<compile_context>
chip_gen: v7x
topology: tpu7x:2x2x1
jax: 0.10.0
libtpu: 0.0.40
codegen_flags: <defaults>
</compile_context>

<pallas_src>
import functools
import math

import jax
import jax.numpy as jnp
from jax import lax
from jax.experimental import pallas as pl
from jax.experimental.pallas import tpu as pltpu


# ----------------------------------------------------------------------------
# Pallas matmul kernel (the hot path: every conv and every linear goes here)
# ----------------------------------------------------------------------------
def _round_up(x, m):
    return (x + m - 1) // m * m


def _pick_tile(d, max_tile=512):
    """Largest MXU-friendly tile that divides d, else a padded 128-multiple."""
    for c in (512, 384, 256, 128):
        if c <= max_tile and d % c == 0:
            return c
    return min(_round_up(d, 128), max_tile)


def _matmul_kernel(x_ref, w_ref, b_ref, o_ref, *, act):
    """bf16 x bf16 -> f32, accumulated directly in the resident output block."""
    k = pl.program_id(2)

    @pl.when(k == 0)
    def _():
        o_ref[...] = jnp.zeros_like(o_ref)

    o_ref[...] += jnp.dot(x_ref[...], w_ref[...],
                          preferred_element_type=jnp.float32)

    @pl.when(k == pl.num_programs(2) - 1)
    def _():
        y = o_ref[...] + b_ref[...]
        if act == "relu":
            y = jnp.maximum(y, 0.0)
        elif act == "sigmoid":
            y = jax.nn.sigmoid(y)
        o_ref[...] = y


def pallas_matmul(x, w, b=None, act=None, tm=None, tn=None, tk=None):
    """(M, K) @ (K, N) + bias, fused activation.  Operands cast to bf16,
    accumulation in f32 on the MXU."""
    M, K = x.shape
    K2, N = w.shape
    assert K == K2

    if tm is None:
        tm = min(_round_up(M, 16), 128)   # bf16 sublane packing -> multiple of 16
    if tk is None:
        tk = _pick_tile(K)
    if tn is None:
        tn = _pick_tile(N)

    Mp, Kp, Np = _round_up(M, tm), _round_up(K, tk), _round_up(N, tn)

    xp = x.astype(jnp.bfloat16)
    if (Mp, Kp) != (M, K):
        xp = jnp.pad(xp, ((0, Mp - M), (0, Kp - K)))
    wp = w.astype(jnp.bfloat16)               # no-op for pre-prepared weights
    if (Kp, Np) != (K, N):
        wp = jnp.pad(wp, ((0, Kp - K), (0, Np - N)))
    if b is None:
        bp = jnp.zeros((1, Np), jnp.float32)
    else:
        bp = b.astype(jnp.float32).reshape(1, N)
        if Np != N:
            bp = jnp.pad(bp, ((0, 0), (0, Np - N)))

    out = pl.pallas_call(
        functools.partial(_matmul_kernel, act=act),
        out_shape=jax.ShapeDtypeStruct((Mp, Np), jnp.float32),
        grid_spec=pltpu.PrefetchScalarGridSpec(
            num_scalar_prefetch=0,
            grid=(Mp // tm, Np // tn, Kp // tk),
            in_specs=[
                pl.BlockSpec((tm, tk), lambda i, j, k: (i, k)),
                pl.BlockSpec((tk, tn), lambda i, j, k: (k, j)),
                pl.BlockSpec((1, tn), lambda i, j, k: (0, j)),
            ],
            out_specs=pl.BlockSpec((tm, tn), lambda i, j, k: (i, j)),
        ),
        compiler_params=pltpu.CompilerParams(
            dimension_semantics=("parallel", "parallel", "arbitrary")),
    )(xp, wp, bp)

    if (Mp, Np) != (M, N):
        out = out[:M, :N]
    return out


# ----------------------------------------------------------------------------
# Conv / pooling / batchnorm helpers (NHWC, im2col + Pallas matmul)
# ----------------------------------------------------------------------------
def _im2col_nhwc(x, kh, kw, stride, padding):
    B, H, W, C = x.shape
    xp = jnp.pad(x, ((0, 0), (padding, padding), (padding, padding), (0, 0)))
    OH = (H + 2 * padding - kh) // stride + 1
    OW = (W + 2 * padding - kw) // stride + 1
    cols = []
    for i in range(kh):
        for j in range(kw):
            cols.append(xp[:,
                           i: i + stride * (OH - 1) + 1: stride,
                           j: j + stride * (OW - 1) + 1: stride, :])
    col = cols[0] if len(cols) == 1 else jnp.concatenate(cols, axis=-1)
    # ordering (kh, kw, C) matches the prepared weight layout (KH*KW*Cin, Cout)
    return col.reshape(B * OH * OW, kh * kw * C), OH, OW


def conv2d(x, p, kh, kw, stride=1, padding=0, act=None):
    """x: NHWC, p['w']: prepared (KH*KW*Cin, Cout) bf16, p['b']: (Cout,) f32."""
    B, H, W, C = x.shape
    if kh == 1 and kw == 1 and stride == 1 and padding == 0:
        x2, OH, OW = x.reshape(B * H * W, C), H, W
    else:
        x2, OH, OW = _im2col_nhwc(x, kh, kw, stride, padding)
    y = pallas_matmul(x2, p["w"], p["b"], act=act)
    return y.reshape(B, OH, OW, p["w"].shape[1])


def maxpool2d(x, k, stride, padding=0):
    return lax.reduce_window(
        x, -jnp.inf, lax.max,
        (1, k, k, 1), (1, stride, stride, 1),
        ((0, 0), (padding, padding), (padding, padding), (0, 0)))


def batchnorm(x, p):
    # p['scale'] / p['shift'] precomputed from (gamma, beta, mean, var, eps)
    return x * p["scale"] + p["shift"]


def adaptive_avg_pool(x, out_h, out_w):
    B, H, W, C = x.shape
    rows = []
    for i in range(out_h):
        hs, he = (i * H) // out_h, -(-((i + 1) * H) // out_h)
        row = []
        for j in range(out_w):
            ws, we = (j * W) // out_w, -(-((j + 1) * W) // out_w)
            row.append(jnp.mean(x[:, hs:he, ws:we, :], axis=(1, 2)))
        rows.append(jnp.stack(row, axis=1))     # (B, out_w, C)
    return jnp.stack(rows, axis=1)              # (B, out_h, out_w, C)


# ----------------------------------------------------------------------------
# CBAM / InceptionA blocks
# ----------------------------------------------------------------------------
def channel_attention(x, w1, w2):
    # Tiny MLP (C<=384, hidden<=24): plain JAX (VPU) per the perf review —
    # padding it to 128x128x128 MXU tiles would be >95% wasted work.
    avg = jnp.mean(x, axis=(1, 2))              # (B, C)
    mx = jnp.max(x, axis=(1, 2))                # (B, C)

    def fc(v):
        h = jnp.maximum(v @ w1, 0.0)
        return h @ w2

    att = jax.nn.sigmoid(fc(avg) + fc(mx))      # (B, C)
    return x * att[:, None, None, :]


def spatial_attention(x, w_hwio):
    # 7x7 conv with Cin=2, Cout=1: negligible FLOPs, computed with plain JAX.
    avg = jnp.mean(x, axis=-1, keepdims=True)
    mx = jnp.max(x, axis=-1, keepdims=True)
    cat = jnp.concatenate([avg, mx], axis=-1)   # (B, H, W, 2)
    att = lax.conv_general_dilated(
        cat, w_hwio, window_strides=(1, 1), padding=((3, 3), (3, 3)),
        dimension_numbers=("NHWC", "HWIO", "NHWC"))
    return x * jax.nn.sigmoid(att)


def cbam(x, p):
    x = channel_attention(x, p["ca_w1"], p["ca_w2"])
    x = spatial_attention(x, p["sa_w"])
    return x


def inception_a(x, p):
    # BatchNorms are folded into the preceding 1x1/3x3 convs at prepare time;
    # the module-level ReLU that follows InceptionA is fused into each
    # branch-final conv epilogue (ReLU(concat) == concat(ReLU per branch)).
    b1 = conv2d(x, p["b1c1"], 1, 1, act="relu")
    b1 = conv2d(b1, p["b1c2"], 3, 3, padding=1, act="relu")
    b1 = conv2d(b1, p["b1c3"], 3, 3, padding=1, act="relu")

    b2 = conv2d(x, p["b2c1"], 1, 1, act="relu")
    b2 = conv2d(b2, p["b2c2"], 3, 3, padding=1, act="relu")

    b3 = maxpool2d(x, 3, 1, 1)
    b3 = conv2d(b3, p["b3c1"], 1, 1, act="relu")

    b4 = conv2d(x, p["b4c1"], 1, 1, act="relu")
    return jnp.concatenate([b1, b2, b3, b4], axis=-1)


# ----------------------------------------------------------------------------
# Parameter init (deterministic, synthetic, PyTorch layout)
# ----------------------------------------------------------------------------
def init_params(key, num_classes=10):
    keys = iter(jax.random.split(key, 256))

    def nk():
        return next(keys)

    def conv_p(cout, cin, k):
        fan_in = cin * k * k
        return {"w": jax.random.normal(nk(), (cout, cin, k, k), jnp.float32)
                     / math.sqrt(fan_in),
                "b": jax.random.normal(nk(), (cout,), jnp.float32) * 0.01}

    def lin_w(out_f, in_f):
        return jax.random.normal(nk(), (out_f, in_f), jnp.float32) / math.sqrt(in_f)

    def lin_p(out_f, in_f):
        return {"w": lin_w(out_f, in_f),
                "b": jax.random.normal(nk(), (out_f,), jnp.float32) * 0.01}

    def bn_p(c):
        return {"gamma": jnp.ones((c,), jnp.float32),
                "beta": jnp.zeros((c,), jnp.float32),
                "mean": jnp.zeros((c,), jnp.float32),
                "var": jnp.ones((c,), jnp.float32)}

    def cbam_p(c, reduction=16):
        return {"ca_fc1": lin_w(c // reduction, c),
                "ca_fc2": lin_w(c, c // reduction),
                "sa_conv": jax.random.normal(nk(), (1, 2, 7, 7), jnp.float32)
                           / math.sqrt(2 * 49)}

    inc = {
        "b1c1": conv_p(48, 96, 1), "b1bn1": bn_p(48),
        "b1c2": conv_p(48, 48, 3), "b1bn2": bn_p(48),
        "b1c3": conv_p(48, 48, 3),
        "b2c1": conv_p(48, 96, 1), "b2bn1": bn_p(48),
        "b2c2": conv_p(80, 48, 3),
        "b3c1": conv_p(80, 96, 1),
        "b4c1": conv_p(48, 96, 1),
    }

    return {
        "conv0": conv_p(96, 3, 11),
        "cbam1": cbam_p(96),
        "bn1": bn_p(96),
        "inc": inc,
        "cbam2": cbam_p(256),
        "bn2": bn_p(256),
        "conv3": conv_p(384, 256, 3),
        "cbam3": cbam_p(384),
        "conv4": conv_p(384, 384, 3),
        "cbam4": cbam_p(384),
        "conv5": conv_p(256, 384, 3),
        "cbam5": cbam_p(256),
        "bn3": bn_p(256),
        "fc1": lin_p(4096, 256 * 6 * 6),
        "fc2": lin_p(4096, 4096),
        "fc3": lin_p(num_classes, 4096),
    }


# ----------------------------------------------------------------------------
# One-time weight preparation (hoisted out of the forward pass)
# ----------------------------------------------------------------------------
def prepare_params(raw, eps=1e-5):
    def prep_conv(cp):
        w = cp["w"]                                   # (Cout, Cin, KH, KW)
        cout, cin, kh, kw = w.shape
        w2 = jnp.transpose(w, (2, 3, 1, 0)).reshape(kh * kw * cin, cout)
        return {"w": w2.astype(jnp.bfloat16), "b": cp["b"].astype(jnp.float32)}

    def prep_conv_bn(cp, bnp):                        # fold conv -> BN
        scale = bnp["gamma"] / jnp.sqrt(bnp["var"] + eps)
        w = cp["w"] * scale[:, None, None, None]
        b = (cp["b"] - bnp["mean"]) * scale + bnp["beta"]
        return prep_conv({"w": w, "b": b})

    def prep_bn(bnp):
        scale = bnp["gamma"] / jnp.sqrt(bnp["var"] + eps)
        return {"scale": scale, "shift": bnp["beta"] - bnp["mean"] * scale}

    def prep_cbam(cp):
        return {"ca_w1": jnp.transpose(cp["ca_fc1"]),          # (C, C//16)
                "ca_w2": jnp.transpose(cp["ca_fc2"]),          # (C//16, C)
                "sa_w": jnp.transpose(cp["sa_conv"], (2, 3, 1, 0))}  # HWIO

    def prep_linear(lp):
        return {"w": jnp.transpose(lp["w"]).astype(jnp.bfloat16),
                "b": lp["b"].astype(jnp.float32)}

    inc = raw["inc"]
    prep_inc = {
        "b1c1": prep_conv_bn(inc["b1c1"], inc["b1bn1"]),
        "b1c2": prep_conv_bn(inc["b1c2"], inc["b1bn2"]),
        "b1c3": prep_conv(inc["b1c3"]),
        "b2c1": prep_conv_bn(inc["b2c1"], inc["b2bn1"]),
        "b2c2": prep_conv(inc["b2c2"]),
        "b3c1": prep_conv(inc["b3c1"]),
        "b4c1": prep_conv(inc["b4c1"]),
    }

    # fc1: permute its input features from PyTorch's NCHW flatten order
    # (c*36 + h*6 + w) to our NHWC flatten order so the pooled tensor can be
    # flattened with no runtime transpose.
    fc1_w = raw["fc1"]["w"].reshape(-1, 256, 6, 6)
    fc1_w = jnp.transpose(fc1_w, (0, 2, 3, 1)).reshape(-1, 6 * 6 * 256)
    fc1_w = jnp.transpose(fc1_w).astype(jnp.bfloat16)          # (9216, 4096)

    return {
        "conv0": prep_conv(raw["conv0"]),
        "cbam1": prep_cbam(raw["cbam1"]),
        "bn1": prep_bn(raw["bn1"]),
        "inc": prep_inc,
        "cbam2": prep_cbam(raw["cbam2"]),
        "bn2": prep_bn(raw["bn2"]),
        "conv3": prep_conv(raw["conv3"]),
        "cbam3": prep_cbam(raw["cbam3"]),
        "conv4": prep_conv(raw["conv4"]),
        "cbam4": prep_cbam(raw["cbam4"]),
        "conv5": prep_conv(raw["conv5"]),
        "cbam5": prep_cbam(raw["cbam5"]),
        "bn3": prep_bn(raw["bn3"]),
        "fc1": {"w": fc1_w, "b": raw["fc1"]["b"].astype(jnp.float32)},
        "fc2": prep_linear(raw["fc2"]),
        "fc3": prep_linear(raw["fc3"]),
    }


# ----------------------------------------------------------------------------
# Full forward pass (input NCHW to match PyTorch; NHWC internally)
# ----------------------------------------------------------------------------
def alexnet_cbam3_forward(p, x_nchw):
    x = jnp.transpose(x_nchw, (0, 2, 3, 1))                       # -> NHWC
    # features
    x = conv2d(x, p["conv0"], 11, 11, stride=4, padding=2, act="relu")
    x = cbam(x, p["cbam1"])
    x = maxpool2d(x, 3, 2)
    x = batchnorm(x, p["bn1"])
    x = inception_a(x, p["inc"])        # post-Inception ReLU fused in branches
    x = cbam(x, p["cbam2"])
    x = maxpool2d(x, 3, 2)
    x = batchnorm(x, p["bn2"])
    x = conv2d(x, p["conv3"], 3, 3, padding=1, act="relu")
    x = cbam(x, p["cbam3"])
    x = conv2d(x, p["conv4"], 3, 3, padding=1, act="relu")
    x = cbam(x, p["cbam4"])
    x = conv2d(x, p["conv5"], 3, 3, padding=1, act="relu")
    x = cbam(x, p["cbam5"])
    x = maxpool2d(x, 3, 2)
    x = batchnorm(x, p["bn3"])
    # avgpool + classifier
    x = adaptive_avg_pool(x, 6, 6)                                # (B,6,6,256)
    x = x.reshape(x.shape[0], 6 * 6 * 256)   # fc1 weight permuted to match
    # Dropout layers are identity at inference time.
    x = pallas_matmul(x, p["fc1"]["w"], p["fc1"]["b"], act="relu")
    x = pallas_matmul(x, p["fc2"]["w"], p["fc2"]["b"], act="relu")
    x = pallas_matmul(x, p["fc3"]["w"], p["fc3"]["b"])
    return x


if __name__ == "__main__":
    key = jax.random.PRNGKey(0)
    pkey, xkey = jax.random.split(key)
    num_classes = 10  # module default is 1000; kept small for the synthetic run
    raw_params = init_params(pkey, num_classes=num_classes)
    params = prepare_params(raw_params)        # one-time weight prep (hoisted)
    # 63x63 is the smallest input that survives the conv/pool chain (NCHW).
    x = jax.random.normal(xkey, (2, 3, 63, 63), jnp.float32)
    fwd = jax.jit(alexnet_cbam3_forward)
    out = fwd(params, x)
    jax.block_until_ready(out)
    assert out.shape == (2, num_classes), out.shape
    assert bool(jnp.all(jnp.isfinite(out)))
    print("KERNEL_OK")
</pallas_src>

<mosaic_0001>
module attributes {stable_mosaic.version = 11 : i64} {
  func.func @_matmul_kernel(%arg0: i32, %arg1: i32, %arg2: i32, %arg3: memref<128x384xbf16, #tpu.memory_space<vmem>>, %arg4: memref<384x128xbf16, #tpu.memory_space<vmem>>, %arg5: memref<1x128xf32, #tpu.memory_space<vmem>>, %arg6: memref<128x128xf32, #tpu.memory_space<vmem>>) attributes {dimension_semantics = [#tpu.dimension_semantics<parallel>, #tpu.dimension_semantics<parallel>, #tpu.dimension_semantics<arbitrary>], iteration_bounds = array<i64: 4, 1, 1>, scalar_prefetch = 0 : i64, scratch_operands = 0 : i64, tpu.core_type = #tpu.core_type<tc>, window_params = [{transform_indices = @transform_0, window_bounds = array<i64: 128, 384>}, {transform_indices = @transform_1, window_bounds = array<i64: 384, 128>}, {transform_indices = @transform_2, window_bounds = array<i64: 1, 128>}, {transform_indices = @transform_3, window_bounds = array<i64: 128, 128>}]} {
    %c0_i32 = arith.constant 0 : i32
    %0 = arith.cmpi eq, %arg2, %c0_i32 : i32
    %1 = arith.extui %0 : i1 to i32
    %c0_i32_0 = arith.constant 0 : i32
    %2 = arith.cmpi ne, %1, %c0_i32_0 : i32
    scf.if %2 {
      %cst_10 = arith.constant 0.000000e+00 : f32
      %12 = vector.broadcast %cst_10 : f32 to vector<128x128xf32>
      %c0_11 = arith.constant 0 : index
      %c0_12 = arith.constant 0 : index
      %13 = vector.load %arg6[%c0_11, %c0_12] : memref<128x128xf32, #tpu.memory_space<vmem>>, vector<128x128xf32>
      tpu.vector_store %arg6[%c0_11, %c0_12], %12 {strides = array<i32>} : memref<128x128xf32, #tpu.memory_space<vmem>>, vector<128x128xf32>,
    } else {
    }
    %c0 = arith.constant 0 : index
    %c0_1 = arith.constant 0 : index
    %3 = vector.load %arg6[%c0, %c0_1] : memref<128x128xf32, #tpu.memory_space<vmem>>, vector<128x128xf32>
    %c0_2 = arith.constant 0 : index
    %c0_3 = arith.constant 0 : index
    %4 = vector.load %arg3[%c0_2, %c0_3] : memref<128x384xbf16, #tpu.memory_space<vmem>>, vector<128x384xbf16>
    %c0_4 = arith.constant 0 : index
    %c0_5 = arith.constant 0 : index
    %5 = vector.load %arg4[%c0_4, %c0_5] : memref<384x128xbf16, #tpu.memory_space<vmem>>, vector<384x128xbf16>
    %cst = arith.constant dense<0.000000e+00> : vector<128x128xf32>
    %6 = tpu.matmul %4, %5, %cst {dimension_numbers = #tpu.dot_dimension_numbers<[1], [0], [0], [1], [0, 0, 1, 1], [], []>} : vector<128x384xbf16>, vector<384x128xbf16>, vector<128x128xf32> -> vector<128x128xf32>
    %7 = arith.addf %3, %6 : vector<128x128xf32>
    %c0_6 = arith.constant 0 : index
    %c0_7 = arith.constant 0 : index
    %8 = vector.load %arg6[%c0_6, %c0_7] : memref<128x128xf32, #tpu.memory_space<vmem>>, vector<128x128xf32>
    tpu.vector_store %arg6[%c0_6, %c0_7], %7 {strides = array<i32>} : memref<128x128xf32, #tpu.memory_space<vmem>>, vector<128x128xf32>,
    %c0_i32_8 = arith.constant 0 : i32
    %9 = arith.cmpi eq, %arg2, %c0_i32_8 : i32
    %10 = arith.extui %9 : i1 to i32
    %c0_i32_9 = arith.constant 0 : i32
    %11 = arith.cmpi ne, %10, %c0_i32_9 : i32
    scf.if %11 {
      %c0_10 = arith.constant 0 : index
      %c0_11 = arith.constant 0 : index
      %12 = vector.load %arg6[%c0_10, %c0_11] : memref<128x128xf32, #tpu.memory_space<vmem>>, vector<128x128xf32>
      %c0_12 = arith.constant 0 : index
      %c0_13 = arith.constant 0 : index
      %13 = vector.load %arg5[%c0_12, %c0_13] : memref<1x128xf32, #tpu.memory_space<vmem>>, vector<1x128xf32>
      %14 = vector.broadcast %13 : vector<1x128xf32> to vector<128x128xf32>
      %15 = arith.addf %12, %14 : vector<128x128xf32>
      %cst_14 = arith.constant 0.000000e+00 : f32
      %16 = vector.broadcast %cst_14 : f32 to vector<128x128xf32>
      %17 = arith.maximumf %15, %16 : vector<128x128xf32>
      %c0_15 = arith.constant 0 : index
      %c0_16 = arith.constant 0 : index
      %18 = vector.load %arg6[%c0_15, %c0_16] : memref<128x128xf32, #tpu.memory_space<vmem>>, vector<128x128xf32>
      tpu.vector_store %arg6[%c0_15, %c0_16], %17 {strides = array<i32>} : memref<128x128xf32, #tpu.memory_space<vmem>>, vector<128x128xf32>,
    } else {
    }
    return
  }
  func.func @transform_0(%arg0: i32, %arg1: i32, %arg2: i32) -> (i32, i32) {
    %c0_i32 = arith.constant 0 : i32
    return %arg0, %arg2 : i32, i32
  }
  func.func @transform_1(%arg0: i32, %arg1: i32, %arg2: i32) -> (i32, i32) {
    %c0_i32 = arith.constant 0 : i32
    return %arg2, %arg1 : i32, i32
  }
  func.func @transform_2(%arg0: i32, %arg1: i32, %arg2: i32) -> (i32, i32) {
    %c0_i32 = arith.constant 0 : i32
    %c0_i32_0 = arith.constant 0 : i32
    return %c0_i32, %arg1 : i32, i32
  }
  func.func @transform_3(%arg0: i32, %arg1: i32, %arg2: i32) -> (i32, i32) {
    %c0_i32 = arith.constant 0 : i32
    return %arg0, %arg1 : i32, i32
  }
}

module attributes {stable_mosaic.version = 11 : i64} {
  func.func @_matmul_kernel(%arg0: i32, %arg1: i32, %arg2: i32, %arg3: memref<112x128xbf16, #tpu.memory_space<vmem>>, %arg4: memref<128x128xbf16, #tpu.memory_space<vmem>>, %arg5: memref<1x128xf32, #tpu.memory_space<vmem>>, %arg6: memref<112x128xf32, #tpu.memory_space<vmem>>) attributes {dimension_semantics = [#tpu.dimension_semantics<parallel>, #tpu.dimension_semantics<parallel>, #tpu.dimension_semantics<arbitrary>], iteration_bounds = array<i64: 1, 1, 1>, scalar_prefetch = 0 : i64, scratch_operands = 0 : i64, tpu.core_type = #tpu.core_type<tc>, window_params = [{transform_indices = @transform_0, window_bounds = array<i64: 112, 128>}, {transform_indices = @transform_1, window_bounds = array<i64: 128, 128>}, {transform_indices = @transform_2, window_bounds = array<i64: 1, 128>}, {transform_indices = @transform_3, window_bounds = array<i64: 112, 128>}]} {
    %c0_i32 = arith.constant 0 : i32
    %0 = arith.cmpi eq, %arg2, %c0_i32 : i32
    %1 = arith.extui %0 : i1 to i32
    %c0_i32_0 = arith.constant 0 : i32
    %2 = arith.cmpi ne, %1, %c0_i32_0 : i32
    scf.if %2 {
      %cst_10 = arith.constant 0.000000e+00 : f32
      %12 = vector.broadcast %cst_10 : f32 to vector<112x128xf32>
      %c0_11 = arith.constant 0 : index
      %c0_12 = arith.constant 0 : index
      %13 = vector.load %arg6[%c0_11, %c0_12] : memref<112x128xf32, #tpu.memory_space<vmem>>, vector<112x128xf32>
      tpu.vector_store %arg6[%c0_11, %c0_12], %12 {strides = array<i32>} : memref<112x128xf32, #tpu.memory_space<vmem>>, vector<112x128xf32>,
    } else {
    }
    %c0 = arith.constant 0 : index
    %c0_1 = arith.constant 0 : index
    %3 = vector.load %arg6[%c0, %c0_1] : memref<112x128xf32, #tpu.memory_space<vmem>>, vector<112x128xf32>
    %c0_2 = arith.constant 0 : index
    %c0_3 = arith.constant 0 : index
    %4 = vector.load %arg3[%c0_2, %c0_3] : memref<112x128xbf16, #tpu.memory_space<vmem>>, vector<112x128xbf16>
    %c0_4 = arith.constant 0 : index
    %c0_5 = arith.constant 0 : index
    %5 = vector.load %arg4[%c0_4, %c0_5] : memref<128x128xbf16, #tpu.memory_space<vmem>>, vector<128x128xbf16>
    %cst = arith.constant dense<0.000000e+00> : vector<112x128xf32>
    %6 = tpu.matmul %4, %5, %cst {dimension_numbers = #tpu.dot_dimension_numbers<[1], [0], [0], [1], [0, 0, 1, 1], [], []>} : vector<112x128xbf16>, vector<128x128xbf16>, vector<112x128xf32> -> vector<112x128xf32>
    %7 = arith.addf %3, %6 : vector<112x128xf32>
    %c0_6 = arith.constant 0 : index
    %c0_7 = arith.constant 0 : index
    %8 = vector.load %arg6[%c0_6, %c0_7] : memref<112x128xf32, #tpu.memory_space<vmem>>, vector<112x128xf32>
    tpu.vector_store %arg6[%c0_6, %c0_7], %7 {strides = array<i32>} : memref<112x128xf32, #tpu.memory_space<vmem>>, vector<112x128xf32>,
    %c0_i32_8 = arith.constant 0 : i32
    %9 = arith.cmpi eq, %arg2, %c0_i32_8 : i32
    %10 = arith.extui %9 : i1 to i32
    %c0_i32_9 = arith.constant 0 : i32
    %11 = arith.cmpi ne, %10, %c0_i32_9 : i32
    scf.if %11 {
      %c0_10 = arith.constant 0 : index
      %c0_11 = arith.constant 0 : index
      %12 = vector.load %arg6[%c0_10, %c0_11] : memref<112x128xf32, #tpu.memory_space<vmem>>, vector<112x128xf32>
      %c0_12 = arith.constant 0 : index
      %c0_13 = arith.constant 0 : index
      %13 = vector.load %arg5[%c0_12, %c0_13] : memref<1x128xf32, #tpu.memory_space<vmem>>, vector<1x128xf32>
      %14 = vector.broadcast %13 : vector<1x128xf32> to vector<112x128xf32>
      %15 = arith.addf %12, %14 : vector<112x128xf32>
      %cst_14 = arith.constant 0.000000e+00 : f32
      %16 = vector.broadcast %cst_14 : f32 to vector<112x128xf32>
      %17 = arith.maximumf %15, %16 : vector<112x128xf32>
      %c0_15 = arith.constant 0 : index
      %c0_16 = arith.constant 0 : index
      %18 = vector.load %arg6[%c0_15, %c0_16] : memref<112x128xf32, #tpu.memory_space<vmem>>, vector<112x128xf32>
      tpu.vector_store %arg6[%c0_15, %c0_16], %17 {strides = array<i32>} : memref<112x128xf32, #tpu.memory_space<vmem>>, vector<112x128xf32>,
    } else {
    }
    return
  }
  func.func @transform_0(%arg0: i32, %arg1: i32, %arg2: i32) -> (i32, i32) {
    %c0_i32 = arith.constant 0 : i32
    return %arg0, %arg2 : i32, i32
  }
  func.func @transform_1(%arg0: i32, %arg1: i32, %arg2: i32) -> (i32, i32) {
    %c0_i32 = arith.constant 0 : i32
    return %arg2, %arg1 : i32, i32
  }
  func.func @transform_2(%arg0: i32, %arg1: i32, %arg2: i32) -> (i32, i32) {
    %c0_i32 = arith.constant 0 : i32
    %c0_i32_0 = arith.constant 0 : i32
    return %c0_i32, %arg1 : i32, i32
  }
  func.func @transform_3(%arg0: i32, %arg1: i32, %arg2: i32) -> (i32, i32) {
    %c0_i32 = arith.constant 0 : i32
    return %arg0, %arg1 : i32, i32
  }
}

module attributes {stable_mosaic.version = 11 : i64} {
  func.func @_matmul_kernel(%arg0: i32, %arg1: i32, %arg2: i32, %arg3: memref<112x512xbf16, #tpu.memory_space<vmem>>, %arg4: memref<512x128xbf16, #tpu.memory_space<vmem>>, %arg5: memref<1x128xf32, #tpu.memory_space<vmem>>, %arg6: memref<112x128xf32, #tpu.memory_space<vmem>>) attributes {dimension_semantics = [#tpu.dimension_semantics<parallel>, #tpu.dimension_semantics<parallel>, #tpu.dimension_semantics<arbitrary>], iteration_bounds = array<i64: 1, 1, 1>, scalar_prefetch = 0 : i64, scratch_operands = 0 : i64, tpu.core_type = #tpu.core_type<tc>, window_params = [{transform_indices = @transform_0, window_bounds = array<i64: 112, 512>}, {transform_indices = @transform_1, window_bounds = array<i64: 512, 128>}, {transform_indices = @transform_2, window_bounds = array<i64: 1, 128>}, {transform_indices = @transform_3, window_bounds = array<i64: 112, 128>}]} {
    %c0_i32 = arith.constant 0 : i32
    %0 = arith.cmpi eq, %arg2, %c0_i32 : i32
    %1 = arith.extui %0 : i1 to i32
    %c0_i32_0 = arith.constant 0 : i32
    %2 = arith.cmpi ne, %1, %c0_i32_0 : i32
    scf.if %2 {
      %cst_10 = arith.constant 0.000000e+00 : f32
      %12 = vector.broadcast %cst_10 : f32 to vector<112x128xf32>
      %c0_11 = arith.constant 0 : index
      %c0_12 = arith.constant 0 : index
      %13 = vector.load %arg6[%c0_11, %c0_12] : memref<112x128xf32, #tpu.memory_space<vmem>>, vector<112x128xf32>
      tpu.vector_store %arg6[%c0_11, %c0_12], %12 {strides = array<i32>} : memref<112x128xf32, #tpu.memory_space<vmem>>, vector<112x128xf32>,
    } else {
    }
    %c0 = arith.constant 0 : index
    %c0_1 = arith.constant 0 : index
    %3 = vector.load %arg6[%c0, %c0_1] : memref<112x128xf32, #tpu.memory_space<vmem>>, vector<112x128xf32>
    %c0_2 = arith.constant 0 : index
    %c0_3 = arith.constant 0 : index
    %4 = vector.load %arg3[%c0_2, %c0_3] : memref<112x512xbf16, #tpu.memory_space<vmem>>, vector<112x512xbf16>
    %c0_4 = arith.constant 0 : index
    %c0_5 = arith.constant 0 : index
    %5 = vector.load %arg4[%c0_4, %c0_5] : memref<512x128xbf16, #tpu.memory_space<vmem>>, vector<512x128xbf16>
    %cst = arith.constant dense<0.000000e+00> : vector<112x128xf32>
    %6 = tpu.matmul %4, %5, %cst {dimension_numbers = #tpu.dot_dimension_numbers<[1], [0], [0], [1], [0, 0, 1, 1], [], []>} : vector<112x512xbf16>, vector<512x128xbf16>, vector<112x128xf32> -> vector<112x128xf32>
    %7 = arith.addf %3, %6 : vector<112x128xf32>
    %c0_6 = arith.constant 0 : index
    %c0_7 = arith.constant 0 : index
    %8 = vector.load %arg6[%c0_6, %c0_7] : memref<112x128xf32, #tpu.memory_space<vmem>>, vector<112x128xf32>
    tpu.vector_store %arg6[%c0_6, %c0_7], %7 {strides = array<i32>} : memref<112x128xf32, #tpu.memory_space<vmem>>, vector<112x128xf32>,
    %c0_i32_8 = arith.constant 0 : i32
    %9 = arith.cmpi eq, %arg2, %c0_i32_8 : i32
    %10 = arith.extui %9 : i1 to i32
    %c0_i32_9 = arith.constant 0 : i32
    %11 = arith.cmpi ne, %10, %c0_i32_9 : i32
    scf.if %11 {
      %c0_10 = arith.constant 0 : index
      %c0_11 = arith.constant 0 : index
      %12 = vector.load %arg6[%c0_10, %c0_11] : memref<112x128xf32, #tpu.memory_space<vmem>>, vector<112x128xf32>
      %c0_12 = arith.constant 0 : index
      %c0_13 = arith.constant 0 : index
      %13 = vector.load %arg5[%c0_12, %c0_13] : memref<1x128xf32, #tpu.memory_space<vmem>>, vector<1x128xf32>
      %14 = vector.broadcast %13 : vector<1x128xf32> to vector<112x128xf32>
      %15 = arith.addf %12, %14 : vector<112x128xf32>
      %cst_14 = arith.constant 0.000000e+00 : f32
      %16 = vector.broadcast %cst_14 : f32 to vector<112x128xf32>
      %17 = arith.maximumf %15, %16 : vector<112x128xf32>
      %c0_15 = arith.constant 0 : index
      %c0_16 = arith.constant 0 : index
      %18 = vector.load %arg6[%c0_15, %c0_16] : memref<112x128xf32, #tpu.memory_space<vmem>>, vector<112x128xf32>
      tpu.vector_store %arg6[%c0_15, %c0_16], %17 {strides = array<i32>} : memref<112x128xf32, #tpu.memory_space<vmem>>, vector<112x128xf32>,
    } else {
    }
    return
  }
  func.func @transform_0(%arg0: i32, %arg1: i32, %arg2: i32) -> (i32, i32) {
    %c0_i32 = arith.constant 0 : i32
    return %arg0, %arg2 : i32, i32
  }
  func.func @transform_1(%arg0: i32, %arg1: i32, %arg2: i32) -> (i32, i32) {
    %c0_i32 = arith.constant 0 : i32
    return %arg2, %arg1 : i32, i32
  }
  func.func @transform_2(%arg0: i32, %arg1: i32, %arg2: i32) -> (i32, i32) {
    %c0_i32 = arith.constant 0 : i32
    %c0_i32_0 = arith.constant 0 : i32
    return %c0_i32, %arg1 : i32, i32
  }
  func.func @transform_3(%arg0: i32, %arg1: i32, %arg2: i32) -> (i32, i32) {
    %c0_i32 = arith.constant 0 : i32
    return %arg0, %arg1 : i32, i32
  }
}

module attributes {stable_mosaic.version = 11 : i64} {
  func.func @_matmul_kernel(%arg0: i32, %arg1: i32, %arg2: i32, %arg3: memref<32x384xbf16, #tpu.memory_space<vmem>>, %arg4: memref<384x384xbf16, #tpu.memory_space<vmem>>, %arg5: memref<1x384xf32, #tpu.memory_space<vmem>>, %arg6: memref<32x384xf32, #tpu.memory_space<vmem>>) attributes {dimension_semantics = [#tpu.dimension_semantics<parallel>, #tpu.dimension_semantics<parallel>, #tpu.dimension_semantics<arbitrary>], iteration_bounds = array<i64: 1, 1, 6>, scalar_prefetch = 0 : i64, scratch_operands = 0 : i64, tpu.core_type = #tpu.core_type<tc>, window_params = [{transform_indices = @transform_0, window_bounds = array<i64: 32, 384>}, {transform_indices = @transform_1, window_bounds = array<i64: 384, 384>}, {transform_indices = @transform_2, window_bounds = array<i64: 1, 384>}, {transform_indices = @transform_3, window_bounds = array<i64: 32, 384>}]} {
    %c0_i32 = arith.constant 0 : i32
    %0 = arith.cmpi eq, %arg2, %c0_i32 : i32
    %1 = arith.extui %0 : i1 to i32
    %c0_i32_0 = arith.constant 0 : i32
    %2 = arith.cmpi ne, %1, %c0_i32_0 : i32
    scf.if %2 {
      %cst_9 = arith.constant 0.000000e+00 : f32
      %12 = vector.broadcast %cst_9 : f32 to vector<32x384xf32>
      %c0_10 = arith.constant 0 : index
      %c0_11 = arith.constant 0 : index
      %13 = vector.load %arg6[%c0_10, %c0_11] : memref<32x384xf32, #tpu.memory_space<vmem>>, vector<32x384xf32>
      tpu.vector_store %arg6[%c0_10, %c0_11], %12 {strides = array<i32>} : memref<32x384xf32, #tpu.memory_space<vmem>>, vector<32x384xf32>,
    } else {
    }
    %c0 = arith.constant 0 : index
    %c0_1 = arith.constant 0 : index
    %3 = vector.load %arg6[%c0, %c0_1] : memref<32x384xf32, #tpu.memory_space<vmem>>, vector<32x384xf32>
    %c0_2 = arith.constant 0 : index
    %c0_3 = arith.constant 0 : index
    %4 = vector.load %arg3[%c0_2, %c0_3] : memref<32x384xbf16, #tpu.memory_space<vmem>>, vector<32x384xbf16>
    %c0_4 = arith.constant 0 : index
    %c0_5 = arith.constant 0 : index
    %5 = vector.load %arg4[%c0_4, %c0_5] : memref<384x384xbf16, #tpu.memory_space<vmem>>, vector<384x384xbf16>
    %cst = arith.constant dense<0.000000e+00> : vector<32x384xf32>
    %6 = tpu.matmul %4, %5, %cst {dimension_numbers = #tpu.dot_dimension_numbers<[1], [0], [0], [1], [0, 0, 1, 1], [], []>} : vector<32x384xbf16>, vector<384x384xbf16>, vector<32x384xf32> -> vector<32x384xf32>
    %7 = arith.addf %3, %6 : vector<32x384xf32>
    %c0_6 = arith.constant 0 : index
    %c0_7 = arith.constant 0 : index
    %8 = vector.load %arg6[%c0_6, %c0_7] : memref<32x384xf32, #tpu.memory_space<vmem>>, vector<32x384xf32>
    tpu.vector_store %arg6[%c0_6, %c0_7], %7 {strides = array<i32>} : memref<32x384xf32, #tpu.memory_space<vmem>>, vector<32x384xf32>,
    %c5_i32 = arith.constant 5 : i32
    %9 = arith.cmpi eq, %arg2, %c5_i32 : i32
    %10 = arith.extui %9 : i1 to i32
    %c0_i32_8 = arith.constant 0 : i32
    %11 = arith.cmpi ne, %10, %c0_i32_8 : i32
    scf.if %11 {
      %c0_9 = arith.constant 0 : index
      %c0_10 = arith.constant 0 : index
      %12 = vector.load %arg6[%c0_9, %c0_10] : memref<32x384xf32, #tpu.memory_space<vmem>>, vector<32x384xf32>
      %c0_11 = arith.constant 0 : index
      %c0_12 = arith.constant 0 : index
      %13 = vector.load %arg5[%c0_11, %c0_12] : memref<1x384xf32, #tpu.memory_space<vmem>>, vector<1x384xf32>
      %14 = vector.broadcast %13 : vector<1x384xf32> to vector<32x384xf32>
      %15 = arith.addf %12, %14 : vector<32x384xf32>
      %cst_13 = arith.constant 0.000000e+00 : f32
      %16 = vector.broadcast %cst_13 : f32 to vector<32x384xf32>
      %17 = arith.maximumf %15, %16 : vector<32x384xf32>
      %c0_14 = arith.constant 0 : index
      %c0_15 = arith.constant 0 : index
      %18 = vector.load %arg6[%c0_14, %c0_15] : memref<32x384xf32, #tpu.memory_space<vmem>>, vector<32x384xf32>
      tpu.vector_store %arg6[%c0_14, %c0_15], %17 {strides = array<i32>} : memref<32x384xf32, #tpu.memory_space<vmem>>, vector<32x384xf32>,
    } else {
    }
    return
  }
  func.func @transform_0(%arg0: i32, %arg1: i32, %arg2: i32) -> (i32, i32) {
    %c0_i32 = arith.constant 0 : i32
    return %arg0, %arg2 : i32, i32
  }
  func.func @transform_1(%arg0: i32, %arg1: i32, %arg2: i32) -> (i32, i32) {
    %c0_i32 = arith.constant 0 : i32
    return %arg2, %arg1 : i32, i32
  }
  func.func @transform_2(%arg0: i32, %arg1: i32, %arg2: i32) -> (i32, i32) {
    %c0_i32 = arith.constant 0 : i32
    %c0_i32_0 = arith.constant 0 : i32
    return %c0_i32, %arg1 : i32, i32
  }
  func.func @transform_3(%arg0: i32, %arg1: i32, %arg2: i32) -> (i32, i32) {
    %c0_i32 = arith.constant 0 : i32
    return %arg0, %arg1 : i32, i32
  }
}

module attributes {stable_mosaic.version = 11 : i64} {
  func.func @_matmul_kernel(%arg0: i32, %arg1: i32, %arg2: i32, %arg3: memref<32x384xbf16, #tpu.memory_space<vmem>>, %arg4: memref<384x384xbf16, #tpu.memory_space<vmem>>, %arg5: memref<1x384xf32, #tpu.memory_space<vmem>>, %arg6: memref<32x384xf32, #tpu.memory_space<vmem>>) attributes {dimension_semantics = [#tpu.dimension_semantics<parallel>, #tpu.dimension_semantics<parallel>, #tpu.dimension_semantics<arbitrary>], iteration_bounds = array<i64: 1, 1, 9>, scalar_prefetch = 0 : i64, scratch_operands = 0 : i64, tpu.core_type = #tpu.core_type<tc>, window_params = [{transform_indices = @transform_0, window_bounds = array<i64: 32, 384>}, {transform_indices = @transform_1, window_bounds = array<i64: 384, 384>}, {transform_indices = @transform_2, window_bounds = array<i64: 1, 384>}, {transform_indices = @transform_3, window_bounds = array<i64: 32, 384>}]} {
    %c0_i32 = arith.constant 0 : i32
    %0 = arith.cmpi eq, %arg2, %c0_i32 : i32
    %1 = arith.extui %0 : i1 to i32
    %c0_i32_0 = arith.constant 0 : i32
    %2 = arith.cmpi ne, %1, %c0_i32_0 : i32
    scf.if %2 {
      %cst_9 = arith.constant 0.000000e+00 : f32
      %12 = vector.broadcast %cst_9 : f32 to vector<32x384xf32>
      %c0_10 = arith.constant 0 : index
      %c0_11 = arith.constant 0 : index
      %13 = vector.load %arg6[%c0_10, %c0_11] : memref<32x384xf32, #tpu.memory_space<vmem>>, vector<32x384xf32>
      tpu.vector_store %arg6[%c0_10, %c0_11], %12 {strides = array<i32>} : memref<32x384xf32, #tpu.memory_space<vmem>>, vector<32x384xf32>,
    } else {
    }
    %c0 = arith.constant 0 : index
    %c0_1 = arith.constant 0 : index
    %3 = vector.load %arg6[%c0, %c0_1] : memref<32x384xf32, #tpu.memory_space<vmem>>, vector<32x384xf32>
    %c0_2 = arith.constant 0 : index
    %c0_3 = arith.constant 0 : index
    %4 = vector.load %arg3[%c0_2, %c0_3] : memref<32x384xbf16, #tpu.memory_space<vmem>>, vector<32x384xbf16>
    %c0_4 = arith.constant 0 : index
    %c0_5 = arith.constant 0 : index
    %5 = vector.load %arg4[%c0_4, %c0_5] : memref<384x384xbf16, #tpu.memory_space<vmem>>, vector<384x384xbf16>
    %cst = arith.constant dense<0.000000e+00> : vector<32x384xf32>
    %6 = tpu.matmul %4, %5, %cst {dimension_numbers = #tpu.dot_dimension_numbers<[1], [0], [0], [1], [0, 0, 1, 1], [], []>} : vector<32x384xbf16>, vector<384x384xbf16>, vector<32x384xf32> -> vector<32x384xf32>
    %7 = arith.addf %3, %6 : vector<32x384xf32>
    %c0_6 = arith.constant 0 : index
    %c0_7 = arith.constant 0 : index
    %8 = vector.load %arg6[%c0_6, %c0_7] : memref<32x384xf32, #tpu.memory_space<vmem>>, vector<32x384xf32>
    tpu.vector_store %arg6[%c0_6, %c0_7], %7 {strides = array<i32>} : memref<32x384xf32, #tpu.memory_space<vmem>>, vector<32x384xf32>,
    %c8_i32 = arith.constant 8 : i32
    %9 = arith.cmpi eq, %arg2, %c8_i32 : i32
    %10 = arith.extui %9 : i1 to i32
    %c0_i32_8 = arith.constant 0 : i32
    %11 = arith.cmpi ne, %10, %c0_i32_8 : i32
    scf.if %11 {
      %c0_9 = arith.constant 0 : index
      %c0_10 = arith.constant 0 : index
      %12 = vector.load %arg6[%c0_9, %c0_10] : memref<32x384xf32, #tpu.memory_space<vmem>>, vector<32x384xf32>
      %c0_11 = arith.constant 0 : index
      %c0_12 = arith.constant 0 : index
      %13 = vector.load %arg5[%c0_11, %c0_12] : memref<1x384xf32, #tpu.memory_space<vmem>>, vector<1x384xf32>
      %14 = vector.broadcast %13 : vector<1x384xf32> to vector<32x384xf32>
      %15 = arith.addf %12, %14 : vector<32x384xf32>
      %cst_13 = arith.constant 0.000000e+00 : f32
      %16 = vector.broadcast %cst_13 : f32 to vector<32x384xf32>
      %17 = arith.maximumf %15, %16 : vector<32x384xf32>
      %c0_14 = arith.constant 0 : index
      %c0_15 = arith.constant 0 : index
      %18 = vector.load %arg6[%c0_14, %c0_15] : memref<32x384xf32, #tpu.memory_space<vmem>>, vector<32x384xf32>
      tpu.vector_store %arg6[%c0_14, %c0_15], %17 {strides = array<i32>} : memref<32x384xf32, #tpu.memory_space<vmem>>, vector<32x384xf32>,
    } else {
    }
    return
  }
  func.func @transform_0(%arg0: i32, %arg1: i32, %arg2: i32) -> (i32, i32) {
    %c0_i32 = arith.constant 0 : i32
    return %arg0, %arg2 : i32, i32
  }
  func.func @transform_1(%arg0: i32, %arg1: i32, %arg2: i32) -> (i32, i32) {
    %c0_i32 = arith.constant 0 : i32
    return %arg2, %arg1 : i32, i32
  }
  func.func @transform_2(%arg0: i32, %arg1: i32, %arg2: i32) -> (i32, i32) {
    %c0_i32 = arith.constant 0 : i32
    %c0_i32_0 = arith.constant 0 : i32
    return %c0_i32, %arg1 : i32, i32
  }
  func.func @transform_3(%arg0: i32, %arg1: i32, %arg2: i32) -> (i32, i32) {
    %c0_i32 = arith.constant 0 : i32
    return %arg0, %arg1 : i32, i32
  }
}

module attributes {stable_mosaic.version = 11 : i64} {
  func.func @_matmul_kernel(%arg0: i32, %arg1: i32, %arg2: i32, %arg3: memref<32x384xbf16, #tpu.memory_space<vmem>>, %arg4: memref<384x256xbf16, #tpu.memory_space<vmem>>, %arg5: memref<1x256xf32, #tpu.memory_space<vmem>>, %arg6: memref<32x256xf32, #tpu.memory_space<vmem>>) attributes {dimension_semantics = [#tpu.dimension_semantics<parallel>, #tpu.dimension_semantics<parallel>, #tpu.dimension_semantics<arbitrary>], iteration_bounds = array<i64: 1, 1, 9>, scalar_prefetch = 0 : i64, scratch_operands = 0 : i64, tpu.core_type = #tpu.core_type<tc>, window_params = [{transform_indices = @transform_0, window_bounds = array<i64: 32, 384>}, {transform_indices = @transform_1, window_bounds = array<i64: 384, 256>}, {transform_indices = @transform_2, window_bounds = array<i64: 1, 256>}, {transform_indices = @transform_3, window_bounds = array<i64: 32, 256>}]} {
    %c0_i32 = arith.constant 0 : i32
    %0 = arith.cmpi eq, %arg2, %c0_i32 : i32
    %1 = arith.extui %0 : i1 to i32
    %c0_i32_0 = arith.constant 0 : i32
    %2 = arith.cmpi ne, %1, %c0_i32_0 : i32
    scf.if %2 {
      %cst_9 = arith.constant 0.000000e+00 : f32
      %12 = vector.broadcast %cst_9 : f32 to vector<32x256xf32>
      %c0_10 = arith.constant 0 : index
      %c0_11 = arith.constant 0 : index
      %13 = vector.load %arg6[%c0_10, %c0_11] : memref<32x256xf32, #tpu.memory_space<vmem>>, vector<32x256xf32>
      tpu.vector_store %arg6[%c0_10, %c0_11], %12 {strides = array<i32>} : memref<32x256xf32, #tpu.memory_space<vmem>>, vector<32x256xf32>,
    } else {
    }
    %c0 = arith.constant 0 : index
    %c0_1 = arith.constant 0 : index
    %3 = vector.load %arg6[%c0, %c0_1] : memref<32x256xf32, #tpu.memory_space<vmem>>, vector<32x256xf32>
    %c0_2 = arith.constant 0 : index
    %c0_3 = arith.constant 0 : index
    %4 = vector.load %arg3[%c0_2, %c0_3] : memref<32x384xbf16, #tpu.memory_space<vmem>>, vector<32x384xbf16>
    %c0_4 = arith.constant 0 : index
    %c0_5 = arith.constant 0 : index
    %5 = vector.load %arg4[%c0_4, %c0_5] : memref<384x256xbf16, #tpu.memory_space<vmem>>, vector<384x256xbf16>
    %cst = arith.constant dense<0.000000e+00> : vector<32x256xf32>
    %6 = tpu.matmul %4, %5, %cst {dimension_numbers = #tpu.dot_dimension_numbers<[1], [0], [0], [1], [0, 0, 1, 1], [], []>} : vector<32x384xbf16>, vector<384x256xbf16>, vector<32x256xf32> -> vector<32x256xf32>
    %7 = arith.addf %3, %6 : vector<32x256xf32>
    %c0_6 = arith.constant 0 : index
    %c0_7 = arith.constant 0 : index
    %8 = vector.load %arg6[%c0_6, %c0_7] : memref<32x256xf32, #tpu.memory_space<vmem>>, vector<32x256xf32>
    tpu.vector_store %arg6[%c0_6, %c0_7], %7 {strides = array<i32>} : memref<32x256xf32, #tpu.memory_space<vmem>>, vector<32x256xf32>,
    %c8_i32 = arith.constant 8 : i32
    %9 = arith.cmpi eq, %arg2, %c8_i32 : i32
    %10 = arith.extui %9 : i1 to i32
    %c0_i32_8 = arith.constant 0 : i32
    %11 = arith.cmpi ne, %10, %c0_i32_8 : i32
    scf.if %11 {
      %c0_9 = arith.constant 0 : index
      %c0_10 = arith.constant 0 : index
      %12 = vector.load %arg6[%c0_9, %c0_10] : memref<32x256xf32, #tpu.memory_space<vmem>>, vector<32x256xf32>
      %c0_11 = arith.constant 0 : index
      %c0_12 = arith.constant 0 : index
      %13 = vector.load %arg5[%c0_11, %c0_12] : memref<1x256xf32, #tpu.memory_space<vmem>>, vector<1x256xf32>
      %14 = vector.broadcast %13 : vector<1x256xf32> to vector<32x256xf32>
      %15 = arith.addf %12, %14 : vector<32x256xf32>
      %cst_13 = arith.constant 0.000000e+00 : f32
      %16 = vector.broadcast %cst_13 : f32 to vector<32x256xf32>
      %17 = arith.maximumf %15, %16 : vector<32x256xf32>
      %c0_14 = arith.constant 0 : index
      %c0_15 = arith.constant 0 : index
      %18 = vector.load %arg6[%c0_14, %c0_15] : memref<32x256xf32, #tpu.memory_space<vmem>>, vector<32x256xf32>
      tpu.vector_store %arg6[%c0_14, %c0_15], %17 {strides = array<i32>} : memref<32x256xf32, #tpu.memory_space<vmem>>, vector<32x256xf32>,
    } else {
    }
    return
  }
  func.func @transform_0(%arg0: i32, %arg1: i32, %arg2: i32) -> (i32, i32) {
    %c0_i32 = arith.constant 0 : i32
    return %arg0, %arg2 : i32, i32
  }
  func.func @transform_1(%arg0: i32, %arg1: i32, %arg2: i32) -> (i32, i32) {
    %c0_i32 = arith.constant 0 : i32
    return %arg2, %arg1 : i32, i32
  }
  func.func @transform_2(%arg0: i32, %arg1: i32, %arg2: i32) -> (i32, i32) {
    %c0_i32 = arith.constant 0 : i32
    %c0_i32_0 = arith.constant 0 : i32
    return %c0_i32, %arg1 : i32, i32
  }
  func.func @transform_3(%arg0: i32, %arg1: i32, %arg2: i32) -> (i32, i32) {
    %c0_i32 = arith.constant 0 : i32
    return %arg0, %arg1 : i32, i32
  }
}

module attributes {stable_mosaic.version = 11 : i64} {
  func.func @_matmul_kernel(%arg0: i32, %arg1: i32, %arg2: i32, %arg3: memref<16x512xbf16, #tpu.memory_space<vmem>>, %arg4: memref<512x512xbf16, #tpu.memory_space<vmem>>, %arg5: memref<1x512xf32, #tpu.memory_space<vmem>>, %arg6: memref<16x512xf32, #tpu.memory_space<vmem>>) attributes {dimension_semantics = [#tpu.dimension_semantics<parallel>, #tpu.dimension_semantics<parallel>, #tpu.dimension_semantics<arbitrary>], iteration_bounds = array<i64: 1, 8, 18>, scalar_prefetch = 0 : i64, scratch_operands = 0 : i64, tpu.core_type = #tpu.core_type<tc>, window_params = [{transform_indices = @transform_0, window_bounds = array<i64: 16, 512>}, {transform_indices = @transform_1, window_bounds = array<i64: 512, 512>}, {transform_indices = @transform_2, window_bounds = array<i64: 1, 512>}, {transform_indices = @transform_3, window_bounds = array<i64: 16, 512>}]} {
    %c0_i32 = arith.constant 0 : i32
    %0 = arith.cmpi eq, %arg2, %c0_i32 : i32
    %1 = arith.extui %0 : i1 to i32
    %c0_i32_0 = arith.constant 0 : i32
    %2 = arith.cmpi ne, %1, %c0_i32_0 : i32
    scf.if %2 {
      %cst_9 = arith.constant 0.000000e+00 : f32
      %12 = vector.broadcast %cst_9 : f32 to vector<16x512xf32>
      %c0_10 = arith.constant 0 : index
      %c0_11 = arith.constant 0 : index
      %13 = vector.load %arg6[%c0_10, %c0_11] : memref<16x512xf32, #tpu.memory_space<vmem>>, vector<16x512xf32>
      tpu.vector_store %arg6[%c0_10, %c0_11], %12 {strides = array<i32>} : memref<16x512xf32, #tpu.memory_space<vmem>>, vector<16x512xf32>,
    } else {
    }
    %c0 = arith.constant 0 : index
    %c0_1 = arith.constant 0 : index
    %3 = vector.load %arg6[%c0, %c0_1] : memref<16x512xf32, #tpu.memory_space<vmem>>, vector<16x512xf32>
    %c0_2 = arith.constant 0 : index
    %c0_3 = arith.constant 0 : index
    %4 = vector.load %arg3[%c0_2, %c0_3] : memref<16x512xbf16, #tpu.memory_space<vmem>>, vector<16x512xbf16>
    %c0_4 = arith.constant 0 : index
    %c0_5 = arith.constant 0 : index
    %5 = vector.load %arg4[%c0_4, %c0_5] : memref<512x512xbf16, #tpu.memory_space<vmem>>, vector<512x512xbf16>
    %cst = arith.constant dense<0.000000e+00> : vector<16x512xf32>
    %6 = tpu.matmul %4, %5, %cst {dimension_numbers = #tpu.dot_dimension_numbers<[1], [0], [0], [1], [0, 0, 1, 1], [], []>} : vector<16x512xbf16>, vector<512x512xbf16>, vector<16x512xf32> -> vector<16x512xf32>
    %7 = arith.addf %3, %6 : vector<16x512xf32>
    %c0_6 = arith.constant 0 : index
    %c0_7 = arith.constant 0 : index
    %8 = vector.load %arg6[%c0_6, %c0_7] : memref<16x512xf32, #tpu.memory_space<vmem>>, vector<16x512xf32>
    tpu.vector_store %arg6[%c0_6, %c0_7], %7 {strides = array<i32>} : memref<16x512xf32, #tpu.memory_space<vmem>>, vector<16x512xf32>,
    %c17_i32 = arith.constant 17 : i32
    %9 = arith.cmpi eq, %arg2, %c17_i32 : i32
    %10 = arith.extui %9 : i1 to i32
    %c0_i32_8 = arith.constant 0 : i32
    %11 = arith.cmpi ne, %10, %c0_i32_8 : i32
    scf.if %11 {
      %c0_9 = arith.constant 0 : index
      %c0_10 = arith.constant 0 : index
      %12 = vector.load %arg6[%c0_9, %c0_10] : memref<16x512xf32, #tpu.memory_space<vmem>>, vector<16x512xf32>
      %c0_11 = arith.constant 0 : index
      %c0_12 = arith.constant 0 : index
      %13 = vector.load %arg5[%c0_11, %c0_12] : memref<1x512xf32, #tpu.memory_space<vmem>>, vector<1x512xf32>
      %14 = vector.broadcast %13 : vector<1x512xf32> to vector<16x512xf32>
      %15 = arith.addf %12, %14 : vector<16x512xf32>
      %cst_13 = arith.constant 0.000000e+00 : f32
      %16 = vector.broadcast %cst_13 : f32 to vector<16x512xf32>
      %17 = arith.maximumf %15, %16 : vector<16x512xf32>
      %c0_14 = arith.constant 0 : index
      %c0_15 = arith.constant 0 : index
      %18 = vector.load %arg6[%c0_14, %c0_15] : memref<16x512xf32, #tpu.memory_space<vmem>>, vector<16x512xf32>
      tpu.vector_store %arg6[%c0_14, %c0_15], %17 {strides = array<i32>} : memref<16x512xf32, #tpu.memory_space<vmem>>, vector<16x512xf32>,
    } else {
    }
    return
  }
  func.func @transform_0(%arg0: i32, %arg1: i32, %arg2: i32) -> (i32, i32) {
    %c0_i32 = arith.constant 0 : i32
    return %arg0, %arg2 : i32, i32
  }
  func.func @transform_1(%arg0: i32, %arg1: i32, %arg2: i32) -> (i32, i32) {
    %c0_i32 = arith.constant 0 : i32
    return %arg2, %arg1 : i32, i32
  }
  func.func @transform_2(%arg0: i32, %arg1: i32, %arg2: i32) -> (i32, i32) {
    %c0_i32 = arith.constant 0 : i32
    %c0_i32_0 = arith.constant 0 : i32
    return %c0_i32, %arg1 : i32, i32
  }
  func.func @transform_3(%arg0: i32, %arg1: i32, %arg2: i32) -> (i32, i32) {
    %c0_i32 = arith.constant 0 : i32
    return %arg0, %arg1 : i32, i32
  }
}

module attributes {stable_mosaic.version = 11 : i64} {
  func.func @_matmul_kernel(%arg0: i32, %arg1: i32, %arg2: i32, %arg3: memref<16x512xbf16, #tpu.memory_space<vmem>>, %arg4: memref<512x512xbf16, #tpu.memory_space<vmem>>, %arg5: memref<1x512xf32, #tpu.memory_space<vmem>>, %arg6: memref<16x512xf32, #tpu.memory_space<vmem>>) attributes {dimension_semantics = [#tpu.dimension_semantics<parallel>, #tpu.dimension_semantics<parallel>, #tpu.dimension_semantics<arbitrary>], iteration_bounds = array<i64: 1, 8, 8>, scalar_prefetch = 0 : i64, scratch_operands = 0 : i64, tpu.core_type = #tpu.core_type<tc>, window_params = [{transform_indices = @transform_0, window_bounds = array<i64: 16, 512>}, {transform_indices = @transform_1, window_bounds = array<i64: 512, 512>}, {transform_indices = @transform_2, window_bounds = array<i64: 1, 512>}, {transform_indices = @transform_3, window_bounds = array<i64: 16, 512>}]} {
    %c0_i32 = arith.constant 0 : i32
    %0 = arith.cmpi eq, %arg2, %c0_i32 : i32
    %1 = arith.extui %0 : i1 to i32
    %c0_i32_0 = arith.constant 0 : i32
    %2 = arith.cmpi ne, %1, %c0_i32_0 : i32
    scf.if %2 {
      %cst_9 = arith.constant 0.000000e+00 : f32
      %12 = vector.broadcast %cst_9 : f32 to vector<16x512xf32>
      %c0_10 = arith.constant 0 : index
      %c0_11 = arith.constant 0 : index
      %13 = vector.load %arg6[%c0_10, %c0_11] : memref<16x512xf32, #tpu.memory_space<vmem>>, vector<16x512xf32>
      tpu.vector_store %arg6[%c0_10, %c0_11], %12 {strides = array<i32>} : memref<16x512xf32, #tpu.memory_space<vmem>>, vector<16x512xf32>,
    } else {
    }
    %c0 = arith.constant 0 : index
    %c0_1 = arith.constant 0 : index
    %3 = vector.load %arg6[%c0, %c0_1] : memref<16x512xf32, #tpu.memory_space<vmem>>, vector<16x512xf32>
    %c0_2 = arith.constant 0 : index
    %c0_3 = arith.constant 0 : index
    %4 = vector.load %arg3[%c0_2, %c0_3] : memref<16x512xbf16, #tpu.memory_space<vmem>>, vector<16x512xbf16>
    %c0_4 = arith.constant 0 : index
    %c0_5 = arith.constant 0 : index
    %5 = vector.load %arg4[%c0_4, %c0_5] : memref<512x512xbf16, #tpu.memory_space<vmem>>, vector<512x512xbf16>
    %cst = arith.constant dense<0.000000e+00> : vector<16x512xf32>
    %6 = tpu.matmul %4, %5, %cst {dimension_numbers = #tpu.dot_dimension_numbers<[1], [0], [0], [1], [0, 0, 1, 1], [], []>} : vector<16x512xbf16>, vector<512x512xbf16>, vector<16x512xf32> -> vector<16x512xf32>
    %7 = arith.addf %3, %6 : vector<16x512xf32>
    %c0_6 = arith.constant 0 : index
    %c0_7 = arith.constant 0 : index
    %8 = vector.load %arg6[%c0_6, %c0_7] : memref<16x512xf32, #tpu.memory_space<vmem>>, vector<16x512xf32>
    tpu.vector_store %arg6[%c0_6, %c0_7], %7 {strides = array<i32>} : memref<16x512xf32, #tpu.memory_space<vmem>>, vector<16x512xf32>,
    %c7_i32 = arith.constant 7 : i32
    %9 = arith.cmpi eq, %arg2, %c7_i32 : i32
    %10 = arith.extui %9 : i1 to i32
    %c0_i32_8 = arith.constant 0 : i32
    %11 = arith.cmpi ne, %10, %c0_i32_8 : i32
    scf.if %11 {
      %c0_9 = arith.constant 0 : index
      %c0_10 = arith.constant 0 : index
      %12 = vector.load %arg6[%c0_9, %c0_10] : memref<16x512xf32, #tpu.memory_space<vmem>>, vector<16x512xf32>
      %c0_11 = arith.constant 0 : index
      %c0_12 = arith.constant 0 : index
      %13 = vector.load %arg5[%c0_11, %c0_12] : memref<1x512xf32, #tpu.memory_space<vmem>>, vector<1x512xf32>
      %14 = vector.broadcast %13 : vector<1x512xf32> to vector<16x512xf32>
      %15 = arith.addf %12, %14 : vector<16x512xf32>
      %cst_13 = arith.constant 0.000000e+00 : f32
      %16 = vector.broadcast %cst_13 : f32 to vector<16x512xf32>
      %17 = arith.maximumf %15, %16 : vector<16x512xf32>
      %c0_14 = arith.constant 0 : index
      %c0_15 = arith.constant 0 : index
      %18 = vector.load %arg6[%c0_14, %c0_15] : memref<16x512xf32, #tpu.memory_space<vmem>>, vector<16x512xf32>
      tpu.vector_store %arg6[%c0_14, %c0_15], %17 {strides = array<i32>} : memref<16x512xf32, #tpu.memory_space<vmem>>, vector<16x512xf32>,
    } else {
    }
    return
  }
  func.func @transform_0(%arg0: i32, %arg1: i32, %arg2: i32) -> (i32, i32) {
    %c0_i32 = arith.constant 0 : i32
    return %arg0, %arg2 : i32, i32
  }
  func.func @transform_1(%arg0: i32, %arg1: i32, %arg2: i32) -> (i32, i32) {
    %c0_i32 = arith.constant 0 : i32
    return %arg2, %arg1 : i32, i32
  }
  func.func @transform_2(%arg0: i32, %arg1: i32, %arg2: i32) -> (i32, i32) {
    %c0_i32 = arith.constant 0 : i32
    %c0_i32_0 = arith.constant 0 : i32
    return %c0_i32, %arg1 : i32, i32
  }
  func.func @transform_3(%arg0: i32, %arg1: i32, %arg2: i32) -> (i32, i32) {
    %c0_i32 = arith.constant 0 : i32
    return %arg0, %arg1 : i32, i32
  }
}

module attributes {stable_mosaic.version = 11 : i64} {
  func.func @_matmul_kernel(%arg0: i32, %arg1: i32, %arg2: i32, %arg3: memref<16x512xbf16, #tpu.memory_space<vmem>>, %arg4: memref<512x128xbf16, #tpu.memory_space<vmem>>, %arg5: memref<1x128xf32, #tpu.memory_space<vmem>>, %arg6: memref<16x128xf32, #tpu.memory_space<vmem>>) attributes {dimension_semantics = [#tpu.dimension_semantics<parallel>, #tpu.dimension_semantics<parallel>, #tpu.dimension_semantics<arbitrary>], iteration_bounds = array<i64: 1, 1, 8>, scalar_prefetch = 0 : i64, scratch_operands = 0 : i64, tpu.core_type = #tpu.core_type<tc>, window_params = [{transform_indices = @transform_0, window_bounds = array<i64: 16, 512>}, {transform_indices = @transform_1, window_bounds = array<i64: 512, 128>}, {transform_indices = @transform_2, window_bounds = array<i64: 1, 128>}, {transform_indices = @transform_3, window_bounds = array<i64: 16, 128>}]} {
    %c0_i32 = arith.constant 0 : i32
    %0 = arith.cmpi eq, %arg2, %c0_i32 : i32
    %1 = arith.extui %0 : i1 to i32
    %c0_i32_0 = arith.constant 0 : i32
    %2 = arith.cmpi ne, %1, %c0_i32_0 : i32
    scf.if %2 {
      %cst_9 = arith.constant 0.000000e+00 : f32
      %12 = vector.broadcast %cst_9 : f32 to vector<16x128xf32>
      %c0_10 = arith.constant 0 : index
      %c0_11 = arith.constant 0 : index
      %13 = vector.load %arg6[%c0_10, %c0_11] : memref<16x128xf32, #tpu.memory_space<vmem>>, vector<16x128xf32>
      tpu.vector_store %arg6[%c0_10, %c0_11], %12 {strides = array<i32>} : memref<16x128xf32, #tpu.memory_space<vmem>>, vector<16x128xf32>,
    } else {
    }
    %c0 = arith.constant 0 : index
    %c0_1 = arith.constant 0 : index
    %3 = vector.load %arg6[%c0, %c0_1] : memref<16x128xf32, #tpu.memory_space<vmem>>, vector<16x128xf32>
    %c0_2 = arith.constant 0 : index
    %c0_3 = arith.constant 0 : index
    %4 = vector.load %arg3[%c0_2, %c0_3] : memref<16x512xbf16, #tpu.memory_space<vmem>>, vector<16x512xbf16>
    %c0_4 = arith.constant 0 : index
    %c0_5 = arith.constant 0 : index
    %5 = vector.load %arg4[%c0_4, %c0_5] : memref<512x128xbf16, #tpu.memory_space<vmem>>, vector<512x128xbf16>
    %cst = arith.constant dense<0.000000e+00> : vector<16x128xf32>
    %6 = tpu.matmul %4, %5, %cst {dimension_numbers = #tpu.dot_dimension_numbers<[1], [0], [0], [1], [0, 0, 1, 1], [], []>} : vector<16x512xbf16>, vector<512x128xbf16>, vector<16x128xf32> -> vector<16x128xf32>
    %7 = arith.addf %3, %6 : vector<16x128xf32>
    %c0_6 = arith.constant 0 : index
    %c0_7 = arith.constant 0 : index
    %8 = vector.load %arg6[%c0_6, %c0_7] : memref<16x128xf32, #tpu.memory_space<vmem>>, vector<16x128xf32>
    tpu.vector_store %arg6[%c0_6, %c0_7], %7 {strides = array<i32>} : memref<16x128xf32, #tpu.memory_space<vmem>>, vector<16x128xf32>,
    %c7_i32 = arith.constant 7 : i32
    %9 = arith.cmpi eq, %arg2, %c7_i32 : i32
    %10 = arith.extui %9 : i1 to i32
    %c0_i32_8 = arith.constant 0 : i32
    %11 = arith.cmpi ne, %10, %c0_i32_8 : i32
    scf.if %11 {
      %c0_9 = arith.constant 0 : index
      %c0_10 = arith.constant 0 : index
      %12 = vector.load %arg6[%c0_9, %c0_10] : memref<16x128xf32, #tpu.memory_space<vmem>>, vector<16x128xf32>
      %c0_11 = arith.constant 0 : index
      %c0_12 = arith.constant 0 : index
      %13 = vector.load %arg5[%c0_11, %c0_12] : memref<1x128xf32, #tpu.memory_space<vmem>>, vector<1x128xf32>
      %14 = vector.broadcast %13 : vector<1x128xf32> to vector<16x128xf32>
      %15 = arith.addf %12, %14 : vector<16x128xf32>
      %c0_13 = arith.constant 0 : index
      %c0_14 = arith.constant 0 : index
      %16 = vector.load %arg6[%c0_13, %c0_14] : memref<16x128xf32, #tpu.memory_space<vmem>>, vector<16x128xf32>
      tpu.vector_store %arg6[%c0_13, %c0_14], %15 {strides = array<i32>} : memref<16x128xf32, #tpu.memory_space<vmem>>, vector<16x128xf32>,
    } else {
    }
    return
  }
  func.func @transform_0(%arg0: i32, %arg1: i32, %arg2: i32) -> (i32, i32) {
    %c0_i32 = arith.constant 0 : i32
    return %arg0, %arg2 : i32, i32
  }
  func.func @transform_1(%arg0: i32, %arg1: i32, %arg2: i32) -> (i32, i32) {
    %c0_i32 = arith.constant 0 : i32
    return %arg2, %arg1 : i32, i32
  }
  func.func @transform_2(%arg0: i32, %arg1: i32, %arg2: i32) -> (i32, i32) {
    %c0_i32 = arith.constant 0 : i32
    %c0_i32_0 = arith.constant 0 : i32
    return %c0_i32, %arg1 : i32, i32
  }
  func.func @transform_3(%arg0: i32, %arg1: i32, %arg2: i32) -> (i32, i32) {
    %c0_i32 = arith.constant 0 : i32
    return %arg0, %arg1 : i32, i32
  }
}

</mosaic_0001>

<llo_original>
// kernel: mul.54
$region0: #{mul.54}
  #allocation0 [shape = 's32[1]{0}', space=sflag, size = 0x4, scoped, tag = 'scoped memory for mul.54']
  %s0 = inlined_call_operand.vmem [shape: f32[2,96], index: 0, kind: input, shape index: {}]
  %s1 = inlined_call_operand.vmem [shape: f32[2,15,15,96], index: 1, kind: output, shape index: {}]
  // Predicated region
  $region2: #{mul.54} parent=0 // pred_check
    _
  $region3: #{mul.54} parent=0 // pred_check_branch
    %3 = sbr.rel (0) target = $region5
  $region4: #{mul.54} parent=0 // pred_region
    _
  $region5: #{mul.54} parent=0 // pred_fallthru
    _
  %v4 = vld [vmem:[%s0] ss:$0 sm:$0xff]
  %5 = vst [vmem:[%s1] sm:$0xff] %v4
  %s6 = scalar_lea.vmem %s0, 1
  %v7 = vld [vmem:[%s6] ss:$0 sm:$0xff]
  %s8 = scalar_lea.vmem %s1, 240
  %9 = vst [vmem:[%s8] sm:$0xff] %v7
  %s10 = scalar_lea.vmem %s1, 16
  %11 = vst [vmem:[%s10] sm:$0xff] %v4
  %s12 = scalar_lea.vmem %s1, 256
  %13 = vst [vmem:[%s12] sm:$0xff] %v7
  %s14 = scalar_lea.vmem %s1, 32
  %15 = vst [vmem:[%s14] sm:$0xff] %v4
  %s16 = scalar_lea.vmem %s1, 272
  %17 = vst [vmem:[%s16] sm:$0xff] %v7
  %s18 = scalar_lea.vmem %s1, 48
  %19 = vst [vmem:[%s18] sm:$0xff] %v4
  %s20 = scalar_lea.vmem %s1, 288
  %21 = vst [vmem:[%s20] sm:$0xff] %v7
  %s22 = scalar_lea.vmem %s1, 64
  %23 = vst [vmem:[%s22] sm:$0xff] %v4
  %s24 = scalar_lea.vmem %s1, 304
  %25 = vst [vmem:[%s24] sm:$0xff] %v7
  %s26 = scalar_lea.vmem %s1, 80
  %27 = vst [vmem:[%s26] sm:$0xff] %v4
  %s28 = scalar_lea.vmem %s1, 320
  %29 = vst [vmem:[%s28] sm:$0xff] %v7
  %s30 = scalar_lea.vmem %s1, 96
  %31 = vst [vmem:[%s30] sm:$0xff] %v4
  %s32 = scalar_lea.vmem %s1, 336
  %33 = vst [vmem:[%s32] sm:$0xff] %v7
  %s34 = scalar_lea.vmem %s1, 112
  %35 = vst [vmem:[%s34] sm:$0xff] %v4
  %s36 = scalar_lea.vmem %s1, 352
  %37 = vst [vmem:[%s36] sm:$0xff] %v7
  %s38 = scalar_lea.vmem %s1, 128
  %39 = vst [vmem:[%s38] sm:$0xff] %v4
  %s40 = scalar_lea.vmem %s1, 368
  %41 = vst [vmem:[%s40] sm:$0xff] %v7
  %s42 = scalar_lea.vmem %s1, 144
  %43 = vst [vmem:[%s42] sm:$0xff] %v4
  %s44 = scalar_lea.vmem %s1, 384
  %45 = vst [vmem:[%s44] sm:$0xff] %v7
  %s46 = scalar_lea.vmem %s1, 160
  %47 = vst [vmem:[%s46] sm:$0xff] %v4
  %s48 = scalar_lea.vmem %s1, 400
  %49 = vst [vmem:[%s48] sm:$0xff] %v7
  %s50 = scalar_lea.vmem %s1, 176
  %51 = vst [vmem:[%s50] sm:$0xff] %v4
  %s52 = scalar_lea.vmem %s1, 416
  %53 = vst [vmem:[%s52] sm:$0xff] %v7
  %s54 = scalar_lea.vmem %s1, 192
  %55 = vst [vmem:[%s54] sm:$0xff] %v4
  %s56 = scalar_lea.vmem %s1, 432
  %57 = vst [vmem:[%s56] sm:$0xff] %v7
  %s58 = scalar_lea.vmem %s1, 208
  %59 = vst [vmem:[%s58] sm:$0xff] %v4
  %s60 = scalar_lea.vmem %s1, 448
  %61 = vst [vmem:[%s60] sm:$0xff] %v7
  %s62 = scalar_lea.vmem %s1, 224
  %63 = vst [vmem:[%s62] sm:$0xff] %v4
  %s64 = scalar_lea.vmem %s1, 464
  %65 = vst [vmem:[%s64] sm:$0xff] %v7
  %s66 = scalar_lea.vmem %s1, 8
  %67 = vst [vmem:[%s66] sm:$0xff] %v4
  %s68 = scalar_lea.vmem %s1, 248
  %69 = vst [vmem:[%s68] sm:$0xff] %v7
  %s70 = scalar_lea.vmem %s1, 24
  %71 = vst [vmem:[%s70] sm:$0xff] %v4
  %s72 = scalar_lea.vmem %s1, 264
  %73 = vst [vmem:[%s72] sm:$0xff] %v7
  %s74 = scalar_lea.vmem %s1, 40
  %75 = vst [vmem:[%s74] sm:$0xff] %v4
  %s76 = scalar_lea.vmem %s1, 280
  %77 = vst [vmem:[%s76] sm:$0xff] %v7
  %s78 = scalar_lea.vmem %s1, 56
  %79 = vst [vmem:[%s78] sm:$0xff] %v4
  %s80 = scalar_lea.vmem %s1, 296
  %81 = vst [vmem:[%s80] sm:$0xff] %v7
  %s82 = scalar_lea.vmem %s1, 72
  %83 = vst [vmem:[%s82] sm:$0xff] %v4
  %s84 = scalar_lea.vmem %s1, 312
  %85 = vst [vmem:[%s84] sm:$0xff] %v7
  %s86 = scalar_lea.vmem %s1, 88
  %87 = vst [vmem:[%s86] sm:$0xff] %v4
  %s88 = scalar_lea.vmem %s1, 328
  %89 = vst [vmem:[%s88] sm:$0xff] %v7
  %s90 = scalar_lea.vmem %s1, 104
  %91 = vst [vmem:[%s90] sm:$0xff] %v4
  %s92 = scalar_lea.vmem %s1, 344
  %93 = vst [vmem:[%s92] sm:$0xff] %v7
  %s94 = scalar_lea.vmem %s1, 120
  %95 = vst [vmem:[%s94] sm:$0xff] %v4
  %s96 = scalar_lea.vmem %s1, 360
  %97 = vst [vmem:[%s96] sm:$0xff] %v7
  %s98 = scalar_lea.vmem %s1, 136
  %99 = vst [vmem:[%s98] sm:$0xff] %v4
  %s100 = scalar_lea.vmem %s1, 376
  %101 = vst [vmem:[%s100] sm:$0xff] %v7
  %s102 = scalar_lea.vmem %s1, 152
  %103 = vst [vmem:[%s102] sm:$0xff] %v4
  %s104 = scalar_lea.vmem %s1, 392
  %105 = vst [vmem:[%s104] sm:$0xff] %v7
  %s106 = scalar_lea.vmem %s1, 168
  %107 = vst [vmem:[%s106] sm:$0xff] %v4
  %s108 = scalar_lea.vmem %s1, 408
  %109 = vst [vmem:[%s108] sm:$0xff] %v7
  %s110 = scalar_lea.vmem %s1, 184
  %111 = vst [vmem:[%s110] sm:$0xff] %v4
  %s112 = scalar_lea.vmem %s1, 424
  %113 = vst [vmem:[%s112] sm:$0xff] %v7
  %s114 = scalar_lea.vmem %s1, 200
  %115 = vst [vmem:[%s114] sm:$0xff] %v4
  %s116 = scalar_lea.vmem %s1, 440
  %117 = vst [vmem:[%s116] sm:$0xff] %v7
  %s118 = scalar_lea.vmem %s1, 216
  %119 = vst [vmem:[%s118] sm:$0xff] %v4
  %s120 = scalar_lea.vmem %s1, 456
  %121 = vst [vmem:[%s120] sm:$0xff] %v7
  %s122 = scalar_lea.vmem %s1, 232
  %123 = vst [vmem:[%s122] sm:$0xff] %v4
  %s124 = scalar_lea.vmem %s1, 472
  %125 = vst [vmem:[%s124] sm:$0xff] %v7

// kernel: alexnet_cbam3_forward.14
$region0: #{alexnet_cbam3_forward.14}
  #allocation0 [shape = 'u32[]', space=smem, size = 0x4, offset = 0x4, fixed_abs, tag = 'smem constant byte address 0x4 - core index']
  #allocation1 [shape = 'u32[144,128]{1,0:T(1,128)}', space=vmem, size = 0x12000, scoped, tag = 'internal scratch']
  %s0 = inlined_call_operand.vmem [shape: bf16[512,384], index: 0, kind: input, shape index: {}]
  %s1 = inlined_call_operand.vmem [shape: bf16[384,128], index: 1, kind: input, shape index: {}]
  %s2 = inlined_call_operand.vmem [shape: f32[1,128], index: 2, kind: input, shape index: {}]
  %s3 = inlined_call_operand.vmem [shape: f32[512,128], index: 3, kind: output, shape index: {}]
  %s4 = sld [smem:[#allocation0]]
  $region53: #{alexnet_cbam3_forward.14} parent=0
    _
  %s6 = ssub.s32 1, %s4
  %s7 = scalar_select 0, %s6, %s4
  loop: start=0, step=1, limit=6
  $region2: #{alexnet_cbam3_forward.14} parent=0 // loop_pre_header
    _
  $region3: #{alexnet_cbam3_forward.14} parent=0 // loop_header
    %s9 = sphi 0, %s13
    %p10 = scmp.ge.s32.totalorder %s9, 6
    %s16 = sphi 0, %s35
    %s17 = sphi 0, %s31
    %s18 = sphi 0, %s27
    %s19 = sphi 0, %s16
    %s20 = sphi 0, %s17
    %s21 = sphi 0, %s18
    %s22 = sphi 0, %s19
    %s23 = sphi 0, %s20
    %s24 = sphi 0, %s21
    %s40 = sphi 0, %s42
    %s43 = sphi 0, %s40
    %s44 = sphi 0, %s43
    %s60 = sphi 0, %s44
    %s68 = sphi 0, %s70
    %s71 = sphi 0, %s68
    %s72 = sphi 0, %s71
    %s88 = sphi 0, %s72
    %s94 = sphi 0, %s96
    %s97 = sphi 0, %s94
    %s98 = sphi 0, %s97
    %s114 = sphi 0, %s98
    %s122 = sphi 0, %s124
    %s125 = sphi 0, %s122
    %s126 = sphi 0, %s125
    %s142 = sphi 0, %s126
  $region4: #{alexnet_cbam3_forward.14} parent=0 // loop_header_branch
    %12 = sbr.rel (%p10) target = $region8
  $region5: #{alexnet_cbam3_forward.14} parent=0 // loop_body
    %s14 = ssub.s32 %s9, 1
    %s15 = ssub.s32 %s9, 2
    %s25 = sadd.s32 1, %s18
    %p26 = scmp.ge.s32.totalorder %s25, 1
    %s27 = scalar_select %p26, 0, %s25
    %s28 = sadd.s32 1, %s17
    %s29 = scalar_select %p26, %s28, %s17
    %p30 = scmp.ge.s32.totalorder %s29, 1
    %s31 = scalar_select %p30, 0, %s29
    %s32 = sadd.s32 1, %s16
    %s33 = scalar_select %p30, %s32, %s16
    %p34 = scmp.ge.s32.totalorder %s33, 4
    %s35 = scalar_select %p34, 0, %s33
    %s36 = ssub.s32 %s16, %s35
    %s37 = ssub.s32 %s18, %s27
    %s38 = sor.u32 %s36, %s37
    %p39 = scmp.eq.s32.totalorder %s38, 0
    %s41 = sadd.s32 %s40, 1
    %s42 = scalar_select %p39, %s40, %s41
    %p45 = pneg %p39
    %p46 = scmp.eq.s32.totalorder %s9, 3
    %p47 = por %p45, %p46
    %p48 = scmp.ne.s32.totalorder %s40, %s43
    %p49 = scmp.eq.s32.totalorder %s9, 0
    %p50 = por %p48, %p49
    %p51 = scmp.ne.s32.totalorder %s40, %s43
    %p52 = scmp.eq.s32.totalorder %s14, 3
    %p53 = por %p51, %p52
    %p54 = scmp.ne.s32.totalorder %s43, %s44
    %p55 = scmp.eq.s32.totalorder %s14, 0
    %p56 = por %p54, %p55
    %p57 = scmp.ne.s32.totalorder %s43, %s44
    %p58 = scmp.eq.s32.totalorder %s15, 3
    %p59 = por %p57, %p58
    %p61 = scmp.ne.s32.totalorder %s44, %s60
    %p62 = scmp.eq.s32.totalorder %s15, 0
    %p63 = por %p61, %p62
    %s64 = ssub.s32 %s18, %s27
    %s65 = ssub.s32 %s17, %s31
    %s66 = sor.u32 %s64, %s65
    %p67 = scmp.eq.s32.totalorder %s66, 0
    %s69 = sadd.s32 %s68, 1
    %s70 = scalar_select %p67, %s68, %s69
    %p73 = pneg %p67
    %p74 = scmp.eq.s32.totalorder %s9, 3
    %p75 = por %p73, %p74
    %p76 = scmp.ne.s32.totalorder %s68, %s71
    %p77 = scmp.eq.s32.totalorder %s9, 0
    %p78 = por %p76, %p77
    %p79 = scmp.ne.s32.totalorder %s68, %s71
    %p80 = scmp.eq.s32.totalorder %s14, 3
    %p81 = por %p79, %p80
    %p82 = scmp.ne.s32.totalorder %s71, %s72
    %p83 = scmp.eq.s32.totalorder %s14, 0
    %p84 = por %p82, %p83
    %p85 = scmp.ne.s32.totalorder %s71, %s72
    %p86 = scmp.eq.s32.totalorder %s15, 3
    %p87 = por %p85, %p86
    %p89 = scmp.ne.s32.totalorder %s72, %s88
    %p90 = scmp.eq.s32.totalorder %s15, 0
    %p91 = por %p89, %p90
    %s92 = ssub.s32 %s17, %s31
    %p93 = scmp.eq.s32.totalorder %s92, 0
    %s95 = sadd.s32 %s94, 1
    %s96 = scalar_select %p93, %s94, %s95
    %p99 = pneg %p93
    %p100 = scmp.eq.s32.totalorder %s9, 3
    %p101 = por %p99, %p100
    %p102 = scmp.ne.s32.totalorder %s94, %s97
    %p103 = scmp.eq.s32.totalorder %s9, 0
    %p104 = por %p102, %p103
    %p105 = scmp.ne.s32.totalorder %s94, %s97
    %p106 = scmp.eq.s32.totalorder %s14, 3
    %p107 = por %p105, %p106
    %p108 = scmp.ne.s32.totalorder %s97, %s98
    %p109 = scmp.eq.s32.totalorder %s14, 0
    %p110 = por %p108, %p109
    %p111 = scmp.ne.s32.totalorder %s97, %s98
    %p112 = scmp.eq.s32.totalorder %s15, 3
    %p113 = por %p111, %p112
    %p115 = scmp.ne.s32.totalorder %s98, %s114
    %p116 = scmp.eq.s32.totalorder %s15, 0
    %p117 = por %p115, %p116
    %s118 = ssub.s32 %s16, %s35
    %s119 = ssub.s32 %s17, %s31
    %s120 = sor.u32 %s118, %s119
    %p121 = scmp.eq.s32.totalorder %s120, 0
    %s123 = sadd.s32 %s122, 1
    %s124 = scalar_select %p121, %s122, %s123
    %p127 = pneg %p121
    %p128 = scmp.eq.s32.totalorder %s9, 3
    %p129 = por %p127, %p128
    %p130 = scmp.ne.s32.totalorder %s122, %s125
    %p131 = scmp.eq.s32.totalorder %s9, 0
    %p132 = por %p130, %p131
    %p133 = scmp.ne.s32.totalorder %s122, %s125
    %p134 = scmp.eq.s32.totalorder %s14, 3
    %p135 = por %p133, %p134
    %p136 = scmp.ne.s32.totalorder %s125, %s126
    %p137 = scmp.eq.s32.totalorder %s14, 0
    %p138 = por %p136, %p137
    %p139 = scmp.ne.s32.totalorder %s125, %s126
    %p140 = scmp.eq.s32.totalorder %s15, 3
    %p141 = por %p139, %p140
    %p143 = scmp.ne.s32.totalorder %s126, %s142
    %p144 = scmp.eq.s32.totalorder %s15, 0
    %p145 = por %p143, %p144
    %p146 = scmp.le.s32.totalorder 1, %s9
    %p147 = scmp.lt.s32.totalorder %s9, 5
    %p148 = pnand %p146, %p147
    %p149 = pneg %p148
    // Predicated region
    $region9: #{alexnet_cbam3_forward.14} parent=5 // pred_check
      _
    $region10: #{alexnet_cbam3_forward.14} parent=5 // pred_check_branch
      %151 = sbr.rel (%p148) target = $region12
    $region11: #{alexnet_cbam3_forward.14} parent=5 // pred_region
      %s152 = ssub.s32 %s9, 1
      // Predicated region
      $region13: #{alexnet_cbam3_forward.14} parent=11 // pred_check
        %p153 = pneg %p84
      $region14: #{alexnet_cbam3_forward.14} parent=11 // pred_check_branch
        %155 = sbr.rel (%p153) target = $region16
      $region15: #{alexnet_cbam3_forward.14} parent=11 // pred_region
        %s156 = smul.u32 48, %s21
        %p157 = scmp.lt.s32.totalorder %s156, 47
        %s158 = scalar_select %p157, %s156, 47
        %p159 = scmp.lt.s32.totalorder %s20, 0
        %s160 = scalar_select %p159, %s20, 0
        %s161 = sadd.s32 %s160, %s158
        %s162 = smul.addr %s161, 4
        %s163 = scalar_lea.vmem %s1, %s162
        %s164 = smul.u32 48, %s21
      $region16: #{alexnet_cbam3_forward.14} parent=11 // pred_fallthru
        _
      // Predicated region
      $region17: #{alexnet_cbam3_forward.14} parent=11 // pred_check
        %p165 = pneg %p110
      $region18: #{alexnet_cbam3_forward.14} parent=11 // pred_check_branch
        %167 = sbr.rel (%p165) target = $region20
      $region19: #{alexnet_cbam3_forward.14} parent=11 // pred_region
        %p168 = scmp.lt.s32.totalorder %s20, 0
        %s169 = scalar_select %p168, %s20, 0
        %s170 = scalar_lea.vmem %s2, %s169
      $region20: #{alexnet_cbam3_forward.14} parent=11 // pred_fallthru
        _
    $region12: #{alexnet_cbam3_forward.14} parent=5 // pred_fallthru
      _
    %p171 = scmp.lt.s32.totalorder %s9, 4
    // Predicated region
    $region21: #{alexnet_cbam3_forward.14} parent=5 // pred_check
      %p172 = pneg %p171
    $region22: #{alexnet_cbam3_forward.14} parent=5 // pred_check_branch
      %174 = sbr.rel (%p172) target = $region24
    $region23: #{alexnet_cbam3_forward.14} parent=5 // pred_region
      // Predicated region
      $region25: #{alexnet_cbam3_forward.14} parent=23 // pred_check
        %p175 = pneg %p50
      $region26: #{alexnet_cbam3_forward.14} parent=23 // pred_check_branch
        %177 = sbr.rel (%p175) target = $region28
      $region27: #{alexnet_cbam3_forward.14} parent=23 // pred_region
        %s178 = smul.u32 16, %s16
        %s179 = smul.u32 3, %s18
        %p180 = scmp.lt.s32.totalorder %s178, 63
        %s181 = scalar_select %p180, %s178, 63
        %p182 = scmp.lt.s32.totalorder %s179, 2
        %s183 = scalar_select %p182, %s179, 2
        %s184 = smul.addr %s181, 3
        %s185 = sadd.s32 %s183, %s184
        %s186 = smul.addr %s185, 4
        %s187 = scalar_lea.vmem %s0, %s186
        %s188 = smul.u32 16, %s16
        %s189 = smul.u32 3, %s18
      $region28: #{alexnet_cbam3_forward.14} parent=23 // pred_fallthru
        _
    $region24: #{alexnet_cbam3_forward.14} parent=5 // pred_fallthru
      _
    %p190 = scmp.le.s32.totalorder 1, %s9
    %p191 = scmp.lt.s32.totalorder %s9, 5
    %p192 = pnand %p190, %p191
    %p193 = pneg %p192
    // Predicated region
    $region29: #{alexnet_cbam3_forward.14} parent=5 // pred_check
      _
    $region30: #{alexnet_cbam3_forward.14} parent=5 // pred_check_branch
      %195 = sbr.rel (%p192) target = $region32
    $region31: #{alexnet_cbam3_forward.14} parent=5 // pred_region
      %s196 = ssub.s32 %s9, 1
      %s197 = smul.u32 16, %s19
      %s198 = smul.u32 3, %s21
      %p199 = scmp.lt.s32.totalorder %s197, 63
      %s200 = scalar_select %p199, %s197, 63
      %p201 = scmp.lt.s32.totalorder %s198, 2
      %s202 = scalar_select %p201, %s198, 2
      %s203 = smul.addr %s200, 3
      %s204 = sadd.s32 %s202, %s203
      %s205 = smul.addr %s204, 4
      %s206 = scalar_lea.vmem %s0, %s205
      %p207 = pneg %p56
      %p208 = pneg %p53
      %s209 = smul.u32 48, %s21
      %p210 = scmp.lt.s32.totalorder %s209, 47
      %s211 = scalar_select %p210, %s209, 47
      %p212 = scmp.lt.s32.totalorder %s20, 0
      %s213 = scalar_select %p212, %s20, 0
      %s214 = sadd.s32 %s213, %s211
      %s215 = smul.addr %s214, 4
      %s216 = scalar_lea.vmem %s1, %s215
      %p217 = pneg %p84
      %p218 = pneg %p81
      %p219 = scmp.lt.s32.totalorder %s20, 0
      %s220 = scalar_select %p219, %s20, 0
      %s221 = scalar_lea.vmem %s2, %s220
      %p222 = pneg %p110
      %p223 = pneg %p107
      %p224 = pneg %p138
      %p225 = pneg %p135
      %s226 = smul.u32 16, %s19
      %p227 = scmp.lt.s32.totalorder %s226, 63
      %s228 = scalar_select %p227, %s226, 63
      %p229 = scmp.lt.s32.totalorder %s20, 0
      %s230 = scalar_select %p229, %s20, 0
      %s231 = sadd.s32 %s230, %s228
      %s232 = smul.addr %s231, 8
      %s233 = scalar_lea.vmem %s3, %s232
      %s234 = smul.u32 16, %s19
      %s235 = smul.u32 3, %s21
      %p236 = scmp.lt.s32.totalorder %s234, 63
      %s237 = scalar_select %p236, %s234, 63
      %p238 = scmp.lt.s32.totalorder %s235, 2
      %s239 = scalar_select %p238, %s235, 2
      %s240 = smul.addr %s237, 3
      %s241 = sadd.s32 %s239, %s240
      %s242 = smul.addr %s241, 4
      %s243 = scalar_lea.vmem %s0, %s242
      %s244 = smul.u32 16, %s19
      %s245 = smul.u32 3, %s21
      %s246 = smul.u32 48, %s21
      %p247 = scmp.lt.s32.totalorder %s246, 47
      %s248 = scalar_select %p247, %s246, 47
      %p249 = scmp.lt.s32.totalorder %s20, 0
      %s250 = scalar_select %p249, %s20, 0
      %s251 = sadd.s32 %s250, %s248
      %s252 = smul.addr %s251, 4
      %s253 = scalar_lea.vmem %s1, %s252
      %s254 = smul.u32 48, %s21
      %p255 = scmp.lt.s32.totalorder %s20, 0
      %s256 = scalar_select %p255, %s20, 0
      %s257 = scalar_lea.vmem %s2, %s256
      %s258 = smul.u32 16, %s19
      %p259 = scmp.lt.s32.totalorder %s258, 63
      %s260 = scalar_select %p259, %s258, 63
      %p261 = scmp.lt.s32.totalorder %s20, 0
      %s262 = scalar_select %p261, %s20, 0
      %s263 = sadd.s32 %s262, %s260
      %s264 = smul.addr %s263, 8
      %s265 = scalar_lea.vmem %s3, %s264
      %s266 = smul.u32 16, %s19
      %p268 = scmp.eq.s32.totalorder %s21, 0
      // Predicated region
      $region33: #{alexnet_cbam3_forward.14} parent=31 // pred_check
        %p269 = pneg %p268
      $region34: #{alexnet_cbam3_forward.14} parent=31 // pred_check_branch
        %271 = sbr.rel (%p269) target = $region36
      $region35: #{alexnet_cbam3_forward.14} parent=31 // pred_region
        %272 = vst [vmem:[%s265] sm:$0xff] 0.0
        %273 = vst [vmem:[%s265 + $0x8] sm:$0xff] 0.0
        %274 = vst [vmem:[%s265 + $0x10] sm:$0xff] 0.0
        %275 = vst [vmem:[%s265 + $0x18] sm:$0xff] 0.0
        %276 = vst [vmem:[%s265 + $0x20] sm:$0xff] 0.0
        %277 = vst [vmem:[%s265 + $0x28] sm:$0xff] 0.0
        %278 = vst [vmem:[%s265 + $0x30] sm:$0xff] 0.0
        %279 = vst [vmem:[%s265 + $0x38] sm:$0xff] 0.0
        %280 = vst [vmem:[%s265 + $0x40] sm:$0xff] 0.0
        %281 = vst [vmem:[%s265 + $0x48] sm:$0xff] 0.0
        %282 = vst [vmem:[%s265 + $0x50] sm:$0xff] 0.0
        %283 = vst [vmem:[%s265 + $0x58] sm:$0xff] 0.0
        %284 = vst [vmem:[%s265 + $0x60] sm:$0xff] 0.0
        %285 = vst [vmem:[%s265 + $0x68] sm:$0xff] 0.0
        %286 = vst [vmem:[%s265 + $0x70] sm:$0xff] 0.0
        %287 = vst [vmem:[%s265 + $0x78] sm:$0xff] 0.0
      $region36: #{alexnet_cbam3_forward.14} parent=31 // pred_fallthru
        _
      %v288 = vld [vmem:[%s265] sm:$0xff]
      %v289 = vld [vmem:[%s265 + $0x8] sm:$0xff]
      %v290 = vld [vmem:[%s265 + $0x10] sm:$0xff]
      %v291 = vld [vmem:[%s265 + $0x18] sm:$0xff]
      %v292 = vld [vmem:[%s265 + $0x20] sm:$0xff]
      %v293 = vld [vmem:[%s265 + $0x28] sm:$0xff]
      %v294 = vld [vmem:[%s265 + $0x30] sm:$0xff]
      %v295 = vld [vmem:[%s265 + $0x38] sm:$0xff]
      %v296 = vld [vmem:[%s265 + $0x40] sm:$0xff]
      %v297 = vld [vmem:[%s265 + $0x48] sm:$0xff]
      %v298 = vld [vmem:[%s265 + $0x50] sm:$0xff]
      %v299 = vld [vmem:[%s265 + $0x58] sm:$0xff]
      %v300 = vld [vmem:[%s265 + $0x60] sm:$0xff]
      %v301 = vld [vmem:[%s265 + $0x68] sm:$0xff]
      %v302 = vld [vmem:[%s265 + $0x70] sm:$0xff]
      %v303 = vld [vmem:[%s265 + $0x78] sm:$0xff]
      %v304 = vld [vmem:[%s243] sm:$0xff]
      %v305 = vld [vmem:[%s243 + $0x8] sm:$0xf]
      %v306 = vld [vmem:[%s243 + $0xc] sm:$0xff]
      %v307 = vld [vmem:[%s243 + $0x14] sm:$0xf]
      %v308 = vld [vmem:[%s243 + $0x18] sm:$0xff]
      %v309 = vld [vmem:[%s243 + $0x20] sm:$0xf]
      %v310 = vld [vmem:[%s243 + $0x24] sm:$0xff]
      %v311 = vld [vmem:[%s243 + $0x2c] sm:$0xf]
      %v312 = vld [vmem:[%s243 + $0x30] sm:$0xff]
      %v313 = vld [vmem:[%s243 + $0x38] sm:$0xf]
      %v314 = vld [vmem:[%s243 + $0x3c] sm:$0xff]
      %v315 = vld [vmem:[%s243 + $0x44] sm:$0xf]
      %v316 = vld [vmem:[%s243 + $0x48] sm:$0xff]
      %v317 = vld [vmem:[%s243 + $0x50] sm:$0xf]
      %v318 = vld [vmem:[%s243 + $0x54] sm:$0xff]
      %v319 = vld [vmem:[%s243 + $0x5c] sm:$0xf]
      %v320 = vld [vmem:[%s243 + $0x60] sm:$0xff]
      %v321 = vld [vmem:[%s243 + $0x68] sm:$0xf]
      %v322 = vld [vmem:[%s243 + $0x6c] sm:$0xff]
      %v323 = vld [vmem:[%s243 + $0x74] sm:$0xf]
      %v324 = vld [vmem:[%s243 + $0x78] sm:$0xff]
      %v325 = vld [vmem:[%s243 + $0x80] sm:$0xf]
      %v326 = vld [vmem:[%s243 + $0x84] sm:$0xff]
      %v327 = vld [vmem:[%s243 + $0x8c] sm:$0xf]
      %v328 = vld [vmem:[%s243 + $0x90] sm:$0xff]
      %v329 = vld [vmem:[%s243 + $0x98] sm:$0xf]
      %v330 = vld [vmem:[%s243 + $0x9c] sm:$0xff]
      %v331 = vld [vmem:[%s243 + $0xa4] sm:$0xf]
      %v332 = vld [vmem:[%s243 + $0xa8] sm:$0xff]
      %v333 = vld [vmem:[%s243 + $0xb0] sm:$0xf]
      %v334 = vld [vmem:[%s243 + $0xb4] sm:$0xff]
      %v335 = vld [vmem:[%s243 + $0xbc] sm:$0xf]
      %v336 = vld [vmem:[%s253] sm:$0xf]
      %v337 = vld [vmem:[%s253 + $0x4] sm:$0xf]
      %v338 = vld [vmem:[%s253 + $0x8] sm:$0xf]
      %v339 = vld [vmem:[%s253 + $0xc] sm:$0xf]
      %v340 = vld [vmem:[%s253 + $0x10] sm:$0xf]
      %v341 = vld [vmem:[%s253 + $0x14] sm:$0xf]
      %v342 = vld [vmem:[%s253 + $0x18] sm:$0xf]
      %v343 = vld [vmem:[%s253 + $0x1c] sm:$0xf]
      %v344 = vld [vmem:[%s253 + $0x20] sm:$0xf]
      %v345 = vld [vmem:[%s253 + $0x24] sm:$0xf]
      %v346 = vld [vmem:[%s253 + $0x28] sm:$0xf]
      %v347 = vld [vmem:[%s253 + $0x2c] sm:$0xf]
      %v348 = vld [vmem:[%s253 + $0x30] sm:$0xf]
      %v349 = vld [vmem:[%s253 + $0x34] sm:$0xf]
      %v350 = vld [vmem:[%s253 + $0x38] sm:$0xf]
      %v351 = vld [vmem:[%s253 + $0x3c] sm:$0xf]
      %v352 = vld [vmem:[%s253 + $0x40] sm:$0xf]
      %v353 = vld [vmem:[%s253 + $0x44] sm:$0xf]
      %v354 = vld [vmem:[%s253 + $0x48] sm:$0xf]
      %v355 = vld [vmem:[%s253 + $0x4c] sm:$0xf]
      %v356 = vld [vmem:[%s253 + $0x50] sm:$0xf]
      %v357 = vld [vmem:[%s253 + $0x54] sm:$0xf]
      %v358 = vld [vmem:[%s253 + $0x58] sm:$0xf]
      %v359 = vld [vmem:[%s253 + $0x5c] sm:$0xf]
      %v360 = vld [vmem:[%s253 + $0x60] sm:$0xf]
      %v361 = vld [vmem:[%s253 + $0x64] sm:$0xf]
      %v362 = vld [vmem:[%s253 + $0x68] sm:$0xf]
      %v363 = vld [vmem:[%s253 + $0x6c] sm:$0xf]
      %v364 = vld [vmem:[%s253 + $0x70] sm:$0xf]
      %v365 = vld [vmem:[%s253 + $0x74] sm:$0xf]
      %v366 = vld [vmem:[%s253 + $0x78] sm:$0xf]
      %v367 = vld [vmem:[%s253 + $0x7c] sm:$0xf]
      %v368 = vld [vmem:[%s253 + $0x80] sm:$0xf]
      %v369 = vld [vmem:[%s253 + $0x84] sm:$0xf]
      %v370 = vld [vmem:[%s253 + $0x88] sm:$0xf]
      %v371 = vld [vmem:[%s253 + $0x8c] sm:$0xf]
      %v372 = vld [vmem:[%s253 + $0x90] sm:$0xf]
      %v373 = vld [vmem:[%s253 + $0x94] sm:$0xf]
      %v374 = vld [vmem:[%s253 + $0x98] sm:$0xf]
      %v375 = vld [vmem:[%s253 + $0x9c] sm:$0xf]
      %v376 = vld [vmem:[%s253 + $0xa0] sm:$0xf]
      %v377 = vld [vmem:[%s253 + $0xa4] sm:$0xf]
      %v378 = vld [vmem:[%s253 + $0xa8] sm:$0xf]
      %v379 = vld [vmem:[%s253 + $0xac] sm:$0xf]
      %v380 = vld [vmem:[%s253 + $0xb0] sm:$0xf]
      %v381 = vld [vmem:[%s253 + $0xb4] sm:$0xf]
      %v382 = vld [vmem:[%s253 + $0xb8] sm:$0xf]
      %v383 = vld [vmem:[%s253 + $0xbc] sm:$0xf]
      %v416 = vunpack.c.l.b16 %v304
      %v417 = vunpack.c.h.b16 %v304
      %v418 = vunpack.c.l.b16 %v305
      %v419 = vunpack.c.l.b16 %v306
      %v420 = vunpack.c.h.b16 %v306
      %v421 = vunpack.c.l.b16 %v307
      %v422 = vunpack.c.l.b16 %v308
      %v423 = vunpack.c.h.b16 %v308
      %v424 = vunpack.c.l.b16 %v309
      %v425 = vunpack.c.l.b16 %v310
      %v426 = vunpack.c.h.b16 %v310
      %v427 = vunpack.c.l.b16 %v311
      %v428 = vunpack.c.l.b16 %v312
      %v429 = vunpack.c.h.b16 %v312
      %v430 = vunpack.c.l.b16 %v313
      %v431 = vunpack.c.l.b16 %v314
      %v432 = vunpack.c.h.b16 %v314
      %v433 = vunpack.c.l.b16 %v315
      %v434 = vunpack.c.l.b16 %v316
      %v435 = vunpack.c.h.b16 %v316
      %v436 = vunpack.c.l.b16 %v317
      %v437 = vunpack.c.l.b16 %v318
      %v438 = vunpack.c.h.b16 %v318
      %v439 = vunpack.c.l.b16 %v319
      %v440 = vunpack.c.l.b16 %v320
      %v441 = vunpack.c.h.b16 %v320
      %v442 = vunpack.c.l.b16 %v321
      %v443 = vunpack.c.l.b16 %v322
      %v444 = vunpack.c.h.b16 %v322
      %v445 = vunpack.c.l.b16 %v323
      %v446 = vunpack.c.l.b16 %v324
      %v447 = vunpack.c.h.b16 %v324
      %v448 = vunpack.c.l.b16 %v325
      %v449 = vunpack.c.l.b16 %v326
      %v450 = vunpack.c.h.b16 %v326
      %v451 = vunpack.c.l.b16 %v327
      %v452 = vunpack.c.l.b16 %v328
      %v453 = vunpack.c.h.b16 %v328
      %v454 = vunpack.c.l.b16 %v329
      %v455 = vunpack.c.l.b16 %v330
      %v456 = vunpack.c.h.b16 %v330
      %v457 = vunpack.c.l.b16 %v331
      %v458 = vunpack.c.l.b16 %v332
      %v459 = vunpack.c.h.b16 %v332
      %v460 = vunpack.c.l.b16 %v333
      %v461 = vunpack.c.l.b16 %v334
      %v462 = vunpack.c.h.b16 %v334
      %v463 = vunpack.c.l.b16 %v335
      %v464 = vpack.c.b16 %v419, %v416
      %v465 = vpack.c.b16 %v420, %v417
      %v466 = vpack.c.b16 %v421, %v418
      %v467 = vpack.c.b16 %v425, %v422
      %v468 = vpack.c.b16 %v426, %v423
      %v469 = vpack.c.b16 %v427, %v424
      %v470 = vpack.c.b16 %v431, %v428
      %v471 = vpack.c.b16 %v432, %v429
      %v472 = vpack.c.b16 %v433, %v430
      %v473 = vpack.c.b16 %v437, %v434
      %v474 = vpack.c.b16 %v438, %v435
      %v475 = vpack.c.b16 %v439, %v436
      %v476 = vpack.c.b16 %v443, %v440
      %v477 = vpack.c.b16 %v444, %v441
      %v478 = vpack.c.b16 %v445, %v442
      %v479 = vpack.c.b16 %v449, %v446
      %v480 = vpack.c.b16 %v450, %v447
      %v481 = vpack.c.b16 %v451, %v448
      %v482 = vpack.c.b16 %v455, %v452
      %v483 = vpack.c.b16 %v456, %v453
      %v484 = vpack.c.b16 %v457, %v454
      %v485 = vpack.c.b16 %v461, %v458
      %v486 = vpack.c.b16 %v462, %v459
      %v487 = vpack.c.b16 %v463, %v460
      %v560 = vunpack.c.l.b16 %v336
      %v561 = vunpack.c.l.b16 %v337
      %v562 = vunpack.c.l.b16 %v338
      %v563 = vunpack.c.l.b16 %v339
      %v564 = vunpack.c.l.b16 %v340
      %v565 = vunpack.c.l.b16 %v341
      %v566 = vunpack.c.l.b16 %v342
      %v567 = vunpack.c.l.b16 %v343
      %v568 = vunpack.c.l.b16 %v344
      %v569 = vunpack.c.l.b16 %v345
      %v570 = vunpack.c.l.b16 %v346
      %v571 = vunpack.c.l.b16 %v347
      %v572 = vunpack.c.l.b16 %v348
      %v573 = vunpack.c.l.b16 %v349
      %v574 = vunpack.c.l.b16 %v350
      %v575 = vunpack.c.l.b16 %v351
      %v576 = vunpack.c.l.b16 %v352
      %v577 = vunpack.c.l.b16 %v353
      %v578 = vunpack.c.l.b16 %v354
      %v579 = vunpack.c.l.b16 %v355
      %v580 = vunpack.c.l.b16 %v356
      %v581 = vunpack.c.l.b16 %v357
      %v582 = vunpack.c.l.b16 %v358
      %v583 = vunpack.c.l.b16 %v359
      %v584 = vunpack.c.l.b16 %v360
      %v585 = vunpack.c.l.b16 %v361
      %v586 = vunpack.c.l.b16 %v362
      %v587 = vunpack.c.l.b16 %v363
      %v588 = vunpack.c.l.b16 %v364
      %v589 = vunpack.c.l.b16 %v365
      %v590 = vunpack.c.l.b16 %v366
      %v591 = vunpack.c.l.b16 %v367
      %v592 = vunpack.c.l.b16 %v368
      %v593 = vunpack.c.l.b16 %v369
      %v594 = vunpack.c.l.b16 %v370
      %v595 = vunpack.c.l.b16 %v371
      %v596 = vunpack.c.l.b16 %v372
      %v597 = vunpack.c.l.b16 %v373
      %v598 = vunpack.c.l.b16 %v374
      %v599 = vunpack.c.l.b16 %v375
      %v600 = vunpack.c.l.b16 %v376
      %v601 = vunpack.c.l.b16 %v377
      %v602 = vunpack.c.l.b16 %v378
      %v603 = vunpack.c.l.b16 %v379
      %v604 = vunpack.c.l.b16 %v380
      %v605 = vunpack.c.l.b16 %v381
      %v606 = vunpack.c.l.b16 %v382
      %v607 = vunpack.c.l.b16 %v383
      %v608 = vpack.c.b16 %v561, %v560
      %v609 = vpack.c.b16 %v563, %v562
      %v610 = vpack.c.b16 %v565, %v564
      %v611 = vpack.c.b16 %v567, %v566
      %v612 = vpack.c.b16 %v569, %v568
      %v613 = vpack.c.b16 %v571, %v570
      %v614 = vpack.c.b16 %v573, %v572
      %v615 = vpack.c.b16 %v575, %v574
      %v616 = vpack.c.b16 %v577, %v576
      %v617 = vpack.c.b16 %v579, %v578
      %v618 = vpack.c.b16 %v581, %v580
      %v619 = vpack.c.b16 %v583, %v582
      %v620 = vpack.c.b16 %v585, %v584
      %v621 = vpack.c.b16 %v587, %v586
      %v622 = vpack.c.b16 %v589, %v588
      %v623 = vpack.c.b16 %v591, %v590
      %v624 = vpack.c.b16 %v593, %v592
      %v625 = vpack.c.b16 %v595, %v594
      %v626 = vpack.c.b16 %v597, %v596
      %v627 = vpack.c.b16 %v599, %v598
      %v628 = vpack.c.b16 %v601, %v600
      %v629 = vpack.c.b16 %v603, %v602
      %v630 = vpack.c.b16 %v605, %v604
      %v631 = vpack.c.b16 %v607, %v606
      %656 = vmatprep.subr.bf16.mxu0 0
      %657 = vmatpush1.bf16.msra.mxu0 %v608
      %658 = vmatprep.subr.bf16.mxu0 0
      %659 = vmatpush1.bf16.msra.mxu0 %v609
      %660 = vmatprep.subr.bf16.mxu0 0
      %661 = vmatpush1.bf16.msra.mxu0 %v610
      %662 = vmatprep.subr.bf16.mxu0 0
      %663 = vmatpush1.bf16.msra.mxu0 %v611
      %664 = vmatprep.subr.bf16.mxu0 0
      %665 = vmatpush1.bf16.msra.mxu0 %v612
      %666 = vmatprep.subr.bf16.mxu0 0
      %667 = vmatpush1.bf16.msra.mxu0 %v613
      %668 = vmatprep.subr.bf16.mxu0 0
      %669 = vmatpush1.bf16.msra.mxu0 %v614
      %670 = vmatprep.subr.bf16.mxu0 0
      %671 = vmatpush1.bf16.msra.mxu0 %v615
      %672 = vmatprep.subr.bf16.mxu0 0
      %673 = vmatpush1.bf16.msra.mxu0 %v616
      %674 = vmatprep.subr.bf16.mxu0 0
      %675 = vmatpush1.bf16.msra.mxu0 %v617
      %676 = vmatprep.subr.bf16.mxu0 0
      %677 = vmatpush1.bf16.msra.mxu0 %v618
      %678 = vmatprep.subr.bf16.mxu0 0
      %679 = vmatpush1.bf16.msra.mxu0 %v619
      %680 = vmatprep.subr.bf16.mxu0 0
      %681 = vmatpush1.bf16.msra.mxu0 %v620
      %682 = vmatprep.subr.bf16.mxu0 0
      %683 = vmatpush1.bf16.msra.mxu0 %v621
      %684 = vmatprep.subr.bf16.mxu0 0
      %685 = vmatpush1.bf16.msra.mxu0 %v622
      %686 = vmatprep.subr.bf16.mxu0 0
      %687 = vmatpush1.bf16.msra.mxu0 %v623
      %688 = vmatprep.mubr.bf16.mxu0 %v465
      %689 = vmatmul.mubr.bf16.gmra.mrb[0].mxu0 %v464
      %v690 = vpop.f32.mrb[0].mxu0
      %v691 = vadd.f32 0.0, %v690
      %v692 = vpop.f32.mrb[0].mxu0
      %v693 = vpop.f32.mrb[0].mxu0
      %v694 = vadd.f32 0.0, %v693
      %v695 = vpop.f32.mrb[0].mxu0
      %696 = vmatprep.mubr.bf16.mxu0 %v468
      %697 = vmatmul.mubr.bf16.gmra.mrb[0].mxu0 %v467
      %v698 = vpop.f32.mrb[0].mxu0
      %v699 = vadd.f32 0.0, %v698
      %v700 = vpop.f32.mrb[0].mxu0
      %v701 = vpop.f32.mrb[0].mxu0
      %v702 = vadd.f32 0.0, %v701
      %v703 = vpop.f32.mrb[0].mxu0
      %704 = vmatprep.mubr.bf16.mxu0 %v471
      %705 = vmatmul.mubr.bf16.gmra.mrb[0].mxu0 %v470
      %v706 = vpop.f32.mrb[0].mxu0
      %v707 = vadd.f32 0.0, %v706
      %v708 = vpop.f32.mrb[0].mxu0
      %v709 = vpop.f32.mrb[0].mxu0
      %v710 = vadd.f32 0.0, %v709
      %v711 = vpop.f32.mrb[0].mxu0
      %712 = vmatprep.mubr.bf16.mxu0 %v474
      %713 = vmatmul.mubr.bf16.gmra.mrb[0].mxu0 %v473
      %v714 = vpop.f32.mrb[0].mxu0
      %v715 = vadd.f32 0.0, %v714
      %v716 = vpop.f32.mrb[0].mxu0
      %v717 = vpop.f32.mrb[0].mxu0
      %v718 = vadd.f32 0.0, %v717
      %v719 = vpop.f32.mrb[0].mxu0
      %720 = vmatprep.mubr.bf16.mxu0 %v477
      %721 = vmatmul.mubr.bf16.gmra.mrb[0].mxu0 %v476
      %v722 = vpop.f32.mrb[0].mxu0
      %v723 = vadd.f32 0.0, %v722
      %v724 = vpop.f32.mrb[0].mxu0
      %v725 = vpop.f32.mrb[0].mxu0
      %v726 = vadd.f32 0.0, %v725
      %v727 = vpop.f32.mrb[0].mxu0
      %728 = vmatprep.mubr.bf16.mxu0 %v480
      %729 = vmatmul.mubr.bf16.gmra.mrb[0].mxu0 %v479
      %v730 = vpop.f32.mrb[0].mxu0
      %v731 = vadd.f32 0.0, %v730
      %v732 = vpop.f32.mrb[0].mxu0
      %v733 = vpop.f32.mrb[0].mxu0
      %v734 = vadd.f32 0.0, %v733
      %v735 = vpop.f32.mrb[0].mxu0
      %736 = vmatprep.mubr.bf16.mxu0 %v483
      %737 = vmatmul.mubr.bf16.gmra.mrb[0].mxu0 %v482
      %v738 = vpop.f32.mrb[0].mxu0
      %v739 = vadd.f32 0.0, %v738
      %v740 = vpop.f32.mrb[0].mxu0
      %v741 = vpop.f32.mrb[0].mxu0
      %v742 = vadd.f32 0.0, %v741
      %v743 = vpop.f32.mrb[0].mxu0
      %744 = vmatprep.mubr.bf16.mxu0 %v486
      %745 = vmatmul.mubr.bf16.gmra.mrb[0].mxu0 %v485
      %v746 = vpop.f32.mrb[0].mxu0
      %v747 = vadd.f32 0.0, %v746
      %v748 = vpop.f32.mrb[0].mxu0
      %v749 = vpop.f32.mrb[0].mxu0
      %v750 = vadd.f32 0.0, %v749
      %v751 = vpop.f32.mrb[0].mxu0
      %752 = vdwg.mxu0
      %753 = vmatprep.subr.bf16.mxu0 0
      %754 = vmatpush1.bf16.msra.mxu0 %v624
      %755 = vmatprep.subr.bf16.mxu0 0
      %756 = vmatpush1.bf16.msra.mxu0 %v625
      %757 = vmatprep.subr.bf16.mxu0 0
      %758 = vmatpush1.bf16.msra.mxu0 %v626
      %759 = vmatprep.subr.bf16.mxu0 0
      %760 = vmatpush1.bf16.msra.mxu0 %v627
      %761 = vmatprep.subr.bf16.mxu0 0
      %762 = vmatpush1.bf16.msra.mxu0 %v628
      %763 = vmatprep.subr.bf16.mxu0 0
      %764 = vmatpush1.bf16.msra.mxu0 %v629
      %765 = vmatprep.subr.bf16.mxu0 0
      %766 = vmatpush1.bf16.msra.mxu0 %v630
      %767 = vmatprep.subr.bf16.mxu0 0
      %768 = vmatpush1.bf16.msra.mxu0 %v631
      %769 = vmatprep.subr.bf16.mxu0 0
      %770 = vmatpush1.bf16.msra.mxu0 0
      %771 = vmatprep.subr.bf16.mxu0 0
      %772 = vmatpush1.bf16.msra.mxu0 0
      %773 = vmatprep.subr.bf16.mxu0 0
      %774 = vmatpush1.bf16.msra.mxu0 0
      %775 = vmatprep.subr.bf16.mxu0 0
      %776 = vmatpush1.bf16.msra.mxu0 0
      %777 = vmatprep.subr.bf16.mxu0 0
      %778 = vmatpush1.bf16.msra.mxu0 0
      %779 = vmatprep.subr.bf16.mxu0 0
      %780 = vmatpush1.bf16.msra.mxu0 0
      %781 = vmatprep.subr.bf16.mxu0 0
      %782 = vmatpush1.bf16.msra.mxu0 0
      %783 = vmatprep.subr.bf16.mxu0 0
      %784 = vmatpush1.bf16.msra.mxu0 0
      %785 = vmatprep.mubr.bf16.mxu0 0
      %786 = vmatmul.mubr.bf16.gmra.mrb[0].mxu0 %v466
      %v787 = vpop.f32.mrb[0].mxu0
      %v788 = vadd.f32 %v691, %v787
      %v789 = vpop.f32.mrb[0].mxu0
      %v790 = vpop.f32.mrb[0].mxu0
      %v791 = vadd.f32 %v694, %v790
      %v792 = vpop.f32.mrb[0].mxu0
      %793 = vmatprep.mubr.bf16.mxu0 0
      %794 = vmatmul.mubr.bf16.gmra.mrb[0].mxu0 %v469
      %v795 = vpop.f32.mrb[0].mxu0
      %v796 = vadd.f32 %v699, %v795
      %v797 = vpop.f32.mrb[0].mxu0
      %v798 = vpop.f32.mrb[0].mxu0
      %v799 = vadd.f32 %v702, %v798
      %v800 = vpop.f32.mrb[0].mxu0
      %801 = vmatprep.mubr.bf16.mxu0 0
      %802 = vmatmul.mubr.bf16.gmra.mrb[0].mxu0 %v472
      %v803 = vpop.f32.mrb[0].mxu0
      %v804 = vadd.f32 %v707, %v803
      %v805 = vpop.f32.mrb[0].mxu0
      %v806 = vpop.f32.mrb[0].mxu0
      %v807 = vadd.f32 %v710, %v806
      %v808 = vpop.f32.mrb[0].mxu0
      %809 = vmatprep.mubr.bf16.mxu0 0
      %810 = vmatmul.mubr.bf16.gmra.mrb[0].mxu0 %v475
      %v811 = vpop.f32.mrb[0].mxu0
      %v812 = vadd.f32 %v715, %v811
      %v813 = vpop.f32.mrb[0].mxu0
      %v814 = vpop.f32.mrb[0].mxu0
      %v815 = vadd.f32 %v718, %v814
      %v816 = vpop.f32.mrb[0].mxu0
      %817 = vmatprep.mubr.bf16.mxu0 0
      %818 = vmatmul.mubr.bf16.gmra.mrb[0].mxu0 %v478
      %v819 = vpop.f32.mrb[0].mxu0
      %v820 = vadd.f32 %v723, %v819
      %v821 = vpop.f32.mrb[0].mxu0
      %v822 = vpop.f32.mrb[0].mxu0
      %v823 = vadd.f32 %v726, %v822
      %v824 = vpop.f32.mrb[0].mxu0
      %825 = vmatprep.mubr.bf16.mxu0 0
      %826 = vmatmul.mubr.bf16.gmra.mrb[0].mxu0 %v481
      %v827 = vpop.f32.mrb[0].mxu0
      %v828 = vadd.f32 %v731, %v827
      %v829 = vpop.f32.mrb[0].mxu0
      %v830 = vpop.f32.mrb[0].mxu0
      %v831 = vadd.f32 %v734, %v830
      %v832 = vpop.f32.mrb[0].mxu0
      %833 = vmatprep.mubr.bf16.mxu0 0
      %834 = vmatmul.mubr.bf16.gmra.mrb[0].mxu0 %v484
      %v835 = vpop.f32.mrb[0].mxu0
      %v836 = vadd.f32 %v739, %v835
      %v837 = vpop.f32.mrb[0].mxu0
      %v838 = vpop.f32.mrb[0].mxu0
      %v839 = vadd.f32 %v742, %v838
      %v840 = vpop.f32.mrb[0].mxu0
      %841 = vmatprep.mubr.bf16.mxu0 0
      %842 = vmatmul.mubr.bf16.gmra.mrb[0].mxu0 %v487
      %v843 = vpop.f32.mrb[0].mxu0
      %v844 = vadd.f32 %v747, %v843
      %v845 = vpop.f32.mrb[0].mxu0
      %v846 = vpop.f32.mrb[0].mxu0
      %v847 = vadd.f32 %v750, %v846
      %v848 = vpop.f32.mrb[0].mxu0
      %849 = vdwg.mxu0
      %v850 = vadd.f32 %v288, %v788
      %v851 = vadd.f32 %v289, %v791
      %v852 = vadd.f32 %v290, %v796
      %v853 = vadd.f32 %v291, %v799
      %v854 = vadd.f32 %v292, %v804
      %v855 = vadd.f32 %v293, %v807
      %v856 = vadd.f32 %v294, %v812
      %v857 = vadd.f32 %v295, %v815
      %v858 = vadd.f32 %v296, %v820
      %v859 = vadd.f32 %v297, %v823
      %v860 = vadd.f32 %v298, %v828
      %v861 = vadd.f32 %v299, %v831
      %v862 = vadd.f32 %v300, %v836
      %v863 = vadd.f32 %v301, %v839
      %v864 = vadd.f32 %v302, %v844
      %v865 = vadd.f32 %v303, %v847
      %866 = vst [vmem:[%s265] sm:$0xff] %v850
      %867 = vst [vmem:[%s265 + $0x8] sm:$0xff] %v851
      %868 = vst [vmem:[%s265 + $0x10] sm:$0xff] %v852
      %869 = vst [vmem:[%s265 + $0x18] sm:$0xff] %v853
      %870 = vst [vmem:[%s265 + $0x20] sm:$0xff] %v854
      %871 = vst [vmem:[%s265 + $0x28] sm:$0xff] %v855
      %872 = vst [vmem:[%s265 + $0x30] sm:$0xff] %v856
      %873 = vst [vmem:[%s265 + $0x38] sm:$0xff] %v857
      %874 = vst [vmem:[%s265 + $0x40] sm:$0xff] %v858
      %875 = vst [vmem:[%s265 + $0x48] sm:$0xff] %v859
      %876 = vst [vmem:[%s265 + $0x50] sm:$0xff] %v860
      %877 = vst [vmem:[%s265 + $0x58] sm:$0xff] %v861
      %878 = vst [vmem:[%s265 + $0x60] sm:$0xff] %v862
      %879 = vst [vmem:[%s265 + $0x68] sm:$0xff] %v863
      %880 = vst [vmem:[%s265 + $0x70] sm:$0xff] %v864
      %881 = vst [vmem:[%s265 + $0x78] sm:$0xff] %v865
      // Predicated region
      $region37: #{alexnet_cbam3_forward.14} parent=31 // pred_check
        %p882 = pneg %p268
      $region38: #{alexnet_cbam3_forward.14} parent=31 // pred_check_branch
        %884 = sbr.rel (%p882) target = $region40
      $region39: #{alexnet_cbam3_forward.14} parent=31 // pred_region
        %v885 = vld [vmem:[%s265] sm:$0xff]
        %v886 = vld [vmem:[%s265 + $0x8] sm:$0xff]
        %v887 = vld [vmem:[%s265 + $0x10] sm:$0xff]
        %v888 = vld [vmem:[%s265 + $0x18] sm:$0xff]
        %v889 = vld [vmem:[%s265 + $0x20] sm:$0xff]
        %v890 = vld [vmem:[%s265 + $0x28] sm:$0xff]
        %v891 = vld [vmem:[%s265 + $0x30] sm:$0xff]
        %v892 = vld [vmem:[%s265 + $0x38] sm:$0xff]
        %v893 = vld [vmem:[%s265 + $0x40] sm:$0xff]
        %v894 = vld [vmem:[%s265 + $0x48] sm:$0xff]
        %v895 = vld [vmem:[%s265 + $0x50] sm:$0xff]
        %v896 = vld [vmem:[%s265 + $0x58] sm:$0xff]
        %v897 = vld [vmem:[%s265 + $0x60] sm:$0xff]
        %v898 = vld [vmem:[%s265 + $0x68] sm:$0xff]
        %v899 = vld [vmem:[%s265 + $0x70] sm:$0xff]
        %v900 = vld [vmem:[%s265 + $0x78] sm:$0xff]
        %v901 = vld [vmem:[%s257] sm:$0x1]
        %v903 = vlaneseq
        %v904 = vshrl.u32 %v903, 7
        %v905 = vsub.s32 0, %v904
        %v906 = vrot.slane %v901, %v905
        %v908 = vadd.f32 %v885, %v906
        %v909 = vadd.f32 %v886, %v906
        %v910 = vadd.f32 %v887, %v906
        %v911 = vadd.f32 %v888, %v906
        %v912 = vadd.f32 %v889, %v906
        %v913 = vadd.f32 %v890, %v906
        %v914 = vadd.f32 %v891, %v906
        %v915 = vadd.f32 %v892, %v906
        %v916 = vadd.f32 %v893, %v906
        %v917 = vadd.f32 %v894, %v906
        %v918 = vadd.f32 %v895, %v906
        %v919 = vadd.f32 %v896, %v906
        %v920 = vadd.f32 %v897, %v906
        %v921 = vadd.f32 %v898, %v906
        %v922 = vadd.f32 %v899, %v906
        %v923 = vadd.f32 %v900, %v906
        %v924 = vmax.f32 %v908, 0.0
        %v925 = vmax.f32 %v909, 0.0
        %v926 = vmax.f32 %v910, 0.0
        %v927 = vmax.f32 %v911, 0.0
        %v928 = vmax.f32 %v912, 0.0
        %v929 = vmax.f32 %v913, 0.0
        %v930 = vmax.f32 %v914, 0.0
        %v931 = vmax.f32 %v915, 0.0
        %v932 = vmax.f32 %v916, 0.0
        %v933 = vmax.f32 %v917, 0.0
        %v934 = vmax.f32 %v918, 0.0
        %v935 = vmax.f32 %v919, 0.0
        %v936 = vmax.f32 %v920, 0.0
        %v937 = vmax.f32 %v921, 0.0
        %v938 = vmax.f32 %v922, 0.0
        %v939 = vmax.f32 %v923, 0.0
        %940 = vst [vmem:[%s265] sm:$0xff] %v924
        %941 = vst [vmem:[%s265 + $0x8] sm:$0xff] %v925
        %942 = vst [vmem:[%s265 + $0x10] sm:$0xff] %v926
        %943 = vst [vmem:[%s265 + $0x18] sm:$0xff] %v927
        %944 = vst [vmem:[%s265 + $0x20] sm:$0xff] %v928
        %945 = vst [vmem:[%s265 + $0x28] sm:$0xff] %v929
        %946 = vst [vmem:[%s265 + $0x30] sm:$0xff] %v930
        %947 = vst [vmem:[%s265 + $0x38] sm:$0xff] %v931
        %948 = vst [vmem:[%s265 + $0x40] sm:$0xff] %v932
        %949 = vst [vmem:[%s265 + $0x48] sm:$0xff] %v933
        %950 = vst [vmem:[%s265 + $0x50] sm:$0xff] %v934
        %951 = vst [vmem:[%s265 + $0x58] sm:$0xff] %v935
        %952 = vst [vmem:[%s265 + $0x60] sm:$0xff] %v936
        %953 = vst [vmem:[%s265 + $0x68] sm:$0xff] %v937
        %954 = vst [vmem:[%s265 + $0x70] sm:$0xff] %v938
        %955 = vst [vmem:[%s265 + $0x78] sm:$0xff] %v939
      $region40: #{alexnet_cbam3_forward.14} parent=31 // pred_fallthru
        _
      %s956 = smul.u32 16, %s19
      %p957 = scmp.lt.s32.totalorder %s956, 63
      %s958 = scalar_select %p957, %s956, 63
      %p959 = scmp.lt.s32.totalorder %s20, 0
      %s960 = scalar_select %p959, %s20, 0
      %s961 = sadd.s32 %s960, %s958
      %s962 = smul.addr %s961, 8
      %s963 = scalar_lea.vmem %s3, %s962
      // Predicated region
      $region41: #{alexnet_cbam3_forward.14} parent=31 // pred_check
        %p964 = pneg %p135
      $region42: #{alexnet_cbam3_forward.14} parent=31 // pred_check_branch
        %966 = sbr.rel (%p964) target = $region44
      $region43: #{alexnet_cbam3_forward.14} parent=31 // pred_region
        %s967 = smul.u32 16, %s19
      $region44: #{alexnet_cbam3_forward.14} parent=31 // pred_fallthru
        _
    $region32: #{alexnet_cbam3_forward.14} parent=5 // pred_fallthru
      _
    %p968 = scmp.le.s32.totalorder 2, %s9
    // Predicated region
    $region45: #{alexnet_cbam3_forward.14} parent=5 // pred_check
      %p969 = pneg %p968
    $region46: #{alexnet_cbam3_forward.14} parent=5 // pred_check_branch
      %971 = sbr.rel (%p969) target = $region48
    $region47: #{alexnet_cbam3_forward.14} parent=5 // pred_region
      %s972 = ssub.s32 %s9, 2
      // Predicated region
      $region49: #{alexnet_cbam3_forward.14} parent=47 // pred_check
        %p973 = pneg %p141
      $region50: #{alexnet_cbam3_forward.14} parent=47 // pred_check_branch
        %975 = sbr.rel (%p973) target = $region52
      $region51: #{alexnet_cbam3_forward.14} parent=47 // pred_region
        %s976 = smul.u32 16, %s22
        %p977 = scmp.lt.s32.totalorder %s976, 63
        %s978 = scalar_select %p977, %s976, 63
        %p979 = scmp.lt.s32.totalorder %s23, 0
        %s980 = scalar_select %p979, %s23, 0
        %s981 = sadd.s32 %s980, %s978
        %s982 = smul.addr %s981, 8
        %s983 = scalar_lea.vmem %s3, %s982
      $region52: #{alexnet_cbam3_forward.14} parent=47 // pred_fallthru
        _
    $region48: #{alexnet_cbam3_forward.14} parent=5 // pred_fallthru
      _
  $region6: #{alexnet_cbam3_forward.14} parent=0 // loop_footer
    %s13 = sadd.s32 1, %s9
  $region7: #{alexnet_cbam3_forward.14} parent=0 // loop_footer_branch
    %8 = sbr.rel target = $region3
  $region8: #{alexnet_cbam3_forward.14} parent=0 // loop_exit
    _

// kernel: alexnet_cbam3_forward.15
$region0: #{alexnet_cbam3_forward.15}
  #allocation0 [shape = 'u32[]', space=smem, size = 0x4, offset = 0x4, fixed_abs, tag = 'smem constant byte address 0x4 - core index']
  #allocation1 [shape = 'u32[144,128]{1,0:T(1,128)}', space=vmem, size = 0x12000, scoped, tag = 'internal scratch']
  %s0 = inlined_call_operand.vmem [shape: bf16[112,128], index: 0, kind: input, shape index: {}]
  %s1 = inlined_call_operand.vmem [shape: bf16[128,128], index: 1, kind: input, shape index: {}]
  %s2 = inlined_call_operand.vmem [shape: f32[1,128], index: 2, kind: input, shape index: {}]
  %s3 = inlined_call_operand.vmem [shape: f32[112,128], index: 3, kind: output, shape index: {}]
  %s4 = sld [smem:[#allocation0]]
  $region30: #{alexnet_cbam3_forward.15} parent=0
    _
  %s6 = ssub.s32 1, %s4
  %s7 = scalar_select 0, %s6, %s4
  // Predicated region
  $region2: #{alexnet_cbam3_forward.15} parent=0 // pred_check
    _
  $region3: #{alexnet_cbam3_forward.15} parent=0 // pred_check_branch
    %9 = sbr.rel (0) target = $region5
  $region4: #{alexnet_cbam3_forward.15} parent=0 // pred_region
    _
  $region5: #{alexnet_cbam3_forward.15} parent=0 // pred_fallthru
    _
  // Predicated region
  $region6: #{alexnet_cbam3_forward.15} parent=0 // pred_check
    _
  $region7: #{alexnet_cbam3_forward.15} parent=0 // pred_check_branch
    %11 = sbr.rel (0) target = $region9
  $region8: #{alexnet_cbam3_forward.15} parent=0 // pred_region
    _
  $region9: #{alexnet_cbam3_forward.15} parent=0 // pred_fallthru
    _
  // Predicated region
  $region10: #{alexnet_cbam3_forward.15} parent=0 // pred_check
    _
  $region11: #{alexnet_cbam3_forward.15} parent=0 // pred_check_branch
    %13 = sbr.rel (0) target = $region13
  $region12: #{alexnet_cbam3_forward.15} parent=0 // pred_region
    _
  $region13: #{alexnet_cbam3_forward.15} parent=0 // pred_fallthru
    _
  %p15 = scmp.eq.s32.totalorder 0, 0
  // Predicated region
  $region14: #{alexnet_cbam3_forward.15} parent=0 // pred_check
    %p16 = pneg %p15
  $region15: #{alexnet_cbam3_forward.15} parent=0 // pred_check_branch
    %18 = sbr.rel (%p16) target = $region17
  $region16: #{alexnet_cbam3_forward.15} parent=0 // pred_region
    %19 = vst [vmem:[%s3] sm:$0xff] 0.0
    %20 = vst [vmem:[%s3 + $0x8] sm:$0xff] 0.0
    %21 = vst [vmem:[%s3 + $0x10] sm:$0xff] 0.0
    %22 = vst [vmem:[%s3 + $0x18] sm:$0xff] 0.0
    %23 = vst [vmem:[%s3 + $0x20] sm:$0xff] 0.0
    %24 = vst [vmem:[%s3 + $0x28] sm:$0xff] 0.0
    %25 = vst [vmem:[%s3 + $0x30] sm:$0xff] 0.0
    %26 = vst [vmem:[%s3 + $0x38] sm:$0xff] 0.0
    %27 = vst [vmem:[%s3 + $0x40] sm:$0xff] 0.0
    %28 = vst [vmem:[%s3 + $0x48] sm:$0xff] 0.0
    %29 = vst [vmem:[%s3 + $0x50] sm:$0xff] 0.0
    %30 = vst [vmem:[%s3 + $0x58] sm:$0xff] 0.0
    %31 = vst [vmem:[%s3 + $0x60] sm:$0xff] 0.0
    %32 = vst [vmem:[%s3 + $0x68] sm:$0xff] 0.0
  $region17: #{alexnet_cbam3_forward.15} parent=0 // pred_fallthru
    _
  %v33 = vld [vmem:[%s3] sm:$0xff]
  %v34 = vld [vmem:[%s3 + $0x8] sm:$0xff]
  %v35 = vld [vmem:[%s3 + $0x10] sm:$0xff]
  %v36 = vld [vmem:[%s3 + $0x18] sm:$0xff]
  %v37 = vld [vmem:[%s3 + $0x20] sm:$0xff]
  %v38 = vld [vmem:[%s3 + $0x28] sm:$0xff]
  %v39 = vld [vmem:[%s3 + $0x30] sm:$0xff]
  %v40 = vld [vmem:[%s3 + $0x38] sm:$0xff]
  %v41 = vld [vmem:[%s3 + $0x40] sm:$0xff]
  %v42 = vld [vmem:[%s3 + $0x48] sm:$0xff]
  %v43 = vld [vmem:[%s3 + $0x50] sm:$0xff]
  %v44 = vld [vmem:[%s3 + $0x58] sm:$0xff]
  %v45 = vld [vmem:[%s3 + $0x60] sm:$0xff]
  %v46 = vld [vmem:[%s3 + $0x68] sm:$0xff]
  %v47 = vld [vmem:[%s0] sm:$0xf]
  %v48 = vld [vmem:[%s0 + $0x4] sm:$0xf]
  %v49 = vld [vmem:[%s0 + $0x8] sm:$0xf]
  %v50 = vld [vmem:[%s0 + $0xc] sm:$0xf]
  %v51 = vld [vmem:[%s0 + $0x10] sm:$0xf]
  %v52 = vld [vmem:[%s0 + $0x14] sm:$0xf]
  %v53 = vld [vmem:[%s0 + $0x18] sm:$0xf]
  %v54 = vld [vmem:[%s0 + $0x1c] sm:$0xf]
  %v55 = vld [vmem:[%s0 + $0x20] sm:$0xf]
  %v56 = vld [vmem:[%s0 + $0x24] sm:$0xf]
  %v57 = vld [vmem:[%s0 + $0x28] sm:$0xf]
  %v58 = vld [vmem:[%s0 + $0x2c] sm:$0xf]
  %v59 = vld [vmem:[%s0 + $0x30] sm:$0xf]
  %v60 = vld [vmem:[%s0 + $0x34] sm:$0xf]
  %v61 = vld [vmem:[%s1] sm:$0xf]
  %v62 = vld [vmem:[%s1 + $0x4] sm:$0xf]
  %v63 = vld [vmem:[%s1 + $0x8] sm:$0xf]
  %v64 = vld [vmem:[%s1 + $0xc] sm:$0xf]
  %v65 = vld [vmem:[%s1 + $0x10] sm:$0xf]
  %v66 = vld [vmem:[%s1 + $0x14] sm:$0xf]
  %v67 = vld [vmem:[%s1 + $0x18] sm:$0xf]
  %v68 = vld [vmem:[%s1 + $0x1c] sm:$0xf]
  %v69 = vld [vmem:[%s1 + $0x20] sm:$0xf]
  %v70 = vld [vmem:[%s1 + $0x24] sm:$0xf]
  %v71 = vld [vmem:[%s1 + $0x28] sm:$0xf]
  %v72 = vld [vmem:[%s1 + $0x2c] sm:$0xf]
  %v73 = vld [vmem:[%s1 + $0x30] sm:$0xf]
  %v74 = vld [vmem:[%s1 + $0x34] sm:$0xf]
  %v75 = vld [vmem:[%s1 + $0x38] sm:$0xf]
  %v76 = vld [vmem:[%s1 + $0x3c] sm:$0xf]
  %v91 = vunpack.c.l.b16 %v47
  %v92 = vunpack.c.l.b16 %v48
  %v93 = vunpack.c.l.b16 %v49
  %v94 = vunpack.c.l.b16 %v50
  %v95 = vunpack.c.l.b16 %v51
  %v96 = vunpack.c.l.b16 %v52
  %v97 = vunpack.c.l.b16 %v53
  %v98 = vunpack.c.l.b16 %v54
  %v99 = vunpack.c.l.b16 %v55
  %v100 = vunpack.c.l.b16 %v56
  %v101 = vunpack.c.l.b16 %v57
  %v102 = vunpack.c.l.b16 %v58
  %v103 = vunpack.c.l.b16 %v59
  %v104 = vunpack.c.l.b16 %v60
  %v105 = vpack.c.b16 %v92, %v91
  %v106 = vpack.c.b16 %v94, %v93
  %v107 = vpack.c.b16 %v96, %v95
  %v108 = vpack.c.b16 %v98, %v97
  %v109 = vpack.c.b16 %v100, %v99
  %v110 = vpack.c.b16 %v102, %v101
  %v111 = vpack.c.b16 %v104, %v103
  %v135 = vunpack.c.l.b16 %v61
  %v136 = vunpack.c.l.b16 %v62
  %v137 = vunpack.c.l.b16 %v63
  %v138 = vunpack.c.l.b16 %v64
  %v139 = vunpack.c.l.b16 %v65
  %v140 = vunpack.c.l.b16 %v66
  %v141 = vunpack.c.l.b16 %v67
  %v142 = vunpack.c.l.b16 %v68
  %v143 = vunpack.c.l.b16 %v69
  %v144 = vunpack.c.l.b16 %v70
  %v145 = vunpack.c.l.b16 %v71
  %v146 = vunpack.c.l.b16 %v72
  %v147 = vunpack.c.l.b16 %v73
  %v148 = vunpack.c.l.b16 %v74
  %v149 = vunpack.c.l.b16 %v75
  %v150 = vunpack.c.l.b16 %v76
  %v151 = vpack.c.b16 %v136, %v135
  %v152 = vpack.c.b16 %v138, %v137
  %v153 = vpack.c.b16 %v140, %v139
  %v154 = vpack.c.b16 %v142, %v141
  %v155 = vpack.c.b16 %v144, %v143
  %v156 = vpack.c.b16 %v146, %v145
  %v157 = vpack.c.b16 %v148, %v147
  %v158 = vpack.c.b16 %v150, %v149
  %167 = vmatprep.subr.bf16.mxu0 0
  %168 = vmatpush1.bf16.msra.mxu0 %v151
  %169 = vmatprep.subr.bf16.mxu0 0
  %170 = vmatpush1.bf16.msra.mxu0 %v152
  %171 = vmatprep.subr.bf16.mxu0 0
  %172 = vmatpush1.bf16.msra.mxu0 %v153
  %173 = vmatprep.subr.bf16.mxu0 0
  %174 = vmatpush1.bf16.msra.mxu0 %v154
  %175 = vmatprep.subr.bf16.mxu0 0
  %176 = vmatpush1.bf16.msra.mxu0 %v155
  %177 = vmatprep.subr.bf16.mxu0 0
  %178 = vmatpush1.bf16.msra.mxu0 %v156
  %179 = vmatprep.subr.bf16.mxu0 0
  %180 = vmatpush1.bf16.msra.mxu0 %v157
  %181 = vmatprep.subr.bf16.mxu0 0
  %182 = vmatpush1.bf16.msra.mxu0 %v158
  %183 = vmatprep.subr.bf16.mxu0 0
  %184 = vmatpush1.bf16.msra.mxu0 0
  %185 = vmatprep.subr.bf16.mxu0 0
  %186 = vmatpush1.bf16.msra.mxu0 0
  %187 = vmatprep.subr.bf16.mxu0 0
  %188 = vmatpush1.bf16.msra.mxu0 0
  %189 = vmatprep.subr.bf16.mxu0 0
  %190 = vmatpush1.bf16.msra.mxu0 0
  %191 = vmatprep.subr.bf16.mxu0 0
  %192 = vmatpush1.bf16.msra.mxu0 0
  %193 = vmatprep.subr.bf16.mxu0 0
  %194 = vmatpush1.bf16.msra.mxu0 0
  %195 = vmatprep.subr.bf16.mxu0 0
  %196 = vmatpush1.bf16.msra.mxu0 0
  %197 = vmatprep.subr.bf16.mxu0 0
  %198 = vmatpush1.bf16.msra.mxu0 0
  %199 = vmatprep.mubr.bf16.mxu0 0
  %200 = vmatmul.mubr.bf16.gmra.mrb[0].mxu0 %v105
  %v201 = vpop.f32.mrb[0].mxu0
  %v202 = vadd.f32 0.0, %v201
  %v203 = vpop.f32.mrb[0].mxu0
  %v204 = vpop.f32.mrb[0].mxu0
  %v205 = vadd.f32 0.0, %v204
  %v206 = vpop.f32.mrb[0].mxu0
  %207 = vmatprep.mubr.bf16.mxu0 0
  %208 = vmatmul.mubr.bf16.gmra.mrb[0].mxu0 %v106
  %v209 = vpop.f32.mrb[0].mxu0
  %v210 = vadd.f32 0.0, %v209
  %v211 = vpop.f32.mrb[0].mxu0
  %v212 = vpop.f32.mrb[0].mxu0
  %v213 = vadd.f32 0.0, %v212
  %v214 = vpop.f32.mrb[0].mxu0
  %215 = vmatprep.mubr.bf16.mxu0 0
  %216 = vmatmul.mubr.bf16.gmra.mrb[0].mxu0 %v107
  %v217 = vpop.f32.mrb[0].mxu0
  %v218 = vadd.f32 0.0, %v217
  %v219 = vpop.f32.mrb[0].mxu0
  %v220 = vpop.f32.mrb[0].mxu0
  %v221 = vadd.f32 0.0, %v220
  %v222 = vpop.f32.mrb[0].mxu0
  %223 = vmatprep.mubr.bf16.mxu0 0
  %224 = vmatmul.mubr.bf16.gmra.mrb[0].mxu0 %v108
  %v225 = vpop.f32.mrb[0].mxu0
  %v226 = vadd.f32 0.0, %v225
  %v227 = vpop.f32.mrb[0].mxu0
  %v228 = vpop.f32.mrb[0].mxu0
  %v229 = vadd.f32 0.0, %v228
  %v230 = vpop.f32.mrb[0].mxu0
  %231 = vmatprep.mubr.bf16.mxu0 0
  %232 = vmatmul.mubr.bf16.gmra.mrb[0].mxu0 %v109
  %v233 = vpop.f32.mrb[0].mxu0
  %v234 = vadd.f32 0.0, %v233
  %v235 = vpop.f32.mrb[0].mxu0
  %v236 = vpop.f32.mrb[0].mxu0
  %v237 = vadd.f32 0.0, %v236
  %v238 = vpop.f32.mrb[0].mxu0
  %239 = vmatprep.mubr.bf16.mxu0 0
  %240 = vmatmul.mubr.bf16.gmra.mrb[0].mxu0 %v110
  %v241 = vpop.f32.mrb[0].mxu0
  %v242 = vadd.f32 0.0, %v241
  %v243 = vpop.f32.mrb[0].mxu0
  %v244 = vpop.f32.mrb[0].mxu0
  %v245 = vadd.f32 0.0, %v244
  %v246 = vpop.f32.mrb[0].mxu0
  %247 = vmatprep.mubr.bf16.mxu0 0
  %248 = vmatmul.mubr.bf16.gmra.mrb[0].mxu0 %v111
  %v249 = vpop.f32.mrb[0].mxu0
  %v250 = vadd.f32 0.0, %v249
  %v251 = vpop.f32.mrb[0].mxu0
  %v252 = vpop.f32.mrb[0].mxu0
  %v253 = vadd.f32 0.0, %v252
  %v254 = vpop.f32.mrb[0].mxu0
  %255 = vdwg.mxu0
  %v256 = vadd.f32 %v33, %v202
  %v257 = vadd.f32 %v34, %v205
  %v258 = vadd.f32 %v35, %v210
  %v259 = vadd.f32 %v36, %v213
  %v260 = vadd.f32 %v37, %v218
  %v261 = vadd.f32 %v38, %v221
  %v262 = vadd.f32 %v39, %v226
  %v263 = vadd.f32 %v40, %v229
  %v264 = vadd.f32 %v41, %v234
  %v265 = vadd.f32 %v42, %v237
  %v266 = vadd.f32 %v43, %v242
  %v267 = vadd.f32 %v44, %v245
  %v268 = vadd.f32 %v45, %v250
  %v269 = vadd.f32 %v46, %v253
  %270 = vst [vmem:[%s3] sm:$0xff] %v256
  %271 = vst [vmem:[%s3 + $0x8] sm:$0xff] %v257
  %272 = vst [vmem:[%s3 + $0x10] sm:$0xff] %v258
  %273 = vst [vmem:[%s3 + $0x18] sm:$0xff] %v259
  %274 = vst [vmem:[%s3 + $0x20] sm:$0xff] %v260
  %275 = vst [vmem:[%s3 + $0x28] sm:$0xff] %v261
  %276 = vst [vmem:[%s3 + $0x30] sm:$0xff] %v262
  %277 = vst [vmem:[%s3 + $0x38] sm:$0xff] %v263
  %278 = vst [vmem:[%s3 + $0x40] sm:$0xff] %v264
  %279 = vst [vmem:[%s3 + $0x48] sm:$0xff] %v265
  %280 = vst [vmem:[%s3 + $0x50] sm:$0xff] %v266
  %281 = vst [vmem:[%s3 + $0x58] sm:$0xff] %v267
  %282 = vst [vmem:[%s3 + $0x60] sm:$0xff] %v268
  %283 = vst [vmem:[%s3 + $0x68] sm:$0xff] %v269
  // Predicated region
  $region18: #{alexnet_cbam3_forward.15} parent=0 // pred_check
    %p284 = pneg %p15
  $region19: #{alexnet_cbam3_forward.15} parent=0 // pred_check_branch
    %286 = sbr.rel (%p284) target = $region21
  $region20: #{alexnet_cbam3_forward.15} parent=0 // pred_region
    %v287 = vld [vmem:[%s3] sm:$0xff]
    %v288 = vld [vmem:[%s3 + $0x8] sm:$0xff]
    %v289 = vld [vmem:[%s3 + $0x10] sm:$0xff]
    %v290 = vld [vmem:[%s3 + $0x18] sm:$0xff]
    %v291 = vld [vmem:[%s3 + $0x20] sm:$0xff]
    %v292 = vld [vmem:[%s3 + $0x28] sm:$0xff]
    %v293 = vld [vmem:[%s3 + $0x30] sm:$0xff]
    %v294 = vld [vmem:[%s3 + $0x38] sm:$0xff]
    %v295 = vld [vmem:[%s3 + $0x40] sm:$0xff]
    %v296 = vld [vmem:[%s3 + $0x48] sm:$0xff]
    %v297 = vld [vmem:[%s3 + $0x50] sm:$0xff]
    %v298 = vld [vmem:[%s3 + $0x58] sm:$0xff]
    %v299 = vld [vmem:[%s3 + $0x60] sm:$0xff]
    %v300 = vld [vmem:[%s3 + $0x68] sm:$0xff]
    %v301 = vld [vmem:[%s2] sm:$0x1]
    %v303 = vlaneseq
    %v304 = vshrl.u32 %v303, 7
    %v305 = vsub.s32 0, %v304
    %v306 = vrot.slane %v301, %v305
    %v308 = vadd.f32 %v287, %v306
    %v309 = vadd.f32 %v288, %v306
    %v310 = vadd.f32 %v289, %v306
    %v311 = vadd.f32 %v290, %v306
    %v312 = vadd.f32 %v291, %v306
    %v313 = vadd.f32 %v292, %v306
    %v314 = vadd.f32 %v293, %v306
    %v315 = vadd.f32 %v294, %v306
    %v316 = vadd.f32 %v295, %v306
    %v317 = vadd.f32 %v296, %v306
    %v318 = vadd.f32 %v297, %v306
    %v319 = vadd.f32 %v298, %v306
    %v320 = vadd.f32 %v299, %v306
    %v321 = vadd.f32 %v300, %v306
    %v322 = vmax.f32 %v308, 0.0
    %v323 = vmax.f32 %v309, 0.0
    %v324 = vmax.f32 %v310, 0.0
    %v325 = vmax.f32 %v311, 0.0
    %v326 = vmax.f32 %v312, 0.0
    %v327 = vmax.f32 %v313, 0.0
    %v328 = vmax.f32 %v314, 0.0
    %v329 = vmax.f32 %v315, 0.0
    %v330 = vmax.f32 %v316, 0.0
    %v331 = vmax.f32 %v317, 0.0
    %v332 = vmax.f32 %v318, 0.0
    %v333 = vmax.f32 %v319, 0.0
    %v334 = vmax.f32 %v320, 0.0
    %v335 = vmax.f32 %v321, 0.0
    %336 = vst [vmem:[%s3] sm:$0xff] %v322
    %337 = vst [vmem:[%s3 + $0x8] sm:$0xff] %v323
    %338 = vst [vmem:[%s3 + $0x10] sm:$0xff] %v324
    %339 = vst [vmem:[%s3 + $0x18] sm:$0xff] %v325
    %340 = vst [vmem:[%s3 + $0x20] sm:$0xff] %v326
    %341 = vst [vmem:[%s3 + $0x28] sm:$0xff] %v327
    %342 = vst [vmem:[%s3 + $0x30] sm:$0xff] %v328
    %343 = vst [vmem:[%s3 + $0x38] sm:$0xff] %v329
    %344 = vst [vmem:[%s3 + $0x40] sm:$0xff] %v330
    %345 = vst [vmem:[%s3 + $0x48] sm:$0xff] %v331
    %346 = vst [vmem:[%s3 + $0x50] sm:$0xff] %v332
    %347 = vst [vmem:[%s3 + $0x58] sm:$0xff] %v333
    %348 = vst [vmem:[%s3 + $0x60] sm:$0xff] %v334
    %349 = vst [vmem:[%s3 + $0x68] sm:$0xff] %v335
  $region21: #{alexnet_cbam3_forward.15} parent=0 // pred_fallthru
    _
  // Predicated region
  $region22: #{alexnet_cbam3_forward.15} parent=0 // pred_check
    _
  $region23: #{alexnet_cbam3_forward.15} parent=0 // pred_check_branch
    %351 = sbr.rel (0) target = $region25
  $region24: #{alexnet_cbam3_forward.15} parent=0 // pred_region
    _
  $region25: #{alexnet_cbam3_forward.15} parent=0 // pred_fallthru
    _
  // Predicated region
  $region26: #{alexnet_cbam3_forward.15} parent=0 // pred_check
    _
  $region27: #{alexnet_cbam3_forward.15} parent=0 // pred_check_branch
    %353 = sbr.rel (0) target = $region29
  $region28: #{alexnet_cbam3_forward.15} parent=0 // pred_region
    _
  $region29: #{alexnet_cbam3_forward.15} parent=0 // pred_fallthru
    _

// kernel: alexnet_cbam3_forward.16
$region0: #{alexnet_cbam3_forward.16}
  #allocation0 [shape = 'u32[]', space=smem, size = 0x4, offset = 0x4, fixed_abs, tag = 'smem constant byte address 0x4 - core index']
  #allocation1 [shape = 'u32[144,128]{1,0:T(1,128)}', space=vmem, size = 0x12000, scoped, tag = 'internal scratch']
  %s0 = inlined_call_operand.vmem [shape: bf16[112,512], index: 0, kind: input, shape index: {}]
  %s1 = inlined_call_operand.vmem [shape: bf16[512,128], index: 1, kind: input, shape index: {}]
  %s2 = inlined_call_operand.vmem [shape: f32[1,128], index: 2, kind: input, shape index: {}]
  %s3 = inlined_call_operand.vmem [shape: f32[112,128], index: 3, kind: output, shape index: {}]
  %s4 = sld [smem:[#allocation0]]
  $region30: #{alexnet_cbam3_forward.16} parent=0
    _
  %s6 = ssub.s32 1, %s4
  %s7 = scalar_select 0, %s6, %s4
  // Predicated region
  $region2: #{alexnet_cbam3_forward.16} parent=0 // pred_check
    _
  $region3: #{alexnet_cbam3_forward.16} parent=0 // pred_check_branch
    %9 = sbr.rel (0) target = $region5
  $region4: #{alexnet_cbam3_forward.16} parent=0 // pred_region
    _
  $region5: #{alexnet_cbam3_forward.16} parent=0 // pred_fallthru
    _
  // Predicated region
  $region6: #{alexnet_cbam3_forward.16} parent=0 // pred_check
    _
  $region7: #{alexnet_cbam3_forward.16} parent=0 // pred_check_branch
    %11 = sbr.rel (0) target = $region9
  $region8: #{alexnet_cbam3_forward.16} parent=0 // pred_region
    _
  $region9: #{alexnet_cbam3_forward.16} parent=0 // pred_fallthru
    _
  // Predicated region
  $region10: #{alexnet_cbam3_forward.16} parent=0 // pred_check
    _
  $region11: #{alexnet_cbam3_forward.16} parent=0 // pred_check_branch
    %13 = sbr.rel (0) target = $region13
  $region12: #{alexnet_cbam3_forward.16} parent=0 // pred_region
    _
  $region13: #{alexnet_cbam3_forward.16} parent=0 // pred_fallthru
    _
  %p15 = scmp.eq.s32.totalorder 0, 0
  // Predicated region
  $region14: #{alexnet_cbam3_forward.16} parent=0 // pred_check
    %p16 = pneg %p15
  $region15: #{alexnet_cbam3_forward.16} parent=0 // pred_check_branch
    %18 = sbr.rel (%p16) target = $region17
  $region16: #{alexnet_cbam3_forward.16} parent=0 // pred_region
    %19 = vst [vmem:[%s3] sm:$0xff] 0.0
    %20 = vst [vmem:[%s3 + $0x8] sm:$0xff] 0.0
    %21 = vst [vmem:[%s3 + $0x10] sm:$0xff] 0.0
    %22 = vst [vmem:[%s3 + $0x18] sm:$0xff] 0.0
    %23 = vst [vmem:[%s3 + $0x20] sm:$0xff] 0.0
    %24 = vst [vmem:[%s3 + $0x28] sm:$0xff] 0.0
    %25 = vst [vmem:[%s3 + $0x30] sm:$0xff] 0.0
    %26 = vst [vmem:[%s3 + $0x38] sm:$0xff] 0.0
    %27 = vst [vmem:[%s3 + $0x40] sm:$0xff] 0.0
    %28 = vst [vmem:[%s3 + $0x48] sm:$0xff] 0.0
    %29 = vst [vmem:[%s3 + $0x50] sm:$0xff] 0.0
    %30 = vst [vmem:[%s3 + $0x58] sm:$0xff] 0.0
    %31 = vst [vmem:[%s3 + $0x60] sm:$0xff] 0.0
    %32 = vst [vmem:[%s3 + $0x68] sm:$0xff] 0.0
  $region17: #{alexnet_cbam3_forward.16} parent=0 // pred_fallthru
    _
  %v33 = vld [vmem:[%s3] sm:$0xff]
  %v34 = vld [vmem:[%s3 + $0x8] sm:$0xff]
  %v35 = vld [vmem:[%s3 + $0x10] sm:$0xff]
  %v36 = vld [vmem:[%s3 + $0x18] sm:$0xff]
  %v37 = vld [vmem:[%s3 + $0x20] sm:$0xff]
  %v38 = vld [vmem:[%s3 + $0x28] sm:$0xff]
  %v39 = vld [vmem:[%s3 + $0x30] sm:$0xff]
  %v40 = vld [vmem:[%s3 + $0x38] sm:$0xff]
  %v41 = vld [vmem:[%s3 + $0x40] sm:$0xff]
  %v42 = vld [vmem:[%s3 + $0x48] sm:$0xff]
  %v43 = vld [vmem:[%s3 + $0x50] sm:$0xff]
  %v44 = vld [vmem:[%s3 + $0x58] sm:$0xff]
  %v45 = vld [vmem:[%s3 + $0x60] sm:$0xff]
  %v46 = vld [vmem:[%s3 + $0x68] sm:$0xff]
  %v47 = vld [vmem:[%s0] sm:$0xff]
  %v48 = vld [vmem:[%s0 + $0x8] sm:$0xff]
  %v49 = vld [vmem:[%s0 + $0x10] sm:$0xff]
  %v50 = vld [vmem:[%s0 + $0x18] sm:$0xff]
  %v51 = vld [vmem:[%s0 + $0x20] sm:$0xff]
  %v52 = vld [vmem:[%s0 + $0x28] sm:$0xff]
  %v53 = vld [vmem:[%s0 + $0x30] sm:$0xff]
  %v54 = vld [vmem:[%s0 + $0x38] sm:$0xff]
  %v55 = vld [vmem:[%s0 + $0x40] sm:$0xff]
  %v56 = vld [vmem:[%s0 + $0x48] sm:$0xff]
  %v57 = vld [vmem:[%s0 + $0x50] sm:$0xff]
  %v58 = vld [vmem:[%s0 + $0x58] sm:$0xff]
  %v59 = vld [vmem:[%s0 + $0x60] sm:$0xff]
  %v60 = vld [vmem:[%s0 + $0x68] sm:$0xff]
  %v61 = vld [vmem:[%s0 + $0x70] sm:$0xff]
  %v62 = vld [vmem:[%s0 + $0x78] sm:$0xff]
  %v63 = vld [vmem:[%s0 + $0x80] sm:$0xff]
  %v64 = vld [vmem:[%s0 + $0x88] sm:$0xff]
  %v65 = vld [vmem:[%s0 + $0x90] sm:$0xff]
  %v66 = vld [vmem:[%s0 + $0x98] sm:$0xff]
  %v67 = vld [vmem:[%s0 + $0xa0] sm:$0xff]
  %v68 = vld [vmem:[%s0 + $0xa8] sm:$0xff]
  %v69 = vld [vmem:[%s0 + $0xb0] sm:$0xff]
  %v70 = vld [vmem:[%s0 + $0xb8] sm:$0xff]
  %v71 = vld [vmem:[%s0 + $0xc0] sm:$0xff]
  %v72 = vld [vmem:[%s0 + $0xc8] sm:$0xff]
  %v73 = vld [vmem:[%s0 + $0xd0] sm:$0xff]
  %v74 = vld [vmem:[%s0 + $0xd8] sm:$0xff]
  %v75 = vld [vmem:[%s1] sm:$0xf]
  %v76 = vld [vmem:[%s1 + $0x4] sm:$0xf]
  %v77 = vld [vmem:[%s1 + $0x8] sm:$0xf]
  %v78 = vld [vmem:[%s1 + $0xc] sm:$0xf]
  %v79 = vld [vmem:[%s1 + $0x10] sm:$0xf]
  %v80 = vld [vmem:[%s1 + $0x14] sm:$0xf]
  %v81 = vld [vmem:[%s1 + $0x18] sm:$0xf]
  %v82 = vld [vmem:[%s1 + $0x1c] sm:$0xf]
  %v83 = vld [vmem:[%s1 + $0x20] sm:$0xf]
  %v84 = vld [vmem:[%s1 + $0x24] sm:$0xf]
  %v85 = vld [vmem:[%s1 + $0x28] sm:$0xf]
  %v86 = vld [vmem:[%s1 + $0x2c] sm:$0xf]
  %v87 = vld [vmem:[%s1 + $0x30] sm:$0xf]
  %v88 = vld [vmem:[%s1 + $0x34] sm:$0xf]
  %v89 = vld [vmem:[%s1 + $0x38] sm:$0xf]
  %v90 = vld [vmem:[%s1 + $0x3c] sm:$0xf]
  %v91 = vld [vmem:[%s1 + $0x40] sm:$0xf]
  %v92 = vld [vmem:[%s1 + $0x44] sm:$0xf]
  %v93 = vld [vmem:[%s1 + $0x48] sm:$0xf]
  %v94 = vld [vmem:[%s1 + $0x4c] sm:$0xf]
  %v95 = vld [vmem:[%s1 + $0x50] sm:$0xf]
  %v96 = vld [vmem:[%s1 + $0x54] sm:$0xf]
  %v97 = vld [vmem:[%s1 + $0x58] sm:$0xf]
  %v98 = vld [vmem:[%s1 + $0x5c] sm:$0xf]
  %v99 = vld [vmem:[%s1 + $0x60] sm:$0xf]
  %v100 = vld [vmem:[%s1 + $0x64] sm:$0xf]
  %v101 = vld [vmem:[%s1 + $0x68] sm:$0xf]
  %v102 = vld [vmem:[%s1 + $0x6c] sm:$0xf]
  %v103 = vld [vmem:[%s1 + $0x70] sm:$0xf]
  %v104 = vld [vmem:[%s1 + $0x74] sm:$0xf]
  %v105 = vld [vmem:[%s1 + $0x78] sm:$0xf]
  %v106 = vld [vmem:[%s1 + $0x7c] sm:$0xf]
  %v107 = vld [vmem:[%s1 + $0x80] sm:$0xf]
  %v108 = vld [vmem:[%s1 + $0x84] sm:$0xf]
  %v109 = vld [vmem:[%s1 + $0x88] sm:$0xf]
  %v110 = vld [vmem:[%s1 + $0x8c] sm:$0xf]
  %v111 = vld [vmem:[%s1 + $0x90] sm:$0xf]
  %v112 = vld [vmem:[%s1 + $0x94] sm:$0xf]
  %v113 = vld [vmem:[%s1 + $0x98] sm:$0xf]
  %v114 = vld [vmem:[%s1 + $0x9c] sm:$0xf]
  %v115 = vld [vmem:[%s1 + $0xa0] sm:$0xf]
  %v116 = vld [vmem:[%s1 + $0xa4] sm:$0xf]
  %v117 = vld [vmem:[%s1 + $0xa8] sm:$0xf]
  %v118 = vld [vmem:[%s1 + $0xac] sm:$0xf]
  %v119 = vld [vmem:[%s1 + $0xb0] sm:$0xf]
  %v120 = vld [vmem:[%s1 + $0xb4] sm:$0xf]
  %v121 = vld [vmem:[%s1 + $0xb8] sm:$0xf]
  %v122 = vld [vmem:[%s1 + $0xbc] sm:$0xf]
  %v123 = vld [vmem:[%s1 + $0xc0] sm:$0xf]
  %v124 = vld [vmem:[%s1 + $0xc4] sm:$0xf]
  %v125 = vld [vmem:[%s1 + $0xc8] sm:$0xf]
  %v126 = vld [vmem:[%s1 + $0xcc] sm:$0xf]
  %v127 = vld [vmem:[%s1 + $0xd0] sm:$0xf]
  %v128 = vld [vmem:[%s1 + $0xd4] sm:$0xf]
  %v129 = vld [vmem:[%s1 + $0xd8] sm:$0xf]
  %v130 = vld [vmem:[%s1 + $0xdc] sm:$0xf]
  %v131 = vld [vmem:[%s1 + $0xe0] sm:$0xf]
  %v132 = vld [vmem:[%s1 + $0xe4] sm:$0xf]
  %v133 = vld [vmem:[%s1 + $0xe8] sm:$0xf]
  %v134 = vld [vmem:[%s1 + $0xec] sm:$0xf]
  %v135 = vld [vmem:[%s1 + $0xf0] sm:$0xf]
  %v136 = vld [vmem:[%s1 + $0xf4] sm:$0xf]
  %v137 = vld [vmem:[%s1 + $0xf8] sm:$0xf]
  %v138 = vld [vmem:[%s1 + $0xfc] sm:$0xf]
  %v167 = vunpack.c.l.b16 %v47
  %v168 = vunpack.c.h.b16 %v47
  %v169 = vunpack.c.l.b16 %v48
  %v170 = vunpack.c.h.b16 %v48
  %v171 = vunpack.c.l.b16 %v49
  %v172 = vunpack.c.h.b16 %v49
  %v173 = vunpack.c.l.b16 %v50
  %v174 = vunpack.c.h.b16 %v50
  %v175 = vunpack.c.l.b16 %v51
  %v176 = vunpack.c.h.b16 %v51
  %v177 = vunpack.c.l.b16 %v52
  %v178 = vunpack.c.h.b16 %v52
  %v179 = vunpack.c.l.b16 %v53
  %v180 = vunpack.c.h.b16 %v53
  %v181 = vunpack.c.l.b16 %v54
  %v182 = vunpack.c.h.b16 %v54
  %v183 = vunpack.c.l.b16 %v55
  %v184 = vunpack.c.h.b16 %v55
  %v185 = vunpack.c.l.b16 %v56
  %v186 = vunpack.c.h.b16 %v56
  %v187 = vunpack.c.l.b16 %v57
  %v188 = vunpack.c.h.b16 %v57
  %v189 = vunpack.c.l.b16 %v58
  %v190 = vunpack.c.h.b16 %v58
  %v191 = vunpack.c.l.b16 %v59
  %v192 = vunpack.c.h.b16 %v59
  %v193 = vunpack.c.l.b16 %v60
  %v194 = vunpack.c.h.b16 %v60
  %v195 = vunpack.c.l.b16 %v61
  %v196 = vunpack.c.h.b16 %v61
  %v197 = vunpack.c.l.b16 %v62
  %v198 = vunpack.c.h.b16 %v62
  %v199 = vunpack.c.l.b16 %v63
  %v200 = vunpack.c.h.b16 %v63
  %v201 = vunpack.c.l.b16 %v64
  %v202 = vunpack.c.h.b16 %v64
  %v203 = vunpack.c.l.b16 %v65
  %v204 = vunpack.c.h.b16 %v65
  %v205 = vunpack.c.l.b16 %v66
  %v206 = vunpack.c.h.b16 %v66
  %v207 = vunpack.c.l.b16 %v67
  %v208 = vunpack.c.h.b16 %v67
  %v209 = vunpack.c.l.b16 %v68
  %v210 = vunpack.c.h.b16 %v68
  %v211 = vunpack.c.l.b16 %v69
  %v212 = vunpack.c.h.b16 %v69
  %v213 = vunpack.c.l.b16 %v70
  %v214 = vunpack.c.h.b16 %v70
  %v215 = vunpack.c.l.b16 %v71
  %v216 = vunpack.c.h.b16 %v71
  %v217 = vunpack.c.l.b16 %v72
  %v218 = vunpack.c.h.b16 %v72
  %v219 = vunpack.c.l.b16 %v73
  %v220 = vunpack.c.h.b16 %v73
  %v221 = vunpack.c.l.b16 %v74
  %v222 = vunpack.c.h.b16 %v74
  %v223 = vpack.c.b16 %v171, %v167
  %v224 = vpack.c.b16 %v172, %v168
  %v225 = vpack.c.b16 %v173, %v169
  %v226 = vpack.c.b16 %v174, %v170
  %v227 = vpack.c.b16 %v179, %v175
  %v228 = vpack.c.b16 %v180, %v176
  %v229 = vpack.c.b16 %v181, %v177
  %v230 = vpack.c.b16 %v182, %v178
  %v231 = vpack.c.b16 %v187, %v183
  %v232 = vpack.c.b16 %v188, %v184
  %v233 = vpack.c.b16 %v189, %v185
  %v234 = vpack.c.b16 %v190, %v186
  %v235 = vpack.c.b16 %v195, %v191
  %v236 = vpack.c.b16 %v196, %v192
  %v237 = vpack.c.b16 %v197, %v193
  %v238 = vpack.c.b16 %v198, %v194
  %v239 = vpack.c.b16 %v203, %v199
  %v240 = vpack.c.b16 %v204, %v200
  %v241 = vpack.c.b16 %v205, %v201
  %v242 = vpack.c.b16 %v206, %v202
  %v243 = vpack.c.b16 %v211, %v207
  %v244 = vpack.c.b16 %v212, %v208
  %v245 = vpack.c.b16 %v213, %v209
  %v246 = vpack.c.b16 %v214, %v210
  %v247 = vpack.c.b16 %v219, %v215
  %v248 = vpack.c.b16 %v220, %v216
  %v249 = vpack.c.b16 %v221, %v217
  %v250 = vpack.c.b16 %v222, %v218
  %v343 = vunpack.c.l.b16 %v75
  %v344 = vunpack.c.l.b16 %v76
  %v345 = vunpack.c.l.b16 %v77
  %v346 = vunpack.c.l.b16 %v78
  %v347 = vunpack.c.l.b16 %v79
  %v348 = vunpack.c.l.b16 %v80
  %v349 = vunpack.c.l.b16 %v81
  %v350 = vunpack.c.l.b16 %v82
  %v351 = vunpack.c.l.b16 %v83
  %v352 = vunpack.c.l.b16 %v84
  %v353 = vunpack.c.l.b16 %v85
  %v354 = vunpack.c.l.b16 %v86
  %v355 = vunpack.c.l.b16 %v87
  %v356 = vunpack.c.l.b16 %v88
  %v357 = vunpack.c.l.b16 %v89
  %v358 = vunpack.c.l.b16 %v90
  %v359 = vunpack.c.l.b16 %v91
  %v360 = vunpack.c.l.b16 %v92
  %v361 = vunpack.c.l.b16 %v93
  %v362 = vunpack.c.l.b16 %v94
  %v363 = vunpack.c.l.b16 %v95
  %v364 = vunpack.c.l.b16 %v96
  %v365 = vunpack.c.l.b16 %v97
  %v366 = vunpack.c.l.b16 %v98
  %v367 = vunpack.c.l.b16 %v99
  %v368 = vunpack.c.l.b16 %v100
  %v369 = vunpack.c.l.b16 %v101
  %v370 = vunpack.c.l.b16 %v102
  %v371 = vunpack.c.l.b16 %v103
  %v372 = vunpack.c.l.b16 %v104
  %v373 = vunpack.c.l.b16 %v105
  %v374 = vunpack.c.l.b16 %v106
  %v375 = vunpack.c.l.b16 %v107
  %v376 = vunpack.c.l.b16 %v108
  %v377 = vunpack.c.l.b16 %v109
  %v378 = vunpack.c.l.b16 %v110
  %v379 = vunpack.c.l.b16 %v111
  %v380 = vunpack.c.l.b16 %v112
  %v381 = vunpack.c.l.b16 %v113
  %v382 = vunpack.c.l.b16 %v114
  %v383 = vunpack.c.l.b16 %v115
  %v384 = vunpack.c.l.b16 %v116
  %v385 = vunpack.c.l.b16 %v117
  %v386 = vunpack.c.l.b16 %v118
  %v387 = vunpack.c.l.b16 %v119
  %v388 = vunpack.c.l.b16 %v120
  %v389 = vunpack.c.l.b16 %v121
  %v390 = vunpack.c.l.b16 %v122
  %v391 = vunpack.c.l.b16 %v123
  %v392 = vunpack.c.l.b16 %v124
  %v393 = vunpack.c.l.b16 %v125
  %v394 = vunpack.c.l.b16 %v126
  %v395 = vunpack.c.l.b16 %v127
  %v396 = vunpack.c.l.b16 %v128
  %v397 = vunpack.c.l.b16 %v129
  %v398 = vunpack.c.l.b16 %v130
  %v399 = vunpack.c.l.b16 %v131
  %v400 = vunpack.c.l.b16 %v132
  %v401 = vunpack.c.l.b16 %v133
  %v402 = vunpack.c.l.b16 %v134
  %v403 = vunpack.c.l.b16 %v135
  %v404 = vunpack.c.l.b16 %v136
  %v405 = vunpack.c.l.b16 %v137
  %v406 = vunpack.c.l.b16 %v138
  %v407 = vpack.c.b16 %v344, %v343
  %v408 = vpack.c.b16 %v346, %v345
  %v409 = vpack.c.b16 %v348, %v347
  %v410 = vpack.c.b16 %v350, %v349
  %v411 = vpack.c.b16 %v352, %v351
  %v412 = vpack.c.b16 %v354, %v353
  %v413 = vpack.c.b16 %v356, %v355
  %v414 = vpack.c.b16 %v358, %v357
  %v415 = vpack.c.b16 %v360, %v359
  %v416 = vpack.c.b16 %v362, %v361
  %v417 = vpack.c.b16 %v364, %v363
  %v418 = vpack.c.b16 %v366, %v365
  %v419 = vpack.c.b16 %v368, %v367
  %v420 = vpack.c.b16 %v370, %v369
  %v421 = vpack.c.b16 %v372, %v371
  %v422 = vpack.c.b16 %v374, %v373
  %v423 = vpack.c.b16 %v376, %v375
  %v424 = vpack.c.b16 %v378, %v377
  %v425 = vpack.c.b16 %v380, %v379
  %v426 = vpack.c.b16 %v382, %v381
  %v427 = vpack.c.b16 %v384, %v383
  %v428 = vpack.c.b16 %v386, %v385
  %v429 = vpack.c.b16 %v388, %v387
  %v430 = vpack.c.b16 %v390, %v389
  %v431 = vpack.c.b16 %v392, %v391
  %v432 = vpack.c.b16 %v394, %v393
  %v433 = vpack.c.b16 %v396, %v395
  %v434 = vpack.c.b16 %v398, %v397
  %v435 = vpack.c.b16 %v400, %v399
  %v436 = vpack.c.b16 %v402, %v401
  %v437 = vpack.c.b16 %v404, %v403
  %v438 = vpack.c.b16 %v406, %v405
  %471 = vmatprep.subr.bf16.mxu0 0
  %472 = vmatpush1.bf16.msra.mxu0 %v407
  %473 = vmatprep.subr.bf16.mxu0 0
  %474 = vmatpush1.bf16.msra.mxu0 %v408
  %475 = vmatprep.subr.bf16.mxu0 0
  %476 = vmatpush1.bf16.msra.mxu0 %v409
  %477 = vmatprep.subr.bf16.mxu0 0
  %478 = vmatpush1.bf16.msra.mxu0 %v410
  %479 = vmatprep.subr.bf16.mxu0 0
  %480 = vmatpush1.bf16.msra.mxu0 %v411
  %481 = vmatprep.subr.bf16.mxu0 0
  %482 = vmatpush1.bf16.msra.mxu0 %v412
  %483 = vmatprep.subr.bf16.mxu0 0
  %484 = vmatpush1.bf16.msra.mxu0 %v413
  %485 = vmatprep.subr.bf16.mxu0 0
  %486 = vmatpush1.bf16.msra.mxu0 %v414
  %487 = vmatprep.subr.bf16.mxu0 0
  %488 = vmatpush1.bf16.msra.mxu0 %v415
  %489 = vmatprep.subr.bf16.mxu0 0
  %490 = vmatpush1.bf16.msra.mxu0 %v416
  %491 = vmatprep.subr.bf16.mxu0 0
  %492 = vmatpush1.bf16.msra.mxu0 %v417
  %493 = vmatprep.subr.bf16.mxu0 0
  %494 = vmatpush1.bf16.msra.mxu0 %v418
  %495 = vmatprep.subr.bf16.mxu0 0
  %496 = vmatpush1.bf16.msra.mxu0 %v419
  %497 = vmatprep.subr.bf16.mxu0 0
  %498 = vmatpush1.bf16.msra.mxu0 %v420
  %499 = vmatprep.subr.bf16.mxu0 0
  %500 = vmatpush1.bf16.msra.mxu0 %v421
  %501 = vmatprep.subr.bf16.mxu0 0
  %502 = vmatpush1.bf16.msra.mxu0 %v422
  %503 = vmatprep.mubr.bf16.mxu0 %v224
  %504 = vmatmul.mubr.bf16.gmra.mrb[0].mxu0 %v223
  %v505 = vpop.f32.mrb[0].mxu0
  %v506 = vadd.f32 0.0, %v505
  %v507 = vpop.f32.mrb[0].mxu0
  %v508 = vpop.f32.mrb[0].mxu0
  %v509 = vadd.f32 0.0, %v508
  %v510 = vpop.f32.mrb[0].mxu0
  %511 = vmatprep.mubr.bf16.mxu0 %v228
  %512 = vmatmul.mubr.bf16.gmra.mrb[0].mxu0 %v227
  %v513 = vpop.f32.mrb[0].mxu0
  %v514 = vadd.f32 0.0, %v513
  %v515 = vpop.f32.mrb[0].mxu0
  %v516 = vpop.f32.mrb[0].mxu0
  %v517 = vadd.f32 0.0, %v516
  %v518 = vpop.f32.mrb[0].mxu0
  %519 = vmatprep.mubr.bf16.mxu0 %v232
  %520 = vmatmul.mubr.bf16.gmra.mrb[0].mxu0 %v231
  %v521 = vpop.f32.mrb[0].mxu0
  %v522 = vadd.f32 0.0, %v521
  %v523 = vpop.f32.mrb[0].mxu0
  %v524 = vpop.f32.mrb[0].mxu0
  %v525 = vadd.f32 0.0, %v524
  %v526 = vpop.f32.mrb[0].mxu0
  %527 = vmatprep.mubr.bf16.mxu0 %v236
  %528 = vmatmul.mubr.bf16.gmra.mrb[0].mxu0 %v235
  %v529 = vpop.f32.mrb[0].mxu0
  %v530 = vadd.f32 0.0, %v529
  %v531 = vpop.f32.mrb[0].mxu0
  %v532 = vpop.f32.mrb[0].mxu0
  %v533 = vadd.f32 0.0, %v532
  %v534 = vpop.f32.mrb[0].mxu0
  %535 = vmatprep.mubr.bf16.mxu0 %v240
  %536 = vmatmul.mubr.bf16.gmra.mrb[0].mxu0 %v239
  %v537 = vpop.f32.mrb[0].mxu0
  %v538 = vadd.f32 0.0, %v537
  %v539 = vpop.f32.mrb[0].mxu0
  %v540 = vpop.f32.mrb[0].mxu0
  %v541 = vadd.f32 0.0, %v540
  %v542 = vpop.f32.mrb[0].mxu0
  %543 = vmatprep.mubr.bf16.mxu0 %v244
  %544 = vmatmul.mubr.bf16.gmra.mrb[0].mxu0 %v243
  %v545 = vpop.f32.mrb[0].mxu0
  %v546 = vadd.f32 0.0, %v545
  %v547 = vpop.f32.mrb[0].mxu0
  %v548 = vpop.f32.mrb[0].mxu0
  %v549 = vadd.f32 0.0, %v548
  %v550 = vpop.f32.mrb[0].mxu0
  %551 = vmatprep.mubr.bf16.mxu0 %v248
  %552 = vmatmul.mubr.bf16.gmra.mrb[0].mxu0 %v247
  %v553 = vpop.f32.mrb[0].mxu0
  %v554 = vadd.f32 0.0, %v553
  %v555 = vpop.f32.mrb[0].mxu0
  %v556 = vpop.f32.mrb[0].mxu0
  %v557 = vadd.f32 0.0, %v556
  %v558 = vpop.f32.mrb[0].mxu0
  %559 = vdwg.mxu0
  %560 = vmatprep.subr.bf16.mxu0 0
  %561 = vmatpush1.bf16.msra.mxu0 %v423
  %562 = vmatprep.subr.bf16.mxu0 0
  %563 = vmatpush1.bf16.msra.mxu0 %v424
  %564 = vmatprep.subr.bf16.mxu0 0
  %565 = vmatpush1.bf16.msra.mxu0 %v425
  %566 = vmatprep.subr.bf16.mxu0 0
  %567 = vmatpush1.bf16.msra.mxu0 %v426
  %568 = vmatprep.subr.bf16.mxu0 0
  %569 = vmatpush1.bf16.msra.mxu0 %v427
  %570 = vmatprep.subr.bf16.mxu0 0
  %571 = vmatpush1.bf16.msra.mxu0 %v428
  %572 = vmatprep.subr.bf16.mxu0 0
  %573 = vmatpush1.bf16.msra.mxu0 %v429
  %574 = vmatprep.subr.bf16.mxu0 0
  %575 = vmatpush1.bf16.msra.mxu0 %v430
  %576 = vmatprep.subr.bf16.mxu0 0
  %577 = vmatpush1.bf16.msra.mxu0 %v431
  %578 = vmatprep.subr.bf16.mxu0 0
  %579 = vmatpush1.bf16.msra.mxu0 %v432
  %580 = vmatprep.subr.bf16.mxu0 0
  %581 = vmatpush1.bf16.msra.mxu0 %v433
  %582 = vmatprep.subr.bf16.mxu0 0
  %583 = vmatpush1.bf16.msra.mxu0 %v434
  %584 = vmatprep.subr.bf16.mxu0 0
  %585 = vmatpush1.bf16.msra.mxu0 %v435
  %586 = vmatprep.subr.bf16.mxu0 0
  %587 = vmatpush1.bf16.msra.mxu0 %v436
  %588 = vmatprep.subr.bf16.mxu0 0
  %589 = vmatpush1.bf16.msra.mxu0 %v437
  %590 = vmatprep.subr.bf16.mxu0 0
  %591 = vmatpush1.bf16.msra.mxu0 %v438
  %592 = vmatprep.mubr.bf16.mxu0 %v226
  %593 = vmatmul.mubr.bf16.gmra.mrb[0].mxu0 %v225
  %v594 = vpop.f32.mrb[0].mxu0
  %v595 = vadd.f32 %v506, %v594
  %v596 = vpop.f32.mrb[0].mxu0
  %v597 = vpop.f32.mrb[0].mxu0
  %v598 = vadd.f32 %v509, %v597
  %v599 = vpop.f32.mrb[0].mxu0
  %600 = vmatprep.mubr.bf16.mxu0 %v230
  %601 = vmatmul.mubr.bf16.gmra.mrb[0].mxu0 %v229
  %v602 = vpop.f32.mrb[0].mxu0
  %v603 = vadd.f32 %v514, %v602
  %v604 = vpop.f32.mrb[0].mxu0
  %v605 = vpop.f32.mrb[0].mxu0
  %v606 = vadd.f32 %v517, %v605
  %v607 = vpop.f32.mrb[0].mxu0
  %608 = vmatprep.mubr.bf16.mxu0 %v234
  %609 = vmatmul.mubr.bf16.gmra.mrb[0].mxu0 %v233
  %v610 = vpop.f32.mrb[0].mxu0
  %v611 = vadd.f32 %v522, %v610
  %v612 = vpop.f32.mrb[0].mxu0
  %v613 = vpop.f32.mrb[0].mxu0
  %v614 = vadd.f32 %v525, %v613
  %v615 = vpop.f32.mrb[0].mxu0
  %616 = vmatprep.mubr.bf16.mxu0 %v238
  %617 = vmatmul.mubr.bf16.gmra.mrb[0].mxu0 %v237
  %v618 = vpop.f32.mrb[0].mxu0
  %v619 = vadd.f32 %v530, %v618
  %v620 = vpop.f32.mrb[0].mxu0
  %v621 = vpop.f32.mrb[0].mxu0
  %v622 = vadd.f32 %v533, %v621
  %v623 = vpop.f32.mrb[0].mxu0
  %624 = vmatprep.mubr.bf16.mxu0 %v242
  %625 = vmatmul.mubr.bf16.gmra.mrb[0].mxu0 %v241
  %v626 = vpop.f32.mrb[0].mxu0
  %v627 = vadd.f32 %v538, %v626
  %v628 = vpop.f32.mrb[0].mxu0
  %v629 = vpop.f32.mrb[0].mxu0
  %v630 = vadd.f32 %v541, %v629
  %v631 = vpop.f32.mrb[0].mxu0
  %632 = vmatprep.mubr.bf16.mxu0 %v246
  %633 = vmatmul.mubr.bf16.gmra.mrb[0].mxu0 %v245
  %v634 = vpop.f32.mrb[0].mxu0
  %v635 = vadd.f32 %v546, %v634
  %v636 = vpop.f32.mrb[0].mxu0
  %v637 = vpop.f32.mrb[0].mxu0
  %v638 = vadd.f32 %v549, %v637
  %v639 = vpop.f32.mrb[0].mxu0
  %640 = vmatprep.mubr.bf16.mxu0 %v250
  %641 = vmatmul.mubr.bf16.gmra.mrb[0].mxu0 %v249
  %v642 = vpop.f32.mrb[0].mxu0
  %v643 = vadd.f32 %v554, %v642
  %v644 = vpop.f32.mrb[0].mxu0
  %v645 = vpop.f32.mrb[0].mxu0
  %v646 = vadd.f32 %v557, %v645
  %v647 = vpop.f32.mrb[0].mxu0
  %648 = vdwg.mxu0
  %v649 = vadd.f32 %v33, %v595
  %v650 = vadd.f32 %v34, %v598
  %v651 = vadd.f32 %v35, %v603
  %v652 = vadd.f32 %v36, %v606
  %v653 = vadd.f32 %v37, %v611
  %v654 = vadd.f32 %v38, %v614
  %v655 = vadd.f32 %v39, %v619
  %v656 = vadd.f32 %v40, %v622
  %v657 = vadd.f32 %v41, %v627
  %v658 = vadd.f32 %v42, %v630
  %v659 = vadd.f32 %v43, %v635
  %v660 = vadd.f32 %v44, %v638
  %v661 = vadd.f32 %v45, %v643
  %v662 = vadd.f32 %v46, %v646
  %663 = vst [vmem:[%s3] sm:$0xff] %v649
  %664 = vst [vmem:[%s3 + $0x8] sm:$0xff] %v650
  %665 = vst [vmem:[%s3 + $0x10] sm:$0xff] %v651
  %666 = vst [vmem:[%s3 + $0x18] sm:$0xff] %v652
  %667 = vst [vmem:[%s3 + $0x20] sm:$0xff] %v653
  %668 = vst [vmem:[%s3 + $0x28] sm:$0xff] %v654
  %669 = vst [vmem:[%s3 + $0x30] sm:$0xff] %v655
  %670 = vst [vmem:[%s3 + $0x38] sm:$0xff] %v656
  %671 = vst [vmem:[%s3 + $0x40] sm:$0xff] %v657
  %672 = vst [vmem:[%s3 + $0x48] sm:$0xff] %v658
  %673 = vst [vmem:[%s3 + $0x50] sm:$0xff] %v659
  %674 = vst [vmem:[%s3 + $0x58] sm:$0xff] %v660
  %675 = vst [vmem:[%s3 + $0x60] sm:$0xff] %v661
  %676 = vst [vmem:[%s3 + $0x68] sm:$0xff] %v662
  // Predicated region
  $region18: #{alexnet_cbam3_forward.16} parent=0 // pred_check
    %p677 = pneg %p15
  $region19: #{alexnet_cbam3_forward.16} parent=0 // pred_check_branch
    %679 = sbr.rel (%p677) target = $region21
  $region20: #{alexnet_cbam3_forward.16} parent=0 // pred_region
    %v680 = vld [vmem:[%s3] sm:$0xff]
    %v681 = vld [vmem:[%s3 + $0x8] sm:$0xff]
    %v682 = vld [vmem:[%s3 + $0x10] sm:$0xff]
    %v683 = vld [vmem:[%s3 + $0x18] sm:$0xff]
    %v684 = vld [vmem:[%s3 + $0x20] sm:$0xff]
    %v685 = vld [vmem:[%s3 + $0x28] sm:$0xff]
    %v686 = vld [vmem:[%s3 + $0x30] sm:$0xff]
    %v687 = vld [vmem:[%s3 + $0x38] sm:$0xff]
    %v688 = vld [vmem:[%s3 + $0x40] sm:$0xff]
    %v689 = vld [vmem:[%s3 + $0x48] sm:$0xff]
    %v690 = vld [vmem:[%s3 + $0x50] sm:$0xff]
    %v691 = vld [vmem:[%s3 + $0x58] sm:$0xff]
    %v692 = vld [vmem:[%s3 + $0x60] sm:$0xff]
    %v693 = vld [vmem:[%s3 + $0x68] sm:$0xff]
    %v694 = vld [vmem:[%s2] sm:$0x1]
    %v696 = vlaneseq
    %v697 = vshrl.u32 %v696, 7
    %v698 = vsub.s32 0, %v697
    %v699 = vrot.slane %v694, %v698
    %v701 = vadd.f32 %v680, %v699
    %v702 = vadd.f32 %v681, %v699
    %v703 = vadd.f32 %v682, %v699
    %v704 = vadd.f32 %v683, %v699
    %v705 = vadd.f32 %v684, %v699
    %v706 = vadd.f32 %v685, %v699
    %v707 = vadd.f32 %v686, %v699
    %v708 = vadd.f32 %v687, %v699
    %v709 = vadd.f32 %v688, %v699
    %v710 = vadd.f32 %v689, %v699
    %v711 = vadd.f32 %v690, %v699
    %v712 = vadd.f32 %v691, %v699
    %v713 = vadd.f32 %v692, %v699
    %v714 = vadd.f32 %v693, %v699
    %v715 = vmax.f32 %v701, 0.0
    %v716 = vmax.f32 %v702, 0.0
    %v717 = vmax.f32 %v703, 0.0
    %v718 = vmax.f32 %v704, 0.0
    %v719 = vmax.f32 %v705, 0.0
    %v720 = vmax.f32 %v706, 0.0
    %v721 = vmax.f32 %v707, 0.0
    %v722 = vmax.f32 %v708, 0.0
    %v723 = vmax.f32 %v709, 0.0
    %v724 = vmax.f32 %v710, 0.0
    %v725 = vmax.f32 %v711, 0.0
    %v726 = vmax.f32 %v712, 0.0
    %v727 = vmax.f32 %v713, 0.0
    %v728 = vmax.f32 %v714, 0.0
    %729 = vst [vmem:[%s3] sm:$0xff] %v715
    %730 = vst [vmem:[%s3 + $0x8] sm:$0xff] %v716
    %731 = vst [vmem:[%s3 + $0x10] sm:$0xff] %v717
    %732 = vst [vmem:[%s3 + $0x18] sm:$0xff] %v718
    %733 = vst [vmem:[%s3 + $0x20] sm:$0xff] %v719
    %734 = vst [vmem:[%s3 + $0x28] sm:$0xff] %v720
    %735 = vst [vmem:[%s3 + $0x30] sm:$0xff] %v721
    %736 = vst [vmem:[%s3 + $0x38] sm:$0xff] %v722
    %737 = vst [vmem:[%s3 + $0x40] sm:$0xff] %v723
    %738 = vst [vmem:[%s3 + $0x48] sm:$0xff] %v724
    %739 = vst [vmem:[%s3 + $0x50] sm:$0xff] %v725
    %740 = vst [vmem:[%s3 + $0x58] sm:$0xff] %v726
    %741 = vst [vmem:[%s3 + $0x60] sm:$0xff] %v727
    %742 = vst [vmem:[%s3 + $0x68] sm:$0xff] %v728
  $region21: #{alexnet_cbam3_forward.16} parent=0 // pred_fallthru
    _
  // Predicated region
  $region22: #{alexnet_cbam3_forward.16} parent=0 // pred_check
    _
  $region23: #{alexnet_cbam3_forward.16} parent=0 // pred_check_branch
    %744 = sbr.rel (0) target = $region25
  $region24: #{alexnet_cbam3_forward.16} parent=0 // pred_region
    _
  $region25: #{alexnet_cbam3_forward.16} parent=0 // pred_fallthru
    _
  // Predicated region
  $region26: #{alexnet_cbam3_forward.16} parent=0 // pred_check
    _
  $region27: #{alexnet_cbam3_forward.16} parent=0 // pred_check_branch
    %746 = sbr.rel (0) target = $region29
  $region28: #{alexnet_cbam3_forward.16} parent=0 // pred_region
    _
  $region29: #{alexnet_cbam3_forward.16} parent=0 // pred_fallthru
    _

// kernel: alexnet_cbam3_forward.22
$region0: #{alexnet_cbam3_forward.22}
  #allocation0 [shape = 'u32[]', space=smem, size = 0x4, offset = 0x4, fixed_abs, tag = 'smem constant byte address 0x4 - core index']
  #allocation1 [shape = 'u32[144,128]{1,0:T(1,128)}', space=vmem, size = 0x12000, scoped, tag = 'internal scratch']
  %s0 = inlined_call_operand.vmem [shape: bf16[32,2304], index: 0, kind: input, shape index: {}]
  %s1 = inlined_call_operand.vmem [shape: bf16[2304,384], index: 1, kind: input, shape index: {}]
  %s2 = inlined_call_operand.vmem [shape: f32[1,384], index: 2, kind: input, shape index: {}]
  %s3 = inlined_call_operand.vmem [shape: f32[32,384], index: 3, kind: output, shape index: {}]
  %s4 = sld [smem:[#allocation0]]
  $region79: #{alexnet_cbam3_forward.22} parent=0
    _
  %s6 = ssub.s32 1, %s4
  %s7 = scalar_select 0, %s6, %s4
  $region1: #{alexnet_cbam3_forward.22} parent=0
    #allocation2 [shape = 'u8[49152]{0}', space=vmem, size = 0xc000, scoped, tag = 'input window, operand 0']
    loop: start=0, step=1, limit=8
    $region2: #{alexnet_cbam3_forward.22} parent=1 // loop_pre_header
      _
    $region3: #{alexnet_cbam3_forward.22} parent=1 // loop_header
      %s9 = sphi 0, %s13
      %p10 = scmp.ge.s32.totalorder %s9, 8
      %s16 = sphi 0, %s35
      %s17 = sphi 0, %s31
      %s18 = sphi 0, %s27
      %s19 = sphi 0, %s16
      %s20 = sphi 0, %s17
      %s21 = sphi 0, %s18
      %s22 = sphi 0, %s19
      %s23 = sphi 0, %s20
      %s24 = sphi 0, %s21
      %s40 = sphi 0, %s42
      %s43 = sphi 0, %s40
      %s44 = sphi 0, %s43
      %s60 = sphi 0, %s44
      %s68 = sphi 0, %s70
      %s71 = sphi 0, %s68
      %s72 = sphi 0, %s71
      %s88 = sphi 0, %s72
      %s94 = sphi 0, %s96
      %s97 = sphi 0, %s94
      %s98 = sphi 0, %s97
      %s114 = sphi 0, %s98
      %s122 = sphi 0, %s124
      %s125 = sphi 0, %s122
      %s126 = sphi 0, %s125
      %s142 = sphi 0, %s126
    $region4: #{alexnet_cbam3_forward.22} parent=1 // loop_header_branch
      %12 = sbr.rel (%p10) target = $region8
    $region5: #{alexnet_cbam3_forward.22} parent=1 // loop_body
      %s14 = ssub.s32 %s9, 1
      %s15 = ssub.s32 %s9, 2
      %s25 = sadd.s32 1, %s18
      %p26 = scmp.ge.s32.totalorder %s25, 6
      %s27 = scalar_select %p26, 0, %s25
      %s28 = sadd.s32 1, %s17
      %s29 = scalar_select %p26, %s28, %s17
      %p30 = scmp.ge.s32.totalorder %s29, 1
      %s31 = scalar_select %p30, 0, %s29
      %s32 = sadd.s32 1, %s16
      %s33 = scalar_select %p30, %s32, %s16
      %p34 = scmp.ge.s32.totalorder %s33, 1
      %s35 = scalar_select %p34, 0, %s33
      %s36 = ssub.s32 %s16, %s35
      %s37 = ssub.s32 %s18, %s27
      %s38 = sor.u32 %s36, %s37
      %p39 = scmp.eq.s32.totalorder %s38, 0
      %s41 = sadd.s32 %s40, 1
      %s42 = scalar_select %p39, %s40, %s41
      %p45 = pneg %p39
      %p46 = scmp.eq.s32.totalorder %s9, 5
      %p47 = por %p45, %p46
      %p48 = scmp.ne.s32.totalorder %s40, %s43
      %p49 = scmp.eq.s32.totalorder %s9, 0
      %p50 = por %p48, %p49
      %p51 = scmp.ne.s32.totalorder %s40, %s43
      %p52 = scmp.eq.s32.totalorder %s14, 5
      %p53 = por %p51, %p52
      %p54 = scmp.ne.s32.totalorder %s43, %s44
      %p55 = scmp.eq.s32.totalorder %s14, 0
      %p56 = por %p54, %p55
      %p57 = scmp.ne.s32.totalorder %s43, %s44
      %p58 = scmp.eq.s32.totalorder %s15, 5
      %p59 = por %p57, %p58
      %p61 = scmp.ne.s32.totalorder %s44, %s60
      %p62 = scmp.eq.s32.totalorder %s15, 0
      %p63 = por %p61, %p62
      %s64 = ssub.s32 %s18, %s27
      %s65 = ssub.s32 %s17, %s31
      %s66 = sor.u32 %s64, %s65
      %p67 = scmp.eq.s32.totalorder %s66, 0
      %s69 = sadd.s32 %s68, 1
      %s70 = scalar_select %p67, %s68, %s69
      %p73 = pneg %p67
      %p74 = scmp.eq.s32.totalorder %s9, 5
      %p75 = por %p73, %p74
      %p76 = scmp.ne.s32.totalorder %s68, %s71
      %p77 = scmp.eq.s32.totalorder %s9, 0
      %p78 = por %p76, %p77
      %p79 = scmp.ne.s32.totalorder %s68, %s71
      %p80 = scmp.eq.s32.totalorder %s14, 5
      %p81 = por %p79, %p80
      %p82 = scmp.ne.s32.totalorder %s71, %s72
      %p83 = scmp.eq.s32.totalorder %s14, 0
      %p84 = por %p82, %p83
      %p85 = scmp.ne.s32.totalorder %s71, %s72
      %p86 = scmp.eq.s32.totalorder %s15, 5
      %p87 = por %p85, %p86
      %p89 = scmp.ne.s32.totalorder %s72, %s88
      %p90 = scmp.eq.s32.totalorder %s15, 0
      %p91 = por %p89, %p90
      %s92 = ssub.s32 %s17, %s31
      %p93 = scmp.eq.s32.totalorder %s92, 0
      %s95 = sadd.s32 %s94, 1
      %s96 = scalar_select %p93, %s94, %s95
      %p99 = pneg %p93
      %p100 = scmp.eq.s32.totalorder %s9, 5
      %p101 = por %p99, %p100
      %p102 = scmp.ne.s32.totalorder %s94, %s97
      %p103 = scmp.eq.s32.totalorder %s9, 0
      %p104 = por %p102, %p103
      %p105 = scmp.ne.s32.totalorder %s94, %s97
      %p106 = scmp.eq.s32.totalorder %s14, 5
      %p107 = por %p105, %p106
      %p108 = scmp.ne.s32.totalorder %s97, %s98
      %p109 = scmp.eq.s32.totalorder %s14, 0
      %p110 = por %p108, %p109
      %p111 = scmp.ne.s32.totalorder %s97, %s98
      %p112 = scmp.eq.s32.totalorder %s15, 5
      %p113 = por %p111, %p112
      %p115 = scmp.ne.s32.totalorder %s98, %s114
      %p116 = scmp.eq.s32.totalorder %s15, 0
      %p117 = por %p115, %p116
      %s118 = ssub.s32 %s16, %s35
      %s119 = ssub.s32 %s17, %s31
      %s120 = sor.u32 %s118, %s119
      %p121 = scmp.eq.s32.totalorder %s120, 0
      %s123 = sadd.s32 %s122, 1
      %s124 = scalar_select %p121, %s122, %s123
      %p127 = pneg %p121
      %p128 = scmp.eq.s32.totalorder %s9, 5
      %p129 = por %p127, %p128
      %p130 = scmp.ne.s32.totalorder %s122, %s125
      %p131 = scmp.eq.s32.totalorder %s9, 0
      %p132 = por %p130, %p131
      %p133 = scmp.ne.s32.totalorder %s122, %s125
      %p134 = scmp.eq.s32.totalorder %s14, 5
      %p135 = por %p133, %p134
      %p136 = scmp.ne.s32.totalorder %s125, %s126
      %p137 = scmp.eq.s32.totalorder %s14, 0
      %p138 = por %p136, %p137
      %p139 = scmp.ne.s32.totalorder %s125, %s126
      %p140 = scmp.eq.s32.totalorder %s15, 5
      %p141 = por %p139, %p140
      %p143 = scmp.ne.s32.totalorder %s126, %s142
      %p144 = scmp.eq.s32.totalorder %s15, 0
      %p145 = por %p143, %p144
      %p146 = scmp.le.s32.totalorder 1, %s9
      %p147 = scmp.lt.s32.totalorder %s9, 7
      %p148 = pnand %p146, %p147
      %p149 = pneg %p148
      // Predicated region
      $region9: #{alexnet_cbam3_forward.22} parent=5 // pred_check
        _
      $region10: #{alexnet_cbam3_forward.22} parent=5 // pred_check_branch
        %151 = sbr.rel (%p148) target = $region12
      $region11: #{alexnet_cbam3_forward.22} parent=5 // pred_region
        %s152 = ssub.s32 %s9, 1
        // Predicated region
        $region13: #{alexnet_cbam3_forward.22} parent=11 // pred_check
          %p153 = pneg %p110
        $region14: #{alexnet_cbam3_forward.22} parent=11 // pred_check_branch
          %155 = sbr.rel (%p153) target = $region16
        $region15: #{alexnet_cbam3_forward.22} parent=11 // pred_region
          %s156 = smul.u32 3, %s20
          %p157 = scmp.lt.s32.totalorder %s156, 2
          %s158 = scalar_select %p157, %s156, 2
          %s159 = scalar_lea.vmem %s2, %s158
          %s160 = smul.u32 3, %s20
        $region16: #{alexnet_cbam3_forward.22} parent=11 // pred_fallthru
          _
      $region12: #{alexnet_cbam3_forward.22} parent=5 // pred_fallthru
        _
      %p161 = scmp.lt.s32.totalorder %s9, 6
      // Predicated region
      $region17: #{alexnet_cbam3_forward.22} parent=5 // pred_check
        %p162 = pneg %p161
      $region18: #{alexnet_cbam3_forward.22} parent=5 // pred_check_branch
        %164 = sbr.rel (%p162) target = $region20
      $region19: #{alexnet_cbam3_forward.22} parent=5 // pred_region
        // Predicated region
        $region21: #{alexnet_cbam3_forward.22} parent=19 // pred_check
          %p165 = pneg %p50
        $region22: #{alexnet_cbam3_forward.22} parent=19 // pred_check_branch
          %167 = sbr.rel (%p165) target = $region24
        $region23: #{alexnet_cbam3_forward.22} parent=19 // pred_region
          %s168 = sand.u32 %s40, 1
          %s169 = sand.u32 %s40, 1
          %s170 = smul.addr %s169, 48
          %s171 = scalar_lea.vmem [#allocation2], %s170
          %s172 = smul.u32 4, %s16
          %s173 = smul.u32 3, %s18
          %s174 = smul.addr %s172, 18
          %s175 = sadd.s32 %s173, %s174
          %s176 = smul.addr %s175, 4
          %s177 = scalar_lea.vmem %s0, %s176
          // Predicated region
          $region25: #{alexnet_cbam3_forward.22} parent=23 // pred_check
            _
          $region26: #{alexnet_cbam3_forward.22} parent=23 // pred_check_branch
            %179 = sbr.rel (0) target = $region28
          $region27: #{alexnet_cbam3_forward.22} parent=23 // pred_region
            // Predicated region
            $region29: #{alexnet_cbam3_forward.22} parent=27 // pred_check
              _
            $region30: #{alexnet_cbam3_forward.22} parent=27 // pred_check_branch
              %181 = sbr.rel (0) target = $region32
            $region31: #{alexnet_cbam3_forward.22} parent=27 // pred_region
              %s182 = scalar_lea.vmem %s177, 8
              %s183 = scalar_lea.vmem %s171, 8 [#allocation2]
              loop: start=0, step=1, limit=1
              $region33: #{alexnet_cbam3_forward.22} parent=31 // loop_pre_header
                _
              $region34: #{alexnet_cbam3_forward.22} parent=31 // loop_header
                %s185 = sphi 0, %s189
                %p186 = scmp.ge.s32.totalorder %s185, 1
                %s190 = sphi %s177, %s177
                %s191 = sphi %s171, %s171
              $region35: #{alexnet_cbam3_forward.22} parent=31 // loop_header_branch
                %188 = sbr.rel (%p186) target = $region39
              $region36: #{alexnet_cbam3_forward.22} parent=31 // loop_body
                %v192 = vld [vmem:[%s190] sm:$0xff]
                %193 = vst [vmem:[%s191] sm:$0xff] %v192
                %v194 = vld [vmem:[%s190 + $0x48] sm:$0xff]
                %195 = vst [vmem:[%s191 + $0xc] sm:$0xff] %v194
                %v196 = vld [vmem:[%s190 + $0x90] sm:$0xff]
                %197 = vst [vmem:[%s191 + $0x18] sm:$0xff] %v196
                %v198 = vld [vmem:[%s190 + $0xd8] sm:$0xff]
                %199 = vst [vmem:[%s191 + $0x24] sm:$0xff] %v198
              $region37: #{alexnet_cbam3_forward.22} parent=31 // loop_footer
                %s189 = sadd.s32 1, %s185
              $region38: #{alexnet_cbam3_forward.22} parent=31 // loop_footer_branch
                %184 = sbr.rel target = $region34
              $region39: #{alexnet_cbam3_forward.22} parent=31 // loop_exit
                _
              loop: start=0, step=1, limit=1
              $region40: #{alexnet_cbam3_forward.22} parent=31 // loop_pre_header
                _
              $region41: #{alexnet_cbam3_forward.22} parent=31 // loop_header
                %s202 = sphi 0, %s206
                %p203 = scmp.ge.s32.totalorder %s202, 1
                %s207 = sphi %s182, %s182
                %s208 = sphi %s183, %s183
              $region42: #{alexnet_cbam3_forward.22} parent=31 // loop_header_branch
                %205 = sbr.rel (%p203) target = $region46
              $region43: #{alexnet_cbam3_forward.22} parent=31 // loop_body
                %v209 = vld [vmem:[%s207] sm:$0xf]
                %210 = vst [vmem:[%s208] sm:$0xf] %v209
                %v211 = vld [vmem:[%s207 + $0x48] sm:$0xf]
                %212 = vst [vmem:[%s208 + $0xc] sm:$0xf] %v211
                %v213 = vld [vmem:[%s207 + $0x90] sm:$0xf]
                %214 = vst [vmem:[%s208 + $0x18] sm:$0xf] %v213
                %v215 = vld [vmem:[%s207 + $0xd8] sm:$0xf]
                %216 = vst [vmem:[%s208 + $0x24] sm:$0xf] %v215
              $region44: #{alexnet_cbam3_forward.22} parent=31 // loop_footer
                %s206 = sadd.s32 1, %s202
              $region45: #{alexnet_cbam3_forward.22} parent=31 // loop_footer_branch
                %201 = sbr.rel target = $region41
              $region46: #{alexnet_cbam3_forward.22} parent=31 // loop_exit
                _
            $region32: #{alexnet_cbam3_forward.22} parent=27 // pred_fallthru
              _
          $region28: #{alexnet_cbam3_forward.22} parent=23 // pred_fallthru
            _
          %217 = vnop
        $region24: #{alexnet_cbam3_forward.22} parent=19 // pred_fallthru
          _
        // Predicated region
        $region47: #{alexnet_cbam3_forward.22} parent=19 // pred_check
          %p218 = pneg %p78
        $region48: #{alexnet_cbam3_forward.22} parent=19 // pred_check_branch
          %220 = sbr.rel (%p218) target = $region50
        $region49: #{alexnet_cbam3_forward.22} parent=19 // pred_region
          %s221 = smul.u32 48, %s18
          %s222 = smul.u32 3, %s17
          %p223 = scmp.lt.s32.totalorder %s221, 287
          %s224 = scalar_select %p223, %s221, 287
          %p225 = scmp.lt.s32.totalorder %s222, 2
          %s226 = scalar_select %p225, %s222, 2
          %s227 = smul.addr %s224, 3
          %s228 = sadd.s32 %s226, %s227
          %s229 = smul.addr %s228, 4
          %s230 = scalar_lea.vmem %s1, %s229
          %s231 = smul.u32 48, %s18
          %s232 = smul.u32 3, %s17
        $region50: #{alexnet_cbam3_forward.22} parent=19 // pred_fallthru
          _
      $region20: #{alexnet_cbam3_forward.22} parent=5 // pred_fallthru
        _
      %p233 = scmp.le.s32.totalorder 1, %s9
      %p234 = scmp.lt.s32.totalorder %s9, 7
      %p235 = pnand %p233, %p234
      %p236 = pneg %p235
      // Predicated region
      $region51: #{alexnet_cbam3_forward.22} parent=5 // pred_check
        _
      $region52: #{alexnet_cbam3_forward.22} parent=5 // pred_check_branch
        %238 = sbr.rel (%p235) target = $region54
      $region53: #{alexnet_cbam3_forward.22} parent=5 // pred_region
        %s239 = ssub.s32 %s9, 1
        %s240 = sand.u32 %s43, 1
        %s241 = sand.u32 %s43, 1
        %s242 = smul.addr %s241, 48
        %s243 = scalar_lea.vmem [#allocation2], %s242
        // Predicated region
        $region55: #{alexnet_cbam3_forward.22} parent=53 // pred_check
          %p244 = pneg %p56
        $region56: #{alexnet_cbam3_forward.22} parent=53 // pred_check_branch
          %246 = sbr.rel (%p244) target = $region58
        $region57: #{alexnet_cbam3_forward.22} parent=53 // pred_region
          _
        $region58: #{alexnet_cbam3_forward.22} parent=53 // pred_fallthru
          _
        %s247 = sand.u32 %s43, 1
        %s248 = sand.u32 %s43, 1
        %s249 = smul.addr %s248, 48
        %s250 = scalar_lea.vmem [#allocation2], %s249
        %p251 = pneg %p56
        %p252 = pneg %p53
        %s253 = smul.u32 48, %s21
        %s254 = smul.u32 3, %s20
        %p255 = scmp.lt.s32.totalorder %s253, 287
        %s256 = scalar_select %p255, %s253, 287
        %p257 = scmp.lt.s32.totalorder %s254, 2
        %s258 = scalar_select %p257, %s254, 2
        %s259 = smul.addr %s256, 3
        %s260 = sadd.s32 %s258, %s259
        %s261 = smul.addr %s260, 4
        %s262 = scalar_lea.vmem %s1, %s261
        %p263 = pneg %p84
        %p264 = pneg %p81
        %s265 = smul.u32 3, %s20
        %p266 = scmp.lt.s32.totalorder %s265, 2
        %s267 = scalar_select %p266, %s265, 2
        %s268 = scalar_lea.vmem %s2, %s267
        %p269 = pneg %p110
        %p270 = pneg %p107
        %p271 = pneg %p138
        %p272 = pneg %p135
        %s273 = smul.u32 4, %s19
        %s274 = smul.u32 3, %s20
        %p275 = scmp.lt.s32.totalorder %s273, 3
        %s276 = scalar_select %p275, %s273, 3
        %p277 = scmp.lt.s32.totalorder %s274, 2
        %s278 = scalar_select %p277, %s274, 2
        %s279 = smul.addr %s276, 3
        %s280 = sadd.s32 %s278, %s279
        %s281 = smul.addr %s280, 8
        %s282 = scalar_lea.vmem %s3, %s281
        %s283 = smul.u32 4, %s19
        %s284 = smul.u32 3, %s21
        %s285 = smul.u32 48, %s21
        %s286 = smul.u32 3, %s20
        %p287 = scmp.lt.s32.totalorder %s285, 287
        %s288 = scalar_select %p287, %s285, 287
        %p289 = scmp.lt.s32.totalorder %s286, 2
        %s290 = scalar_select %p289, %s286, 2
        %s291 = smul.addr %s288, 3
        %s292 = sadd.s32 %s290, %s291
        %s293 = smul.addr %s292, 4
        %s294 = scalar_lea.vmem %s1, %s293
        %s295 = smul.u32 48, %s21
        %s296 = smul.u32 3, %s20
        %s297 = smul.u32 3, %s20
        %p298 = scmp.lt.s32.totalorder %s297, 2
        %s299 = scalar_select %p298, %s297, 2
        %s300 = scalar_lea.vmem %s2, %s299
        %s301 = smul.u32 3, %s20
        %s302 = smul.u32 4, %s19
        %s303 = smul.u32 3, %s20
        %p304 = scmp.lt.s32.totalorder %s302, 3
        %s305 = scalar_select %p304, %s302, 3
        %p306 = scmp.lt.s32.totalorder %s303, 2
        %s307 = scalar_select %p306, %s303, 2
        %s308 = smul.addr %s305, 3
        %s309 = sadd.s32 %s307, %s308
        %s310 = smul.addr %s309, 8
        %s311 = scalar_lea.vmem %s3, %s310
        %s312 = smul.u32 4, %s19
        %s313 = smul.u32 3, %s20
        %p315 = scmp.eq.s32.totalorder %s21, 0
        // Predicated region
        $region59: #{alexnet_cbam3_forward.22} parent=53 // pred_check
          %p316 = pneg %p315
        $region60: #{alexnet_cbam3_forward.22} parent=53 // pred_check_branch
          %318 = sbr.rel (%p316) target = $region62
        $region61: #{alexnet_cbam3_forward.22} parent=53 // pred_region
          %319 = vst [vmem:[%s311] sm:$0xff] 0.0
          %320 = vst [vmem:[%s311 + $0x8] sm:$0xff] 0.0
          %321 = vst [vmem:[%s311 + $0x10] sm:$0xff] 0.0
          %322 = vst [vmem:[%s311 + $0x18] sm:$0xff] 0.0
          %323 = vst [vmem:[%s311 + $0x20] sm:$0xff] 0.0
          %324 = vst [vmem:[%s311 + $0x28] sm:$0xff] 0.0
          %325 = vst [vmem:[%s311 + $0x30] sm:$0xff] 0.0
          %326 = vst [vmem:[%s311 + $0x38] sm:$0xff] 0.0
          %327 = vst [vmem:[%s311 + $0x40] sm:$0xff] 0.0
          %328 = vst [vmem:[%s311 + $0x48] sm:$0xff] 0.0
          %329 = vst [vmem:[%s311 + $0x50] sm:$0xff] 0.0
          %330 = vst [vmem:[%s311 + $0x58] sm:$0xff] 0.0
        $region62: #{alexnet_cbam3_forward.22} parent=53 // pred_fallthru
          _
        %v331 = vld [vmem:[%s311] sm:$0xff]
        %v332 = vld [vmem:[%s311 + $0x8] sm:$0xff]
        %v333 = vld [vmem:[%s311 + $0x10] sm:$0xff]
        %v334 = vld [vmem:[%s311 + $0x18] sm:$0xff]
        %v335 = vld [vmem:[%s311 + $0x20] sm:$0xff]
        %v336 = vld [vmem:[%s311 + $0x28] sm:$0xff]
        %v337 = vld [vmem:[%s311 + $0x30] sm:$0xff]
        %v338 = vld [vmem:[%s311 + $0x38] sm:$0xff]
        %v339 = vld [vmem:[%s311 + $0x40] sm:$0xff]
        %v340 = vld [vmem:[%s311 + $0x48] sm:$0xff]
        %v341 = vld [vmem:[%s311 + $0x50] sm:$0xff]
        %v342 = vld [vmem:[%s311 + $0x58] sm:$0xff]
        %v343 = vld [vmem:[%s243] sm:$0xff]
        %v344 = vld [vmem:[%s243 + $0x8] sm:$0xf]
        %v345 = vld [vmem:[%s243 + $0xc] sm:$0xff]
        %v346 = vld [vmem:[%s243 + $0x14] sm:$0xf]
        %v347 = vld [vmem:[%s243 + $0x18] sm:$0xff]
        %v348 = vld [vmem:[%s243 + $0x20] sm:$0xf]
        %v349 = vld [vmem:[%s243 + $0x24] sm:$0xff]
        %v350 = vld [vmem:[%s243 + $0x2c] sm:$0xf]
        %v351 = vld [vmem:[%s294] sm:$0xff]
        %v352 = vld [vmem:[%s294 + $0x8] sm:$0xf]
        %v353 = vld [vmem:[%s294 + $0xc] sm:$0xff]
        %v354 = vld [vmem:[%s294 + $0x14] sm:$0xf]
        %v355 = vld [vmem:[%s294 + $0x18] sm:$0xff]
        %v356 = vld [vmem:[%s294 + $0x20] sm:$0xf]
        %v357 = vld [vmem:[%s294 + $0x24] sm:$0xff]
        %v358 = vld [vmem:[%s294 + $0x2c] sm:$0xf]
        %v359 = vld [vmem:[%s294 + $0x30] sm:$0xff]
        %v360 = vld [vmem:[%s294 + $0x38] sm:$0xf]
        %v361 = vld [vmem:[%s294 + $0x3c] sm:$0xff]
        %v362 = vld [vmem:[%s294 + $0x44] sm:$0xf]
        %v363 = vld [vmem:[%s294 + $0x48] sm:$0xff]
        %v364 = vld [vmem:[%s294 + $0x50] sm:$0xf]
        %v365 = vld [vmem:[%s294 + $0x54] sm:$0xff]
        %v366 = vld [vmem:[%s294 + $0x5c] sm:$0xf]
        %v367 = vld [vmem:[%s294 + $0x60] sm:$0xff]
        %v368 = vld [vmem:[%s294 + $0x68] sm:$0xf]
        %v369 = vld [vmem:[%s294 + $0x6c] sm:$0xff]
        %v370 = vld [vmem:[%s294 + $0x74] sm:$0xf]
        %v371 = vld [vmem:[%s294 + $0x78] sm:$0xff]
        %v372 = vld [vmem:[%s294 + $0x80] sm:$0xf]
        %v373 = vld [vmem:[%s294 + $0x84] sm:$0xff]
        %v374 = vld [vmem:[%s294 + $0x8c] sm:$0xf]
        %v375 = vld [vmem:[%s294 + $0x90] sm:$0xff]
        %v376 = vld [vmem:[%s294 + $0x98] sm:$0xf]
        %v377 = vld [vmem:[%s294 + $0x9c] sm:$0xff]
        %v378 = vld [vmem:[%s294 + $0xa4] sm:$0xf]
        %v379 = vld [vmem:[%s294 + $0xa8] sm:$0xff]
        %v380 = vld [vmem:[%s294 + $0xb0] sm:$0xf]
        %v381 = vld [vmem:[%s294 + $0xb4] sm:$0xff]
        %v382 = vld [vmem:[%s294 + $0xbc] sm:$0xf]
        %v383 = vld [vmem:[%s294 + $0xc0] sm:$0xff]
        %v384 = vld [vmem:[%s294 + $0xc8] sm:$0xf]
        %v385 = vld [vmem:[%s294 + $0xcc] sm:$0xff]
        %v386 = vld [vmem:[%s294 + $0xd4] sm:$0xf]
        %v387 = vld [vmem:[%s294 + $0xd8] sm:$0xff]
        %v388 = vld [vmem:[%s294 + $0xe0] sm:$0xf]
        %v389 = vld [vmem:[%s294 + $0xe4] sm:$0xff]
        %v390 = vld [vmem:[%s294 + $0xec] sm:$0xf]
        %v391 = vld [vmem:[%s294 + $0xf0] sm:$0xff]
        %v392 = vld [vmem:[%s294 + $0xf8] sm:$0xf]
        %v393 = vld [vmem:[%s294 + $0xfc] sm:$0xff]
        %v394 = vld [vmem:[%s294 + $0x104] sm:$0xf]
        %v395 = vld [vmem:[%s294 + $0x108] sm:$0xff]
        %v396 = vld [vmem:[%s294 + $0x110] sm:$0xf]
        %v397 = vld [vmem:[%s294 + $0x114] sm:$0xff]
        %v398 = vld [vmem:[%s294 + $0x11c] sm:$0xf]
        %v399 = vld [vmem:[%s294 + $0x120] sm:$0xff]
        %v400 = vld [vmem:[%s294 + $0x128] sm:$0xf]
        %v401 = vld [vmem:[%s294 + $0x12c] sm:$0xff]
        %v402 = vld [vmem:[%s294 + $0x134] sm:$0xf]
        %v403 = vld [vmem:[%s294 + $0x138] sm:$0xff]
        %v404 = vld [vmem:[%s294 + $0x140] sm:$0xf]
        %v405 = vld [vmem:[%s294 + $0x144] sm:$0xff]
        %v406 = vld [vmem:[%s294 + $0x14c] sm:$0xf]
        %v407 = vld [vmem:[%s294 + $0x150] sm:$0xff]
        %v408 = vld [vmem:[%s294 + $0x158] sm:$0xf]
        %v409 = vld [vmem:[%s294 + $0x15c] sm:$0xff]
        %v410 = vld [vmem:[%s294 + $0x164] sm:$0xf]
        %v411 = vld [vmem:[%s294 + $0x168] sm:$0xff]
        %v412 = vld [vmem:[%s294 + $0x170] sm:$0xf]
        %v413 = vld [vmem:[%s294 + $0x174] sm:$0xff]
        %v414 = vld [vmem:[%s294 + $0x17c] sm:$0xf]
        %v415 = vld [vmem:[%s294 + $0x180] sm:$0xff]
        %v416 = vld [vmem:[%s294 + $0x188] sm:$0xf]
        %v417 = vld [vmem:[%s294 + $0x18c] sm:$0xff]
        %v418 = vld [vmem:[%s294 + $0x194] sm:$0xf]
        %v419 = vld [vmem:[%s294 + $0x198] sm:$0xff]
        %v420 = vld [vmem:[%s294 + $0x1a0] sm:$0xf]
        %v421 = vld [vmem:[%s294 + $0x1a4] sm:$0xff]
        %v422 = vld [vmem:[%s294 + $0x1ac] sm:$0xf]
        %v423 = vld [vmem:[%s294 + $0x1b0] sm:$0xff]
        %v424 = vld [vmem:[%s294 + $0x1b8] sm:$0xf]
        %v425 = vld [vmem:[%s294 + $0x1bc] sm:$0xff]
        %v426 = vld [vmem:[%s294 + $0x1c4] sm:$0xf]
        %v427 = vld [vmem:[%s294 + $0x1c8] sm:$0xff]
        %v428 = vld [vmem:[%s294 + $0x1d0] sm:$0xf]
        %v429 = vld [vmem:[%s294 + $0x1d4] sm:$0xff]
        %v430 = vld [vmem:[%s294 + $0x1dc] sm:$0xf]
        %v431 = vld [vmem:[%s294 + $0x1e0] sm:$0xff]
        %v432 = vld [vmem:[%s294 + $0x1e8] sm:$0xf]
        %v433 = vld [vmem:[%s294 + $0x1ec] sm:$0xff]
        %v434 = vld [vmem:[%s294 + $0x1f4] sm:$0xf]
        %v435 = vld [vmem:[%s294 + $0x1f8] sm:$0xff]
        %v436 = vld [vmem:[%s294 + $0x200] sm:$0xf]
        %v437 = vld [vmem:[%s294 + $0x204] sm:$0xff]
        %v438 = vld [vmem:[%s294 + $0x20c] sm:$0xf]
        %v439 = vld [vmem:[%s294 + $0x210] sm:$0xff]
        %v440 = vld [vmem:[%s294 + $0x218] sm:$0xf]
        %v441 = vld [vmem:[%s294 + $0x21c] sm:$0xff]
        %v442 = vld [vmem:[%s294 + $0x224] sm:$0xf]
        %v443 = vld [vmem:[%s294 + $0x228] sm:$0xff]
        %v444 = vld [vmem:[%s294 + $0x230] sm:$0xf]
        %v445 = vld [vmem:[%s294 + $0x234] sm:$0xff]
        %v446 = vld [vmem:[%s294 + $0x23c] sm:$0xf]
        %v455 = vunpack.c.l.b16 %v343
        %v456 = vunpack.c.h.b16 %v343
        %v457 = vunpack.c.l.b16 %v344
        %v458 = vunpack.c.l.b16 %v345
        %v459 = vunpack.c.h.b16 %v345
        %v460 = vunpack.c.l.b16 %v346
        %v461 = vunpack.c.l.b16 %v347
        %v462 = vunpack.c.h.b16 %v347
        %v463 = vunpack.c.l.b16 %v348
        %v464 = vunpack.c.l.b16 %v349
        %v465 = vunpack.c.h.b16 %v349
        %v466 = vunpack.c.l.b16 %v350
        %v467 = vpack.c.b16 %v458, %v455
        %v468 = vpack.c.b16 %v459, %v456
        %v469 = vpack.c.b16 %v460, %v457
        %v470 = vpack.c.b16 %v464, %v461
        %v471 = vpack.c.b16 %v465, %v462
        %v472 = vpack.c.b16 %v466, %v463
        %v575 = vunpack.c.l.b16 %v351
        %v576 = vunpack.c.h.b16 %v351
        %v577 = vunpack.c.l.b16 %v352
        %v578 = vunpack.c.l.b16 %v353
        %v579 = vunpack.c.h.b16 %v353
        %v580 = vunpack.c.l.b16 %v354
        %v581 = vunpack.c.l.b16 %v355
        %v582 = vunpack.c.h.b16 %v355
        %v583 = vunpack.c.l.b16 %v356
        %v584 = vunpack.c.l.b16 %v357
        %v585 = vunpack.c.h.b16 %v357
        %v586 = vunpack.c.l.b16 %v358
        %v587 = vunpack.c.l.b16 %v359
        %v588 = vunpack.c.h.b16 %v359
        %v589 = vunpack.c.l.b16 %v360
        %v590 = vunpack.c.l.b16 %v361
        %v591 = vunpack.c.h.b16 %v361
        %v592 = vunpack.c.l.b16 %v362
        %v593 = vunpack.c.l.b16 %v363
        %v594 = vunpack.c.h.b16 %v363
        %v595 = vunpack.c.l.b16 %v364
        %v596 = vunpack.c.l.b16 %v365
        %v597 = vunpack.c.h.b16 %v365
        %v598 = vunpack.c.l.b16 %v366
        %v599 = vunpack.c.l.b16 %v367
        %v600 = vunpack.c.h.b16 %v367
        %v601 = vunpack.c.l.b16 %v368
        %v602 = vunpack.c.l.b16 %v369
        %v603 = vunpack.c.h.b16 %v369
        %v604 = vunpack.c.l.b16 %v370
        %v605 = vunpack.c.l.b16 %v371
        %v606 = vunpack.c.h.b16 %v371
        %v607 = vunpack.c.l.b16 %v372
        %v608 = vunpack.c.l.b16 %v373
        %v609 = vunpack.c.h.b16 %v373
        %v610 = vunpack.c.l.b16 %v374
        %v611 = vunpack.c.l.b16 %v375
        %v612 = vunpack.c.h.b16 %v375
        %v613 = vunpack.c.l.b16 %v376
        %v614 = vunpack.c.l.b16 %v377
        %v615 = vunpack.c.h.b16 %v377
        %v616 = vunpack.c.l.b16 %v378
        %v617 = vunpack.c.l.b16 %v379
        %v618 = vunpack.c.h.b16 %v379
        %v619 = vunpack.c.l.b16 %v380
        %v620 = vunpack.c.l.b16 %v381
        %v621 = vunpack.c.h.b16 %v381
        %v622 = vunpack.c.l.b16 %v382
        %v623 = vunpack.c.l.b16 %v383
        %v624 = vunpack.c.h.b16 %v383
        %v625 = vunpack.c.l.b16 %v384
        %v626 = vunpack.c.l.b16 %v385
        %v627 = vunpack.c.h.b16 %v385
        %v628 = vunpack.c.l.b16 %v386
        %v629 = vunpack.c.l.b16 %v387
        %v630 = vunpack.c.h.b16 %v387
        %v631 = vunpack.c.l.b16 %v388
        %v632 = vunpack.c.l.b16 %v389
        %v633 = vunpack.c.h.b16 %v389
        %v634 = vunpack.c.l.b16 %v390
        %v635 = vunpack.c.l.b16 %v391
        %v636 = vunpack.c.h.b16 %v391
        %v637 = vunpack.c.l.b16 %v392
        %v638 = vunpack.c.l.b16 %v393
        %v639 = vunpack.c.h.b16 %v393
        %v640 = vunpack.c.l.b16 %v394
        %v641 = vunpack.c.l.b16 %v395
        %v642 = vunpack.c.h.b16 %v395
        %v643 = vunpack.c.l.b16 %v396
        %v644 = vunpack.c.l.b16 %v397
        %v645 = vunpack.c.h.b16 %v397
        %v646 = vunpack.c.l.b16 %v398
        %v647 = vunpack.c.l.b16 %v399
        %v648 = vunpack.c.h.b16 %v399
        %v649 = vunpack.c.l.b16 %v400
        %v650 = vunpack.c.l.b16 %v401
        %v651 = vunpack.c.h.b16 %v401
        %v652 = vunpack.c.l.b16 %v402
        %v653 = vunpack.c.l.b16 %v403
        %v654 = vunpack.c.h.b16 %v403
        %v655 = vunpack.c.l.b16 %v404
        %v656 = vunpack.c.l.b16 %v405
        %v657 = vunpack.c.h.b16 %v405
        %v658 = vunpack.c.l.b16 %v406
        %v659 = vunpack.c.l.b16 %v407
        %v660 = vunpack.c.h.b16 %v407
        %v661 = vunpack.c.l.b16 %v408
        %v662 = vunpack.c.l.b16 %v409
        %v663 = vunpack.c.h.b16 %v409
        %v664 = vunpack.c.l.b16 %v410
        %v665 = vunpack.c.l.b16 %v411
        %v666 = vunpack.c.h.b16 %v411
        %v667 = vunpack.c.l.b16 %v412
        %v668 = vunpack.c.l.b16 %v413
        %v669 = vunpack.c.h.b16 %v413
        %v670 = vunpack.c.l.b16 %v414
        %v671 = vunpack.c.l.b16 %v415
        %v672 = vunpack.c.h.b16 %v415
        %v673 = vunpack.c.l.b16 %v416
        %v674 = vunpack.c.l.b16 %v417
        %v675 = vunpack.c.h.b16 %v417
        %v676 = vunpack.c.l.b16 %v418
        %v677 = vunpack.c.l.b16 %v419
        %v678 = vunpack.c.h.b16 %v419
        %v679 = vunpack.c.l.b16 %v420
        %v680 = vunpack.c.l.b16 %v421
        %v681 = vunpack.c.h.b16 %v421
        %v682 = vunpack.c.l.b16 %v422
        %v683 = vunpack.c.l.b16 %v423
        %v684 = vunpack.c.h.b16 %v423
        %v685 = vunpack.c.l.b16 %v424
        %v686 = vunpack.c.l.b16 %v425
        %v687 = vunpack.c.h.b16 %v425
        %v688 = vunpack.c.l.b16 %v426
        %v689 = vunpack.c.l.b16 %v427
        %v690 = vunpack.c.h.b16 %v427
        %v691 = vunpack.c.l.b16 %v428
        %v692 = vunpack.c.l.b16 %v429
        %v693 = vunpack.c.h.b16 %v429
        %v694 = vunpack.c.l.b16 %v430
        %v695 = vunpack.c.l.b16 %v431
        %v696 = vunpack.c.h.b16 %v431
        %v697 = vunpack.c.l.b16 %v432
        %v698 = vunpack.c.l.b16 %v433
        %v699 = vunpack.c.h.b16 %v433
        %v700 = vunpack.c.l.b16 %v434
        %v701 = vunpack.c.l.b16 %v435
        %v702 = vunpack.c.h.b16 %v435
        %v703 = vunpack.c.l.b16 %v436
        %v704 = vunpack.c.l.b16 %v437
        %v705 = vunpack.c.h.b16 %v437
        %v706 = vunpack.c.l.b16 %v438
        %v707 = vunpack.c.l.b16 %v439
        %v708 = vunpack.c.h.b16 %v439
        %v709 = vunpack.c.l.b16 %v440
        %v710 = vunpack.c.l.b16 %v441
        %v711 = vunpack.c.h.b16 %v441
        %v712 = vunpack.c.l.b16 %v442
        %v713 = vunpack.c.l.b16 %v443
        %v714 = vunpack.c.h.b16 %v443
        %v715 = vunpack.c.l.b16 %v444
        %v716 = vunpack.c.l.b16 %v445
        %v717 = vunpack.c.h.b16 %v445
        %v718 = vunpack.c.l.b16 %v446
        %v719 = vpack.c.b16 %v578, %v575
        %v720 = vpack.c.b16 %v579, %v576
        %v721 = vpack.c.b16 %v580, %v577
        %v722 = vpack.c.b16 %v584, %v581
        %v723 = vpack.c.b16 %v585, %v582
        %v724 = vpack.c.b16 %v586, %v583
        %v725 = vpack.c.b16 %v590, %v587
        %v726 = vpack.c.b16 %v591, %v588
        %v727 = vpack.c.b16 %v592, %v589
        %v728 = vpack.c.b16 %v596, %v593
        %v729 = vpack.c.b16 %v597, %v594
        %v730 = vpack.c.b16 %v598, %v595
        %v731 = vpack.c.b16 %v602, %v599
        %v732 = vpack.c.b16 %v603, %v600
        %v733 = vpack.c.b16 %v604, %v601
        %v734 = vpack.c.b16 %v608, %v605
        %v735 = vpack.c.b16 %v609, %v606
        %v736 = vpack.c.b16 %v610, %v607
        %v737 = vpack.c.b16 %v614, %v611
        %v738 = vpack.c.b16 %v615, %v612
        %v739 = vpack.c.b16 %v616, %v613
        %v740 = vpack.c.b16 %v620, %v617
        %v741 = vpack.c.b16 %v621, %v618
        %v742 = vpack.c.b16 %v622, %v619
        %v743 = vpack.c.b16 %v626, %v623
        %v744 = vpack.c.b16 %v627, %v624
        %v745 = vpack.c.b16 %v628, %v625
        %v746 = vpack.c.b16 %v632, %v629
        %v747 = vpack.c.b16 %v633, %v630
        %v748 = vpack.c.b16 %v634, %v631
        %v749 = vpack.c.b16 %v638, %v635
        %v750 = vpack.c.b16 %v639, %v636
        %v751 = vpack.c.b16 %v640, %v637
        %v752 = vpack.c.b16 %v644, %v641
        %v753 = vpack.c.b16 %v645, %v642
        %v754 = vpack.c.b16 %v646, %v643
        %v755 = vpack.c.b16 %v650, %v647
        %v756 = vpack.c.b16 %v651, %v648
        %v757 = vpack.c.b16 %v652, %v649
        %v758 = vpack.c.b16 %v656, %v653
        %v759 = vpack.c.b16 %v657, %v654
        %v760 = vpack.c.b16 %v658, %v655
        %v761 = vpack.c.b16 %v662, %v659
        %v762 = vpack.c.b16 %v663, %v660
        %v763 = vpack.c.b16 %v664, %v661
        %v764 = vpack.c.b16 %v668, %v665
        %v765 = vpack.c.b16 %v669, %v666
        %v766 = vpack.c.b16 %v670, %v667
        %v767 = vpack.c.b16 %v674, %v671
        %v768 = vpack.c.b16 %v675, %v672
        %v769 = vpack.c.b16 %v676, %v673
        %v770 = vpack.c.b16 %v680, %v677
        %v771 = vpack.c.b16 %v681, %v678
        %v772 = vpack.c.b16 %v682, %v679
        %v773 = vpack.c.b16 %v686, %v683
        %v774 = vpack.c.b16 %v687, %v684
        %v775 = vpack.c.b16 %v688, %v685
        %v776 = vpack.c.b16 %v692, %v689
        %v777 = vpack.c.b16 %v693, %v690
        %v778 = vpack.c.b16 %v694, %v691
        %v779 = vpack.c.b16 %v698, %v695
        %v780 = vpack.c.b16 %v699, %v696
        %v781 = vpack.c.b16 %v700, %v697
        %v782 = vpack.c.b16 %v704, %v701
        %v783 = vpack.c.b16 %v705, %v702
        %v784 = vpack.c.b16 %v706, %v703
        %v785 = vpack.c.b16 %v710, %v707
        %v786 = vpack.c.b16 %v711, %v708
        %v787 = vpack.c.b16 %v712, %v709
        %v788 = vpack.c.b16 %v716, %v713
        %v789 = vpack.c.b16 %v717, %v714
        %v790 = vpack.c.b16 %v718, %v715
        %863 = vmatprep.subr.bf16.mxu0 %v720
        %864 = vmatpush1.bf16.msra.mxu0 %v719
        %865 = vmatprep.subr.bf16.mxu0 %v723
        %866 = vmatpush1.bf16.msra.mxu0 %v722
        %867 = vmatprep.subr.bf16.mxu0 %v726
        %868 = vmatpush1.bf16.msra.mxu0 %v725
        %869 = vmatprep.subr.bf16.mxu0 %v729
        %870 = vmatpush1.bf16.msra.mxu0 %v728
        %871 = vmatprep.subr.bf16.mxu0 %v732
        %872 = vmatpush1.bf16.msra.mxu0 %v731
        %873 = vmatprep.subr.bf16.mxu0 %v735
        %874 = vmatpush1.bf16.msra.mxu0 %v734
        %875 = vmatprep.subr.bf16.mxu0 %v738
        %876 = vmatpush1.bf16.msra.mxu0 %v737
        %877 = vmatprep.subr.bf16.mxu0 %v741
        %878 = vmatpush1.bf16.msra.mxu0 %v740
        %879 = vmatprep.subr.bf16.mxu0 %v744
        %880 = vmatpush1.bf16.msra.mxu0 %v743
        %881 = vmatprep.subr.bf16.mxu0 %v747
        %882 = vmatpush1.bf16.msra.mxu0 %v746
        %883 = vmatprep.subr.bf16.mxu0 %v750
        %884 = vmatpush1.bf16.msra.mxu0 %v749
        %885 = vmatprep.subr.bf16.mxu0 %v753
        %886 = vmatpush1.bf16.msra.mxu0 %v752
        %887 = vmatprep.subr.bf16.mxu0 %v756
        %888 = vmatpush1.bf16.msra.mxu0 %v755
        %889 = vmatprep.subr.bf16.mxu0 %v759
        %890 = vmatpush1.bf16.msra.mxu0 %v758
        %891 = vmatprep.subr.bf16.mxu0 %v762
        %892 = vmatpush1.bf16.msra.mxu0 %v761
        %893 = vmatprep.subr.bf16.mxu0 %v765
        %894 = vmatpush1.bf16.msra.mxu0 %v764
        %895 = vmatprep.mubr.bf16.mxu0 %v468
        %896 = vmatmul.mubr.bf16.gmra.mrb[0].mxu0 %v467
        %v897 = vpop.f32.mrb[0].mxu0
        %v898 = vadd.f32 0.0, %v897
        %v899 = vpop.f32.mrb[0].mxu0
        %v900 = vadd.f32 0.0, %v899
        %v901 = vpop.f32.mrb[0].mxu0
        %v902 = vadd.f32 0.0, %v901
        %v903 = vpop.f32.mrb[0].mxu0
        %v904 = vadd.f32 0.0, %v903
        %905 = vmatprep.mubr.bf16.mxu0 %v471
        %906 = vmatmul.mubr.bf16.gmra.mrb[0].mxu0 %v470
        %v907 = vpop.f32.mrb[0].mxu0
        %v908 = vadd.f32 0.0, %v907
        %v909 = vpop.f32.mrb[0].mxu0
        %v910 = vadd.f32 0.0, %v909
        %v911 = vpop.f32.mrb[0].mxu0
        %v912 = vadd.f32 0.0, %v911
        %v913 = vpop.f32.mrb[0].mxu0
        %v914 = vadd.f32 0.0, %v913
        %915 = vdwg.mxu0
        %916 = vmatprep.subr.bf16.mxu0 %v768
        %917 = vmatpush1.bf16.msra.mxu0 %v767
        %918 = vmatprep.subr.bf16.mxu0 %v771
        %919 = vmatpush1.bf16.msra.mxu0 %v770
        %920 = vmatprep.subr.bf16.mxu0 %v774
        %921 = vmatpush1.bf16.msra.mxu0 %v773
        %922 = vmatprep.subr.bf16.mxu0 %v777
        %923 = vmatpush1.bf16.msra.mxu0 %v776
        %924 = vmatprep.subr.bf16.mxu0 %v780
        %925 = vmatpush1.bf16.msra.mxu0 %v779
        %926 = vmatprep.subr.bf16.mxu0 %v783
        %927 = vmatpush1.bf16.msra.mxu0 %v782
        %928 = vmatprep.subr.bf16.mxu0 %v786
        %929 = vmatpush1.bf16.msra.mxu0 %v785
        %930 = vmatprep.subr.bf16.mxu0 %v789
        %931 = vmatpush1.bf16.msra.mxu0 %v788
        %932 = vmatprep.subr.bf16.mxu0 0
        %933 = vmatpush1.bf16.msra.mxu0 0
        %934 = vmatprep.subr.bf16.mxu0 0
        %935 = vmatpush1.bf16.msra.mxu0 0
        %936 = vmatprep.subr.bf16.mxu0 0
        %937 = vmatpush1.bf16.msra.mxu0 0
        %938 = vmatprep.subr.bf16.mxu0 0
        %939 = vmatpush1.bf16.msra.mxu0 0
        %940 = vmatprep.subr.bf16.mxu0 0
        %941 = vmatpush1.bf16.msra.mxu0 0
        %942 = vmatprep.subr.bf16.mxu0 0
        %943 = vmatpush1.bf16.msra.mxu0 0
        %944 = vmatprep.subr.bf16.mxu0 0
        %945 = vmatpush1.bf16.msra.mxu0 0
        %946 = vmatprep.subr.bf16.mxu0 0
        %947 = vmatpush1.bf16.msra.mxu0 0
        %948 = vmatprep.mubr.bf16.mxu0 0
        %949 = vmatmul.mubr.bf16.gmra.mrb[0].mxu0 %v469
        %v950 = vpop.f32.mrb[0].mxu0
        %v951 = vadd.f32 %v898, %v950
        %v952 = vpop.f32.mrb[0].mxu0
        %v953 = vadd.f32 %v900, %v952
        %v954 = vpop.f32.mrb[0].mxu0
        %v955 = vadd.f32 %v902, %v954
        %v956 = vpop.f32.mrb[0].mxu0
        %v957 = vadd.f32 %v904, %v956
        %958 = vmatprep.mubr.bf16.mxu0 0
        %959 = vmatmul.mubr.bf16.gmra.mrb[0].mxu0 %v472
        %v960 = vpop.f32.mrb[0].mxu0
        %v961 = vadd.f32 %v908, %v960
        %v962 = vpop.f32.mrb[0].mxu0
        %v963 = vadd.f32 %v910, %v962
        %v964 = vpop.f32.mrb[0].mxu0
        %v965 = vadd.f32 %v912, %v964
        %v966 = vpop.f32.mrb[0].mxu0
        %v967 = vadd.f32 %v914, %v966
        %968 = vdwg.mxu0
        %969 = vmatprep.subr.bf16.mxu0 0
        %970 = vmatpush1.bf16.msra.mxu0 %v721
        %971 = vmatprep.subr.bf16.mxu0 0
        %972 = vmatpush1.bf16.msra.mxu0 %v724
        %973 = vmatprep.subr.bf16.mxu0 0
        %974 = vmatpush1.bf16.msra.mxu0 %v727
        %975 = vmatprep.subr.bf16.mxu0 0
        %976 = vmatpush1.bf16.msra.mxu0 %v730
        %977 = vmatprep.subr.bf16.mxu0 0
        %978 = vmatpush1.bf16.msra.mxu0 %v733
        %979 = vmatprep.subr.bf16.mxu0 0
        %980 = vmatpush1.bf16.msra.mxu0 %v736
        %981 = vmatprep.subr.bf16.mxu0 0
        %982 = vmatpush1.bf16.msra.mxu0 %v739
        %983 = vmatprep.subr.bf16.mxu0 0
        %984 = vmatpush1.bf16.msra.mxu0 %v742
        %985 = vmatprep.subr.bf16.mxu0 0
        %986 = vmatpush1.bf16.msra.mxu0 %v745
        %987 = vmatprep.subr.bf16.mxu0 0
        %988 = vmatpush1.bf16.msra.mxu0 %v748
        %989 = vmatprep.subr.bf16.mxu0 0
        %990 = vmatpush1.bf16.msra.mxu0 %v751
        %991 = vmatprep.subr.bf16.mxu0 0
        %992 = vmatpush1.bf16.msra.mxu0 %v754
        %993 = vmatprep.subr.bf16.mxu0 0
        %994 = vmatpush1.bf16.msra.mxu0 %v757
        %995 = vmatprep.subr.bf16.mxu0 0
        %996 = vmatpush1.bf16.msra.mxu0 %v760
        %997 = vmatprep.subr.bf16.mxu0 0
        %998 = vmatpush1.bf16.msra.mxu0 %v763
        %999 = vmatprep.subr.bf16.mxu0 0
        %1000 = vmatpush1.bf16.msra.mxu0 %v766
        %1001 = vmatprep.mubr.bf16.mxu0 %v468
        %1002 = vmatmul.mubr.bf16.gmra.mrb[0].mxu0 %v467
        %v1003 = vpop.f32.mrb[0].mxu0
        %v1004 = vadd.f32 0.0, %v1003
        %v1005 = vpop.f32.mrb[0].mxu0
        %v1006 = vpop.f32.mrb[0].mxu0
        %v1007 = vadd.f32 0.0, %v1006
        %v1008 = vpop.f32.mrb[0].mxu0
        %1009 = vmatprep.mubr.bf16.mxu0 %v471
        %1010 = vmatmul.mubr.bf16.gmra.mrb[0].mxu0 %v470
        %v1011 = vpop.f32.mrb[0].mxu0
        %v1012 = vadd.f32 0.0, %v1011
        %v1013 = vpop.f32.mrb[0].mxu0
        %v1014 = vpop.f32.mrb[0].mxu0
        %v1015 = vadd.f32 0.0, %v1014
        %v1016 = vpop.f32.mrb[0].mxu0
        %1017 = vdwg.mxu0
        %1018 = vmatprep.subr.bf16.mxu0 0
        %1019 = vmatpush1.bf16.msra.mxu0 %v769
        %1020 = vmatprep.subr.bf16.mxu0 0
        %1021 = vmatpush1.bf16.msra.mxu0 %v772
        %1022 = vmatprep.subr.bf16.mxu0 0
        %1023 = vmatpush1.bf16.msra.mxu0 %v775
        %1024 = vmatprep.subr.bf16.mxu0 0
        %1025 = vmatpush1.bf16.msra.mxu0 %v778
        %1026 = vmatprep.subr.bf16.mxu0 0
        %1027 = vmatpush1.bf16.msra.mxu0 %v781
        %1028 = vmatprep.subr.bf16.mxu0 0
        %1029 = vmatpush1.bf16.msra.mxu0 %v784
        %1030 = vmatprep.subr.bf16.mxu0 0
        %1031 = vmatpush1.bf16.msra.mxu0 %v787
        %1032 = vmatprep.subr.bf16.mxu0 0
        %1033 = vmatpush1.bf16.msra.mxu0 %v790
        %1034 = vmatprep.subr.bf16.mxu0 0
        %1035 = vmatpush1.bf16.msra.mxu0 0
        %1036 = vmatprep.subr.bf16.mxu0 0
        %1037 = vmatpush1.bf16.msra.mxu0 0
        %1038 = vmatprep.subr.bf16.mxu0 0
        %1039 = vmatpush1.bf16.msra.mxu0 0
        %1040 = vmatprep.subr.bf16.mxu0 0
        %1041 = vmatpush1.bf16.msra.mxu0 0
        %1042 = vmatprep.subr.bf16.mxu0 0
        %1043 = vmatpush1.bf16.msra.mxu0 0
        %1044 = vmatprep.subr.bf16.mxu0 0
        %1045 = vmatpush1.bf16.msra.mxu0 0
        %1046 = vmatprep.subr.bf16.mxu0 0
        %1047 = vmatpush1.bf16.msra.mxu0 0
        %1048 = vmatprep.subr.bf16.mxu0 0
        %1049 = vmatpush1.bf16.msra.mxu0 0
        %1050 = vmatprep.mubr.bf16.mxu0 0
        %1051 = vmatmul.mubr.bf16.gmra.mrb[0].mxu0 %v469
        %v1052 = vpop.f32.mrb[0].mxu0
        %v1053 = vadd.f32 %v1004, %v1052
        %v1054 = vpop.f32.mrb[0].mxu0
        %v1055 = vpop.f32.mrb[0].mxu0
        %v1056 = vadd.f32 %v1007, %v1055
        %v1057 = vpop.f32.mrb[0].mxu0
        %1058 = vmatprep.mubr.bf16.mxu0 0
        %1059 = vmatmul.mubr.bf16.gmra.mrb[0].mxu0 %v472
        %v1060 = vpop.f32.mrb[0].mxu0
        %v1061 = vadd.f32 %v1012, %v1060
        %v1062 = vpop.f32.mrb[0].mxu0
        %v1063 = vpop.f32.mrb[0].mxu0
        %v1064 = vadd.f32 %v1015, %v1063
        %v1065 = vpop.f32.mrb[0].mxu0
        %1066 = vdwg.mxu0
        %v1067 = vadd.f32 %v331, %v951
        %v1068 = vadd.f32 %v332, %v953
        %v1069 = vadd.f32 %v333, %v1053
        %v1070 = vadd.f32 %v334, %v955
        %v1071 = vadd.f32 %v335, %v957
        %v1072 = vadd.f32 %v336, %v1056
        %v1073 = vadd.f32 %v337, %v961
        %v1074 = vadd.f32 %v338, %v963
        %v1075 = vadd.f32 %v339, %v1061
        %v1076 = vadd.f32 %v340, %v965
        %v1077 = vadd.f32 %v341, %v967
        %v1078 = vadd.f32 %v342, %v1064
        %1079 = vst [vmem:[%s311] sm:$0xff] %v1067
        %1080 = vst [vmem:[%s311 + $0x8] sm:$0xff] %v1068
        %1081 = vst [vmem:[%s311 + $0x10] sm:$0xff] %v1069
        %1082 = vst [vmem:[%s311 + $0x18] sm:$0xff] %v1070
        %1083 = vst [vmem:[%s311 + $0x20] sm:$0xff] %v1071
        %1084 = vst [vmem:[%s311 + $0x28] sm:$0xff] %v1072
        %1085 = vst [vmem:[%s311 + $0x30] sm:$0xff] %v1073
        %1086 = vst [vmem:[%s311 + $0x38] sm:$0xff] %v1074
        %1087 = vst [vmem:[%s311 + $0x40] sm:$0xff] %v1075
        %1088 = vst [vmem:[%s311 + $0x48] sm:$0xff] %v1076
        %1089 = vst [vmem:[%s311 + $0x50] sm:$0xff] %v1077
        %1090 = vst [vmem:[%s311 + $0x58] sm:$0xff] %v1078
        %p1091 = scmp.eq.s32.totalorder %s21, 5
        // Predicated region
        $region63: #{alexnet_cbam3_forward.22} parent=53 // pred_check
          %p1092 = pneg %p1091
        $region64: #{alexnet_cbam3_forward.22} parent=53 // pred_check_branch
          %1094 = sbr.rel (%p1092) target = $region66
        $region65: #{alexnet_cbam3_forward.22} parent=53 // pred_region
          %v1095 = vld [vmem:[%s311] sm:$0xff]
          %v1096 = vld [vmem:[%s311 + $0x8] sm:$0xff]
          %v1097 = vld [vmem:[%s311 + $0x10] sm:$0xff]
          %v1098 = vld [vmem:[%s311 + $0x18] sm:$0xff]
          %v1099 = vld [vmem:[%s311 + $0x20] sm:$0xff]
          %v1100 = vld [vmem:[%s311 + $0x28] sm:$0xff]
          %v1101 = vld [vmem:[%s311 + $0x30] sm:$0xff]
          %v1102 = vld [vmem:[%s311 + $0x38] sm:$0xff]
          %v1103 = vld [vmem:[%s311 + $0x40] sm:$0xff]
          %v1104 = vld [vmem:[%s311 + $0x48] sm:$0xff]
          %v1105 = vld [vmem:[%s311 + $0x50] sm:$0xff]
          %v1106 = vld [vmem:[%s311 + $0x58] sm:$0xff]
          %v1107 = vld [vmem:[%s300] sm:$0x7]
          %v1109 = vlaneseq
          %v1110 = vshrl.u32 %v1109, 7
          %v1111 = vsub.s32 0, %v1110
          %v1112 = vrot.slane %v1107, %v1111
          %v1113 = vlaneseq
          %v1114 = vshrl.u32 %v1113, 7
          %v1115 = vsub.s32 1, %v1114
          %v1116 = vrot.slane %v1107, %v1115
          %v1117 = vlaneseq
          %v1118 = vshrl.u32 %v1117, 7
          %v1119 = vsub.s32 2, %v1118
          %v1120 = vrot.slane %v1107, %v1119
          %v1124 = vadd.f32 %v1095, %v1112
          %v1125 = vadd.f32 %v1096, %v1116
          %v1126 = vadd.f32 %v1097, %v1120
          %v1127 = vadd.f32 %v1098, %v1112
          %v1128 = vadd.f32 %v1099, %v1116
          %v1129 = vadd.f32 %v1100, %v1120
          %v1130 = vadd.f32 %v1101, %v1112
          %v1131 = vadd.f32 %v1102, %v1116
          %v1132 = vadd.f32 %v1103, %v1120
          %v1133 = vadd.f32 %v1104, %v1112
          %v1134 = vadd.f32 %v1105, %v1116
          %v1135 = vadd.f32 %v1106, %v1120
          %v1136 = vmax.f32 %v1124, 0.0
          %v1137 = vmax.f32 %v1125, 0.0
          %v1138 = vmax.f32 %v1126, 0.0
          %v1139 = vmax.f32 %v1127, 0.0
          %v1140 = vmax.f32 %v1128, 0.0
          %v1141 = vmax.f32 %v1129, 0.0
          %v1142 = vmax.f32 %v1130, 0.0
          %v1143 = vmax.f32 %v1131, 0.0
          %v1144 = vmax.f32 %v1132, 0.0
          %v1145 = vmax.f32 %v1133, 0.0
          %v1146 = vmax.f32 %v1134, 0.0
          %v1147 = vmax.f32 %v1135, 0.0
          %1148 = vst [vmem:[%s311] sm:$0xff] %v1136
          %1149 = vst [vmem:[%s311 + $0x8] sm:$0xff] %v1137
          %1150 = vst [vmem:[%s311 + $0x10] sm:$0xff] %v1138
          %1151 = vst [vmem:[%s311 + $0x18] sm:$0xff] %v1139
          %1152 = vst [vmem:[%s311 + $0x20] sm:$0xff] %v1140
          %1153 = vst [vmem:[%s311 + $0x28] sm:$0xff] %v1141
          %1154 = vst [vmem:[%s311 + $0x30] sm:$0xff] %v1142
          %1155 = vst [vmem:[%s311 + $0x38] sm:$0xff] %v1143
          %1156 = vst [vmem:[%s311 + $0x40] sm:$0xff] %v1144
          %1157 = vst [vmem:[%s311 + $0x48] sm:$0xff] %v1145
          %1158 = vst [vmem:[%s311 + $0x50] sm:$0xff] %v1146
          %1159 = vst [vmem:[%s311 + $0x58] sm:$0xff] %v1147
        $region66: #{alexnet_cbam3_forward.22} parent=53 // pred_fallthru
          _
        %s1160 = smul.u32 4, %s19
        %s1161 = smul.u32 3, %s20
        %p1162 = scmp.lt.s32.totalorder %s1160, 3
        %s1163 = scalar_select %p1162, %s1160, 3
        %p1164 = scmp.lt.s32.totalorder %s1161, 2
        %s1165 = scalar_select %p1164, %s1161, 2
        %s1166 = smul.addr %s1163, 3
        %s1167 = sadd.s32 %s1165, %s1166
        %s1168 = smul.addr %s1167, 8
        %s1169 = scalar_lea.vmem %s3, %s1168
        // Predicated region
        $region67: #{alexnet_cbam3_forward.22} parent=53 // pred_check
          %p1170 = pneg %p135
        $region68: #{alexnet_cbam3_forward.22} parent=53 // pred_check_branch
          %1172 = sbr.rel (%p1170) target = $region70
        $region69: #{alexnet_cbam3_forward.22} parent=53 // pred_region
          %s1173 = smul.u32 4, %s19
          %s1174 = smul.u32 3, %s20
        $region70: #{alexnet_cbam3_forward.22} parent=53 // pred_fallthru
          _
        // Predicated region
        $region71: #{alexnet_cbam3_forward.22} parent=53 // pred_check
          %p1175 = pneg %p135
        $region72: #{alexnet_cbam3_forward.22} parent=53 // pred_check_branch
          %1177 = sbr.rel (%p1175) target = $region74
        $region73: #{alexnet_cbam3_forward.22} parent=53 // pred_region
          %s1178 = smul.u32 4, %s19
          %s1179 = smul.u32 3, %s20
          %p1180 = scmp.lt.s32.totalorder %s1178, 3
          %s1181 = scalar_select %p1180, %s1178, 3
          %p1182 = scmp.lt.s32.totalorder %s1179, 2
          %s1183 = scalar_select %p1182, %s1179, 2
          %s1184 = smul.addr %s1181, 3
          %s1185 = sadd.s32 %s1183, %s1184
          %s1186 = smul.addr %s1185, 8
          %s1187 = scalar_lea.vmem %s3, %s1186
        $region74: #{alexnet_cbam3_forward.22} parent=53 // pred_fallthru
          _
      $region54: #{alexnet_cbam3_forward.22} parent=5 // pred_fallthru
        _
      %p1188 = scmp.le.s32.totalorder 2, %s9
      // Predicated region
      $region75: #{alexnet_cbam3_forward.22} parent=5 // pred_check
        %p1189 = pneg %p1188
      $region76: #{alexnet_cbam3_forward.22} parent=5 // pred_check_branch
        %1191 = sbr.rel (%p1189) target = $region78
      $region77: #{alexnet_cbam3_forward.22} parent=5 // pred_region
        %s1192 = ssub.s32 %s9, 2
      $region78: #{alexnet_cbam3_forward.22} parent=5 // pred_fallthru
        _
    $region6: #{alexnet_cbam3_forward.22} parent=1 // loop_footer
      %s13 = sadd.s32 1, %s9
    $region7: #{alexnet_cbam3_forward.22} parent=1 // loop_footer_branch
      %8 = sbr.rel target = $region3
    $region8: #{alexnet_cbam3_forward.22} parent=1 // loop_exit
      _

// kernel: mul.78
$region0: #{mul.78}
  #allocation0 [shape = 's32[1]{0}', space=sflag, size = 0x4, scoped, tag = 'scoped memory for mul.78']
  %s0 = inlined_call_operand.vmem [shape: f32[2,384], index: 0, kind: input, shape index: {}]
  %s1 = inlined_call_operand.vmem [shape: f32[2,3,3,384], index: 1, kind: output, shape index: {}]
  // Predicated region
  $region2: #{mul.78} parent=0 // pred_check
    _
  $region3: #{mul.78} parent=0 // pred_check_branch
    %3 = sbr.rel (0) target = $region5
  $region4: #{mul.78} parent=0 // pred_region
    _
  $region5: #{mul.78} parent=0 // pred_fallthru
    _
  %v4 = vld [vmem:[%s0] ss:$0 sm:$0xff]
  %5 = vst [vmem:[%s1] sm:$0xf] %v4
  %s6 = scalar_lea.vmem %s0, 1
  %v7 = vld [vmem:[%s6] ss:$0 sm:$0xff]
  %s8 = scalar_lea.vmem %s1, 36
  %9 = vst [vmem:[%s8] sm:$0xf] %v7
  %s10 = scalar_lea.vmem %s1, 12
  %11 = vst [vmem:[%s10] sm:$0xf] %v4
  %s12 = scalar_lea.vmem %s1, 48
  %13 = vst [vmem:[%s12] sm:$0xf] %v7
  %s14 = scalar_lea.vmem %s1, 24
  %15 = vst [vmem:[%s14] sm:$0xf] %v4
  %s16 = scalar_lea.vmem %s1, 60
  %17 = vst [vmem:[%s16] sm:$0xf] %v7
  %s18 = scalar_lea.vmem %s0, 2
  %v19 = vld [vmem:[%s18] ss:$0 sm:$0xff]
  %s20 = scalar_lea.vmem %s1, 4
  %21 = vst [vmem:[%s20] sm:$0xf] %v19
  %s22 = scalar_lea.vmem %s0, 2
  %s23 = scalar_lea.vmem %s22, 1
  %v24 = vld [vmem:[%s23] ss:$0 sm:$0xff]
  %s25 = scalar_lea.vmem %s1, 40
  %26 = vst [vmem:[%s25] sm:$0xf] %v24
  %s27 = scalar_lea.vmem %s1, 16
  %28 = vst [vmem:[%s27] sm:$0xf] %v19
  %s29 = scalar_lea.vmem %s1, 52
  %30 = vst [vmem:[%s29] sm:$0xf] %v24
  %s31 = scalar_lea.vmem %s1, 28
  %32 = vst [vmem:[%s31] sm:$0xf] %v19
  %s33 = scalar_lea.vmem %s1, 64
  %34 = vst [vmem:[%s33] sm:$0xf] %v24
  %s35 = scalar_lea.vmem %s0, 4
  %v36 = vld [vmem:[%s35] ss:$0 sm:$0xff]
  %s37 = scalar_lea.vmem %s1, 8
  %38 = vst [vmem:[%s37] sm:$0xf] %v36
  %s39 = scalar_lea.vmem %s0, 4
  %s40 = scalar_lea.vmem %s39, 1
  %v41 = vld [vmem:[%s40] ss:$0 sm:$0xff]
  %s42 = scalar_lea.vmem %s1, 44
  %43 = vst [vmem:[%s42] sm:$0xf] %v41
  %s44 = scalar_lea.vmem %s1, 20
  %45 = vst [vmem:[%s44] sm:$0xf] %v36
  %s46 = scalar_lea.vmem %s1, 56
  %47 = vst [vmem:[%s46] sm:$0xf] %v41
  %s48 = scalar_lea.vmem %s1, 32
  %49 = vst [vmem:[%s48] sm:$0xf] %v36
  %s50 = scalar_lea.vmem %s1, 68
  %51 = vst [vmem:[%s50] sm:$0xf] %v41

// kernel: reverse
$region0: #{reverse}
  %s0 = inlined_call_operand.vmem [shape: f32[7,7,2,1], index: 0, kind: input, shape index: {}]
  %s1 = inlined_call_operand.vmem [shape: bf16[7,7,2,1], index: 1, kind: output, shape index: {}]
  %v2 = vlaneseq
  %v3 = vsub.s32 6, %v2
  %4 = vset.pattern.permute.xlu0 %v3
  $region1: #{reverse} parent=0
    #allocation0 [shape = 'u8[57344]{0}', space=vmem, size = 0xe000, scoped, tag = 'operand span for operand 0']
    #allocation1 [shape = 'u8[7168]{0}', space=vmem, size = 0x1c00, scoped, tag = 'packed  for operand 0']
    #allocation2 [shape = 'u8[57344]{0}', space=vmem, size = 0xe000, scoped, tag = 'operand span for operand 1']
    #allocation3 [shape = 'u8[7168]{0}', space=vmem, size = 0x1c00, scoped, tag = 'packed  for operand 1']
    // Predicated region
    $region2: #{reverse} parent=1 // pred_check
      _
    $region3: #{reverse} parent=1 // pred_check_branch
      %6 = sbr.rel (0) target = $region5
    $region4: #{reverse} parent=1 // pred_region
      // Predicated region
      $region6: #{reverse} parent=4 // pred_check
        _
      $region7: #{reverse} parent=4 // pred_check_branch
        %8 = sbr.rel (0) target = $region9
      $region8: #{reverse} parent=4 // pred_region
        %s9 = scalar_lea.vmem %s0, 8
        %s10 = scalar_lea.vmem [#allocation1], 8
        loop: start=0, step=1, limit=1
        $region10: #{reverse} parent=8 // loop_pre_header
          _
        $region11: #{reverse} parent=8 // loop_header
          %s12 = sphi 0, %s16
          %p13 = scmp.ge.s32.totalorder %s12, 1
          %s17 = sphi %s0, %s0
          %s18 = sphi [#allocation1], [#allocation1]
        $region12: #{reverse} parent=8 // loop_header_branch
          %15 = sbr.rel (%p13) target = $region16
        $region13: #{reverse} parent=8 // loop_body
          %v19 = vld [vmem:[%s17] sm:$0xff]
          %20 = vst [vmem:[%s18] sm:$0xff] %v19
        $region14: #{reverse} parent=8 // loop_footer
          %s16 = sadd.s32 1, %s12
        $region15: #{reverse} parent=8 // loop_footer_branch
          %11 = sbr.rel target = $region11
        $region16: #{reverse} parent=8 // loop_exit
          _
        loop: start=0, step=1, limit=1
        $region17: #{reverse} parent=8 // loop_pre_header
          _
        $region18: #{reverse} parent=8 // loop_header
          %s23 = sphi 0, %s27
          %p24 = scmp.ge.s32.totalorder %s23, 1
          %s28 = sphi %s9, %s9
          %s29 = sphi %s10, %s10
        $region19: #{reverse} parent=8 // loop_header_branch
          %26 = sbr.rel (%p24) target = $region23
        $region20: #{reverse} parent=8 // loop_body
          %v30 = vld [vmem:[%s28] sm:$0x3f]
          %31 = vst [vmem:[%s29] sm:$0x3f] %v30
        $region21: #{reverse} parent=8 // loop_footer
          %s27 = sadd.s32 1, %s23
        $region22: #{reverse} parent=8 // loop_footer_branch
          %22 = sbr.rel target = $region18
        $region23: #{reverse} parent=8 // loop_exit
          _
      $region9: #{reverse} parent=4 // pred_fallthru
        _
    $region5: #{reverse} parent=1 // pred_fallthru
      _
    %32 = vnop
    %s34 = sshllo.u32 0, 1
    %s35 = smul.addr 1, 13
    %s36 = scalar_lea.vmem [#allocation1], %s35
    %v37 = vld [vmem:[%s36] sm:%s34]
    %s38 = scalar_lea.vmem [#allocation0], 104
    %39 = vst [vmem:[%s38] sm:%s34] %v37
    %s40 = smul.addr 1, 12
    %s41 = scalar_lea.vmem [#allocation1], %s40
    %v42 = vld [vmem:[%s41] sm:%s34]
    %s43 = scalar_lea.vmem [#allocation0], 96
    %44 = vst [vmem:[%s43] sm:%s34] %v42
    %s45 = smul.addr 1, 11
    %s46 = scalar_lea.vmem [#allocation1], %s45
    %v47 = vld [vmem:[%s46] sm:%s34]
    %s48 = scalar_lea.vmem [#allocation0], 88
    %49 = vst [vmem:[%s48] sm:%s34] %v47
    %s50 = smul.addr 1, 10
    %s51 = scalar_lea.vmem [#allocation1], %s50
    %v52 = vld [vmem:[%s51] sm:%s34]
    %s53 = scalar_lea.vmem [#allocation0], 80
    %54 = vst [vmem:[%s53] sm:%s34] %v52
    %s55 = smul.addr 1, 9
    %s56 = scalar_lea.vmem [#allocation1], %s55
    %v57 = vld [vmem:[%s56] sm:%s34]
    %s58 = scalar_lea.vmem [#allocation0], 72
    %59 = vst [vmem:[%s58] sm:%s34] %v57
    %s60 = smul.addr 1, 8
    %s61 = scalar_lea.vmem [#allocation1], %s60
    %v62 = vld [vmem:[%s61] sm:%s34]
    %s63 = scalar_lea.vmem [#allocation0], 64
    %64 = vst [vmem:[%s63] sm:%s34] %v62
    %s65 = smul.addr 1, 7
    %s66 = scalar_lea.vmem [#allocation1], %s65
    %v67 = vld [vmem:[%s66] sm:%s34]
    %s68 = scalar_lea.vmem [#allocation0], 56
    %69 = vst [vmem:[%s68] sm:%s34] %v67
    %s70 = smul.addr 1, 6
    %s71 = scalar_lea.vmem [#allocation1], %s70
    %v72 = vld [vmem:[%s71] sm:%s34]
    %s73 = scalar_lea.vmem [#allocation0], 48
    %74 = vst [vmem:[%s73] sm:%s34] %v72
    %s75 = smul.addr 1, 5
    %s76 = scalar_lea.vmem [#allocation1], %s75
    %v77 = vld [vmem:[%s76] sm:%s34]
    %s78 = scalar_lea.vmem [#allocation0], 40
    %79 = vst [vmem:[%s78] sm:%s34] %v77
    %s80 = smul.addr 1, 4
    %s81 = scalar_lea.vmem [#allocation1], %s80
    %v82 = vld [vmem:[%s81] sm:%s34]
    %s83 = scalar_lea.vmem [#allocation0], 32
    %84 = vst [vmem:[%s83] sm:%s34] %v82
    %s85 = smul.addr 1, 3
    %s86 = scalar_lea.vmem [#allocation1], %s85
    %v87 = vld [vmem:[%s86] sm:%s34]
    %s88 = scalar_lea.vmem [#allocation0], 24
    %89 = vst [vmem:[%s88] sm:%s34] %v87
    %s90 = smul.addr 1, 2
    %s91 = scalar_lea.vmem [#allocation1], %s90
    %v92 = vld [vmem:[%s91] sm:%s34]
    %s93 = scalar_lea.vmem [#allocation0], 16
    %94 = vst [vmem:[%s93] sm:%s34] %v92
    %s95 = scalar_lea.vmem [#allocation1], 1
    %v96 = vld [vmem:[%s95] sm:%s34]
    %s97 = scalar_lea.vmem [#allocation0], 8
    %98 = vst [vmem:[%s97] sm:%s34] %v96
    %v99 = vld [vmem:[#allocation1] sm:%s34]
    %100 = vst [vmem:[#allocation0] sm:%s34] %v99
    %s101 = scalar_lea.vmem [#allocation0], 96
    %v102 = vld [vmem:[%s101] sm:$0xff]
    %103 = vperm.xlu0 %4, %v102
    %v104 = vpop.permute.xlu0 %103
    %105 = vst [vmem:[#allocation2] sm:$0xff] %v104
    %s106 = scalar_lea.vmem [#allocation2], 8
    %s107 = scalar_lea.vmem [#allocation0], 104
    %v108 = vld [vmem:[%s107] sm:$0xff]
    %109 = vperm.xlu0 %4, %v108
    %v110 = vpop.permute.xlu0 %109
    %111 = vst [vmem:[%s106] sm:$0xff] %v110
    %s112 = scalar_lea.vmem [#allocation2], 16
    %s113 = scalar_lea.vmem [#allocation0], 80
    %v114 = vld [vmem:[%s113] sm:$0xff]
    %115 = vperm.xlu0 %4, %v114
    %v116 = vpop.permute.xlu0 %115
    %117 = vst [vmem:[%s112] sm:$0xff] %v116
    %s118 = scalar_lea.vmem [#allocation2], 24
    %s119 = scalar_lea.vmem [#allocation0], 88
    %v120 = vld [vmem:[%s119] sm:$0xff]
    %121 = vperm.xlu0 %4, %v120
    %v122 = vpop.permute.xlu0 %121
    %123 = vst [vmem:[%s118] sm:$0xff] %v122
    %s124 = scalar_lea.vmem [#allocation2], 32
    %s125 = scalar_lea.vmem [#allocation0], 64
    %v126 = vld [vmem:[%s125] sm:$0xff]
    %127 = vperm.xlu0 %4, %v126
    %v128 = vpop.permute.xlu0 %127
    %129 = vst [vmem:[%s124] sm:$0xff] %v128
    %s130 = scalar_lea.vmem [#allocation2], 40
    %s131 = scalar_lea.vmem [#allocation0], 72
    %v132 = vld [vmem:[%s131] sm:$0xff]
    %133 = vperm.xlu0 %4, %v132
    %v134 = vpop.permute.xlu0 %133
    %135 = vst [vmem:[%s130] sm:$0xff] %v134
    %s136 = scalar_lea.vmem [#allocation2], 48
    %s137 = scalar_lea.vmem [#allocation0], 48
    %v138 = vld [vmem:[%s137] sm:$0xff]
    %139 = vperm.xlu0 %4, %v138
    %v140 = vpop.permute.xlu0 %139
    %141 = vst [vmem:[%s136] sm:$0xff] %v140
    %s142 = scalar_lea.vmem [#allocation2], 56
    %s143 = scalar_lea.vmem [#allocation0], 56
    %v144 = vld [vmem:[%s143] sm:$0xff]
    %145 = vperm.xlu0 %4, %v144
    %v146 = vpop.permute.xlu0 %145
    %147 = vst [vmem:[%s142] sm:$0xff] %v146
    %s148 = scalar_lea.vmem [#allocation2], 64
    %s149 = scalar_lea.vmem [#allocation0], 32
    %v150 = vld [vmem:[%s149] sm:$0xff]
    %151 = vperm.xlu0 %4, %v150
    %v152 = vpop.permute.xlu0 %151
    %153 = vst [vmem:[%s148] sm:$0xff] %v152
    %s154 = scalar_lea.vmem [#allocation2], 72
    %s155 = scalar_lea.vmem [#allocation0], 40
    %v156 = vld [vmem:[%s155] sm:$0xff]
    %157 = vperm.xlu0 %4, %v156
    %v158 = vpop.permute.xlu0 %157
    %159 = vst [vmem:[%s154] sm:$0xff] %v158
    %s160 = scalar_lea.vmem [#allocation2], 80
    %s161 = scalar_lea.vmem [#allocation0], 16
    %v162 = vld [vmem:[%s161] sm:$0xff]
    %163 = vperm.xlu0 %4, %v162
    %v164 = vpop.permute.xlu0 %163
    %165 = vst [vmem:[%s160] sm:$0xff] %v164
    %s166 = scalar_lea.vmem [#allocation2], 88
    %s167 = scalar_lea.vmem [#allocation0], 24
    %v168 = vld [vmem:[%s167] sm:$0xff]
    %169 = vperm.xlu0 %4, %v168
    %v170 = vpop.permute.xlu0 %169
    %171 = vst [vmem:[%s166] sm:$0xff] %v170
    %s172 = scalar_lea.vmem [#allocation2], 96
    %v173 = vld [vmem:[#allocation0] sm:$0xff]
    %174 = vperm.xlu0 %4, %v173
    %v175 = vpop.permute.xlu0 %174
    %176 = vst [vmem:[%s172] sm:$0xff] %v175
    %s177 = scalar_lea.vmem [#allocation2], 104
    %s178 = scalar_lea.vmem [#allocation0], 8
    %v179 = vld [vmem:[%s178] sm:$0xff]
    %180 = vperm.xlu0 %4, %v179
    %v181 = vpop.permute.xlu0 %180
    %182 = vst [vmem:[%s177] sm:$0xff] %v181
    %s184 = smul.u32 1, 2
    %s185 = sshllo.u32 0, %s184
    %s186 = sshrl.u32 %s184, 1
    %v187 = vld [vmem:[#allocation2] sm:%s185]
    %v188 = vpack.c.bf16 0.0, %v187
    %s189 = sshllo.u32 0, %s186
    %190 = vst [vmem:[#allocation3] sm:%s189] %v188
    %s191 = scalar_lea.vmem [#allocation2], 8
    %v192 = vld [vmem:[%s191] sm:%s185]
    %v193 = vpack.c.bf16 0.0, %v192
    %s194 = sshllo.u32 0, %s186
    %s195 = scalar_lea.vmem [#allocation3], 1
    %196 = vst [vmem:[%s195] sm:%s194] %v193
    %s197 = scalar_lea.vmem [#allocation2], 16
    %v198 = vld [vmem:[%s197] sm:%s185]
    %v199 = vpack.c.bf16 0.0, %v198
    %s200 = sshllo.u32 0, %s186
    %s201 = smul.addr 1, 2
    %s202 = scalar_lea.vmem [#allocation3], %s201
    %203 = vst [vmem:[%s202] sm:%s200] %v199
    %s204 = scalar_lea.vmem [#allocation2], 24
    %v205 = vld [vmem:[%s204] sm:%s185]
    %v206 = vpack.c.bf16 0.0, %v205
    %s207 = sshllo.u32 0, %s186
    %s208 = smul.addr 1, 3
    %s209 = scalar_lea.vmem [#allocation3], %s208
    %210 = vst [vmem:[%s209] sm:%s207] %v206
    %s211 = scalar_lea.vmem [#allocation2], 32
    %v212 = vld [vmem:[%s211] sm:%s185]
    %v213 = vpack.c.bf16 0.0, %v212
    %s214 = sshllo.u32 0, %s186
    %s215 = smul.addr 1, 4
    %s216 = scalar_lea.vmem [#allocation3], %s215
    %217 = vst [vmem:[%s216] sm:%s214] %v213
    %s218 = scalar_lea.vmem [#allocation2], 40
    %v219 = vld [vmem:[%s218] sm:%s185]
    %v220 = vpack.c.bf16 0.0, %v219
    %s221 = sshllo.u32 0, %s186
    %s222 = smul.addr 1, 5
    %s223 = scalar_lea.vmem [#allocation3], %s222
    %224 = vst [vmem:[%s223] sm:%s221] %v220
    %s225 = scalar_lea.vmem [#allocation2], 48
    %v226 = vld [vmem:[%s225] sm:%s185]
    %v227 = vpack.c.bf16 0.0, %v226
    %s228 = sshllo.u32 0, %s186
    %s229 = smul.addr 1, 6
    %s230 = scalar_lea.vmem [#allocation3], %s229
    %231 = vst [vmem:[%s230] sm:%s228] %v227
    %s232 = scalar_lea.vmem [#allocation2], 56
    %v233 = vld [vmem:[%s232] sm:%s185]
    %v234 = vpack.c.bf16 0.0, %v233
    %s235 = sshllo.u32 0, %s186
    %s236 = smul.addr 1, 7
    %s237 = scalar_lea.vmem [#allocation3], %s236
    %238 = vst [vmem:[%s237] sm:%s235] %v234
    %s239 = scalar_lea.vmem [#allocation2], 64
    %v240 = vld [vmem:[%s239] sm:%s185]
    %v241 = vpack.c.bf16 0.0, %v240
    %s242 = sshllo.u32 0, %s186
    %s243 = smul.addr 1, 8
    %s244 = scalar_lea.vmem [#allocation3], %s243
    %245 = vst [vmem:[%s244] sm:%s242] %v241
    %s246 = scalar_lea.vmem [#allocation2], 72
    %v247 = vld [vmem:[%s246] sm:%s185]
    %v248 = vpack.c.bf16 0.0, %v247
    %s249 = sshllo.u32 0, %s186
    %s250 = smul.addr 1, 9
    %s251 = scalar_lea.vmem [#allocation3], %s250
    %252 = vst [vmem:[%s251] sm:%s249] %v248
    %s253 = scalar_lea.vmem [#allocation2], 80
    %v254 = vld [vmem:[%s253] sm:%s185]
    %v255 = vpack.c.bf16 0.0, %v254
    %s256 = sshllo.u32 0, %s186
    %s257 = smul.addr 1, 10
    %s258 = scalar_lea.vmem [#allocation3], %s257
    %259 = vst [vmem:[%s258] sm:%s256] %v255
    %s260 = scalar_lea.vmem [#allocation2], 88
    %v261 = vld [vmem:[%s260] sm:%s185]
    %v262 = vpack.c.bf16 0.0, %v261
    %s263 = sshllo.u32 0, %s186
    %s264 = smul.addr 1, 11
    %s265 = scalar_lea.vmem [#allocation3], %s264
    %266 = vst [vmem:[%s265] sm:%s263] %v262
    %s267 = scalar_lea.vmem [#allocation2], 96
    %v268 = vld [vmem:[%s267] sm:%s185]
    %v269 = vpack.c.bf16 0.0, %v268
    %s270 = sshllo.u32 0, %s186
    %s271 = smul.addr 1, 12
    %s272 = scalar_lea.vmem [#allocation3], %s271
    %273 = vst [vmem:[%s272] sm:%s270] %v269
    %s274 = scalar_lea.vmem [#allocation2], 104
    %v275 = vld [vmem:[%s274] sm:%s185]
    %v276 = vpack.c.bf16 0.0, %v275
    %s277 = sshllo.u32 0, %s186
    %s278 = smul.addr 1, 13
    %s279 = scalar_lea.vmem [#allocation3], %s278
    %280 = vst [vmem:[%s279] sm:%s277] %v276
    // Predicated region
    $region24: #{reverse} parent=1 // pred_check
      _
    $region25: #{reverse} parent=1 // pred_check_branch
      %282 = sbr.rel (0) target = $region27
    $region26: #{reverse} parent=1 // pred_region
      // Predicated region
      $region28: #{reverse} parent=26 // pred_check
        _
      $region29: #{reverse} parent=26 // pred_check_branch
        %284 = sbr.rel (0) target = $region31
      $region30: #{reverse} parent=26 // pred_region
        %s285 = scalar_lea.vmem [#allocation3], 8
        %s286 = scalar_lea.vmem %s1, 8
        loop: start=0, step=1, limit=1
        $region32: #{reverse} parent=30 // loop_pre_header
          _
        $region33: #{reverse} parent=30 // loop_header
          %s288 = sphi 0, %s292
          %p289 = scmp.ge.s32.totalorder %s288, 1
          %s293 = sphi [#allocation3], [#allocation3]
          %s294 = sphi %s1, %s1
        $region34: #{reverse} parent=30 // loop_header_branch
          %291 = sbr.rel (%p289) target = $region38
        $region35: #{reverse} parent=30 // loop_body
          %v295 = vld [vmem:[%s293] sm:$0xff]
          %296 = vst [vmem:[%s294] sm:$0xff] %v295
        $region36: #{reverse} parent=30 // loop_footer
          %s292 = sadd.s32 1, %s288
        $region37: #{reverse} parent=30 // loop_footer_branch
          %287 = sbr.rel target = $region33
        $region38: #{reverse} parent=30 // loop_exit
          _
        loop: start=0, step=1, limit=1
        $region39: #{reverse} parent=30 // loop_pre_header
          _
        $region40: #{reverse} parent=30 // loop_header
          %s299 = sphi 0, %s303
          %p300 = scmp.ge.s32.totalorder %s299, 1
          %s304 = sphi %s285, %s285
          %s305 = sphi %s286, %s286
        $region41: #{reverse} parent=30 // loop_header_branch
          %302 = sbr.rel (%p300) target = $region45
        $region42: #{reverse} parent=30 // loop_body
          %v306 = vld [vmem:[%s304] sm:$0x3f]
          %307 = vst [vmem:[%s305] sm:$0x3f] %v306
        $region43: #{reverse} parent=30 // loop_footer
          %s303 = sadd.s32 1, %s299
        $region44: #{reverse} parent=30 // loop_footer_branch
          %298 = sbr.rel target = $region40
        $region45: #{reverse} parent=30 // loop_exit
          _
      $region31: #{reverse} parent=26 // pred_fallthru
        _
    $region27: #{reverse} parent=1 // pred_fallthru
      _
    %308 = vnop

// kernel: alexnet_cbam3_forward.23
$region0: #{alexnet_cbam3_forward.23}
  #allocation0 [shape = 'u32[]', space=smem, size = 0x4, offset = 0x4, fixed_abs, tag = 'smem constant byte address 0x4 - core index']
  #allocation1 [shape = 'u32[144,128]{1,0:T(1,128)}', space=vmem, size = 0x12000, scoped, tag = 'internal scratch']
  %s0 = inlined_call_operand.vmem [shape: bf16[32,3456], index: 0, kind: input, shape index: {}]
  %s1 = inlined_call_operand.vmem [shape: bf16[3456,384], index: 1, kind: input, shape index: {}]
  %s2 = inlined_call_operand.vmem [shape: f32[1,384], index: 2, kind: input, shape index: {}]
  %s3 = inlined_call_operand.vmem [shape: f32[32,384], index: 3, kind: output, shape index: {}]
  %s4 = sld [smem:[#allocation0]]
  $region79: #{alexnet_cbam3_forward.23} parent=0
    _
  %s6 = ssub.s32 1, %s4
  %s7 = scalar_select 0, %s6, %s4
  $region1: #{alexnet_cbam3_forward.23} parent=0
    #allocation2 [shape = 'u8[49152]{0}', space=vmem, size = 0xc000, scoped, tag = 'input window, operand 0']
    loop: start=0, step=1, limit=11
    $region2: #{alexnet_cbam3_forward.23} parent=1 // loop_pre_header
      _
    $region3: #{alexnet_cbam3_forward.23} parent=1 // loop_header
      %s9 = sphi 0, %s13
      %p10 = scmp.ge.s32.totalorder %s9, 11
      %s16 = sphi 0, %s35
      %s17 = sphi 0, %s31
      %s18 = sphi 0, %s27
      %s19 = sphi 0, %s16
      %s20 = sphi 0, %s17
      %s21 = sphi 0, %s18
      %s22 = sphi 0, %s19
      %s23 = sphi 0, %s20
      %s24 = sphi 0, %s21
      %s40 = sphi 0, %s42
      %s43 = sphi 0, %s40
      %s44 = sphi 0, %s43
      %s60 = sphi 0, %s44
      %s68 = sphi 0, %s70
      %s71 = sphi 0, %s68
      %s72 = sphi 0, %s71
      %s88 = sphi 0, %s72
      %s94 = sphi 0, %s96
      %s97 = sphi 0, %s94
      %s98 = sphi 0, %s97
      %s114 = sphi 0, %s98
      %s122 = sphi 0, %s124
      %s125 = sphi 0, %s122
      %s126 = sphi 0, %s125
      %s142 = sphi 0, %s126
    $region4: #{alexnet_cbam3_forward.23} parent=1 // loop_header_branch
      %12 = sbr.rel (%p10) target = $region8
    $region5: #{alexnet_cbam3_forward.23} parent=1 // loop_body
      %s14 = ssub.s32 %s9, 1
      %s15 = ssub.s32 %s9, 2
      %s25 = sadd.s32 1, %s18
      %p26 = scmp.ge.s32.totalorder %s25, 9
      %s27 = scalar_select %p26, 0, %s25
      %s28 = sadd.s32 1, %s17
      %s29 = scalar_select %p26, %s28, %s17
      %p30 = scmp.ge.s32.totalorder %s29, 1
      %s31 = scalar_select %p30, 0, %s29
      %s32 = sadd.s32 1, %s16
      %s33 = scalar_select %p30, %s32, %s16
      %p34 = scmp.ge.s32.totalorder %s33, 1
      %s35 = scalar_select %p34, 0, %s33
      %s36 = ssub.s32 %s16, %s35
      %s37 = ssub.s32 %s18, %s27
      %s38 = sor.u32 %s36, %s37
      %p39 = scmp.eq.s32.totalorder %s38, 0
      %s41 = sadd.s32 %s40, 1
      %s42 = scalar_select %p39, %s40, %s41
      %p45 = pneg %p39
      %p46 = scmp.eq.s32.totalorder %s9, 8
      %p47 = por %p45, %p46
      %p48 = scmp.ne.s32.totalorder %s40, %s43
      %p49 = scmp.eq.s32.totalorder %s9, 0
      %p50 = por %p48, %p49
      %p51 = scmp.ne.s32.totalorder %s40, %s43
      %p52 = scmp.eq.s32.totalorder %s14, 8
      %p53 = por %p51, %p52
      %p54 = scmp.ne.s32.totalorder %s43, %s44
      %p55 = scmp.eq.s32.totalorder %s14, 0
      %p56 = por %p54, %p55
      %p57 = scmp.ne.s32.totalorder %s43, %s44
      %p58 = scmp.eq.s32.totalorder %s15, 8
      %p59 = por %p57, %p58
      %p61 = scmp.ne.s32.totalorder %s44, %s60
      %p62 = scmp.eq.s32.totalorder %s15, 0
      %p63 = por %p61, %p62
      %s64 = ssub.s32 %s18, %s27
      %s65 = ssub.s32 %s17, %s31
      %s66 = sor.u32 %s64, %s65
      %p67 = scmp.eq.s32.totalorder %s66, 0
      %s69 = sadd.s32 %s68, 1
      %s70 = scalar_select %p67, %s68, %s69
      %p73 = pneg %p67
      %p74 = scmp.eq.s32.totalorder %s9, 8
      %p75 = por %p73, %p74
      %p76 = scmp.ne.s32.totalorder %s68, %s71
      %p77 = scmp.eq.s32.totalorder %s9, 0
      %p78 = por %p76, %p77
      %p79 = scmp.ne.s32.totalorder %s68, %s71
      %p80 = scmp.eq.s32.totalorder %s14, 8
      %p81 = por %p79, %p80
      %p82 = scmp.ne.s32.totalorder %s71, %s72
      %p83 = scmp.eq.s32.totalorder %s14, 0
      %p84 = por %p82, %p83
      %p85 = scmp.ne.s32.totalorder %s71, %s72
      %p86 = scmp.eq.s32.totalorder %s15, 8
      %p87 = por %p85, %p86
      %p89 = scmp.ne.s32.totalorder %s72, %s88
      %p90 = scmp.eq.s32.totalorder %s15, 0
      %p91 = por %p89, %p90
      %s92 = ssub.s32 %s17, %s31
      %p93 = scmp.eq.s32.totalorder %s92, 0
      %s95 = sadd.s32 %s94, 1
      %s96 = scalar_select %p93, %s94, %s95
      %p99 = pneg %p93
      %p100 = scmp.eq.s32.totalorder %s9, 8
      %p101 = por %p99, %p100
      %p102 = scmp.ne.s32.totalorder %s94, %s97
      %p103 = scmp.eq.s32.totalorder %s9, 0
      %p104 = por %p102, %p103
      %p105 = scmp.ne.s32.totalorder %s94, %s97
      %p106 = scmp.eq.s32.totalorder %s14, 8
      %p107 = por %p105, %p106
      %p108 = scmp.ne.s32.totalorder %s97, %s98
      %p109 = scmp.eq.s32.totalorder %s14, 0
      %p110 = por %p108, %p109
      %p111 = scmp.ne.s32.totalorder %s97, %s98
      %p112 = scmp.eq.s32.totalorder %s15, 8
      %p113 = por %p111, %p112
      %p115 = scmp.ne.s32.totalorder %s98, %s114
      %p116 = scmp.eq.s32.totalorder %s15, 0
      %p117 = por %p115, %p116
      %s118 = ssub.s32 %s16, %s35
      %s119 = ssub.s32 %s17, %s31
      %s120 = sor.u32 %s118, %s119
      %p121 = scmp.eq.s32.totalorder %s120, 0
      %s123 = sadd.s32 %s122, 1
      %s124 = scalar_select %p121, %s122, %s123
      %p127 = pneg %p121
      %p128 = scmp.eq.s32.totalorder %s9, 8
      %p129 = por %p127, %p128
      %p130 = scmp.ne.s32.totalorder %s122, %s125
      %p131 = scmp.eq.s32.totalorder %s9, 0
      %p132 = por %p130, %p131
      %p133 = scmp.ne.s32.totalorder %s122, %s125
      %p134 = scmp.eq.s32.totalorder %s14, 8
      %p135 = por %p133, %p134
      %p136 = scmp.ne.s32.totalorder %s125, %s126
      %p137 = scmp.eq.s32.totalorder %s14, 0
      %p138 = por %p136, %p137
      %p139 = scmp.ne.s32.totalorder %s125, %s126
      %p140 = scmp.eq.s32.totalorder %s15, 8
      %p141 = por %p139, %p140
      %p143 = scmp.ne.s32.totalorder %s126, %s142
      %p144 = scmp.eq.s32.totalorder %s15, 0
      %p145 = por %p143, %p144
      %p146 = scmp.le.s32.totalorder 1, %s9
      %p147 = scmp.lt.s32.totalorder %s9, 10
      %p148 = pnand %p146, %p147
      %p149 = pneg %p148
      // Predicated region
      $region9: #{alexnet_cbam3_forward.23} parent=5 // pred_check
        _
      $region10: #{alexnet_cbam3_forward.23} parent=5 // pred_check_branch
        %151 = sbr.rel (%p148) target = $region12
      $region11: #{alexnet_cbam3_forward.23} parent=5 // pred_region
        %s152 = ssub.s32 %s9, 1
        // Predicated region
        $region13: #{alexnet_cbam3_forward.23} parent=11 // pred_check
          %p153 = pneg %p110
        $region14: #{alexnet_cbam3_forward.23} parent=11 // pred_check_branch
          %155 = sbr.rel (%p153) target = $region16
        $region15: #{alexnet_cbam3_forward.23} parent=11 // pred_region
          %s156 = smul.u32 3, %s20
          %p157 = scmp.lt.s32.totalorder %s156, 2
          %s158 = scalar_select %p157, %s156, 2
          %s159 = scalar_lea.vmem %s2, %s158
          %s160 = smul.u32 3, %s20
        $region16: #{alexnet_cbam3_forward.23} parent=11 // pred_fallthru
          _
      $region12: #{alexnet_cbam3_forward.23} parent=5 // pred_fallthru
        _
      %p161 = scmp.lt.s32.totalorder %s9, 9
      // Predicated region
      $region17: #{alexnet_cbam3_forward.23} parent=5 // pred_check
        %p162 = pneg %p161
      $region18: #{alexnet_cbam3_forward.23} parent=5 // pred_check_branch
        %164 = sbr.rel (%p162) target = $region20
      $region19: #{alexnet_cbam3_forward.23} parent=5 // pred_region
        // Predicated region
        $region21: #{alexnet_cbam3_forward.23} parent=19 // pred_check
          %p165 = pneg %p50
        $region22: #{alexnet_cbam3_forward.23} parent=19 // pred_check_branch
          %167 = sbr.rel (%p165) target = $region24
        $region23: #{alexnet_cbam3_forward.23} parent=19 // pred_region
          %s168 = sand.u32 %s40, 1
          %s169 = sand.u32 %s40, 1
          %s170 = smul.addr %s169, 48
          %s171 = scalar_lea.vmem [#allocation2], %s170
          %s172 = smul.u32 4, %s16
          %s173 = smul.u32 3, %s18
          %s174 = smul.addr %s172, 27
          %s175 = sadd.s32 %s173, %s174
          %s176 = smul.addr %s175, 4
          %s177 = scalar_lea.vmem %s0, %s176
          // Predicated region
          $region25: #{alexnet_cbam3_forward.23} parent=23 // pred_check
            _
          $region26: #{alexnet_cbam3_forward.23} parent=23 // pred_check_branch
            %179 = sbr.rel (0) target = $region28
          $region27: #{alexnet_cbam3_forward.23} parent=23 // pred_region
            // Predicated region
            $region29: #{alexnet_cbam3_forward.23} parent=27 // pred_check
              _
            $region30: #{alexnet_cbam3_forward.23} parent=27 // pred_check_branch
              %181 = sbr.rel (0) target = $region32
            $region31: #{alexnet_cbam3_forward.23} parent=27 // pred_region
              %s182 = scalar_lea.vmem %s177, 8
              %s183 = scalar_lea.vmem %s171, 8 [#allocation2]
              loop: start=0, step=1, limit=1
              $region33: #{alexnet_cbam3_forward.23} parent=31 // loop_pre_header
                _
              $region34: #{alexnet_cbam3_forward.23} parent=31 // loop_header
                %s185 = sphi 0, %s189
                %p186 = scmp.ge.s32.totalorder %s185, 1
                %s190 = sphi %s177, %s177
                %s191 = sphi %s171, %s171
              $region35: #{alexnet_cbam3_forward.23} parent=31 // loop_header_branch
                %188 = sbr.rel (%p186) target = $region39
              $region36: #{alexnet_cbam3_forward.23} parent=31 // loop_body
                %v192 = vld [vmem:[%s190] sm:$0xff]
                %193 = vst [vmem:[%s191] sm:$0xff] %v192
                %v194 = vld [vmem:[%s190 + $0x6c] sm:$0xff]
                %195 = vst [vmem:[%s191 + $0xc] sm:$0xff] %v194
                %v196 = vld [vmem:[%s190 + $0xd8] sm:$0xff]
                %197 = vst [vmem:[%s191 + $0x18] sm:$0xff] %v196
                %v198 = vld [vmem:[%s190 + $0x144] sm:$0xff]
                %199 = vst [vmem:[%s191 + $0x24] sm:$0xff] %v198
              $region37: #{alexnet_cbam3_forward.23} parent=31 // loop_footer
                %s189 = sadd.s32 1, %s185
              $region38: #{alexnet_cbam3_forward.23} parent=31 // loop_footer_branch
                %184 = sbr.rel target = $region34
              $region39: #{alexnet_cbam3_forward.23} parent=31 // loop_exit
                _
              loop: start=0, step=1, limit=1
              $region40: #{alexnet_cbam3_forward.23} parent=31 // loop_pre_header
                _
              $region41: #{alexnet_cbam3_forward.23} parent=31 // loop_header
                %s202 = sphi 0, %s206
                %p203 = scmp.ge.s32.totalorder %s202, 1
                %s207 = sphi %s182, %s182
                %s208 = sphi %s183, %s183
              $region42: #{alexnet_cbam3_forward.23} parent=31 // loop_header_branch
                %205 = sbr.rel (%p203) target = $region46
              $region43: #{alexnet_cbam3_forward.23} parent=31 // loop_body
                %v209 = vld [vmem:[%s207] sm:$0xf]
                %210 = vst [vmem:[%s208] sm:$0xf] %v209
                %v211 = vld [vmem:[%s207 + $0x6c] sm:$0xf]
                %212 = vst [vmem:[%s208 + $0xc] sm:$0xf] %v211
                %v213 = vld [vmem:[%s207 + $0xd8] sm:$0xf]
                %214 = vst [vmem:[%s208 + $0x18] sm:$0xf] %v213
                %v215 = vld [vmem:[%s207 + $0x144] sm:$0xf]
                %216 = vst [vmem:[%s208 + $0x24] sm:$0xf] %v215
              $region44: #{alexnet_cbam3_forward.23} parent=31 // loop_footer
                %s206 = sadd.s32 1, %s202
              $region45: #{alexnet_cbam3_forward.23} parent=31 // loop_footer_branch
                %201 = sbr.rel target = $region41
              $region46: #{alexnet_cbam3_forward.23} parent=31 // loop_exit
                _
            $region32: #{alexnet_cbam3_forward.23} parent=27 // pred_fallthru
              _
          $region28: #{alexnet_cbam3_forward.23} parent=23 // pred_fallthru
            _
          %217 = vnop
        $region24: #{alexnet_cbam3_forward.23} parent=19 // pred_fallthru
          _
        // Predicated region
        $region47: #{alexnet_cbam3_forward.23} parent=19 // pred_check
          %p218 = pneg %p78
        $region48: #{alexnet_cbam3_forward.23} parent=19 // pred_check_branch
          %220 = sbr.rel (%p218) target = $region50
        $region49: #{alexnet_cbam3_forward.23} parent=19 // pred_region
          %s221 = smul.u32 48, %s18
          %s222 = smul.u32 3, %s17
          %p223 = scmp.lt.s32.totalorder %s221, 431
          %s224 = scalar_select %p223, %s221, 431
          %p225 = scmp.lt.s32.totalorder %s222, 2
          %s226 = scalar_select %p225, %s222, 2
          %s227 = smul.addr %s224, 3
          %s228 = sadd.s32 %s226, %s227
          %s229 = smul.addr %s228, 4
          %s230 = scalar_lea.vmem %s1, %s229
          %s231 = smul.u32 48, %s18
          %s232 = smul.u32 3, %s17
        $region50: #{alexnet_cbam3_forward.23} parent=19 // pred_fallthru
          _
      $region20: #{alexnet_cbam3_forward.23} parent=5 // pred_fallthru
        _
      %p233 = scmp.le.s32.totalorder 1, %s9
      %p234 = scmp.lt.s32.totalorder %s9, 10
      %p235 = pnand %p233, %p234
      %p236 = pneg %p235
      // Predicated region
      $region51: #{alexnet_cbam3_forward.23} parent=5 // pred_check
        _
      $region52: #{alexnet_cbam3_forward.23} parent=5 // pred_check_branch
        %238 = sbr.rel (%p235) target = $region54
      $region53: #{alexnet_cbam3_forward.23} parent=5 // pred_region
        %s239 = ssub.s32 %s9, 1
        %s240 = sand.u32 %s43, 1
        %s241 = sand.u32 %s43, 1
        %s242 = smul.addr %s241, 48
        %s243 = scalar_lea.vmem [#allocation2], %s242
        // Predicated region
        $region55: #{alexnet_cbam3_forward.23} parent=53 // pred_check
          %p244 = pneg %p56
        $region56: #{alexnet_cbam3_forward.23} parent=53 // pred_check_branch
          %246 = sbr.rel (%p244) target = $region58
        $region57: #{alexnet_cbam3_forward.23} parent=53 // pred_region
          _
        $region58: #{alexnet_cbam3_forward.23} parent=53 // pred_fallthru
          _
        %s247 = sand.u32 %s43, 1
        %s248 = sand.u32 %s43, 1
        %s249 = smul.addr %s248, 48
        %s250 = scalar_lea.vmem [#allocation2], %s249
        %p251 = pneg %p56
        %p252 = pneg %p53
        %s253 = smul.u32 48, %s21
        %s254 = smul.u32 3, %s20
        %p255 = scmp.lt.s32.totalorder %s253, 431
        %s256 = scalar_select %p255, %s253, 431
        %p257 = scmp.lt.s32.totalorder %s254, 2
        %s258 = scalar_select %p257, %s254, 2
        %s259 = smul.addr %s256, 3
        %s260 = sadd.s32 %s258, %s259
        %s261 = smul.addr %s260, 4
        %s262 = scalar_lea.vmem %s1, %s261
        %p263 = pneg %p84
        %p264 = pneg %p81
        %s265 = smul.u32 3, %s20
        %p266 = scmp.lt.s32.totalorder %s265, 2
        %s267 = scalar_select %p266, %s265, 2
        %s268 = scalar_lea.vmem %s2, %s267
        %p269 = pneg %p110
        %p270 = pneg %p107
        %p271 = pneg %p138
        %p272 = pneg %p135
        %s273 = smul.u32 4, %s19
        %s274 = smul.u32 3, %s20
        %p275 = scmp.lt.s32.totalorder %s273, 3
        %s276 = scalar_select %p275, %s273, 3
        %p277 = scmp.lt.s32.totalorder %s274, 2
        %s278 = scalar_select %p277, %s274, 2
        %s279 = smul.addr %s276, 3
        %s280 = sadd.s32 %s278, %s279
        %s281 = smul.addr %s280, 8
        %s282 = scalar_lea.vmem %s3, %s281
        %s283 = smul.u32 4, %s19
        %s284 = smul.u32 3, %s21
        %s285 = smul.u32 48, %s21
        %s286 = smul.u32 3, %s20
        %p287 = scmp.lt.s32.totalorder %s285, 431
        %s288 = scalar_select %p287, %s285, 431
        %p289 = scmp.lt.s32.totalorder %s286, 2
        %s290 = scalar_select %p289, %s286, 2
        %s291 = smul.addr %s288, 3
        %s292 = sadd.s32 %s290, %s291
        %s293 = smul.addr %s292, 4
        %s294 = scalar_lea.vmem %s1, %s293
        %s295 = smul.u32 48, %s21
        %s296 = smul.u32 3, %s20
        %s297 = smul.u32 3, %s20
        %p298 = scmp.lt.s32.totalorder %s297, 2
        %s299 = scalar_select %p298, %s297, 2
        %s300 = scalar_lea.vmem %s2, %s299
        %s301 = smul.u32 3, %s20
        %s302 = smul.u32 4, %s19
        %s303 = smul.u32 3, %s20
        %p304 = scmp.lt.s32.totalorder %s302, 3
        %s305 = scalar_select %p304, %s302, 3
        %p306 = scmp.lt.s32.totalorder %s303, 2
        %s307 = scalar_select %p306, %s303, 2
        %s308 = smul.addr %s305, 3
        %s309 = sadd.s32 %s307, %s308
        %s310 = smul.addr %s309, 8
        %s311 = scalar_lea.vmem %s3, %s310
        %s312 = smul.u32 4, %s19
        %s313 = smul.u32 3, %s20
        %p315 = scmp.eq.s32.totalorder %s21, 0
        // Predicated region
        $region59: #{alexnet_cbam3_forward.23} parent=53 // pred_check
          %p316 = pneg %p315
        $region60: #{alexnet_cbam3_forward.23} parent=53 // pred_check_branch
          %318 = sbr.rel (%p316) target = $region62
        $region61: #{alexnet_cbam3_forward.23} parent=53 // pred_region
          %319 = vst [vmem:[%s311] sm:$0xff] 0.0
          %320 = vst [vmem:[%s311 + $0x8] sm:$0xff] 0.0
          %321 = vst [vmem:[%s311 + $0x10] sm:$0xff] 0.0
          %322 = vst [vmem:[%s311 + $0x18] sm:$0xff] 0.0
          %323 = vst [vmem:[%s311 + $0x20] sm:$0xff] 0.0
          %324 = vst [vmem:[%s311 + $0x28] sm:$0xff] 0.0
          %325 = vst [vmem:[%s311 + $0x30] sm:$0xff] 0.0
          %326 = vst [vmem:[%s311 + $0x38] sm:$0xff] 0.0
          %327 = vst [vmem:[%s311 + $0x40] sm:$0xff] 0.0
          %328 = vst [vmem:[%s311 + $0x48] sm:$0xff] 0.0
          %329 = vst [vmem:[%s311 + $0x50] sm:$0xff] 0.0
          %330 = vst [vmem:[%s311 + $0x58] sm:$0xff] 0.0
        $region62: #{alexnet_cbam3_forward.23} parent=53 // pred_fallthru
          _
        %v331 = vld [vmem:[%s311] sm:$0xff]
        %v332 = vld [vmem:[%s311 + $0x8] sm:$0xff]
        %v333 = vld [vmem:[%s311 + $0x10] sm:$0xff]
        %v334 = vld [vmem:[%s311 + $0x18] sm:$0xff]
        %v335 = vld [vmem:[%s311 + $0x20] sm:$0xff]
        %v336 = vld [vmem:[%s311 + $0x28] sm:$0xff]
        %v337 = vld [vmem:[%s311 + $0x30] sm:$0xff]
        %v338 = vld [vmem:[%s311 + $0x38] sm:$0xff]
        %v339 = vld [vmem:[%s311 + $0x40] sm:$0xff]
        %v340 = vld [vmem:[%s311 + $0x48] sm:$0xff]
        %v341 = vld [vmem:[%s311 + $0x50] sm:$0xff]
        %v342 = vld [vmem:[%s311 + $0x58] sm:$0xff]
        %v343 = vld [vmem:[%s243] sm:$0xff]
        %v344 = vld [vmem:[%s243 + $0x8] sm:$0xf]
        %v345 = vld [vmem:[%s243 + $0xc] sm:$0xff]
        %v346 = vld [vmem:[%s243 + $0x14] sm:$0xf]
        %v347 = vld [vmem:[%s243 + $0x18] sm:$0xff]
        %v348 = vld [vmem:[%s243 + $0x20] sm:$0xf]
        %v349 = vld [vmem:[%s243 + $0x24] sm:$0xff]
        %v350 = vld [vmem:[%s243 + $0x2c] sm:$0xf]
        %v351 = vld [vmem:[%s294] sm:$0xff]
        %v352 = vld [vmem:[%s294 + $0x8] sm:$0xf]
        %v353 = vld [vmem:[%s294 + $0xc] sm:$0xff]
        %v354 = vld [vmem:[%s294 + $0x14] sm:$0xf]
        %v355 = vld [vmem:[%s294 + $0x18] sm:$0xff]
        %v356 = vld [vmem:[%s294 + $0x20] sm:$0xf]
        %v357 = vld [vmem:[%s294 + $0x24] sm:$0xff]
        %v358 = vld [vmem:[%s294 + $0x2c] sm:$0xf]
        %v359 = vld [vmem:[%s294 + $0x30] sm:$0xff]
        %v360 = vld [vmem:[%s294 + $0x38] sm:$0xf]
        %v361 = vld [vmem:[%s294 + $0x3c] sm:$0xff]
        %v362 = vld [vmem:[%s294 + $0x44] sm:$0xf]
        %v363 = vld [vmem:[%s294 + $0x48] sm:$0xff]
        %v364 = vld [vmem:[%s294 + $0x50] sm:$0xf]
        %v365 = vld [vmem:[%s294 + $0x54] sm:$0xff]
        %v366 = vld [vmem:[%s294 + $0x5c] sm:$0xf]
        %v367 = vld [vmem:[%s294 + $0x60] sm:$0xff]
        %v368 = vld [vmem:[%s294 + $0x68] sm:$0xf]
        %v369 = vld [vmem:[%s294 + $0x6c] sm:$0xff]
        %v370 = vld [vmem:[%s294 + $0x74] sm:$0xf]
        %v371 = vld [vmem:[%s294 + $0x78] sm:$0xff]
        %v372 = vld [vmem:[%s294 + $0x80] sm:$0xf]
        %v373 = vld [vmem:[%s294 + $0x84] sm:$0xff]
        %v374 = vld [vmem:[%s294 + $0x8c] sm:$0xf]
        %v375 = vld [vmem:[%s294 + $0x90] sm:$0xff]
        %v376 = vld [vmem:[%s294 + $0x98] sm:$0xf]
        %v377 = vld [vmem:[%s294 + $0x9c] sm:$0xff]
        %v378 = vld [vmem:[%s294 + $0xa4] sm:$0xf]
        %v379 = vld [vmem:[%s294 + $0xa8] sm:$0xff]
        %v380 = vld [vmem:[%s294 + $0xb0] sm:$0xf]
        %v381 = vld [vmem:[%s294 + $0xb4] sm:$0xff]
        %v382 = vld [vmem:[%s294 + $0xbc] sm:$0xf]
        %v383 = vld [vmem:[%s294 + $0xc0] sm:$0xff]
        %v384 = vld [vmem:[%s294 + $0xc8] sm:$0xf]
        %v385 = vld [vmem:[%s294 + $0xcc] sm:$0xff]
        %v386 = vld [vmem:[%s294 + $0xd4] sm:$0xf]
        %v387 = vld [vmem:[%s294 + $0xd8] sm:$0xff]
        %v388 = vld [vmem:[%s294 + $0xe0] sm:$0xf]
        %v389 = vld [vmem:[%s294 + $0xe4] sm:$0xff]
        %v390 = vld [vmem:[%s294 + $0xec] sm:$0xf]
        %v391 = vld [vmem:[%s294 + $0xf0] sm:$0xff]
        %v392 = vld [vmem:[%s294 + $0xf8] sm:$0xf]
        %v393 = vld [vmem:[%s294 + $0xfc] sm:$0xff]
        %v394 = vld [vmem:[%s294 + $0x104] sm:$0xf]
        %v395 = vld [vmem:[%s294 + $0x108] sm:$0xff]
        %v396 = vld [vmem:[%s294 + $0x110] sm:$0xf]
        %v397 = vld [vmem:[%s294 + $0x114] sm:$0xff]
        %v398 = vld [vmem:[%s294 + $0x11c] sm:$0xf]
        %v399 = vld [vmem:[%s294 + $0x120] sm:$0xff]
        %v400 = vld [vmem:[%s294 + $0x128] sm:$0xf]
        %v401 = vld [vmem:[%s294 + $0x12c] sm:$0xff]
        %v402 = vld [vmem:[%s294 + $0x134] sm:$0xf]
        %v403 = vld [vmem:[%s294 + $0x138] sm:$0xff]
        %v404 = vld [vmem:[%s294 + $0x140] sm:$0xf]
        %v405 = vld [vmem:[%s294 + $0x144] sm:$0xff]
        %v406 = vld [vmem:[%s294 + $0x14c] sm:$0xf]
        %v407 = vld [vmem:[%s294 + $0x150] sm:$0xff]
        %v408 = vld [vmem:[%s294 + $0x158] sm:$0xf]
        %v409 = vld [vmem:[%s294 + $0x15c] sm:$0xff]
        %v410 = vld [vmem:[%s294 + $0x164] sm:$0xf]
        %v411 = vld [vmem:[%s294 + $0x168] sm:$0xff]
        %v412 = vld [vmem:[%s294 + $0x170] sm:$0xf]
        %v413 = vld [vmem:[%s294 + $0x174] sm:$0xff]
        %v414 = vld [vmem:[%s294 + $0x17c] sm:$0xf]
        %v415 = vld [vmem:[%s294 + $0x180] sm:$0xff]
        %v416 = vld [vmem:[%s294 + $0x188] sm:$0xf]
        %v417 = vld [vmem:[%s294 + $0x18c] sm:$0xff]
        %v418 = vld [vmem:[%s294 + $0x194] sm:$0xf]
        %v419 = vld [vmem:[%s294 + $0x198] sm:$0xff]
        %v420 = vld [vmem:[%s294 + $0x1a0] sm:$0xf]
        %v421 = vld [vmem:[%s294 + $0x1a4] sm:$0xff]
        %v422 = vld [vmem:[%s294 + $0x1ac] sm:$0xf]
        %v423 = vld [vmem:[%s294 + $0x1b0] sm:$0xff]
        %v424 = vld [vmem:[%s294 + $0x1b8] sm:$0xf]
        %v425 = vld [vmem:[%s294 + $0x1bc] sm:$0xff]
        %v426 = vld [vmem:[%s294 + $0x1c4] sm:$0xf]
        %v427 = vld [vmem:[%s294 + $0x1c8] sm:$0xff]
        %v428 = vld [vmem:[%s294 + $0x1d0] sm:$0xf]
        %v429 = vld [vmem:[%s294 + $0x1d4] sm:$0xff]
        %v430 = vld [vmem:[%s294 + $0x1dc] sm:$0xf]
        %v431 = vld [vmem:[%s294 + $0x1e0] sm:$0xff]
        %v432 = vld [vmem:[%s294 + $0x1e8] sm:$0xf]
        %v433 = vld [vmem:[%s294 + $0x1ec] sm:$0xff]
        %v434 = vld [vmem:[%s294 + $0x1f4] sm:$0xf]
        %v435 = vld [vmem:[%s294 + $0x1f8] sm:$0xff]
        %v436 = vld [vmem:[%s294 + $0x200] sm:$0xf]
        %v437 = vld [vmem:[%s294 + $0x204] sm:$0xff]
        %v438 = vld [vmem:[%s294 + $0x20c] sm:$0xf]
        %v439 = vld [vmem:[%s294 + $0x210] sm:$0xff]
        %v440 = vld [vmem:[%s294 + $0x218] sm:$0xf]
        %v441 = vld [vmem:[%s294 + $0x21c] sm:$0xff]
        %v442 = vld [vmem:[%s294 + $0x224] sm:$0xf]
        %v443 = vld [vmem:[%s294 + $0x228] sm:$0xff]
        %v444 = vld [vmem:[%s294 + $0x230] sm:$0xf]
        %v445 = vld [vmem:[%s294 + $0x234] sm:$0xff]
        %v446 = vld [vmem:[%s294 + $0x23c] sm:$0xf]
        %v455 = vunpack.c.l.b16 %v343
        %v456 = vunpack.c.h.b16 %v343
        %v457 = vunpack.c.l.b16 %v344
        %v458 = vunpack.c.l.b16 %v345
        %v459 = vunpack.c.h.b16 %v345
        %v460 = vunpack.c.l.b16 %v346
        %v461 = vunpack.c.l.b16 %v347
        %v462 = vunpack.c.h.b16 %v347
        %v463 = vunpack.c.l.b16 %v348
        %v464 = vunpack.c.l.b16 %v349
        %v465 = vunpack.c.h.b16 %v349
        %v466 = vunpack.c.l.b16 %v350
        %v467 = vpack.c.b16 %v458, %v455
        %v468 = vpack.c.b16 %v459, %v456
        %v469 = vpack.c.b16 %v460, %v457
        %v470 = vpack.c.b16 %v464, %v461
        %v471 = vpack.c.b16 %v465, %v462
        %v472 = vpack.c.b16 %v466, %v463
        %v575 = vunpack.c.l.b16 %v351
        %v576 = vunpack.c.h.b16 %v351
        %v577 = vunpack.c.l.b16 %v352
        %v578 = vunpack.c.l.b16 %v353
        %v579 = vunpack.c.h.b16 %v353
        %v580 = vunpack.c.l.b16 %v354
        %v581 = vunpack.c.l.b16 %v355
        %v582 = vunpack.c.h.b16 %v355
        %v583 = vunpack.c.l.b16 %v356
        %v584 = vunpack.c.l.b16 %v357
        %v585 = vunpack.c.h.b16 %v357
        %v586 = vunpack.c.l.b16 %v358
        %v587 = vunpack.c.l.b16 %v359
        %v588 = vunpack.c.h.b16 %v359
        %v589 = vunpack.c.l.b16 %v360
        %v590 = vunpack.c.l.b16 %v361
        %v591 = vunpack.c.h.b16 %v361
        %v592 = vunpack.c.l.b16 %v362
        %v593 = vunpack.c.l.b16 %v363
        %v594 = vunpack.c.h.b16 %v363
        %v595 = vunpack.c.l.b16 %v364
        %v596 = vunpack.c.l.b16 %v365
        %v597 = vunpack.c.h.b16 %v365
        %v598 = vunpack.c.l.b16 %v366
        %v599 = vunpack.c.l.b16 %v367
        %v600 = vunpack.c.h.b16 %v367
        %v601 = vunpack.c.l.b16 %v368
        %v602 = vunpack.c.l.b16 %v369
        %v603 = vunpack.c.h.b16 %v369
        %v604 = vunpack.c.l.b16 %v370
        %v605 = vunpack.c.l.b16 %v371
        %v606 = vunpack.c.h.b16 %v371
        %v607 = vunpack.c.l.b16 %v372
        %v608 = vunpack.c.l.b16 %v373
        %v609 = vunpack.c.h.b16 %v373
        %v610 = vunpack.c.l.b16 %v374
        %v611 = vunpack.c.l.b16 %v375
        %v612 = vunpack.c.h.b16 %v375
        %v613 = vunpack.c.l.b16 %v376
        %v614 = vunpack.c.l.b16 %v377
        %v615 = vunpack.c.h.b16 %v377
        %v616 = vunpack.c.l.b16 %v378
        %v617 = vunpack.c.l.b16 %v379
        %v618 = vunpack.c.h.b16 %v379
        %v619 = vunpack.c.l.b16 %v380
        %v620 = vunpack.c.l.b16 %v381
        %v621 = vunpack.c.h.b16 %v381
        %v622 = vunpack.c.l.b16 %v382
        %v623 = vunpack.c.l.b16 %v383
        %v624 = vunpack.c.h.b16 %v383
        %v625 = vunpack.c.l.b16 %v384
        %v626 = vunpack.c.l.b16 %v385
        %v627 = vunpack.c.h.b16 %v385
        %v628 = vunpack.c.l.b16 %v386
        %v629 = vunpack.c.l.b16 %v387
        %v630 = vunpack.c.h.b16 %v387
        %v631 = vunpack.c.l.b16 %v388
        %v632 = vunpack.c.l.b16 %v389
        %v633 = vunpack.c.h.b16 %v389
        %v634 = vunpack.c.l.b16 %v390
        %v635 = vunpack.c.l.b16 %v391
        %v636 = vunpack.c.h.b16 %v391
        %v637 = vunpack.c.l.b16 %v392
        %v638 = vunpack.c.l.b16 %v393
        %v639 = vunpack.c.h.b16 %v393
        %v640 = vunpack.c.l.b16 %v394
        %v641 = vunpack.c.l.b16 %v395
        %v642 = vunpack.c.h.b16 %v395
        %v643 = vunpack.c.l.b16 %v396
        %v644 = vunpack.c.l.b16 %v397
        %v645 = vunpack.c.h.b16 %v397
        %v646 = vunpack.c.l.b16 %v398
        %v647 = vunpack.c.l.b16 %v399
        %v648 = vunpack.c.h.b16 %v399
        %v649 = vunpack.c.l.b16 %v400
        %v650 = vunpack.c.l.b16 %v401
        %v651 = vunpack.c.h.b16 %v401
        %v652 = vunpack.c.l.b16 %v402
        %v653 = vunpack.c.l.b16 %v403
        %v654 = vunpack.c.h.b16 %v403
        %v655 = vunpack.c.l.b16 %v404
        %v656 = vunpack.c.l.b16 %v405
        %v657 = vunpack.c.h.b16 %v405
        %v658 = vunpack.c.l.b16 %v406
        %v659 = vunpack.c.l.b16 %v407
        %v660 = vunpack.c.h.b16 %v407
        %v661 = vunpack.c.l.b16 %v408
        %v662 = vunpack.c.l.b16 %v409
        %v663 = vunpack.c.h.b16 %v409
        %v664 = vunpack.c.l.b16 %v410
        %v665 = vunpack.c.l.b16 %v411
        %v666 = vunpack.c.h.b16 %v411
        %v667 = vunpack.c.l.b16 %v412
        %v668 = vunpack.c.l.b16 %v413
        %v669 = vunpack.c.h.b16 %v413
        %v670 = vunpack.c.l.b16 %v414
        %v671 = vunpack.c.l.b16 %v415
        %v672 = vunpack.c.h.b16 %v415
        %v673 = vunpack.c.l.b16 %v416
        %v674 = vunpack.c.l.b16 %v417
        %v675 = vunpack.c.h.b16 %v417
        %v676 = vunpack.c.l.b16 %v418
        %v677 = vunpack.c.l.b16 %v419
        %v678 = vunpack.c.h.b16 %v419
        %v679 = vunpack.c.l.b16 %v420
        %v680 = vunpack.c.l.b16 %v421
        %v681 = vunpack.c.h.b16 %v421
        %v682 = vunpack.c.l.b16 %v422
        %v683 = vunpack.c.l.b16 %v423
        %v684 = vunpack.c.h.b16 %v423
        %v685 = vunpack.c.l.b16 %v424
        %v686 = vunpack.c.l.b16 %v425
        %v687 = vunpack.c.h.b16 %v425
        %v688 = vunpack.c.l.b16 %v426
        %v689 = vunpack.c.l.b16 %v427
        %v690 = vunpack.c.h.b16 %v427
        %v691 = vunpack.c.l.b16 %v428
        %v692 = vunpack.c.l.b16 %v429
        %v693 = vunpack.c.h.b16 %v429
        %v694 = vunpack.c.l.b16 %v430
        %v695 = vunpack.c.l.b16 %v431
        %v696 = vunpack.c.h.b16 %v431
        %v697 = vunpack.c.l.b16 %v432
        %v698 = vunpack.c.l.b16 %v433
        %v699 = vunpack.c.h.b16 %v433
        %v700 = vunpack.c.l.b16 %v434
        %v701 = vunpack.c.l.b16 %v435
        %v702 = vunpack.c.h.b16 %v435
        %v703 = vunpack.c.l.b16 %v436
        %v704 = vunpack.c.l.b16 %v437
        %v705 = vunpack.c.h.b16 %v437
        %v706 = vunpack.c.l.b16 %v438
        %v707 = vunpack.c.l.b16 %v439
        %v708 = vunpack.c.h.b16 %v439
        %v709 = vunpack.c.l.b16 %v440
        %v710 = vunpack.c.l.b16 %v441
        %v711 = vunpack.c.h.b16 %v441
        %v712 = vunpack.c.l.b16 %v442
        %v713 = vunpack.c.l.b16 %v443
        %v714 = vunpack.c.h.b16 %v443
        %v715 = vunpack.c.l.b16 %v444
        %v716 = vunpack.c.l.b16 %v445
        %v717 = vunpack.c.h.b16 %v445
        %v718 = vunpack.c.l.b16 %v446
        %v719 = vpack.c.b16 %v578, %v575
        %v720 = vpack.c.b16 %v579, %v576
        %v721 = vpack.c.b16 %v580, %v577
        %v722 = vpack.c.b16 %v584, %v581
        %v723 = vpack.c.b16 %v585, %v582
        %v724 = vpack.c.b16 %v586, %v583
        %v725 = vpack.c.b16 %v590, %v587
        %v726 = vpack.c.b16 %v591, %v588
        %v727 = vpack.c.b16 %v592, %v589
        %v728 = vpack.c.b16 %v596, %v593
        %v729 = vpack.c.b16 %v597, %v594
        %v730 = vpack.c.b16 %v598, %v595
        %v731 = vpack.c.b16 %v602, %v599
        %v732 = vpack.c.b16 %v603, %v600
        %v733 = vpack.c.b16 %v604, %v601
        %v734 = vpack.c.b16 %v608, %v605
        %v735 = vpack.c.b16 %v609, %v606
        %v736 = vpack.c.b16 %v610, %v607
        %v737 = vpack.c.b16 %v614, %v611
        %v738 = vpack.c.b16 %v615, %v612
        %v739 = vpack.c.b16 %v616, %v613
        %v740 = vpack.c.b16 %v620, %v617
        %v741 = vpack.c.b16 %v621, %v618
        %v742 = vpack.c.b16 %v622, %v619
        %v743 = vpack.c.b16 %v626, %v623
        %v744 = vpack.c.b16 %v627, %v624
        %v745 = vpack.c.b16 %v628, %v625
        %v746 = vpack.c.b16 %v632, %v629
        %v747 = vpack.c.b16 %v633, %v630
        %v748 = vpack.c.b16 %v634, %v631
        %v749 = vpack.c.b16 %v638, %v635
        %v750 = vpack.c.b16 %v639, %v636
        %v751 = vpack.c.b16 %v640, %v637
        %v752 = vpack.c.b16 %v644, %v641
        %v753 = vpack.c.b16 %v645, %v642
        %v754 = vpack.c.b16 %v646, %v643
        %v755 = vpack.c.b16 %v650, %v647
        %v756 = vpack.c.b16 %v651, %v648
        %v757 = vpack.c.b16 %v652, %v649
        %v758 = vpack.c.b16 %v656, %v653
        %v759 = vpack.c.b16 %v657, %v654
        %v760 = vpack.c.b16 %v658, %v655
        %v761 = vpack.c.b16 %v662, %v659
        %v762 = vpack.c.b16 %v663, %v660
        %v763 = vpack.c.b16 %v664, %v661
        %v764 = vpack.c.b16 %v668, %v665
        %v765 = vpack.c.b16 %v669, %v666
        %v766 = vpack.c.b16 %v670, %v667
        %v767 = vpack.c.b16 %v674, %v671
        %v768 = vpack.c.b16 %v675, %v672
        %v769 = vpack.c.b16 %v676, %v673
        %v770 = vpack.c.b16 %v680, %v677
        %v771 = vpack.c.b16 %v681, %v678
        %v772 = vpack.c.b16 %v682, %v679
        %v773 = vpack.c.b16 %v686, %v683
        %v774 = vpack.c.b16 %v687, %v684
        %v775 = vpack.c.b16 %v688, %v685
        %v776 = vpack.c.b16 %v692, %v689
        %v777 = vpack.c.b16 %v693, %v690
        %v778 = vpack.c.b16 %v694, %v691
        %v779 = vpack.c.b16 %v698, %v695
        %v780 = vpack.c.b16 %v699, %v696
        %v781 = vpack.c.b16 %v700, %v697
        %v782 = vpack.c.b16 %v704, %v701
        %v783 = vpack.c.b16 %v705, %v702
        %v784 = vpack.c.b16 %v706, %v703
        %v785 = vpack.c.b16 %v710, %v707
        %v786 = vpack.c.b16 %v711, %v708
        %v787 = vpack.c.b16 %v712, %v709
        %v788 = vpack.c.b16 %v716, %v713
        %v789 = vpack.c.b16 %v717, %v714
        %v790 = vpack.c.b16 %v718, %v715
        %863 = vmatprep.subr.bf16.mxu0 %v720
        %864 = vmatpush1.bf16.msra.mxu0 %v719
        %865 = vmatprep.subr.bf16.mxu0 %v723
        %866 = vmatpush1.bf16.msra.mxu0 %v722
        %867 = vmatprep.subr.bf16.mxu0 %v726
        %868 = vmatpush1.bf16.msra.mxu0 %v725
        %869 = vmatprep.subr.bf16.mxu0 %v729
        %870 = vmatpush1.bf16.msra.mxu0 %v728
        %871 = vmatprep.subr.bf16.mxu0 %v732
        %872 = vmatpush1.bf16.msra.mxu0 %v731
        %873 = vmatprep.subr.bf16.mxu0 %v735
        %874 = vmatpush1.bf16.msra.mxu0 %v734
        %875 = vmatprep.subr.bf16.mxu0 %v738
        %876 = vmatpush1.bf16.msra.mxu0 %v737
        %877 = vmatprep.subr.bf16.mxu0 %v741
        %878 = vmatpush1.bf16.msra.mxu0 %v740
        %879 = vmatprep.subr.bf16.mxu0 %v744
        %880 = vmatpush1.bf16.msra.mxu0 %v743
        %881 = vmatprep.subr.bf16.mxu0 %v747
        %882 = vmatpush1.bf16.msra.mxu0 %v746
        %883 = vmatprep.subr.bf16.mxu0 %v750
        %884 = vmatpush1.bf16.msra.mxu0 %v749
        %885 = vmatprep.subr.bf16.mxu0 %v753
        %886 = vmatpush1.bf16.msra.mxu0 %v752
        %887 = vmatprep.subr.bf16.mxu0 %v756
        %888 = vmatpush1.bf16.msra.mxu0 %v755
        %889 = vmatprep.subr.bf16.mxu0 %v759
        %890 = vmatpush1.bf16.msra.mxu0 %v758
        %891 = vmatprep.subr.bf16.mxu0 %v762
        %892 = vmatpush1.bf16.msra.mxu0 %v761
        %893 = vmatprep.subr.bf16.mxu0 %v765
        %894 = vmatpush1.bf16.msra.mxu0 %v764
        %895 = vmatprep.mubr.bf16.mxu0 %v468
        %896 = vmatmul.mubr.bf16.gmra.mrb[0].mxu0 %v467
        %v897 = vpop.f32.mrb[0].mxu0
        %v898 = vadd.f32 0.0, %v897
        %v899 = vpop.f32.mrb[0].mxu0
        %v900 = vadd.f32 0.0, %v899
        %v901 = vpop.f32.mrb[0].mxu0
        %v902 = vadd.f32 0.0, %v901
        %v903 = vpop.f32.mrb[0].mxu0
        %v904 = vadd.f32 0.0, %v903
        %905 = vmatprep.mubr.bf16.mxu0 %v471
        %906 = vmatmul.mubr.bf16.gmra.mrb[0].mxu0 %v470
        %v907 = vpop.f32.mrb[0].mxu0
        %v908 = vadd.f32 0.0, %v907
        %v909 = vpop.f32.mrb[0].mxu0
        %v910 = vadd.f32 0.0, %v909
        %v911 = vpop.f32.mrb[0].mxu0
        %v912 = vadd.f32 0.0, %v911
        %v913 = vpop.f32.mrb[0].mxu0
        %v914 = vadd.f32 0.0, %v913
        %915 = vdwg.mxu0
        %916 = vmatprep.subr.bf16.mxu0 %v768
        %917 = vmatpush1.bf16.msra.mxu0 %v767
        %918 = vmatprep.subr.bf16.mxu0 %v771
        %919 = vmatpush1.bf16.msra.mxu0 %v770
        %920 = vmatprep.subr.bf16.mxu0 %v774
        %921 = vmatpush1.bf16.msra.mxu0 %v773
        %922 = vmatprep.subr.bf16.mxu0 %v777
        %923 = vmatpush1.bf16.msra.mxu0 %v776
        %924 = vmatprep.subr.bf16.mxu0 %v780
        %925 = vmatpush1.bf16.msra.mxu0 %v779
        %926 = vmatprep.subr.bf16.mxu0 %v783
        %927 = vmatpush1.bf16.msra.mxu0 %v782
        %928 = vmatprep.subr.bf16.mxu0 %v786
        %929 = vmatpush1.bf16.msra.mxu0 %v785
        %930 = vmatprep.subr.bf16.mxu0 %v789
        %931 = vmatpush1.bf16.msra.mxu0 %v788
        %932 = vmatprep.subr.bf16.mxu0 0
        %933 = vmatpush1.bf16.msra.mxu0 0
        %934 = vmatprep.subr.bf16.mxu0 0
        %935 = vmatpush1.bf16.msra.mxu0 0
        %936 = vmatprep.subr.bf16.mxu0 0
        %937 = vmatpush1.bf16.msra.mxu0 0
        %938 = vmatprep.subr.bf16.mxu0 0
        %939 = vmatpush1.bf16.msra.mxu0 0
        %940 = vmatprep.subr.bf16.mxu0 0
        %941 = vmatpush1.bf16.msra.mxu0 0
        %942 = vmatprep.subr.bf16.mxu0 0
        %943 = vmatpush1.bf16.msra.mxu0 0
        %944 = vmatprep.subr.bf16.mxu0 0
        %945 = vmatpush1.bf16.msra.mxu0 0
        %946 = vmatprep.subr.bf16.mxu0 0
        %947 = vmatpush1.bf16.msra.mxu0 0
        %948 = vmatprep.mubr.bf16.mxu0 0
        %949 = vmatmul.mubr.bf16.gmra.mrb[0].mxu0 %v469
        %v950 = vpop.f32.mrb[0].mxu0
        %v951 = vadd.f32 %v898, %v950
        %v952 = vpop.f32.mrb[0].mxu0
        %v953 = vadd.f32 %v900, %v952
        %v954 = vpop.f32.mrb[0].mxu0
        %v955 = vadd.f32 %v902, %v954
        %v956 = vpop.f32.mrb[0].mxu0
        %v957 = vadd.f32 %v904, %v956
        %958 = vmatprep.mubr.bf16.mxu0 0
        %959 = vmatmul.mubr.bf16.gmra.mrb[0].mxu0 %v472
        %v960 = vpop.f32.mrb[0].mxu0
        %v961 = vadd.f32 %v908, %v960
        %v962 = vpop.f32.mrb[0].mxu0
        %v963 = vadd.f32 %v910, %v962
        %v964 = vpop.f32.mrb[0].mxu0
        %v965 = vadd.f32 %v912, %v964
        %v966 = vpop.f32.mrb[0].mxu0
        %v967 = vadd.f32 %v914, %v966
        %968 = vdwg.mxu0
        %969 = vmatprep.subr.bf16.mxu0 0
        %970 = vmatpush1.bf16.msra.mxu0 %v721
        %971 = vmatprep.subr.bf16.mxu0 0
        %972 = vmatpush1.bf16.msra.mxu0 %v724
        %973 = vmatprep.subr.bf16.mxu0 0
        %974 = vmatpush1.bf16.msra.mxu0 %v727
        %975 = vmatprep.subr.bf16.mxu0 0
        %976 = vmatpush1.bf16.msra.mxu0 %v730
        %977 = vmatprep.subr.bf16.mxu0 0
        %978 = vmatpush1.bf16.msra.mxu0 %v733
        %979 = vmatprep.subr.bf16.mxu0 0
        %980 = vmatpush1.bf16.msra.mxu0 %v736
        %981 = vmatprep.subr.bf16.mxu0 0
        %982 = vmatpush1.bf16.msra.mxu0 %v739
        %983 = vmatprep.subr.bf16.mxu0 0
        %984 = vmatpush1.bf16.msra.mxu0 %v742
        %985 = vmatprep.subr.bf16.mxu0 0
        %986 = vmatpush1.bf16.msra.mxu0 %v745
        %987 = vmatprep.subr.bf16.mxu0 0
        %988 = vmatpush1.bf16.msra.mxu0 %v748
        %989 = vmatprep.subr.bf16.mxu0 0
        %990 = vmatpush1.bf16.msra.mxu0 %v751
        %991 = vmatprep.subr.bf16.mxu0 0
        %992 = vmatpush1.bf16.msra.mxu0 %v754
        %993 = vmatprep.subr.bf16.mxu0 0
        %994 = vmatpush1.bf16.msra.mxu0 %v757
        %995 = vmatprep.subr.bf16.mxu0 0
        %996 = vmatpush1.bf16.msra.mxu0 %v760
        %997 = vmatprep.subr.bf16.mxu0 0
        %998 = vmatpush1.bf16.msra.mxu0 %v763
        %999 = vmatprep.subr.bf16.mxu0 0
        %1000 = vmatpush1.bf16.msra.mxu0 %v766
        %1001 = vmatprep.mubr.bf16.mxu0 %v468
        %1002 = vmatmul.mubr.bf16.gmra.mrb[0].mxu0 %v467
        %v1003 = vpop.f32.mrb[0].mxu0
        %v1004 = vadd.f32 0.0, %v1003
        %v1005 = vpop.f32.mrb[0].mxu0
        %v1006 = vpop.f32.mrb[0].mxu0
        %v1007 = vadd.f32 0.0, %v1006
        %v1008 = vpop.f32.mrb[0].mxu0
        %1009 = vmatprep.mubr.bf16.mxu0 %v471
        %1010 = vmatmul.mubr.bf16.gmra.mrb[0].mxu0 %v470
        %v1011 = vpop.f32.mrb[0].mxu0
        %v1012 = vadd.f32 0.0, %v1011
        %v1013 = vpop.f32.mrb[0].mxu0
        %v1014 = vpop.f32.mrb[0].mxu0
        %v1015 = vadd.f32 0.0, %v1014
        %v1016 = vpop.f32.mrb[0].mxu0
        %1017 = vdwg.mxu0
        %1018 = vmatprep.subr.bf16.mxu0 0
        %1019 = vmatpush1.bf16.msra.mxu0 %v769
        %1020 = vmatprep.subr.bf16.mxu0 0
        %1021 = vmatpush1.bf16.msra.mxu0 %v772
        %1022 = vmatprep.subr.bf16.mxu0 0
        %1023 = vmatpush1.bf16.msra.mxu0 %v775
        %1024 = vmatprep.subr.bf16.mxu0 0
        %1025 = vmatpush1.bf16.msra.mxu0 %v778
        %1026 = vmatprep.subr.bf16.mxu0 0
        %1027 = vmatpush1.bf16.msra.mxu0 %v781
        %1028 = vmatprep.subr.bf16.mxu0 0
        %1029 = vmatpush1.bf16.msra.mxu0 %v784
        %1030 = vmatprep.subr.bf16.mxu0 0
        %1031 = vmatpush1.bf16.msra.mxu0 %v787
        %1032 = vmatprep.subr.bf16.mxu0 0
        %1033 = vmatpush1.bf16.msra.mxu0 %v790
        %1034 = vmatprep.subr.bf16.mxu0 0
        %1035 = vmatpush1.bf16.msra.mxu0 0
        %1036 = vmatprep.subr.bf16.mxu0 0
        %1037 = vmatpush1.bf16.msra.mxu0 0
        %1038 = vmatprep.subr.bf16.mxu0 0
        %1039 = vmatpush1.bf16.msra.mxu0 0
        %1040 = vmatprep.subr.bf16.mxu0 0
        %1041 = vmatpush1.bf16.msra.mxu0 0
        %1042 = vmatprep.subr.bf16.mxu0 0
        %1043 = vmatpush1.bf16.msra.mxu0 0
        %1044 = vmatprep.subr.bf16.mxu0 0
        %1045 = vmatpush1.bf16.msra.mxu0 0
        %1046 = vmatprep.subr.bf16.mxu0 0
        %1047 = vmatpush1.bf16.msra.mxu0 0
        %1048 = vmatprep.subr.bf16.mxu0 0
        %1049 = vmatpush1.bf16.msra.mxu0 0
        %1050 = vmatprep.mubr.bf16.mxu0 0
        %1051 = vmatmul.mubr.bf16.gmra.mrb[0].mxu0 %v469
        %v1052 = vpop.f32.mrb[0].mxu0
        %v1053 = vadd.f32 %v1004, %v1052
        %v1054 = vpop.f32.mrb[0].mxu0
        %v1055 = vpop.f32.mrb[0].mxu0
        %v1056 = vadd.f32 %v1007, %v1055
        %v1057 = vpop.f32.mrb[0].mxu0
        %1058 = vmatprep.mubr.bf16.mxu0 0
        %1059 = vmatmul.mubr.bf16.gmra.mrb[0].mxu0 %v472
        %v1060 = vpop.f32.mrb[0].mxu0
        %v1061 = vadd.f32 %v1012, %v1060
        %v1062 = vpop.f32.mrb[0].mxu0
        %v1063 = vpop.f32.mrb[0].mxu0
        %v1064 = vadd.f32 %v1015, %v1063
        %v1065 = vpop.f32.mrb[0].mxu0
        %1066 = vdwg.mxu0
        %v1067 = vadd.f32 %v331, %v951
        %v1068 = vadd.f32 %v332, %v953
        %v1069 = vadd.f32 %v333, %v1053
        %v1070 = vadd.f32 %v334, %v955
        %v1071 = vadd.f32 %v335, %v957
        %v1072 = vadd.f32 %v336, %v1056
        %v1073 = vadd.f32 %v337, %v961
        %v1074 = vadd.f32 %v338, %v963
        %v1075 = vadd.f32 %v339, %v1061
        %v1076 = vadd.f32 %v340, %v965
        %v1077 = vadd.f32 %v341, %v967
        %v1078 = vadd.f32 %v342, %v1064
        %1079 = vst [vmem:[%s311] sm:$0xff] %v1067
        %1080 = vst [vmem:[%s311 + $0x8] sm:$0xff] %v1068
        %1081 = vst [vmem:[%s311 + $0x10] sm:$0xff] %v1069
        %1082 = vst [vmem:[%s311 + $0x18] sm:$0xff] %v1070
        %1083 = vst [vmem:[%s311 + $0x20] sm:$0xff] %v1071
        %1084 = vst [vmem:[%s311 + $0x28] sm:$0xff] %v1072
        %1085 = vst [vmem:[%s311 + $0x30] sm:$0xff] %v1073
        %1086 = vst [vmem:[%s311 + $0x38] sm:$0xff] %v1074
        %1087 = vst [vmem:[%s311 + $0x40] sm:$0xff] %v1075
        %1088 = vst [vmem:[%s311 + $0x48] sm:$0xff] %v1076
        %1089 = vst [vmem:[%s311 + $0x50] sm:$0xff] %v1077
        %1090 = vst [vmem:[%s311 + $0x58] sm:$0xff] %v1078
        %p1091 = scmp.eq.s32.totalorder %s21, 8
        // Predicated region
        $region63: #{alexnet_cbam3_forward.23} parent=53 // pred_check
          %p1092 = pneg %p1091
        $region64: #{alexnet_cbam3_forward.23} parent=53 // pred_check_branch
          %1094 = sbr.rel (%p1092) target = $region66
        $region65: #{alexnet_cbam3_forward.23} parent=53 // pred_region
          %v1095 = vld [vmem:[%s311] sm:$0xff]
          %v1096 = vld [vmem:[%s311 + $0x8] sm:$0xff]
          %v1097 = vld [vmem:[%s311 + $0x10] sm:$0xff]
          %v1098 = vld [vmem:[%s311 + $0x18] sm:$0xff]
          %v1099 = vld [vmem:[%s311 + $0x20] sm:$0xff]
          %v1100 = vld [vmem:[%s311 + $0x28] sm:$0xff]
          %v1101 = vld [vmem:[%s311 + $0x30] sm:$0xff]
          %v1102 = vld [vmem:[%s311 + $0x38] sm:$0xff]
          %v1103 = vld [vmem:[%s311 + $0x40] sm:$0xff]
          %v1104 = vld [vmem:[%s311 + $0x48] sm:$0xff]
          %v1105 = vld [vmem:[%s311 + $0x50] sm:$0xff]
          %v1106 = vld [vmem:[%s311 + $0x58] sm:$0xff]
          %v1107 = vld [vmem:[%s300] sm:$0x7]
          %v1109 = vlaneseq
          %v1110 = vshrl.u32 %v1109, 7
          %v1111 = vsub.s32 0, %v1110
          %v1112 = vrot.slane %v1107, %v1111
          %v1113 = vlaneseq
          %v1114 = vshrl.u32 %v1113, 7
          %v1115 = vsub.s32 1, %v1114
          %v1116 = vrot.slane %v1107, %v1115
          %v1117 = vlaneseq
          %v1118 = vshrl.u32 %v1117, 7
          %v1119 = vsub.s32 2, %v1118
          %v1120 = vrot.slane %v1107, %v1119
          %v1124 = vadd.f32 %v1095, %v1112
          %v1125 = vadd.f32 %v1096, %v1116
          %v1126 = vadd.f32 %v1097, %v1120
          %v1127 = vadd.f32 %v1098, %v1112
          %v1128 = vadd.f32 %v1099, %v1116
          %v1129 = vadd.f32 %v1100, %v1120
          %v1130 = vadd.f32 %v1101, %v1112
          %v1131 = vadd.f32 %v1102, %v1116
          %v1132 = vadd.f32 %v1103, %v1120
          %v1133 = vadd.f32 %v1104, %v1112
          %v1134 = vadd.f32 %v1105, %v1116
          %v1135 = vadd.f32 %v1106, %v1120
          %v1136 = vmax.f32 %v1124, 0.0
          %v1137 = vmax.f32 %v1125, 0.0
          %v1138 = vmax.f32 %v1126, 0.0
          %v1139 = vmax.f32 %v1127, 0.0
          %v1140 = vmax.f32 %v1128, 0.0
          %v1141 = vmax.f32 %v1129, 0.0
          %v1142 = vmax.f32 %v1130, 0.0
          %v1143 = vmax.f32 %v1131, 0.0
          %v1144 = vmax.f32 %v1132, 0.0
          %v1145 = vmax.f32 %v1133, 0.0
          %v1146 = vmax.f32 %v1134, 0.0
          %v1147 = vmax.f32 %v1135, 0.0
          %1148 = vst [vmem:[%s311] sm:$0xff] %v1136
          %1149 = vst [vmem:[%s311 + $0x8] sm:$0xff] %v1137
          %1150 = vst [vmem:[%s311 + $0x10] sm:$0xff] %v1138
          %1151 = vst [vmem:[%s311 + $0x18] sm:$0xff] %v1139
          %1152 = vst [vmem:[%s311 + $0x20] sm:$0xff] %v1140
          %1153 = vst [vmem:[%s311 + $0x28] sm:$0xff] %v1141
          %1154 = vst [vmem:[%s311 + $0x30] sm:$0xff] %v1142
          %1155 = vst [vmem:[%s311 + $0x38] sm:$0xff] %v1143
          %1156 = vst [vmem:[%s311 + $0x40] sm:$0xff] %v1144
          %1157 = vst [vmem:[%s311 + $0x48] sm:$0xff] %v1145
          %1158 = vst [vmem:[%s311 + $0x50] sm:$0xff] %v1146
          %1159 = vst [vmem:[%s311 + $0x58] sm:$0xff] %v1147
        $region66: #{alexnet_cbam3_forward.23} parent=53 // pred_fallthru
          _
        %s1160 = smul.u32 4, %s19
        %s1161 = smul.u32 3, %s20
        %p1162 = scmp.lt.s32.totalorder %s1160, 3
        %s1163 = scalar_select %p1162, %s1160, 3
        %p1164 = scmp.lt.s32.totalorder %s1161, 2
        %s1165 = scalar_select %p1164, %s1161, 2
        %s1166 = smul.addr %s1163, 3
        %s1167 = sadd.s32 %s1165, %s1166
        %s1168 = smul.addr %s1167, 8
        %s1169 = scalar_lea.vmem %s3, %s1168
        // Predicated region
        $region67: #{alexnet_cbam3_forward.23} parent=53 // pred_check
          %p1170 = pneg %p135
        $region68: #{alexnet_cbam3_forward.23} parent=53 // pred_check_branch
          %1172 = sbr.rel (%p1170) target = $region70
        $region69: #{alexnet_cbam3_forward.23} parent=53 // pred_region
          %s1173 = smul.u32 4, %s19
          %s1174 = smul.u32 3, %s20
        $region70: #{alexnet_cbam3_forward.23} parent=53 // pred_fallthru
          _
        // Predicated region
        $region71: #{alexnet_cbam3_forward.23} parent=53 // pred_check
          %p1175 = pneg %p135
        $region72: #{alexnet_cbam3_forward.23} parent=53 // pred_check_branch
          %1177 = sbr.rel (%p1175) target = $region74
        $region73: #{alexnet_cbam3_forward.23} parent=53 // pred_region
          %s1178 = smul.u32 4, %s19
          %s1179 = smul.u32 3, %s20
          %p1180 = scmp.lt.s32.totalorder %s1178, 3
          %s1181 = scalar_select %p1180, %s1178, 3
          %p1182 = scmp.lt.s32.totalorder %s1179, 2
          %s1183 = scalar_select %p1182, %s1179, 2
          %s1184 = smul.addr %s1181, 3
          %s1185 = sadd.s32 %s1183, %s1184
          %s1186 = smul.addr %s1185, 8
          %s1187 = scalar_lea.vmem %s3, %s1186
        $region74: #{alexnet_cbam3_forward.23} parent=53 // pred_fallthru
          _
      $region54: #{alexnet_cbam3_forward.23} parent=5 // pred_fallthru
        _
      %p1188 = scmp.le.s32.totalorder 2, %s9
      // Predicated region
      $region75: #{alexnet_cbam3_forward.23} parent=5 // pred_check
        %p1189 = pneg %p1188
      $region76: #{alexnet_cbam3_forward.23} parent=5 // pred_check_branch
        %1191 = sbr.rel (%p1189) target = $region78
      $region77: #{alexnet_cbam3_forward.23} parent=5 // pred_region
        %s1192 = ssub.s32 %s9, 2
      $region78: #{alexnet_cbam3_forward.23} parent=5 // pred_fallthru
        _
    $region6: #{alexnet_cbam3_forward.23} parent=1 // loop_footer
      %s13 = sadd.s32 1, %s9
    $region7: #{alexnet_cbam3_forward.23} parent=1 // loop_footer_branch
      %8 = sbr.rel target = $region3
    $region8: #{alexnet_cbam3_forward.23} parent=1 // loop_exit
      _

// kernel: alexnet_cbam3_forward.24
$region0: #{alexnet_cbam3_forward.24}
  #allocation0 [shape = 'u32[]', space=smem, size = 0x4, offset = 0x4, fixed_abs, tag = 'smem constant byte address 0x4 - core index']
  #allocation1 [shape = 'u32[144,128]{1,0:T(1,128)}', space=vmem, size = 0x12000, scoped, tag = 'internal scratch']
  %s0 = inlined_call_operand.vmem [shape: bf16[32,3456], index: 0, kind: input, shape index: {}]
  %s1 = inlined_call_operand.vmem [shape: bf16[3456,256], index: 1, kind: input, shape index: {}]
  %s2 = inlined_call_operand.vmem [shape: f32[1,256], index: 2, kind: input, shape index: {}]
  %s3 = inlined_call_operand.vmem [shape: f32[32,256], index: 3, kind: output, shape index: {}]
  %s4 = sld [smem:[#allocation0]]
  $region79: #{alexnet_cbam3_forward.24} parent=0
    _
  %s6 = ssub.s32 1, %s4
  %s7 = scalar_select 0, %s6, %s4
  $region1: #{alexnet_cbam3_forward.24} parent=0
    #allocation2 [shape = 'u8[49152]{0}', space=vmem, size = 0xc000, scoped, tag = 'input window, operand 0']
    loop: start=0, step=1, limit=11
    $region2: #{alexnet_cbam3_forward.24} parent=1 // loop_pre_header
      _
    $region3: #{alexnet_cbam3_forward.24} parent=1 // loop_header
      %s9 = sphi 0, %s13
      %p10 = scmp.ge.s32.totalorder %s9, 11
      %s16 = sphi 0, %s35
      %s17 = sphi 0, %s31
      %s18 = sphi 0, %s27
      %s19 = sphi 0, %s16
      %s20 = sphi 0, %s17
      %s21 = sphi 0, %s18
      %s22 = sphi 0, %s19
      %s23 = sphi 0, %s20
      %s24 = sphi 0, %s21
      %s40 = sphi 0, %s42
      %s43 = sphi 0, %s40
      %s44 = sphi 0, %s43
      %s60 = sphi 0, %s44
      %s68 = sphi 0, %s70
      %s71 = sphi 0, %s68
      %s72 = sphi 0, %s71
      %s88 = sphi 0, %s72
      %s94 = sphi 0, %s96
      %s97 = sphi 0, %s94
      %s98 = sphi 0, %s97
      %s114 = sphi 0, %s98
      %s122 = sphi 0, %s124
      %s125 = sphi 0, %s122
      %s126 = sphi 0, %s125
      %s142 = sphi 0, %s126
    $region4: #{alexnet_cbam3_forward.24} parent=1 // loop_header_branch
      %12 = sbr.rel (%p10) target = $region8
    $region5: #{alexnet_cbam3_forward.24} parent=1 // loop_body
      %s14 = ssub.s32 %s9, 1
      %s15 = ssub.s32 %s9, 2
      %s25 = sadd.s32 1, %s18
      %p26 = scmp.ge.s32.totalorder %s25, 9
      %s27 = scalar_select %p26, 0, %s25
      %s28 = sadd.s32 1, %s17
      %s29 = scalar_select %p26, %s28, %s17
      %p30 = scmp.ge.s32.totalorder %s29, 1
      %s31 = scalar_select %p30, 0, %s29
      %s32 = sadd.s32 1, %s16
      %s33 = scalar_select %p30, %s32, %s16
      %p34 = scmp.ge.s32.totalorder %s33, 1
      %s35 = scalar_select %p34, 0, %s33
      %s36 = ssub.s32 %s16, %s35
      %s37 = ssub.s32 %s18, %s27
      %s38 = sor.u32 %s36, %s37
      %p39 = scmp.eq.s32.totalorder %s38, 0
      %s41 = sadd.s32 %s40, 1
      %s42 = scalar_select %p39, %s40, %s41
      %p45 = pneg %p39
      %p46 = scmp.eq.s32.totalorder %s9, 8
      %p47 = por %p45, %p46
      %p48 = scmp.ne.s32.totalorder %s40, %s43
      %p49 = scmp.eq.s32.totalorder %s9, 0
      %p50 = por %p48, %p49
      %p51 = scmp.ne.s32.totalorder %s40, %s43
      %p52 = scmp.eq.s32.totalorder %s14, 8
      %p53 = por %p51, %p52
      %p54 = scmp.ne.s32.totalorder %s43, %s44
      %p55 = scmp.eq.s32.totalorder %s14, 0
      %p56 = por %p54, %p55
      %p57 = scmp.ne.s32.totalorder %s43, %s44
      %p58 = scmp.eq.s32.totalorder %s15, 8
      %p59 = por %p57, %p58
      %p61 = scmp.ne.s32.totalorder %s44, %s60
      %p62 = scmp.eq.s32.totalorder %s15, 0
      %p63 = por %p61, %p62
      %s64 = ssub.s32 %s18, %s27
      %s65 = ssub.s32 %s17, %s31
      %s66 = sor.u32 %s64, %s65
      %p67 = scmp.eq.s32.totalorder %s66, 0
      %s69 = sadd.s32 %s68, 1
      %s70 = scalar_select %p67, %s68, %s69
      %p73 = pneg %p67
      %p74 = scmp.eq.s32.totalorder %s9, 8
      %p75 = por %p73, %p74
      %p76 = scmp.ne.s32.totalorder %s68, %s71
      %p77 = scmp.eq.s32.totalorder %s9, 0
      %p78 = por %p76, %p77
      %p79 = scmp.ne.s32.totalorder %s68, %s71
      %p80 = scmp.eq.s32.totalorder %s14, 8
      %p81 = por %p79, %p80
      %p82 = scmp.ne.s32.totalorder %s71, %s72
      %p83 = scmp.eq.s32.totalorder %s14, 0
      %p84 = por %p82, %p83
      %p85 = scmp.ne.s32.totalorder %s71, %s72
      %p86 = scmp.eq.s32.totalorder %s15, 8
      %p87 = por %p85, %p86
      %p89 = scmp.ne.s32.totalorder %s72, %s88
      %p90 = scmp.eq.s32.totalorder %s15, 0
      %p91 = por %p89, %p90
      %s92 = ssub.s32 %s17, %s31
      %p93 = scmp.eq.s32.totalorder %s92, 0
      %s95 = sadd.s32 %s94, 1
      %s96 = scalar_select %p93, %s94, %s95
      %p99 = pneg %p93
      %p100 = scmp.eq.s32.totalorder %s9, 8
      %p101 = por %p99, %p100
      %p102 = scmp.ne.s32.totalorder %s94, %s97
      %p103 = scmp.eq.s32.totalorder %s9, 0
      %p104 = por %p102, %p103
      %p105 = scmp.ne.s32.totalorder %s94, %s97
      %p106 = scmp.eq.s32.totalorder %s14, 8
      %p107 = por %p105, %p106
      %p108 = scmp.ne.s32.totalorder %s97, %s98
      %p109 = scmp.eq.s32.totalorder %s14, 0
      %p110 = por %p108, %p109
      %p111 = scmp.ne.s32.totalorder %s97, %s98
      %p112 = scmp.eq.s32.totalorder %s15, 8
      %p113 = por %p111, %p112
      %p115 = scmp.ne.s32.totalorder %s98, %s114
      %p116 = scmp.eq.s32.totalorder %s15, 0
      %p117 = por %p115, %p116
      %s118 = ssub.s32 %s16, %s35
      %s119 = ssub.s32 %s17, %s31
      %s120 = sor.u32 %s118, %s119
      %p121 = scmp.eq.s32.totalorder %s120, 0
      %s123 = sadd.s32 %s122, 1
      %s124 = scalar_select %p121, %s122, %s123
      %p127 = pneg %p121
      %p128 = scmp.eq.s32.totalorder %s9, 8
      %p129 = por %p127, %p128
      %p130 = scmp.ne.s32.totalorder %s122, %s125
      %p131 = scmp.eq.s32.totalorder %s9, 0
      %p132 = por %p130, %p131
      %p133 = scmp.ne.s32.totalorder %s122, %s125
      %p134 = scmp.eq.s32.totalorder %s14, 8
      %p135 = por %p133, %p134
      %p136 = scmp.ne.s32.totalorder %s125, %s126
      %p137 = scmp.eq.s32.totalorder %s14, 0
      %p138 = por %p136, %p137
      %p139 = scmp.ne.s32.totalorder %s125, %s126
      %p140 = scmp.eq.s32.totalorder %s15, 8
      %p141 = por %p139, %p140
      %p143 = scmp.ne.s32.totalorder %s126, %s142
      %p144 = scmp.eq.s32.totalorder %s15, 0
      %p145 = por %p143, %p144
      %p146 = scmp.le.s32.totalorder 1, %s9
      %p147 = scmp.lt.s32.totalorder %s9, 10
      %p148 = pnand %p146, %p147
      %p149 = pneg %p148
      // Predicated region
      $region9: #{alexnet_cbam3_forward.24} parent=5 // pred_check
        _
      $region10: #{alexnet_cbam3_forward.24} parent=5 // pred_check_branch
        %151 = sbr.rel (%p148) target = $region12
      $region11: #{alexnet_cbam3_forward.24} parent=5 // pred_region
        %s152 = ssub.s32 %s9, 1
        // Predicated region
        $region13: #{alexnet_cbam3_forward.24} parent=11 // pred_check
          %p153 = pneg %p110
        $region14: #{alexnet_cbam3_forward.24} parent=11 // pred_check_branch
          %155 = sbr.rel (%p153) target = $region16
        $region15: #{alexnet_cbam3_forward.24} parent=11 // pred_region
          %s156 = smul.u32 2, %s20
          %p157 = scmp.lt.s32.totalorder %s156, 1
          %s158 = scalar_select %p157, %s156, 1
          %s159 = scalar_lea.vmem %s2, %s158
          %s160 = smul.u32 2, %s20
        $region16: #{alexnet_cbam3_forward.24} parent=11 // pred_fallthru
          _
      $region12: #{alexnet_cbam3_forward.24} parent=5 // pred_fallthru
        _
      %p161 = scmp.lt.s32.totalorder %s9, 9
      // Predicated region
      $region17: #{alexnet_cbam3_forward.24} parent=5 // pred_check
        %p162 = pneg %p161
      $region18: #{alexnet_cbam3_forward.24} parent=5 // pred_check_branch
        %164 = sbr.rel (%p162) target = $region20
      $region19: #{alexnet_cbam3_forward.24} parent=5 // pred_region
        // Predicated region
        $region21: #{alexnet_cbam3_forward.24} parent=19 // pred_check
          %p165 = pneg %p50
        $region22: #{alexnet_cbam3_forward.24} parent=19 // pred_check_branch
          %167 = sbr.rel (%p165) target = $region24
        $region23: #{alexnet_cbam3_forward.24} parent=19 // pred_region
          %s168 = sand.u32 %s40, 1
          %s169 = sand.u32 %s40, 1
          %s170 = smul.addr %s169, 48
          %s171 = scalar_lea.vmem [#allocation2], %s170
          %s172 = smul.u32 4, %s16
          %s173 = smul.u32 3, %s18
          %s174 = smul.addr %s172, 27
          %s175 = sadd.s32 %s173, %s174
          %s176 = smul.addr %s175, 4
          %s177 = scalar_lea.vmem %s0, %s176
          // Predicated region
          $region25: #{alexnet_cbam3_forward.24} parent=23 // pred_check
            _
          $region26: #{alexnet_cbam3_forward.24} parent=23 // pred_check_branch
            %179 = sbr.rel (0) target = $region28
          $region27: #{alexnet_cbam3_forward.24} parent=23 // pred_region
            // Predicated region
            $region29: #{alexnet_cbam3_forward.24} parent=27 // pred_check
              _
            $region30: #{alexnet_cbam3_forward.24} parent=27 // pred_check_branch
              %181 = sbr.rel (0) target = $region32
            $region31: #{alexnet_cbam3_forward.24} parent=27 // pred_region
              %s182 = scalar_lea.vmem %s177, 8
              %s183 = scalar_lea.vmem %s171, 8 [#allocation2]
              loop: start=0, step=1, limit=1
              $region33: #{alexnet_cbam3_forward.24} parent=31 // loop_pre_header
                _
              $region34: #{alexnet_cbam3_forward.24} parent=31 // loop_header
                %s185 = sphi 0, %s189
                %p186 = scmp.ge.s32.totalorder %s185, 1
                %s190 = sphi %s177, %s177
                %s191 = sphi %s171, %s171
              $region35: #{alexnet_cbam3_forward.24} parent=31 // loop_header_branch
                %188 = sbr.rel (%p186) target = $region39
              $region36: #{alexnet_cbam3_forward.24} parent=31 // loop_body
                %v192 = vld [vmem:[%s190] sm:$0xff]
                %193 = vst [vmem:[%s191] sm:$0xff] %v192
                %v194 = vld [vmem:[%s190 + $0x6c] sm:$0xff]
                %195 = vst [vmem:[%s191 + $0xc] sm:$0xff] %v194
                %v196 = vld [vmem:[%s190 + $0xd8] sm:$0xff]
                %197 = vst [vmem:[%s191 + $0x18] sm:$0xff] %v196
                %v198 = vld [vmem:[%s190 + $0x144] sm:$0xff]
                %199 = vst [vmem:[%s191 + $0x24] sm:$0xff] %v198
              $region37: #{alexnet_cbam3_forward.24} parent=31 // loop_footer
                %s189 = sadd.s32 1, %s185
              $region38: #{alexnet_cbam3_forward.24} parent=31 // loop_footer_branch
                %184 = sbr.rel target = $region34
              $region39: #{alexnet_cbam3_forward.24} parent=31 // loop_exit
                _
              loop: start=0, step=1, limit=1
              $region40: #{alexnet_cbam3_forward.24} parent=31 // loop_pre_header
                _
              $region41: #{alexnet_cbam3_forward.24} parent=31 // loop_header
                %s202 = sphi 0, %s206
                %p203 = scmp.ge.s32.totalorder %s202, 1
                %s207 = sphi %s182, %s182
                %s208 = sphi %s183, %s183
              $region42: #{alexnet_cbam3_forward.24} parent=31 // loop_header_branch
                %205 = sbr.rel (%p203) target = $region46
              $region43: #{alexnet_cbam3_forward.24} parent=31 // loop_body
                %v209 = vld [vmem:[%s207] sm:$0xf]
                %210 = vst [vmem:[%s208] sm:$0xf] %v209
                %v211 = vld [vmem:[%s207 + $0x6c] sm:$0xf]
                %212 = vst [vmem:[%s208 + $0xc] sm:$0xf] %v211
                %v213 = vld [vmem:[%s207 + $0xd8] sm:$0xf]
                %214 = vst [vmem:[%s208 + $0x18] sm:$0xf] %v213
                %v215 = vld [vmem:[%s207 + $0x144] sm:$0xf]
                %216 = vst [vmem:[%s208 + $0x24] sm:$0xf] %v215
              $region44: #{alexnet_cbam3_forward.24} parent=31 // loop_footer
                %s206 = sadd.s32 1, %s202
              $region45: #{alexnet_cbam3_forward.24} parent=31 // loop_footer_branch
                %201 = sbr.rel target = $region41
              $region46: #{alexnet_cbam3_forward.24} parent=31 // loop_exit
                _
            $region32: #{alexnet_cbam3_forward.24} parent=27 // pred_fallthru
              _
          $region28: #{alexnet_cbam3_forward.24} parent=23 // pred_fallthru
            _
          %217 = vnop
        $region24: #{alexnet_cbam3_forward.24} parent=19 // pred_fallthru
          _
        // Predicated region
        $region47: #{alexnet_cbam3_forward.24} parent=19 // pred_check
          %p218 = pneg %p78
        $region48: #{alexnet_cbam3_forward.24} parent=19 // pred_check_branch
          %220 = sbr.rel (%p218) target = $region50
        $region49: #{alexnet_cbam3_forward.24} parent=19 // pred_region
          %s221 = smul.u32 48, %s18
          %s222 = smul.u32 2, %s17
          %p223 = scmp.lt.s32.totalorder %s221, 431
          %s224 = scalar_select %p223, %s221, 431
          %p225 = scmp.lt.s32.totalorder %s222, 1
          %s226 = scalar_select %p225, %s222, 1
          %s227 = smul.addr %s224, 2
          %s228 = sadd.s32 %s226, %s227
          %s229 = smul.addr %s228, 4
          %s230 = scalar_lea.vmem %s1, %s229
          %s231 = smul.u32 48, %s18
          %s232 = smul.u32 2, %s17
        $region50: #{alexnet_cbam3_forward.24} parent=19 // pred_fallthru
          _
      $region20: #{alexnet_cbam3_forward.24} parent=5 // pred_fallthru
        _
      %p233 = scmp.le.s32.totalorder 1, %s9
      %p234 = scmp.lt.s32.totalorder %s9, 10
      %p235 = pnand %p233, %p234
      %p236 = pneg %p235
      // Predicated region
      $region51: #{alexnet_cbam3_forward.24} parent=5 // pred_check
        _
      $region52: #{alexnet_cbam3_forward.24} parent=5 // pred_check_branch
        %238 = sbr.rel (%p235) target = $region54
      $region53: #{alexnet_cbam3_forward.24} parent=5 // pred_region
        %s239 = ssub.s32 %s9, 1
        %s240 = sand.u32 %s43, 1
        %s241 = sand.u32 %s43, 1
        %s242 = smul.addr %s241, 48
        %s243 = scalar_lea.vmem [#allocation2], %s242
        // Predicated region
        $region55: #{alexnet_cbam3_forward.24} parent=53 // pred_check
          %p244 = pneg %p56
        $region56: #{alexnet_cbam3_forward.24} parent=53 // pred_check_branch
          %246 = sbr.rel (%p244) target = $region58
        $region57: #{alexnet_cbam3_forward.24} parent=53 // pred_region
          _
        $region58: #{alexnet_cbam3_forward.24} parent=53 // pred_fallthru
          _
        %s247 = sand.u32 %s43, 1
        %s248 = sand.u32 %s43, 1
        %s249 = smul.addr %s248, 48
        %s250 = scalar_lea.vmem [#allocation2], %s249
        %p251 = pneg %p56
        %p252 = pneg %p53
        %s253 = smul.u32 48, %s21
        %s254 = smul.u32 2, %s20
        %p255 = scmp.lt.s32.totalorder %s253, 431
        %s256 = scalar_select %p255, %s253, 431
        %p257 = scmp.lt.s32.totalorder %s254, 1
        %s258 = scalar_select %p257, %s254, 1
        %s259 = smul.addr %s256, 2
        %s260 = sadd.s32 %s258, %s259
        %s261 = smul.addr %s260, 4
        %s262 = scalar_lea.vmem %s1, %s261
        %p263 = pneg %p84
        %p264 = pneg %p81
        %s265 = smul.u32 2, %s20
        %p266 = scmp.lt.s32.totalorder %s265, 1
        %s267 = scalar_select %p266, %s265, 1
        %s268 = scalar_lea.vmem %s2, %s267
        %p269 = pneg %p110
        %p270 = pneg %p107
        %p271 = pneg %p138
        %p272 = pneg %p135
        %s273 = smul.u32 4, %s19
        %s274 = smul.u32 2, %s20
        %p275 = scmp.lt.s32.totalorder %s273, 3
        %s276 = scalar_select %p275, %s273, 3
        %p277 = scmp.lt.s32.totalorder %s274, 1
        %s278 = scalar_select %p277, %s274, 1
        %s279 = smul.addr %s276, 2
        %s280 = sadd.s32 %s278, %s279
        %s281 = smul.addr %s280, 8
        %s282 = scalar_lea.vmem %s3, %s281
        %s283 = smul.u32 4, %s19
        %s284 = smul.u32 3, %s21
        %s285 = smul.u32 48, %s21
        %s286 = smul.u32 2, %s20
        %p287 = scmp.lt.s32.totalorder %s285, 431
        %s288 = scalar_select %p287, %s285, 431
        %p289 = scmp.lt.s32.totalorder %s286, 1
        %s290 = scalar_select %p289, %s286, 1
        %s291 = smul.addr %s288, 2
        %s292 = sadd.s32 %s290, %s291
        %s293 = smul.addr %s292, 4
        %s294 = scalar_lea.vmem %s1, %s293
        %s295 = smul.u32 48, %s21
        %s296 = smul.u32 2, %s20
        %s297 = smul.u32 2, %s20
        %p298 = scmp.lt.s32.totalorder %s297, 1
        %s299 = scalar_select %p298, %s297, 1
        %s300 = scalar_lea.vmem %s2, %s299
        %s301 = smul.u32 2, %s20
        %s302 = smul.u32 4, %s19
        %s303 = smul.u32 2, %s20
        %p304 = scmp.lt.s32.totalorder %s302, 3
        %s305 = scalar_select %p304, %s302, 3
        %p306 = scmp.lt.s32.totalorder %s303, 1
        %s307 = scalar_select %p306, %s303, 1
        %s308 = smul.addr %s305, 2
        %s309 = sadd.s32 %s307, %s308
        %s310 = smul.addr %s309, 8
        %s311 = scalar_lea.vmem %s3, %s310
        %s312 = smul.u32 4, %s19
        %s313 = smul.u32 2, %s20
        %p315 = scmp.eq.s32.totalorder %s21, 0
        // Predicated region
        $region59: #{alexnet_cbam3_forward.24} parent=53 // pred_check
          %p316 = pneg %p315
        $region60: #{alexnet_cbam3_forward.24} parent=53 // pred_check_branch
          %318 = sbr.rel (%p316) target = $region62
        $region61: #{alexnet_cbam3_forward.24} parent=53 // pred_region
          %319 = vst [vmem:[%s311] sm:$0xff] 0.0
          %320 = vst [vmem:[%s311 + $0x8] sm:$0xff] 0.0
          %321 = vst [vmem:[%s311 + $0x10] sm:$0xff] 0.0
          %322 = vst [vmem:[%s311 + $0x18] sm:$0xff] 0.0
          %323 = vst [vmem:[%s311 + $0x20] sm:$0xff] 0.0
          %324 = vst [vmem:[%s311 + $0x28] sm:$0xff] 0.0
          %325 = vst [vmem:[%s311 + $0x30] sm:$0xff] 0.0
          %326 = vst [vmem:[%s311 + $0x38] sm:$0xff] 0.0
        $region62: #{alexnet_cbam3_forward.24} parent=53 // pred_fallthru
          _
        %v327 = vld [vmem:[%s311] sm:$0xff]
        %v328 = vld [vmem:[%s311 + $0x8] sm:$0xff]
        %v329 = vld [vmem:[%s311 + $0x10] sm:$0xff]
        %v330 = vld [vmem:[%s311 + $0x18] sm:$0xff]
        %v331 = vld [vmem:[%s311 + $0x20] sm:$0xff]
        %v332 = vld [vmem:[%s311 + $0x28] sm:$0xff]
        %v333 = vld [vmem:[%s311 + $0x30] sm:$0xff]
        %v334 = vld [vmem:[%s311 + $0x38] sm:$0xff]
        %v335 = vld [vmem:[%s243] sm:$0xff]
        %v336 = vld [vmem:[%s243 + $0x8] sm:$0xf]
        %v337 = vld [vmem:[%s243 + $0xc] sm:$0xff]
        %v338 = vld [vmem:[%s243 + $0x14] sm:$0xf]
        %v339 = vld [vmem:[%s243 + $0x18] sm:$0xff]
        %v340 = vld [vmem:[%s243 + $0x20] sm:$0xf]
        %v341 = vld [vmem:[%s243 + $0x24] sm:$0xff]
        %v342 = vld [vmem:[%s243 + $0x2c] sm:$0xf]
        %v343 = vld [vmem:[%s294] sm:$0xff]
        %v344 = vld [vmem:[%s294 + $0x8] sm:$0xff]
        %v345 = vld [vmem:[%s294 + $0x10] sm:$0xff]
        %v346 = vld [vmem:[%s294 + $0x18] sm:$0xff]
        %v347 = vld [vmem:[%s294 + $0x20] sm:$0xff]
        %v348 = vld [vmem:[%s294 + $0x28] sm:$0xff]
        %v349 = vld [vmem:[%s294 + $0x30] sm:$0xff]
        %v350 = vld [vmem:[%s294 + $0x38] sm:$0xff]
        %v351 = vld [vmem:[%s294 + $0x40] sm:$0xff]
        %v352 = vld [vmem:[%s294 + $0x48] sm:$0xff]
        %v353 = vld [vmem:[%s294 + $0x50] sm:$0xff]
        %v354 = vld [vmem:[%s294 + $0x58] sm:$0xff]
        %v355 = vld [vmem:[%s294 + $0x60] sm:$0xff]
        %v356 = vld [vmem:[%s294 + $0x68] sm:$0xff]
        %v357 = vld [vmem:[%s294 + $0x70] sm:$0xff]
        %v358 = vld [vmem:[%s294 + $0x78] sm:$0xff]
        %v359 = vld [vmem:[%s294 + $0x80] sm:$0xff]
        %v360 = vld [vmem:[%s294 + $0x88] sm:$0xff]
        %v361 = vld [vmem:[%s294 + $0x90] sm:$0xff]
        %v362 = vld [vmem:[%s294 + $0x98] sm:$0xff]
        %v363 = vld [vmem:[%s294 + $0xa0] sm:$0xff]
        %v364 = vld [vmem:[%s294 + $0xa8] sm:$0xff]
        %v365 = vld [vmem:[%s294 + $0xb0] sm:$0xff]
        %v366 = vld [vmem:[%s294 + $0xb8] sm:$0xff]
        %v367 = vld [vmem:[%s294 + $0xc0] sm:$0xff]
        %v368 = vld [vmem:[%s294 + $0xc8] sm:$0xff]
        %v369 = vld [vmem:[%s294 + $0xd0] sm:$0xff]
        %v370 = vld [vmem:[%s294 + $0xd8] sm:$0xff]
        %v371 = vld [vmem:[%s294 + $0xe0] sm:$0xff]
        %v372 = vld [vmem:[%s294 + $0xe8] sm:$0xff]
        %v373 = vld [vmem:[%s294 + $0xf0] sm:$0xff]
        %v374 = vld [vmem:[%s294 + $0xf8] sm:$0xff]
        %v375 = vld [vmem:[%s294 + $0x100] sm:$0xff]
        %v376 = vld [vmem:[%s294 + $0x108] sm:$0xff]
        %v377 = vld [vmem:[%s294 + $0x110] sm:$0xff]
        %v378 = vld [vmem:[%s294 + $0x118] sm:$0xff]
        %v379 = vld [vmem:[%s294 + $0x120] sm:$0xff]
        %v380 = vld [vmem:[%s294 + $0x128] sm:$0xff]
        %v381 = vld [vmem:[%s294 + $0x130] sm:$0xff]
        %v382 = vld [vmem:[%s294 + $0x138] sm:$0xff]
        %v383 = vld [vmem:[%s294 + $0x140] sm:$0xff]
        %v384 = vld [vmem:[%s294 + $0x148] sm:$0xff]
        %v385 = vld [vmem:[%s294 + $0x150] sm:$0xff]
        %v386 = vld [vmem:[%s294 + $0x158] sm:$0xff]
        %v387 = vld [vmem:[%s294 + $0x160] sm:$0xff]
        %v388 = vld [vmem:[%s294 + $0x168] sm:$0xff]
        %v389 = vld [vmem:[%s294 + $0x170] sm:$0xff]
        %v390 = vld [vmem:[%s294 + $0x178] sm:$0xff]
        %v399 = vunpack.c.l.b16 %v335
        %v400 = vunpack.c.h.b16 %v335
        %v401 = vunpack.c.l.b16 %v336
        %v402 = vunpack.c.l.b16 %v337
        %v403 = vunpack.c.h.b16 %v337
        %v404 = vunpack.c.l.b16 %v338
        %v405 = vunpack.c.l.b16 %v339
        %v406 = vunpack.c.h.b16 %v339
        %v407 = vunpack.c.l.b16 %v340
        %v408 = vunpack.c.l.b16 %v341
        %v409 = vunpack.c.h.b16 %v341
        %v410 = vunpack.c.l.b16 %v342
        %v411 = vpack.c.b16 %v402, %v399
        %v412 = vpack.c.b16 %v403, %v400
        %v413 = vpack.c.b16 %v404, %v401
        %v414 = vpack.c.b16 %v408, %v405
        %v415 = vpack.c.b16 %v409, %v406
        %v416 = vpack.c.b16 %v410, %v407
        %v471 = vunpack.c.l.b16 %v343
        %v472 = vunpack.c.h.b16 %v343
        %v473 = vunpack.c.l.b16 %v344
        %v474 = vunpack.c.h.b16 %v344
        %v475 = vunpack.c.l.b16 %v345
        %v476 = vunpack.c.h.b16 %v345
        %v477 = vunpack.c.l.b16 %v346
        %v478 = vunpack.c.h.b16 %v346
        %v479 = vunpack.c.l.b16 %v347
        %v480 = vunpack.c.h.b16 %v347
        %v481 = vunpack.c.l.b16 %v348
        %v482 = vunpack.c.h.b16 %v348
        %v483 = vunpack.c.l.b16 %v349
        %v484 = vunpack.c.h.b16 %v349
        %v485 = vunpack.c.l.b16 %v350
        %v486 = vunpack.c.h.b16 %v350
        %v487 = vunpack.c.l.b16 %v351
        %v488 = vunpack.c.h.b16 %v351
        %v489 = vunpack.c.l.b16 %v352
        %v490 = vunpack.c.h.b16 %v352
        %v491 = vunpack.c.l.b16 %v353
        %v492 = vunpack.c.h.b16 %v353
        %v493 = vunpack.c.l.b16 %v354
        %v494 = vunpack.c.h.b16 %v354
        %v495 = vunpack.c.l.b16 %v355
        %v496 = vunpack.c.h.b16 %v355
        %v497 = vunpack.c.l.b16 %v356
        %v498 = vunpack.c.h.b16 %v356
        %v499 = vunpack.c.l.b16 %v357
        %v500 = vunpack.c.h.b16 %v357
        %v501 = vunpack.c.l.b16 %v358
        %v502 = vunpack.c.h.b16 %v358
        %v503 = vunpack.c.l.b16 %v359
        %v504 = vunpack.c.h.b16 %v359
        %v505 = vunpack.c.l.b16 %v360
        %v506 = vunpack.c.h.b16 %v360
        %v507 = vunpack.c.l.b16 %v361
        %v508 = vunpack.c.h.b16 %v361
        %v509 = vunpack.c.l.b16 %v362
        %v510 = vunpack.c.h.b16 %v362
        %v511 = vunpack.c.l.b16 %v363
        %v512 = vunpack.c.h.b16 %v363
        %v513 = vunpack.c.l.b16 %v364
        %v514 = vunpack.c.h.b16 %v364
        %v515 = vunpack.c.l.b16 %v365
        %v516 = vunpack.c.h.b16 %v365
        %v517 = vunpack.c.l.b16 %v366
        %v518 = vunpack.c.h.b16 %v366
        %v519 = vunpack.c.l.b16 %v367
        %v520 = vunpack.c.h.b16 %v367
        %v521 = vunpack.c.l.b16 %v368
        %v522 = vunpack.c.h.b16 %v368
        %v523 = vunpack.c.l.b16 %v369
        %v524 = vunpack.c.h.b16 %v369
        %v525 = vunpack.c.l.b16 %v370
        %v526 = vunpack.c.h.b16 %v370
        %v527 = vunpack.c.l.b16 %v371
        %v528 = vunpack.c.h.b16 %v371
        %v529 = vunpack.c.l.b16 %v372
        %v530 = vunpack.c.h.b16 %v372
        %v531 = vunpack.c.l.b16 %v373
        %v532 = vunpack.c.h.b16 %v373
        %v533 = vunpack.c.l.b16 %v374
        %v534 = vunpack.c.h.b16 %v374
        %v535 = vunpack.c.l.b16 %v375
        %v536 = vunpack.c.h.b16 %v375
        %v537 = vunpack.c.l.b16 %v376
        %v538 = vunpack.c.h.b16 %v376
        %v539 = vunpack.c.l.b16 %v377
        %v540 = vunpack.c.h.b16 %v377
        %v541 = vunpack.c.l.b16 %v378
        %v542 = vunpack.c.h.b16 %v378
        %v543 = vunpack.c.l.b16 %v379
        %v544 = vunpack.c.h.b16 %v379
        %v545 = vunpack.c.l.b16 %v380
        %v546 = vunpack.c.h.b16 %v380
        %v547 = vunpack.c.l.b16 %v381
        %v548 = vunpack.c.h.b16 %v381
        %v549 = vunpack.c.l.b16 %v382
        %v550 = vunpack.c.h.b16 %v382
        %v551 = vunpack.c.l.b16 %v383
        %v552 = vunpack.c.h.b16 %v383
        %v553 = vunpack.c.l.b16 %v384
        %v554 = vunpack.c.h.b16 %v384
        %v555 = vunpack.c.l.b16 %v385
        %v556 = vunpack.c.h.b16 %v385
        %v557 = vunpack.c.l.b16 %v386
        %v558 = vunpack.c.h.b16 %v386
        %v559 = vunpack.c.l.b16 %v387
        %v560 = vunpack.c.h.b16 %v387
        %v561 = vunpack.c.l.b16 %v388
        %v562 = vunpack.c.h.b16 %v388
        %v563 = vunpack.c.l.b16 %v389
        %v564 = vunpack.c.h.b16 %v389
        %v565 = vunpack.c.l.b16 %v390
        %v566 = vunpack.c.h.b16 %v390
        %v567 = vpack.c.b16 %v473, %v471
        %v568 = vpack.c.b16 %v474, %v472
        %v569 = vpack.c.b16 %v477, %v475
        %v570 = vpack.c.b16 %v478, %v476
        %v571 = vpack.c.b16 %v481, %v479
        %v572 = vpack.c.b16 %v482, %v480
        %v573 = vpack.c.b16 %v485, %v483
        %v574 = vpack.c.b16 %v486, %v484
        %v575 = vpack.c.b16 %v489, %v487
        %v576 = vpack.c.b16 %v490, %v488
        %v577 = vpack.c.b16 %v493, %v491
        %v578 = vpack.c.b16 %v494, %v492
        %v579 = vpack.c.b16 %v497, %v495
        %v580 = vpack.c.b16 %v498, %v496
        %v581 = vpack.c.b16 %v501, %v499
        %v582 = vpack.c.b16 %v502, %v500
        %v583 = vpack.c.b16 %v505, %v503
        %v584 = vpack.c.b16 %v506, %v504
        %v585 = vpack.c.b16 %v509, %v507
        %v586 = vpack.c.b16 %v510, %v508
        %v587 = vpack.c.b16 %v513, %v511
        %v588 = vpack.c.b16 %v514, %v512
        %v589 = vpack.c.b16 %v517, %v515
        %v590 = vpack.c.b16 %v518, %v516
        %v591 = vpack.c.b16 %v521, %v519
        %v592 = vpack.c.b16 %v522, %v520
        %v593 = vpack.c.b16 %v525, %v523
        %v594 = vpack.c.b16 %v526, %v524
        %v595 = vpack.c.b16 %v529, %v527
        %v596 = vpack.c.b16 %v530, %v528
        %v597 = vpack.c.b16 %v533, %v531
        %v598 = vpack.c.b16 %v534, %v532
        %v599 = vpack.c.b16 %v537, %v535
        %v600 = vpack.c.b16 %v538, %v536
        %v601 = vpack.c.b16 %v541, %v539
        %v602 = vpack.c.b16 %v542, %v540
        %v603 = vpack.c.b16 %v545, %v543
        %v604 = vpack.c.b16 %v546, %v544
        %v605 = vpack.c.b16 %v549, %v547
        %v606 = vpack.c.b16 %v550, %v548
        %v607 = vpack.c.b16 %v553, %v551
        %v608 = vpack.c.b16 %v554, %v552
        %v609 = vpack.c.b16 %v557, %v555
        %v610 = vpack.c.b16 %v558, %v556
        %v611 = vpack.c.b16 %v561, %v559
        %v612 = vpack.c.b16 %v562, %v560
        %v613 = vpack.c.b16 %v565, %v563
        %v614 = vpack.c.b16 %v566, %v564
        %663 = vmatprep.subr.bf16.mxu0 %v568
        %664 = vmatpush1.bf16.msra.mxu0 %v567
        %665 = vmatprep.subr.bf16.mxu0 %v570
        %666 = vmatpush1.bf16.msra.mxu0 %v569
        %667 = vmatprep.subr.bf16.mxu0 %v572
        %668 = vmatpush1.bf16.msra.mxu0 %v571
        %669 = vmatprep.subr.bf16.mxu0 %v574
        %670 = vmatpush1.bf16.msra.mxu0 %v573
        %671 = vmatprep.subr.bf16.mxu0 %v576
        %672 = vmatpush1.bf16.msra.mxu0 %v575
        %673 = vmatprep.subr.bf16.mxu0 %v578
        %674 = vmatpush1.bf16.msra.mxu0 %v577
        %675 = vmatprep.subr.bf16.mxu0 %v580
        %676 = vmatpush1.bf16.msra.mxu0 %v579
        %677 = vmatprep.subr.bf16.mxu0 %v582
        %678 = vmatpush1.bf16.msra.mxu0 %v581
        %679 = vmatprep.subr.bf16.mxu0 %v584
        %680 = vmatpush1.bf16.msra.mxu0 %v583
        %681 = vmatprep.subr.bf16.mxu0 %v586
        %682 = vmatpush1.bf16.msra.mxu0 %v585
        %683 = vmatprep.subr.bf16.mxu0 %v588
        %684 = vmatpush1.bf16.msra.mxu0 %v587
        %685 = vmatprep.subr.bf16.mxu0 %v590
        %686 = vmatpush1.bf16.msra.mxu0 %v589
        %687 = vmatprep.subr.bf16.mxu0 %v592
        %688 = vmatpush1.bf16.msra.mxu0 %v591
        %689 = vmatprep.subr.bf16.mxu0 %v594
        %690 = vmatpush1.bf16.msra.mxu0 %v593
        %691 = vmatprep.subr.bf16.mxu0 %v596
        %692 = vmatpush1.bf16.msra.mxu0 %v595
        %693 = vmatprep.subr.bf16.mxu0 %v598
        %694 = vmatpush1.bf16.msra.mxu0 %v597
        %695 = vmatprep.mubr.bf16.mxu0 %v412
        %696 = vmatmul.mubr.bf16.gmra.mrb[0].mxu0 %v411
        %v697 = vpop.f32.mrb[0].mxu0
        %v698 = vadd.f32 0.0, %v697
        %v699 = vpop.f32.mrb[0].mxu0
        %v700 = vadd.f32 0.0, %v699
        %v701 = vpop.f32.mrb[0].mxu0
        %v702 = vadd.f32 0.0, %v701
        %v703 = vpop.f32.mrb[0].mxu0
        %v704 = vadd.f32 0.0, %v703
        %705 = vmatprep.mubr.bf16.mxu0 %v415
        %706 = vmatmul.mubr.bf16.gmra.mrb[0].mxu0 %v414
        %v707 = vpop.f32.mrb[0].mxu0
        %v708 = vadd.f32 0.0, %v707
        %v709 = vpop.f32.mrb[0].mxu0
        %v710 = vadd.f32 0.0, %v709
        %v711 = vpop.f32.mrb[0].mxu0
        %v712 = vadd.f32 0.0, %v711
        %v713 = vpop.f32.mrb[0].mxu0
        %v714 = vadd.f32 0.0, %v713
        %715 = vdwg.mxu0
        %716 = vmatprep.subr.bf16.mxu0 %v600
        %717 = vmatpush1.bf16.msra.mxu0 %v599
        %718 = vmatprep.subr.bf16.mxu0 %v602
        %719 = vmatpush1.bf16.msra.mxu0 %v601
        %720 = vmatprep.subr.bf16.mxu0 %v604
        %721 = vmatpush1.bf16.msra.mxu0 %v603
        %722 = vmatprep.subr.bf16.mxu0 %v606
        %723 = vmatpush1.bf16.msra.mxu0 %v605
        %724 = vmatprep.subr.bf16.mxu0 %v608
        %725 = vmatpush1.bf16.msra.mxu0 %v607
        %726 = vmatprep.subr.bf16.mxu0 %v610
        %727 = vmatpush1.bf16.msra.mxu0 %v609
        %728 = vmatprep.subr.bf16.mxu0 %v612
        %729 = vmatpush1.bf16.msra.mxu0 %v611
        %730 = vmatprep.subr.bf16.mxu0 %v614
        %731 = vmatpush1.bf16.msra.mxu0 %v613
        %732 = vmatprep.subr.bf16.mxu0 0
        %733 = vmatpush1.bf16.msra.mxu0 0
        %734 = vmatprep.subr.bf16.mxu0 0
        %735 = vmatpush1.bf16.msra.mxu0 0
        %736 = vmatprep.subr.bf16.mxu0 0
        %737 = vmatpush1.bf16.msra.mxu0 0
        %738 = vmatprep.subr.bf16.mxu0 0
        %739 = vmatpush1.bf16.msra.mxu0 0
        %740 = vmatprep.subr.bf16.mxu0 0
        %741 = vmatpush1.bf16.msra.mxu0 0
        %742 = vmatprep.subr.bf16.mxu0 0
        %743 = vmatpush1.bf16.msra.mxu0 0
        %744 = vmatprep.subr.bf16.mxu0 0
        %745 = vmatpush1.bf16.msra.mxu0 0
        %746 = vmatprep.subr.bf16.mxu0 0
        %747 = vmatpush1.bf16.msra.mxu0 0
        %748 = vmatprep.mubr.bf16.mxu0 0
        %749 = vmatmul.mubr.bf16.gmra.mrb[0].mxu0 %v413
        %v750 = vpop.f32.mrb[0].mxu0
        %v751 = vadd.f32 %v698, %v750
        %v752 = vpop.f32.mrb[0].mxu0
        %v753 = vadd.f32 %v700, %v752
        %v754 = vpop.f32.mrb[0].mxu0
        %v755 = vadd.f32 %v702, %v754
        %v756 = vpop.f32.mrb[0].mxu0
        %v757 = vadd.f32 %v704, %v756
        %758 = vmatprep.mubr.bf16.mxu0 0
        %759 = vmatmul.mubr.bf16.gmra.mrb[0].mxu0 %v416
        %v760 = vpop.f32.mrb[0].mxu0
        %v761 = vadd.f32 %v708, %v760
        %v762 = vpop.f32.mrb[0].mxu0
        %v763 = vadd.f32 %v710, %v762
        %v764 = vpop.f32.mrb[0].mxu0
        %v765 = vadd.f32 %v712, %v764
        %v766 = vpop.f32.mrb[0].mxu0
        %v767 = vadd.f32 %v714, %v766
        %768 = vdwg.mxu0
        %v769 = vadd.f32 %v327, %v751
        %v770 = vadd.f32 %v328, %v753
        %v771 = vadd.f32 %v329, %v755
        %v772 = vadd.f32 %v330, %v757
        %v773 = vadd.f32 %v331, %v761
        %v774 = vadd.f32 %v332, %v763
        %v775 = vadd.f32 %v333, %v765
        %v776 = vadd.f32 %v334, %v767
        %777 = vst [vmem:[%s311] sm:$0xff] %v769
        %778 = vst [vmem:[%s311 + $0x8] sm:$0xff] %v770
        %779 = vst [vmem:[%s311 + $0x10] sm:$0xff] %v771
        %780 = vst [vmem:[%s311 + $0x18] sm:$0xff] %v772
        %781 = vst [vmem:[%s311 + $0x20] sm:$0xff] %v773
        %782 = vst [vmem:[%s311 + $0x28] sm:$0xff] %v774
        %783 = vst [vmem:[%s311 + $0x30] sm:$0xff] %v775
        %784 = vst [vmem:[%s311 + $0x38] sm:$0xff] %v776
        %p785 = scmp.eq.s32.totalorder %s21, 8
        // Predicated region
        $region63: #{alexnet_cbam3_forward.24} parent=53 // pred_check
          %p786 = pneg %p785
        $region64: #{alexnet_cbam3_forward.24} parent=53 // pred_check_branch
          %788 = sbr.rel (%p786) target = $region66
        $region65: #{alexnet_cbam3_forward.24} parent=53 // pred_region
          %v789 = vld [vmem:[%s311] sm:$0xff]
          %v790 = vld [vmem:[%s311 + $0x8] sm:$0xff]
          %v791 = vld [vmem:[%s311 + $0x10] sm:$0xff]
          %v792 = vld [vmem:[%s311 + $0x18] sm:$0xff]
          %v793 = vld [vmem:[%s311 + $0x20] sm:$0xff]
          %v794 = vld [vmem:[%s311 + $0x28] sm:$0xff]
          %v795 = vld [vmem:[%s311 + $0x30] sm:$0xff]
          %v796 = vld [vmem:[%s311 + $0x38] sm:$0xff]
          %v797 = vld [vmem:[%s300] sm:$0x3]
          %v799 = vlaneseq
          %v800 = vshrl.u32 %v799, 7
          %v801 = vsub.s32 0, %v800
          %v802 = vrot.slane %v797, %v801
          %v803 = vlaneseq
          %v804 = vshrl.u32 %v803, 7
          %v805 = vsub.s32 1, %v804
          %v806 = vrot.slane %v797, %v805
          %v809 = vadd.f32 %v789, %v802
          %v810 = vadd.f32 %v790, %v806
          %v811 = vadd.f32 %v791, %v802
          %v812 = vadd.f32 %v792, %v806
          %v813 = vadd.f32 %v793, %v802
          %v814 = vadd.f32 %v794, %v806
          %v815 = vadd.f32 %v795, %v802
          %v816 = vadd.f32 %v796, %v806
          %v817 = vmax.f32 %v809, 0.0
          %v818 = vmax.f32 %v810, 0.0
          %v819 = vmax.f32 %v811, 0.0
          %v820 = vmax.f32 %v812, 0.0
          %v821 = vmax.f32 %v813, 0.0
          %v822 = vmax.f32 %v814, 0.0
          %v823 = vmax.f32 %v815, 0.0
          %v824 = vmax.f32 %v816, 0.0
          %825 = vst [vmem:[%s311] sm:$0xff] %v817
          %826 = vst [vmem:[%s311 + $0x8] sm:$0xff] %v818
          %827 = vst [vmem:[%s311 + $0x10] sm:$0xff] %v819
          %828 = vst [vmem:[%s311 + $0x18] sm:$0xff] %v820
          %829 = vst [vmem:[%s311 + $0x20] sm:$0xff] %v821
          %830 = vst [vmem:[%s311 + $0x28] sm:$0xff] %v822
          %831 = vst [vmem:[%s311 + $0x30] sm:$0xff] %v823
          %832 = vst [vmem:[%s311 + $0x38] sm:$0xff] %v824
        $region66: #{alexnet_cbam3_forward.24} parent=53 // pred_fallthru
          _
        %s833 = smul.u32 4, %s19
        %s834 = smul.u32 2, %s20
        %p835 = scmp.lt.s32.totalorder %s833, 3
        %s836 = scalar_select %p835, %s833, 3
        %p837 = scmp.lt.s32.totalorder %s834, 1
        %s838 = scalar_select %p837, %s834, 1
        %s839 = smul.addr %s836, 2
        %s840 = sadd.s32 %s838, %s839
        %s841 = smul.addr %s840, 8
        %s842 = scalar_lea.vmem %s3, %s841
        // Predicated region
        $region67: #{alexnet_cbam3_forward.24} parent=53 // pred_check
          %p843 = pneg %p135
        $region68: #{alexnet_cbam3_forward.24} parent=53 // pred_check_branch
          %845 = sbr.rel (%p843) target = $region70
        $region69: #{alexnet_cbam3_forward.24} parent=53 // pred_region
          %s846 = smul.u32 4, %s19
          %s847 = smul.u32 2, %s20
        $region70: #{alexnet_cbam3_forward.24} parent=53 // pred_fallthru
          _
        // Predicated region
        $region71: #{alexnet_cbam3_forward.24} parent=53 // pred_check
          %p848 = pneg %p135
        $region72: #{alexnet_cbam3_forward.24} parent=53 // pred_check_branch
          %850 = sbr.rel (%p848) target = $region74
        $region73: #{alexnet_cbam3_forward.24} parent=53 // pred_region
          %s851 = smul.u32 4, %s19
          %s852 = smul.u32 2, %s20
          %p853 = scmp.lt.s32.totalorder %s851, 3
          %s854 = scalar_select %p853, %s851, 3
          %p855 = scmp.lt.s32.totalorder %s852, 1
          %s856 = scalar_select %p855, %s852, 1
          %s857 = smul.addr %s854, 2
          %s858 = sadd.s32 %s856, %s857
          %s859 = smul.addr %s858, 8
          %s860 = scalar_lea.vmem %s3, %s859
        $region74: #{alexnet_cbam3_forward.24} parent=53 // pred_fallthru
          _
      $region54: #{alexnet_cbam3_forward.24} parent=5 // pred_fallthru
        _
      %p861 = scmp.le.s32.totalorder 2, %s9
      // Predicated region
      $region75: #{alexnet_cbam3_forward.24} parent=5 // pred_check
        %p862 = pneg %p861
      $region76: #{alexnet_cbam3_forward.24} parent=5 // pred_check_branch
        %864 = sbr.rel (%p862) target = $region78
      $region77: #{alexnet_cbam3_forward.24} parent=5 // pred_region
        %s865 = ssub.s32 %s9, 2
      $region78: #{alexnet_cbam3_forward.24} parent=5 // pred_fallthru
        _
    $region6: #{alexnet_cbam3_forward.24} parent=1 // loop_footer
      %s13 = sadd.s32 1, %s9
    $region7: #{alexnet_cbam3_forward.24} parent=1 // loop_footer_branch
      %8 = sbr.rel target = $region3
    $region8: #{alexnet_cbam3_forward.24} parent=1 // loop_exit
      _

// kernel: mul.94
$region0: #{mul.94}
  #allocation0 [shape = 's32[1]{0}', space=sflag, size = 0x4, scoped, tag = 'scoped memory for mul.94']
  %s0 = inlined_call_operand.vmem [shape: f32[2,256], index: 0, kind: input, shape index: {}]
  %s1 = inlined_call_operand.vmem [shape: f32[2,3,3,256], index: 1, kind: output, shape index: {}]
  // Predicated region
  $region2: #{mul.94} parent=0 // pred_check
    _
  $region3: #{mul.94} parent=0 // pred_check_branch
    %3 = sbr.rel (0) target = $region5
  $region4: #{mul.94} parent=0 // pred_region
    _
  $region5: #{mul.94} parent=0 // pred_fallthru
    _
  %v4 = vld [vmem:[%s0] ss:$0 sm:$0xff]
  %5 = vst [vmem:[%s1] sm:$0xf] %v4
  %s6 = scalar_lea.vmem %s0, 1
  %v7 = vld [vmem:[%s6] ss:$0 sm:$0xff]
  %s8 = scalar_lea.vmem %s1, 24
  %9 = vst [vmem:[%s8] sm:$0xf] %v7
  %s10 = scalar_lea.vmem %s1, 8
  %11 = vst [vmem:[%s10] sm:$0xf] %v4
  %s12 = scalar_lea.vmem %s1, 32
  %13 = vst [vmem:[%s12] sm:$0xf] %v7
  %s14 = scalar_lea.vmem %s1, 16
  %15 = vst [vmem:[%s14] sm:$0xf] %v4
  %s16 = scalar_lea.vmem %s1, 40
  %17 = vst [vmem:[%s16] sm:$0xf] %v7
  %s18 = scalar_lea.vmem %s0, 2
  %v19 = vld [vmem:[%s18] ss:$0 sm:$0xff]
  %s20 = scalar_lea.vmem %s1, 4
  %21 = vst [vmem:[%s20] sm:$0xf] %v19
  %s22 = scalar_lea.vmem %s0, 2
  %s23 = scalar_lea.vmem %s22, 1
  %v24 = vld [vmem:[%s23] ss:$0 sm:$0xff]
  %s25 = scalar_lea.vmem %s1, 28
  %26 = vst [vmem:[%s25] sm:$0xf] %v24
  %s27 = scalar_lea.vmem %s1, 12
  %28 = vst [vmem:[%s27] sm:$0xf] %v19
  %s29 = scalar_lea.vmem %s1, 36
  %30 = vst [vmem:[%s29] sm:$0xf] %v24
  %s31 = scalar_lea.vmem %s1, 20
  %32 = vst [vmem:[%s31] sm:$0xf] %v19
  %s33 = scalar_lea.vmem %s1, 44
  %34 = vst [vmem:[%s33] sm:$0xf] %v24

// kernel: alexnet_cbam3_forward.25
$region0: #{alexnet_cbam3_forward.25}
  #allocation0 [shape = 'u32[]', space=smem, size = 0x4, offset = 0x4, fixed_abs, tag = 'smem constant byte address 0x4 - core index']
  #allocation1 [shape = 'u32[144,128]{1,0:T(1,128)}', space=vmem, size = 0x12000, scoped, tag = 'internal scratch']
  %s0 = inlined_call_operand.hbm [shape: bf16[16,9216], index: 0, kind: input, shape index: {}]
  %s1 = inlined_call_operand.hbm [shape: bf16[9216,4096], index: 1, kind: input, shape index: {}]
  %s2 = inlined_call_operand.hbm [shape: f32[1,4096], index: 2, kind: input, shape index: {}]
  %s3 = inlined_call_operand.hbm [shape: f32[16,4096], index: 3, kind: output, shape index: {}]
  %s4 = sld [smem:[#allocation0]]
  $region65: #{alexnet_cbam3_forward.25} parent=0
    _
  %s6 = ssub.s32 1, %s4
  %s7 = scalar_select 0, %s6, %s4
  $region1: #{alexnet_cbam3_forward.25} parent=0
    #allocation2 [shape = 'u8[32768]{0}', space=vmem, size = 0x8000, scoped, tag = 'input window, operand 0']
    #allocation3 [shape = 's32[2]{0}', space=sflag, size = 0x8, scoped, tag = 'scoped memory for alexnet_cbam3_forward.25']
    #allocation4 [shape = 's32[2]{0}', space=sflag, size = 0x8, scoped, tag = 'scoped memory for alexnet_cbam3_forward.25']
    #allocation5 [shape = 'u8[1048576]{0}', space=vmem, size = 0x100000, scoped, tag = 'input window, operand 1']
    #allocation6 [shape = 's32[2]{0}', space=sflag, size = 0x8, scoped, tag = 'scoped memory for alexnet_cbam3_forward.25']
    #allocation7 [shape = 'u8[4096]{0}', space=vmem, size = 0x1000, scoped, tag = 'input window, operand 2']
    #allocation8 [shape = 'u8[65536]{0}', space=vmem, size = 0x10000, scoped, tag = 'output window, operand 0']
    %8 = vsyncpa [#allocation3], 0
    %s9 = scalar_lea.sflag [#allocation3], 1
    %10 = vsyncpa %s9, 0
    %11 = vsyncpa [#allocation6], 0
    %s12 = scalar_lea.sflag [#allocation6], 1
    %13 = vsyncpa %s12, 0
    %14 = vsyncpa [#allocation4], 0
    %s15 = scalar_lea.sflag [#allocation4], 1
    %16 = vsyncpa %s15, 0
    loop: start=0, step=1, limit=146
    $region2: #{alexnet_cbam3_forward.25} parent=1 // loop_pre_header
      _
    $region3: #{alexnet_cbam3_forward.25} parent=1 // loop_header
      %s18 = sphi 0, %s22
      %p19 = scmp.ge.s32.totalorder %s18, 146
      %s25 = sphi 0, %s44
      %s26 = sphi 0, %s40
      %s27 = sphi 0, %s36
      %s28 = sphi 0, %s25
      %s29 = sphi 0, %s26
      %s30 = sphi 0, %s27
      %s31 = sphi 0, %s28
      %s32 = sphi 0, %s29
      %s33 = sphi 0, %s30
      %s49 = sphi 0, %s51
      %s52 = sphi 0, %s49
      %s53 = sphi 0, %s52
      %s69 = sphi 0, %s53
      %s77 = sphi 0, %s79
      %s80 = sphi 0, %s77
      %s81 = sphi 0, %s80
      %s97 = sphi 0, %s81
      %s103 = sphi 0, %s105
      %s106 = sphi 0, %s103
      %s107 = sphi 0, %s106
      %s123 = sphi 0, %s107
      %s131 = sphi 0, %s133
      %s134 = sphi 0, %s131
      %s135 = sphi 0, %s134
      %s151 = sphi 0, %s135
    $region4: #{alexnet_cbam3_forward.25} parent=1 // loop_header_branch
      %21 = sbr.rel (%p19) target = $region8
    $region5: #{alexnet_cbam3_forward.25} parent=1 // loop_body
      %s23 = ssub.s32 %s18, 1
      %s24 = ssub.s32 %s18, 2
      %s34 = sadd.s32 1, %s27
      %p35 = scmp.ge.s32.totalorder %s34, 18
      %s36 = scalar_select %p35, 0, %s34
      %s37 = sadd.s32 1, %s26
      %s38 = scalar_select %p35, %s37, %s26
      %p39 = scmp.ge.s32.totalorder %s38, 8
      %s40 = scalar_select %p39, 0, %s38
      %s41 = sadd.s32 1, %s25
      %s42 = scalar_select %p39, %s41, %s25
      %p43 = scmp.ge.s32.totalorder %s42, 1
      %s44 = scalar_select %p43, 0, %s42
      %s45 = ssub.s32 %s25, %s44
      %s46 = ssub.s32 %s27, %s36
      %s47 = sor.u32 %s45, %s46
      %p48 = scmp.eq.s32.totalorder %s47, 0
      %s50 = sadd.s32 %s49, 1
      %s51 = scalar_select %p48, %s49, %s50
      %p54 = pneg %p48
      %p55 = scmp.eq.s32.totalorder %s18, 143
      %p56 = por %p54, %p55
      %p57 = scmp.ne.s32.totalorder %s49, %s52
      %p58 = scmp.eq.s32.totalorder %s18, 0
      %p59 = por %p57, %p58
      %p60 = scmp.ne.s32.totalorder %s49, %s52
      %p61 = scmp.eq.s32.totalorder %s23, 143
      %p62 = por %p60, %p61
      %p63 = scmp.ne.s32.totalorder %s52, %s53
      %p64 = scmp.eq.s32.totalorder %s23, 0
      %p65 = por %p63, %p64
      %p66 = scmp.ne.s32.totalorder %s52, %s53
      %p67 = scmp.eq.s32.totalorder %s24, 143
      %p68 = por %p66, %p67
      %p70 = scmp.ne.s32.totalorder %s53, %s69
      %p71 = scmp.eq.s32.totalorder %s24, 0
      %p72 = por %p70, %p71
      %s73 = ssub.s32 %s27, %s36
      %s74 = ssub.s32 %s26, %s40
      %s75 = sor.u32 %s73, %s74
      %p76 = scmp.eq.s32.totalorder %s75, 0
      %s78 = sadd.s32 %s77, 1
      %s79 = scalar_select %p76, %s77, %s78
      %p82 = pneg %p76
      %p83 = scmp.eq.s32.totalorder %s18, 143
      %p84 = por %p82, %p83
      %p85 = scmp.ne.s32.totalorder %s77, %s80
      %p86 = scmp.eq.s32.totalorder %s18, 0
      %p87 = por %p85, %p86
      %p88 = scmp.ne.s32.totalorder %s77, %s80
      %p89 = scmp.eq.s32.totalorder %s23, 143
      %p90 = por %p88, %p89
      %p91 = scmp.ne.s32.totalorder %s80, %s81
      %p92 = scmp.eq.s32.totalorder %s23, 0
      %p93 = por %p91, %p92
      %p94 = scmp.ne.s32.totalorder %s80, %s81
      %p95 = scmp.eq.s32.totalorder %s24, 143
      %p96 = por %p94, %p95
      %p98 = scmp.ne.s32.totalorder %s81, %s97
      %p99 = scmp.eq.s32.totalorder %s24, 0
      %p100 = por %p98, %p99
      %s101 = ssub.s32 %s26, %s40
      %p102 = scmp.eq.s32.totalorder %s101, 0
      %s104 = sadd.s32 %s103, 1
      %s105 = scalar_select %p102, %s103, %s104
      %p108 = pneg %p102
      %p109 = scmp.eq.s32.totalorder %s18, 143
      %p110 = por %p108, %p109
      %p111 = scmp.ne.s32.totalorder %s103, %s106
      %p112 = scmp.eq.s32.totalorder %s18, 0
      %p113 = por %p111, %p112
      %p114 = scmp.ne.s32.totalorder %s103, %s106
      %p115 = scmp.eq.s32.totalorder %s23, 143
      %p116 = por %p114, %p115
      %p117 = scmp.ne.s32.totalorder %s106, %s107
      %p118 = scmp.eq.s32.totalorder %s23, 0
      %p119 = por %p117, %p118
      %p120 = scmp.ne.s32.totalorder %s106, %s107
      %p121 = scmp.eq.s32.totalorder %s24, 143
      %p122 = por %p120, %p121
      %p124 = scmp.ne.s32.totalorder %s107, %s123
      %p125 = scmp.eq.s32.totalorder %s24, 0
      %p126 = por %p124, %p125
      %s127 = ssub.s32 %s25, %s44
      %s128 = ssub.s32 %s26, %s40
      %s129 = sor.u32 %s127, %s128
      %p130 = scmp.eq.s32.totalorder %s129, 0
      %s132 = sadd.s32 %s131, 1
      %s133 = scalar_select %p130, %s131, %s132
      %p136 = pneg %p130
      %p137 = scmp.eq.s32.totalorder %s18, 143
      %p138 = por %p136, %p137
      %p139 = scmp.ne.s32.totalorder %s131, %s134
      %p140 = scmp.eq.s32.totalorder %s18, 0
      %p141 = por %p139, %p140
      %p142 = scmp.ne.s32.totalorder %s131, %s134
      %p143 = scmp.eq.s32.totalorder %s23, 143
      %p144 = por %p142, %p143
      %p145 = scmp.ne.s32.totalorder %s134, %s135
      %p146 = scmp.eq.s32.totalorder %s23, 0
      %p147 = por %p145, %p146
      %p148 = scmp.ne.s32.totalorder %s134, %s135
      %p149 = scmp.eq.s32.totalorder %s24, 143
      %p150 = por %p148, %p149
      %p152 = scmp.ne.s32.totalorder %s135, %s151
      %p153 = scmp.eq.s32.totalorder %s24, 0
      %p154 = por %p152, %p153
      %p155 = scmp.le.s32.totalorder 1, %s18
      %p156 = scmp.lt.s32.totalorder %s18, 145
      %p157 = pnand %p155, %p156
      %p158 = pneg %p157
      // Predicated region
      $region9: #{alexnet_cbam3_forward.25} parent=5 // pred_check
        _
      $region10: #{alexnet_cbam3_forward.25} parent=5 // pred_check_branch
        %160 = sbr.rel (%p157) target = $region12
      $region11: #{alexnet_cbam3_forward.25} parent=5 // pred_region
        %s161 = ssub.s32 %s18, 1
      $region12: #{alexnet_cbam3_forward.25} parent=5 // pred_fallthru
        _
      %p162 = scmp.lt.s32.totalorder %s18, 144
      // Predicated region
      $region13: #{alexnet_cbam3_forward.25} parent=5 // pred_check
        %p163 = pneg %p162
      $region14: #{alexnet_cbam3_forward.25} parent=5 // pred_check_branch
        %165 = sbr.rel (%p163) target = $region16
      $region15: #{alexnet_cbam3_forward.25} parent=5 // pred_region
        // Predicated region
        $region17: #{alexnet_cbam3_forward.25} parent=15 // pred_check
          %p166 = pneg %p59
        $region18: #{alexnet_cbam3_forward.25} parent=15 // pred_check_branch
          %168 = sbr.rel (%p166) target = $region20
        $region19: #{alexnet_cbam3_forward.25} parent=15 // pred_region
          %s169 = sand.u32 %s49, 1
          %s170 = scalar_lea.sflag [#allocation3], %s169
          %s171 = sand.u32 %s49, 1
          %s172 = smul.addr %s171, 32
          %s173 = scalar_lea.vmem [#allocation2], %s172
          %s174 = smul.u32 2, %s25
          %s175 = smul.u32 4, %s27
          %s177 = ssub.s32 512, 512
          %178 = vsyncadd %s170, %s177
          %s179 = smul.addr %s174, 72
          %s180 = sadd.s32 %s175, %s179
          %s181 = smul.addr %s180, 64
          %s182 = scalar_lea.hbm %s0, %s181
          %s183 = sshll.u32 %s173, 4
          %s184 = int_to_ptr.vmem [resolvable:$true] %s183
          %189 = dma.hbm_to_vmem [thread:$0]  %s182, 512, %s184, %s170, 4608, 256, 16
        $region20: #{alexnet_cbam3_forward.25} parent=15 // pred_fallthru
          _
        // Predicated region
        $region21: #{alexnet_cbam3_forward.25} parent=15 // pred_check
          %p190 = pneg %p87
        $region22: #{alexnet_cbam3_forward.25} parent=15 // pred_check_branch
          %192 = sbr.rel (%p190) target = $region24
        $region23: #{alexnet_cbam3_forward.25} parent=15 // pred_region
          %s193 = sand.u32 %s18, 1
          %s194 = scalar_lea.sflag [#allocation6], %s193
          %s195 = sand.u32 %s77, 1
          %s196 = smul.addr %s195, 1024
          %s197 = scalar_lea.vmem [#allocation5], %s196
          %s198 = smul.u32 64, %s27
          %s199 = smul.u32 4, %s26
          %s201 = ssub.s32 16384, 16384
          %202 = vsyncadd %s194, %s201
          %s203 = smul.addr %s198, 32
          %s204 = sadd.s32 %s199, %s203
          %s205 = smul.addr %s204, 64
          %s206 = scalar_lea.hbm %s1, %s205
          %s207 = sshll.u32 %s197, 4
          %s208 = int_to_ptr.vmem [resolvable:$true] %s207
          %213 = dma.hbm_to_vmem [thread:$0]  %s206, 16384, %s208, %s194, 2048, 256, 16
        $region24: #{alexnet_cbam3_forward.25} parent=15 // pred_fallthru
          _
        // Predicated region
        $region25: #{alexnet_cbam3_forward.25} parent=15 // pred_check
          %p214 = pneg %p113
        $region26: #{alexnet_cbam3_forward.25} parent=15 // pred_check_branch
          %216 = sbr.rel (%p214) target = $region28
        $region27: #{alexnet_cbam3_forward.25} parent=15 // pred_region
          %s217 = sand.u32 %s18, 1
          %s218 = scalar_lea.sflag [#allocation6], %s217
          %s219 = sand.u32 %s103, 1
          %s220 = smul.addr %s219, 4
          %s221 = scalar_lea.vmem [#allocation7], %s220
          %s222 = smul.u32 4, %s26
          %s224 = ssub.s32 64, 64
          %225 = vsyncadd %s218, %s224
          %s226 = smul.addr %s222, 16
          %s227 = scalar_lea.hbm %s2, %s226
          %s229 = sshll.u32 %s221, 4
          %s230 = int_to_ptr.vmem [resolvable:$true] %s229
          %232 = dma.hbm_to_vmem [thread:$0]  %s227, 64, %s230, %s218
        $region28: #{alexnet_cbam3_forward.25} parent=15 // pred_fallthru
          _
      $region16: #{alexnet_cbam3_forward.25} parent=5 // pred_fallthru
        _
      %p233 = scmp.le.s32.totalorder 1, %s18
      %p234 = scmp.lt.s32.totalorder %s18, 145
      %p235 = pnand %p233, %p234
      %p236 = pneg %p235
      // Predicated region
      $region29: #{alexnet_cbam3_forward.25} parent=5 // pred_check
        _
      $region30: #{alexnet_cbam3_forward.25} parent=5 // pred_check_branch
        %238 = sbr.rel (%p235) target = $region32
      $region31: #{alexnet_cbam3_forward.25} parent=5 // pred_region
        %s239 = ssub.s32 %s18, 1
        %s240 = sand.u32 %s52, 1
        %s241 = scalar_lea.sflag [#allocation3], %s240
        %s242 = sand.u32 %s52, 1
        %s243 = smul.addr %s242, 32
        %s244 = scalar_lea.vmem [#allocation2], %s243
        // Predicated region
        $region33: #{alexnet_cbam3_forward.25} parent=31 // pred_check
          %p245 = pneg %p65
        $region34: #{alexnet_cbam3_forward.25} parent=31 // pred_check_branch
          %247 = sbr.rel (%p245) target = $region36
        $region35: #{alexnet_cbam3_forward.25} parent=31 // pred_region
          %248 = dma.done %s241, 512
        $region36: #{alexnet_cbam3_forward.25} parent=31 // pred_fallthru
          _
        %s249 = sand.u32 %s23, 1
        %s250 = scalar_lea.sflag [#allocation6], %s249
        %s251 = sand.u32 %s80, 1
        %s252 = smul.addr %s251, 1024
        %s253 = scalar_lea.vmem [#allocation5], %s252
        // Predicated region
        $region37: #{alexnet_cbam3_forward.25} parent=31 // pred_check
          %p254 = pneg %p93
        $region38: #{alexnet_cbam3_forward.25} parent=31 // pred_check_branch
          %256 = sbr.rel (%p254) target = $region40
        $region39: #{alexnet_cbam3_forward.25} parent=31 // pred_region
          %257 = dma.done %s250, 16384
        $region40: #{alexnet_cbam3_forward.25} parent=31 // pred_fallthru
          _
        %s258 = sand.u32 %s23, 1
        %s259 = scalar_lea.sflag [#allocation6], %s258
        %s260 = sand.u32 %s106, 1
        %s261 = smul.addr %s260, 4
        %s262 = scalar_lea.vmem [#allocation7], %s261
        // Predicated region
        $region41: #{alexnet_cbam3_forward.25} parent=31 // pred_check
          %p263 = pneg %p119
        $region42: #{alexnet_cbam3_forward.25} parent=31 // pred_check_branch
          %265 = sbr.rel (%p263) target = $region44
        $region43: #{alexnet_cbam3_forward.25} parent=31 // pred_region
          %266 = dma.done %s259, 64
        $region44: #{alexnet_cbam3_forward.25} parent=31 // pred_fallthru
          _
        %s267 = sand.u32 %s52, 1
        %s268 = scalar_lea.sflag [#allocation3], %s267
        %s269 = sand.u32 %s52, 1
        %s270 = smul.addr %s269, 32
        %s271 = scalar_lea.vmem [#allocation2], %s270
        %p272 = pneg %p65
        %p273 = pneg %p62
        %s274 = sand.u32 %s23, 1
        %s275 = scalar_lea.sflag [#allocation6], %s274
        %s276 = sand.u32 %s80, 1
        %s277 = smul.addr %s276, 1024
        %s278 = scalar_lea.vmem [#allocation5], %s277
        %p279 = pneg %p93
        %p280 = pneg %p90
        %s281 = sand.u32 %s23, 1
        %s282 = scalar_lea.sflag [#allocation6], %s281
        %s283 = sand.u32 %s106, 1
        %s284 = smul.addr %s283, 4
        %s285 = scalar_lea.vmem [#allocation7], %s284
        %p286 = pneg %p119
        %p287 = pneg %p116
        %p288 = pneg %p147
        %p289 = pneg %p144
        %s290 = sand.u32 %s134, 1
        %s291 = scalar_lea.sflag [#allocation4], %s290
        %s292 = sand.u32 %s134, 1
        %s293 = smul.addr %s292, 64
        %s294 = scalar_lea.vmem [#allocation8], %s293
        %s295 = smul.u32 2, %s28
        %s296 = smul.u32 4, %s30
        %s297 = smul.u32 64, %s30
        %s298 = smul.u32 4, %s29
        %s299 = smul.u32 4, %s29
        %s300 = smul.u32 2, %s28
        %s301 = smul.u32 4, %s29
        %p302 = scmp.eq.s32.totalorder %s30, 0
        // Predicated region
        $region45: #{alexnet_cbam3_forward.25} parent=31 // pred_check
          %p303 = pneg %p302
        $region46: #{alexnet_cbam3_forward.25} parent=31 // pred_check_branch
          %305 = sbr.rel (%p303) target = $region48
        $region47: #{alexnet_cbam3_forward.25} parent=31 // pred_region
          %306 = vst [vmem:[%s294] sm:$0xff] 0.0
          %307 = vst [vmem:[%s294 + $0x8] sm:$0xff] 0.0
          %308 = vst [vmem:[%s294 + $0x10] sm:$0xff] 0.0
          %309 = vst [vmem:[%s294 + $0x18] sm:$0xff] 0.0
          %310 = vst [vmem:[%s294 + $0x20] sm:$0xff] 0.0
          %311 = vst [vmem:[%s294 + $0x28] sm:$0xff] 0.0
          %312 = vst [vmem:[%s294 + $0x30] sm:$0xff] 0.0
          %313 = vst [vmem:[%s294 + $0x38] sm:$0xff] 0.0
        $region48: #{alexnet_cbam3_forward.25} parent=31 // pred_fallthru
          _
        %v314 = vld [vmem:[%s294] sm:$0xff]
        %v315 = vld [vmem:[%s294 + $0x8] sm:$0xff]
        %v316 = vld [vmem:[%s294 + $0x10] sm:$0xff]
        %v317 = vld [vmem:[%s294 + $0x18] sm:$0xff]
        %v318 = vld [vmem:[%s294 + $0x20] sm:$0xff]
        %v319 = vld [vmem:[%s294 + $0x28] sm:$0xff]
        %v320 = vld [vmem:[%s294 + $0x30] sm:$0xff]
        %v321 = vld [vmem:[%s294 + $0x38] sm:$0xff]
        %v322 = vld [vmem:[%s244] sm:$0xff]
        %v323 = vld [vmem:[%s244 + $0x8] sm:$0xff]
        %v324 = vld [vmem:[%s244 + $0x10] sm:$0xff]
        %v325 = vld [vmem:[%s244 + $0x18] sm:$0xff]
        %v326 = vld [vmem:[%s253] sm:$0xff]
        %v327 = vld [vmem:[%s253 + $0x8] sm:$0xff]
        %v328 = vld [vmem:[%s253 + $0x10] sm:$0xff]
        %v329 = vld [vmem:[%s253 + $0x18] sm:$0xff]
        %v330 = vld [vmem:[%s253 + $0x20] sm:$0xff]
        %v331 = vld [vmem:[%s253 + $0x28] sm:$0xff]
        %v332 = vld [vmem:[%s253 + $0x30] sm:$0xff]
        %v333 = vld [vmem:[%s253 + $0x38] sm:$0xff]
        %v334 = vld [vmem:[%s253 + $0x40] sm:$0xff]
        %v335 = vld [vmem:[%s253 + $0x48] sm:$0xff]
        %v336 = vld [vmem:[%s253 + $0x50] sm:$0xff]
        %v337 = vld [vmem:[%s253 + $0x58] sm:$0xff]
        %v338 = vld [vmem:[%s253 + $0x60] sm:$0xff]
        %v339 = vld [vmem:[%s253 + $0x68] sm:$0xff]
        %v340 = vld [vmem:[%s253 + $0x70] sm:$0xff]
        %v341 = vld [vmem:[%s253 + $0x78] sm:$0xff]
        %v342 = vld [vmem:[%s253 + $0x80] sm:$0xff]
        %v343 = vld [vmem:[%s253 + $0x88] sm:$0xff]
        %v344 = vld [vmem:[%s253 + $0x90] sm:$0xff]
        %v345 = vld [vmem:[%s253 + $0x98] sm:$0xff]
        %v346 = vld [vmem:[%s253 + $0xa0] sm:$0xff]
        %v347 = vld [vmem:[%s253 + $0xa8] sm:$0xff]
        %v348 = vld [vmem:[%s253 + $0xb0] sm:$0xff]
        %v349 = vld [vmem:[%s253 + $0xb8] sm:$0xff]
        %v350 = vld [vmem:[%s253 + $0xc0] sm:$0xff]
        %v351 = vld [vmem:[%s253 + $0xc8] sm:$0xff]
        %v352 = vld [vmem:[%s253 + $0xd0] sm:$0xff]
        %v353 = vld [vmem:[%s253 + $0xd8] sm:$0xff]
        %v354 = vld [vmem:[%s253 + $0xe0] sm:$0xff]
        %v355 = vld [vmem:[%s253 + $0xe8] sm:$0xff]
        %v356 = vld [vmem:[%s253 + $0xf0] sm:$0xff]
        %v357 = vld [vmem:[%s253 + $0xf8] sm:$0xff]
        %v358 = vld [vmem:[%s253 + $0x100] sm:$0xff]
        %v359 = vld [vmem:[%s253 + $0x108] sm:$0xff]
        %v360 = vld [vmem:[%s253 + $0x110] sm:$0xff]
        %v361 = vld [vmem:[%s253 + $0x118] sm:$0xff]
        %v362 = vld [vmem:[%s253 + $0x120] sm:$0xff]
        %v363 = vld [vmem:[%s253 + $0x128] sm:$0xff]
        %v364 = vld [vmem:[%s253 + $0x130] sm:$0xff]
        %v365 = vld [vmem:[%s253 + $0x138] sm:$0xff]
        %v366 = vld [vmem:[%s253 + $0x140] sm:$0xff]
        %v367 = vld [vmem:[%s253 + $0x148] sm:$0xff]
        %v368 = vld [vmem:[%s253 + $0x150] sm:$0xff]
        %v369 = vld [vmem:[%s253 + $0x158] sm:$0xff]
        %v370 = vld [vmem:[%s253 + $0x160] sm:$0xff]
        %v371 = vld [vmem:[%s253 + $0x168] sm:$0xff]
        %v372 = vld [vmem:[%s253 + $0x170] sm:$0xff]
        %v373 = vld [vmem:[%s253 + $0x178] sm:$0xff]
        %v374 = vld [vmem:[%s253 + $0x180] sm:$0xff]
        %v375 = vld [vmem:[%s253 + $0x188] sm:$0xff]
        %v376 = vld [vmem:[%s253 + $0x190] sm:$0xff]
        %v377 = vld [vmem:[%s253 + $0x198] sm:$0xff]
        %v378 = vld [vmem:[%s253 + $0x1a0] sm:$0xff]
        %v379 = vld [vmem:[%s253 + $0x1a8] sm:$0xff]
        %v380 = vld [vmem:[%s253 + $0x1b0] sm:$0xff]
        %v381 = vld [vmem:[%s253 + $0x1b8] sm:$0xff]
        %v382 = vld [vmem:[%s253 + $0x1c0] sm:$0xff]
        %v383 = vld [vmem:[%s253 + $0x1c8] sm:$0xff]
        %v384 = vld [vmem:[%s253 + $0x1d0] sm:$0xff]
        %v385 = vld [vmem:[%s253 + $0x1d8] sm:$0xff]
        %v386 = vld [vmem:[%s253 + $0x1e0] sm:$0xff]
        %v387 = vld [vmem:[%s253 + $0x1e8] sm:$0xff]
        %v388 = vld [vmem:[%s253 + $0x1f0] sm:$0xff]
        %v389 = vld [vmem:[%s253 + $0x1f8] sm:$0xff]
        %v390 = vld [vmem:[%s253 + $0x200] sm:$0xff]
        %v391 = vld [vmem:[%s253 + $0x208] sm:$0xff]
        %v392 = vld [vmem:[%s253 + $0x210] sm:$0xff]
        %v393 = vld [vmem:[%s253 + $0x218] sm:$0xff]
        %v394 = vld [vmem:[%s253 + $0x220] sm:$0xff]
        %v395 = vld [vmem:[%s253 + $0x228] sm:$0xff]
        %v396 = vld [vmem:[%s253 + $0x230] sm:$0xff]
        %v397 = vld [vmem:[%s253 + $0x238] sm:$0xff]
        %v398 = vld [vmem:[%s253 + $0x240] sm:$0xff]
        %v399 = vld [vmem:[%s253 + $0x248] sm:$0xff]
        %v400 = vld [vmem:[%s253 + $0x250] sm:$0xff]
        %v401 = vld [vmem:[%s253 + $0x258] sm:$0xff]
        %v402 = vld [vmem:[%s253 + $0x260] sm:$0xff]
        %v403 = vld [vmem:[%s253 + $0x268] sm:$0xff]
        %v404 = vld [vmem:[%s253 + $0x270] sm:$0xff]
        %v405 = vld [vmem:[%s253 + $0x278] sm:$0xff]
        %v406 = vld [vmem:[%s253 + $0x280] sm:$0xff]
        %v407 = vld [vmem:[%s253 + $0x288] sm:$0xff]
        %v408 = vld [vmem:[%s253 + $0x290] sm:$0xff]
        %v409 = vld [vmem:[%s253 + $0x298] sm:$0xff]
        %v410 = vld [vmem:[%s253 + $0x2a0] sm:$0xff]
        %v411 = vld [vmem:[%s253 + $0x2a8] sm:$0xff]
        %v412 = vld [vmem:[%s253 + $0x2b0] sm:$0xff]
        %v413 = vld [vmem:[%s253 + $0x2b8] sm:$0xff]
        %v414 = vld [vmem:[%s253 + $0x2c0] sm:$0xff]
        %v415 = vld [vmem:[%s253 + $0x2c8] sm:$0xff]
        %v416 = vld [vmem:[%s253 + $0x2d0] sm:$0xff]
        %v417 = vld [vmem:[%s253 + $0x2d8] sm:$0xff]
        %v418 = vld [vmem:[%s253 + $0x2e0] sm:$0xff]
        %v419 = vld [vmem:[%s253 + $0x2e8] sm:$0xff]
        %v420 = vld [vmem:[%s253 + $0x2f0] sm:$0xff]
        %v421 = vld [vmem:[%s253 + $0x2f8] sm:$0xff]
        %v422 = vld [vmem:[%s253 + $0x300] sm:$0xff]
        %v423 = vld [vmem:[%s253 + $0x308] sm:$0xff]
        %v424 = vld [vmem:[%s253 + $0x310] sm:$0xff]
        %v425 = vld [vmem:[%s253 + $0x318] sm:$0xff]
        %v426 = vld [vmem:[%s253 + $0x320] sm:$0xff]
        %v427 = vld [vmem:[%s253 + $0x328] sm:$0xff]
        %v428 = vld [vmem:[%s253 + $0x330] sm:$0xff]
        %v429 = vld [vmem:[%s253 + $0x338] sm:$0xff]
        %v430 = vld [vmem:[%s253 + $0x340] sm:$0xff]
        %v431 = vld [vmem:[%s253 + $0x348] sm:$0xff]
        %v432 = vld [vmem:[%s253 + $0x350] sm:$0xff]
        %v433 = vld [vmem:[%s253 + $0x358] sm:$0xff]
        %v434 = vld [vmem:[%s253 + $0x360] sm:$0xff]
        %v435 = vld [vmem:[%s253 + $0x368] sm:$0xff]
        %v436 = vld [vmem:[%s253 + $0x370] sm:$0xff]
        %v437 = vld [vmem:[%s253 + $0x378] sm:$0xff]
        %v438 = vld [vmem:[%s253 + $0x380] sm:$0xff]
        %v439 = vld [vmem:[%s253 + $0x388] sm:$0xff]
        %v440 = vld [vmem:[%s253 + $0x390] sm:$0xff]
        %v441 = vld [vmem:[%s253 + $0x398] sm:$0xff]
        %v442 = vld [vmem:[%s253 + $0x3a0] sm:$0xff]
        %v443 = vld [vmem:[%s253 + $0x3a8] sm:$0xff]
        %v444 = vld [vmem:[%s253 + $0x3b0] sm:$0xff]
        %v445 = vld [vmem:[%s253 + $0x3b8] sm:$0xff]
        %v446 = vld [vmem:[%s253 + $0x3c0] sm:$0xff]
        %v447 = vld [vmem:[%s253 + $0x3c8] sm:$0xff]
        %v448 = vld [vmem:[%s253 + $0x3d0] sm:$0xff]
        %v449 = vld [vmem:[%s253 + $0x3d8] sm:$0xff]
        %v450 = vld [vmem:[%s253 + $0x3e0] sm:$0xff]
        %v451 = vld [vmem:[%s253 + $0x3e8] sm:$0xff]
        %v452 = vld [vmem:[%s253 + $0x3f0] sm:$0xff]
        %v453 = vld [vmem:[%s253 + $0x3f8] sm:$0xff]
        %v458 = vunpack.c.l.b16 %v322
        %v459 = vunpack.c.h.b16 %v322
        %v460 = vunpack.c.l.b16 %v323
        %v461 = vunpack.c.h.b16 %v323
        %v462 = vunpack.c.l.b16 %v324
        %v463 = vunpack.c.h.b16 %v324
        %v464 = vunpack.c.l.b16 %v325
        %v465 = vunpack.c.h.b16 %v325
        %v466 = vpack.c.b16 %v462, %v458
        %v467 = vpack.c.b16 %v463, %v459
        %v468 = vpack.c.b16 %v464, %v460
        %v469 = vpack.c.b16 %v465, %v461
        %v602 = vunpack.c.l.b16 %v326
        %v603 = vunpack.c.h.b16 %v326
        %v604 = vunpack.c.l.b16 %v327
        %v605 = vunpack.c.h.b16 %v327
        %v606 = vunpack.c.l.b16 %v328
        %v607 = vunpack.c.h.b16 %v328
        %v608 = vunpack.c.l.b16 %v329
        %v609 = vunpack.c.h.b16 %v329
        %v610 = vunpack.c.l.b16 %v330
        %v611 = vunpack.c.h.b16 %v330
        %v612 = vunpack.c.l.b16 %v331
        %v613 = vunpack.c.h.b16 %v331
        %v614 = vunpack.c.l.b16 %v332
        %v615 = vunpack.c.h.b16 %v332
        %v616 = vunpack.c.l.b16 %v333
        %v617 = vunpack.c.h.b16 %v333
        %v618 = vunpack.c.l.b16 %v334
        %v619 = vunpack.c.h.b16 %v334
        %v620 = vunpack.c.l.b16 %v335
        %v621 = vunpack.c.h.b16 %v335
        %v622 = vunpack.c.l.b16 %v336
        %v623 = vunpack.c.h.b16 %v336
        %v624 = vunpack.c.l.b16 %v337
        %v625 = vunpack.c.h.b16 %v337
        %v626 = vunpack.c.l.b16 %v338
        %v627 = vunpack.c.h.b16 %v338
        %v628 = vunpack.c.l.b16 %v339
        %v629 = vunpack.c.h.b16 %v339
        %v630 = vunpack.c.l.b16 %v340
        %v631 = vunpack.c.h.b16 %v340
        %v632 = vunpack.c.l.b16 %v341
        %v633 = vunpack.c.h.b16 %v341
        %v634 = vunpack.c.l.b16 %v342
        %v635 = vunpack.c.h.b16 %v342
        %v636 = vunpack.c.l.b16 %v343
        %v637 = vunpack.c.h.b16 %v343
        %v638 = vunpack.c.l.b16 %v344
        %v639 = vunpack.c.h.b16 %v344
        %v640 = vunpack.c.l.b16 %v345
        %v641 = vunpack.c.h.b16 %v345
        %v642 = vunpack.c.l.b16 %v346
        %v643 = vunpack.c.h.b16 %v346
        %v644 = vunpack.c.l.b16 %v347
        %v645 = vunpack.c.h.b16 %v347
        %v646 = vunpack.c.l.b16 %v348
        %v647 = vunpack.c.h.b16 %v348
        %v648 = vunpack.c.l.b16 %v349
        %v649 = vunpack.c.h.b16 %v349
        %v650 = vunpack.c.l.b16 %v350
        %v651 = vunpack.c.h.b16 %v350
        %v652 = vunpack.c.l.b16 %v351
        %v653 = vunpack.c.h.b16 %v351
        %v654 = vunpack.c.l.b16 %v352
        %v655 = vunpack.c.h.b16 %v352
        %v656 = vunpack.c.l.b16 %v353
        %v657 = vunpack.c.h.b16 %v353
        %v658 = vunpack.c.l.b16 %v354
        %v659 = vunpack.c.h.b16 %v354
        %v660 = vunpack.c.l.b16 %v355
        %v661 = vunpack.c.h.b16 %v355
        %v662 = vunpack.c.l.b16 %v356
        %v663 = vunpack.c.h.b16 %v356
        %v664 = vunpack.c.l.b16 %v357
        %v665 = vunpack.c.h.b16 %v357
        %v666 = vunpack.c.l.b16 %v358
        %v667 = vunpack.c.h.b16 %v358
        %v668 = vunpack.c.l.b16 %v359
        %v669 = vunpack.c.h.b16 %v359
        %v670 = vunpack.c.l.b16 %v360
        %v671 = vunpack.c.h.b16 %v360
        %v672 = vunpack.c.l.b16 %v361
        %v673 = vunpack.c.h.b16 %v361
        %v674 = vunpack.c.l.b16 %v362
        %v675 = vunpack.c.h.b16 %v362
        %v676 = vunpack.c.l.b16 %v363
        %v677 = vunpack.c.h.b16 %v363
        %v678 = vunpack.c.l.b16 %v364
        %v679 = vunpack.c.h.b16 %v364
        %v680 = vunpack.c.l.b16 %v365
        %v681 = vunpack.c.h.b16 %v365
        %v682 = vunpack.c.l.b16 %v366
        %v683 = vunpack.c.h.b16 %v366
        %v684 = vunpack.c.l.b16 %v367
        %v685 = vunpack.c.h.b16 %v367
        %v686 = vunpack.c.l.b16 %v368
        %v687 = vunpack.c.h.b16 %v368
        %v688 = vunpack.c.l.b16 %v369
        %v689 = vunpack.c.h.b16 %v369
        %v690 = vunpack.c.l.b16 %v370
        %v691 = vunpack.c.h.b16 %v370
        %v692 = vunpack.c.l.b16 %v371
        %v693 = vunpack.c.h.b16 %v371
        %v694 = vunpack.c.l.b16 %v372
        %v695 = vunpack.c.h.b16 %v372
        %v696 = vunpack.c.l.b16 %v373
        %v697 = vunpack.c.h.b16 %v373
        %v698 = vunpack.c.l.b16 %v374
        %v699 = vunpack.c.h.b16 %v374
        %v700 = vunpack.c.l.b16 %v375
        %v701 = vunpack.c.h.b16 %v375
        %v702 = vunpack.c.l.b16 %v376
        %v703 = vunpack.c.h.b16 %v376
        %v704 = vunpack.c.l.b16 %v377
        %v705 = vunpack.c.h.b16 %v377
        %v706 = vunpack.c.l.b16 %v378
        %v707 = vunpack.c.h.b16 %v378
        %v708 = vunpack.c.l.b16 %v379
        %v709 = vunpack.c.h.b16 %v379
        %v710 = vunpack.c.l.b16 %v380
        %v711 = vunpack.c.h.b16 %v380
        %v712 = vunpack.c.l.b16 %v381
        %v713 = vunpack.c.h.b16 %v381
        %v714 = vunpack.c.l.b16 %v382
        %v715 = vunpack.c.h.b16 %v382
        %v716 = vunpack.c.l.b16 %v383
        %v717 = vunpack.c.h.b16 %v383
        %v718 = vunpack.c.l.b16 %v384
        %v719 = vunpack.c.h.b16 %v384
        %v720 = vunpack.c.l.b16 %v385
        %v721 = vunpack.c.h.b16 %v385
        %v722 = vunpack.c.l.b16 %v386
        %v723 = vunpack.c.h.b16 %v386
        %v724 = vunpack.c.l.b16 %v387
        %v725 = vunpack.c.h.b16 %v387
        %v726 = vunpack.c.l.b16 %v388
        %v727 = vunpack.c.h.b16 %v388
        %v728 = vunpack.c.l.b16 %v389
        %v729 = vunpack.c.h.b16 %v389
        %v730 = vunpack.c.l.b16 %v390
        %v731 = vunpack.c.h.b16 %v390
        %v732 = vunpack.c.l.b16 %v391
        %v733 = vunpack.c.h.b16 %v391
        %v734 = vunpack.c.l.b16 %v392
        %v735 = vunpack.c.h.b16 %v392
        %v736 = vunpack.c.l.b16 %v393
        %v737 = vunpack.c.h.b16 %v393
        %v738 = vunpack.c.l.b16 %v394
        %v739 = vunpack.c.h.b16 %v394
        %v740 = vunpack.c.l.b16 %v395
        %v741 = vunpack.c.h.b16 %v395
        %v742 = vunpack.c.l.b16 %v396
        %v743 = vunpack.c.h.b16 %v396
        %v744 = vunpack.c.l.b16 %v397
        %v745 = vunpack.c.h.b16 %v397
        %v746 = vunpack.c.l.b16 %v398
        %v747 = vunpack.c.h.b16 %v398
        %v748 = vunpack.c.l.b16 %v399
        %v749 = vunpack.c.h.b16 %v399
        %v750 = vunpack.c.l.b16 %v400
        %v751 = vunpack.c.h.b16 %v400
        %v752 = vunpack.c.l.b16 %v401
        %v753 = vunpack.c.h.b16 %v401
        %v754 = vunpack.c.l.b16 %v402
        %v755 = vunpack.c.h.b16 %v402
        %v756 = vunpack.c.l.b16 %v403
        %v757 = vunpack.c.h.b16 %v403
        %v758 = vunpack.c.l.b16 %v404
        %v759 = vunpack.c.h.b16 %v404
        %v760 = vunpack.c.l.b16 %v405
        %v761 = vunpack.c.h.b16 %v405
        %v762 = vunpack.c.l.b16 %v406
        %v763 = vunpack.c.h.b16 %v406
        %v764 = vunpack.c.l.b16 %v407
        %v765 = vunpack.c.h.b16 %v407
        %v766 = vunpack.c.l.b16 %v408
        %v767 = vunpack.c.h.b16 %v408
        %v768 = vunpack.c.l.b16 %v409
        %v769 = vunpack.c.h.b16 %v409
        %v770 = vunpack.c.l.b16 %v410
        %v771 = vunpack.c.h.b16 %v410
        %v772 = vunpack.c.l.b16 %v411
        %v773 = vunpack.c.h.b16 %v411
        %v774 = vunpack.c.l.b16 %v412
        %v775 = vunpack.c.h.b16 %v412
        %v776 = vunpack.c.l.b16 %v413
        %v777 = vunpack.c.h.b16 %v413
        %v778 = vunpack.c.l.b16 %v414
        %v779 = vunpack.c.h.b16 %v414
        %v780 = vunpack.c.l.b16 %v415
        %v781 = vunpack.c.h.b16 %v415
        %v782 = vunpack.c.l.b16 %v416
        %v783 = vunpack.c.h.b16 %v416
        %v784 = vunpack.c.l.b16 %v417
        %v785 = vunpack.c.h.b16 %v417
        %v786 = vunpack.c.l.b16 %v418
        %v787 = vunpack.c.h.b16 %v418
        %v788 = vunpack.c.l.b16 %v419
        %v789 = vunpack.c.h.b16 %v419
        %v790 = vunpack.c.l.b16 %v420
        %v791 = vunpack.c.h.b16 %v420
        %v792 = vunpack.c.l.b16 %v421
        %v793 = vunpack.c.h.b16 %v421
        %v794 = vunpack.c.l.b16 %v422
        %v795 = vunpack.c.h.b16 %v422
        %v796 = vunpack.c.l.b16 %v423
        %v797 = vunpack.c.h.b16 %v423
        %v798 = vunpack.c.l.b16 %v424
        %v799 = vunpack.c.h.b16 %v424
        %v800 = vunpack.c.l.b16 %v425
        %v801 = vunpack.c.h.b16 %v425
        %v802 = vunpack.c.l.b16 %v426
        %v803 = vunpack.c.h.b16 %v426
        %v804 = vunpack.c.l.b16 %v427
        %v805 = vunpack.c.h.b16 %v427
        %v806 = vunpack.c.l.b16 %v428
        %v807 = vunpack.c.h.b16 %v428
        %v808 = vunpack.c.l.b16 %v429
        %v809 = vunpack.c.h.b16 %v429
        %v810 = vunpack.c.l.b16 %v430
        %v811 = vunpack.c.h.b16 %v430
        %v812 = vunpack.c.l.b16 %v431
        %v813 = vunpack.c.h.b16 %v431
        %v814 = vunpack.c.l.b16 %v432
        %v815 = vunpack.c.h.b16 %v432
        %v816 = vunpack.c.l.b16 %v433
        %v817 = vunpack.c.h.b16 %v433
        %v818 = vunpack.c.l.b16 %v434
        %v819 = vunpack.c.h.b16 %v434
        %v820 = vunpack.c.l.b16 %v435
        %v821 = vunpack.c.h.b16 %v435
        %v822 = vunpack.c.l.b16 %v436
        %v823 = vunpack.c.h.b16 %v436
        %v824 = vunpack.c.l.b16 %v437
        %v825 = vunpack.c.h.b16 %v437
        %v826 = vunpack.c.l.b16 %v438
        %v827 = vunpack.c.h.b16 %v438
        %v828 = vunpack.c.l.b16 %v439
        %v829 = vunpack.c.h.b16 %v439
        %v830 = vunpack.c.l.b16 %v440
        %v831 = vunpack.c.h.b16 %v440
        %v832 = vunpack.c.l.b16 %v441
        %v833 = vunpack.c.h.b16 %v441
        %v834 = vunpack.c.l.b16 %v442
        %v835 = vunpack.c.h.b16 %v442
        %v836 = vunpack.c.l.b16 %v443
        %v837 = vunpack.c.h.b16 %v443
        %v838 = vunpack.c.l.b16 %v444
        %v839 = vunpack.c.h.b16 %v444
        %v840 = vunpack.c.l.b16 %v445
        %v841 = vunpack.c.h.b16 %v445
        %v842 = vunpack.c.l.b16 %v446
        %v843 = vunpack.c.h.b16 %v446
        %v844 = vunpack.c.l.b16 %v447
        %v845 = vunpack.c.h.b16 %v447
        %v846 = vunpack.c.l.b16 %v448
        %v847 = vunpack.c.h.b16 %v448
        %v848 = vunpack.c.l.b16 %v449
        %v849 = vunpack.c.h.b16 %v449
        %v850 = vunpack.c.l.b16 %v450
        %v851 = vunpack.c.h.b16 %v450
        %v852 = vunpack.c.l.b16 %v451
        %v853 = vunpack.c.h.b16 %v451
        %v854 = vunpack.c.l.b16 %v452
        %v855 = vunpack.c.h.b16 %v452
        %v856 = vunpack.c.l.b16 %v453
        %v857 = vunpack.c.h.b16 %v453
        %v858 = vpack.c.b16 %v606, %v602
        %v859 = vpack.c.b16 %v607, %v603
        %v860 = vpack.c.b16 %v608, %v604
        %v861 = vpack.c.b16 %v609, %v605
        %v862 = vpack.c.b16 %v614, %v610
        %v863 = vpack.c.b16 %v615, %v611
        %v864 = vpack.c.b16 %v616, %v612
        %v865 = vpack.c.b16 %v617, %v613
        %v866 = vpack.c.b16 %v622, %v618
        %v867 = vpack.c.b16 %v623, %v619
        %v868 = vpack.c.b16 %v624, %v620
        %v869 = vpack.c.b16 %v625, %v621
        %v870 = vpack.c.b16 %v630, %v626
        %v871 = vpack.c.b16 %v631, %v627
        %v872 = vpack.c.b16 %v632, %v628
        %v873 = vpack.c.b16 %v633, %v629
        %v874 = vpack.c.b16 %v638, %v634
        %v875 = vpack.c.b16 %v639, %v635
        %v876 = vpack.c.b16 %v640, %v636
        %v877 = vpack.c.b16 %v641, %v637
        %v878 = vpack.c.b16 %v646, %v642
        %v879 = vpack.c.b16 %v647, %v643
        %v880 = vpack.c.b16 %v648, %v644
        %v881 = vpack.c.b16 %v649, %v645
        %v882 = vpack.c.b16 %v654, %v650
        %v883 = vpack.c.b16 %v655, %v651
        %v884 = vpack.c.b16 %v656, %v652
        %v885 = vpack.c.b16 %v657, %v653
        %v886 = vpack.c.b16 %v662, %v658
        %v887 = vpack.c.b16 %v663, %v659
        %v888 = vpack.c.b16 %v664, %v660
        %v889 = vpack.c.b16 %v665, %v661
        %v890 = vpack.c.b16 %v670, %v666
        %v891 = vpack.c.b16 %v671, %v667
        %v892 = vpack.c.b16 %v672, %v668
        %v893 = vpack.c.b16 %v673, %v669
        %v894 = vpack.c.b16 %v678, %v674
        %v895 = vpack.c.b16 %v679, %v675
        %v896 = vpack.c.b16 %v680, %v676
        %v897 = vpack.c.b16 %v681, %v677
        %v898 = vpack.c.b16 %v686, %v682
        %v899 = vpack.c.b16 %v687, %v683
        %v900 = vpack.c.b16 %v688, %v684
        %v901 = vpack.c.b16 %v689, %v685
        %v902 = vpack.c.b16 %v694, %v690
        %v903 = vpack.c.b16 %v695, %v691
        %v904 = vpack.c.b16 %v696, %v692
        %v905 = vpack.c.b16 %v697, %v693
        %v906 = vpack.c.b16 %v702, %v698
        %v907 = vpack.c.b16 %v703, %v699
        %v908 = vpack.c.b16 %v704, %v700
        %v909 = vpack.c.b16 %v705, %v701
        %v910 = vpack.c.b16 %v710, %v706
        %v911 = vpack.c.b16 %v711, %v707
        %v912 = vpack.c.b16 %v712, %v708
        %v913 = vpack.c.b16 %v713, %v709
        %v914 = vpack.c.b16 %v718, %v714
        %v915 = vpack.c.b16 %v719, %v715
        %v916 = vpack.c.b16 %v720, %v716
        %v917 = vpack.c.b16 %v721, %v717
        %v918 = vpack.c.b16 %v726, %v722
        %v919 = vpack.c.b16 %v727, %v723
        %v920 = vpack.c.b16 %v728, %v724
        %v921 = vpack.c.b16 %v729, %v725
        %v922 = vpack.c.b16 %v734, %v730
        %v923 = vpack.c.b16 %v735, %v731
        %v924 = vpack.c.b16 %v736, %v732
        %v925 = vpack.c.b16 %v737, %v733
        %v926 = vpack.c.b16 %v742, %v738
        %v927 = vpack.c.b16 %v743, %v739
        %v928 = vpack.c.b16 %v744, %v740
        %v929 = vpack.c.b16 %v745, %v741
        %v930 = vpack.c.b16 %v750, %v746
        %v931 = vpack.c.b16 %v751, %v747
        %v932 = vpack.c.b16 %v752, %v748
        %v933 = vpack.c.b16 %v753, %v749
        %v934 = vpack.c.b16 %v758, %v754
        %v935 = vpack.c.b16 %v759, %v755
        %v936 = vpack.c.b16 %v760, %v756
        %v937 = vpack.c.b16 %v761, %v757
        %v938 = vpack.c.b16 %v766, %v762
        %v939 = vpack.c.b16 %v767, %v763
        %v940 = vpack.c.b16 %v768, %v764
        %v941 = vpack.c.b16 %v769, %v765
        %v942 = vpack.c.b16 %v774, %v770
        %v943 = vpack.c.b16 %v775, %v771
        %v944 = vpack.c.b16 %v776, %v772
        %v945 = vpack.c.b16 %v777, %v773
        %v946 = vpack.c.b16 %v782, %v778
        %v947 = vpack.c.b16 %v783, %v779
        %v948 = vpack.c.b16 %v784, %v780
        %v949 = vpack.c.b16 %v785, %v781
        %v950 = vpack.c.b16 %v790, %v786
        %v951 = vpack.c.b16 %v791, %v787
        %v952 = vpack.c.b16 %v792, %v788
        %v953 = vpack.c.b16 %v793, %v789
        %v954 = vpack.c.b16 %v798, %v794
        %v955 = vpack.c.b16 %v799, %v795
        %v956 = vpack.c.b16 %v800, %v796
        %v957 = vpack.c.b16 %v801, %v797
        %v958 = vpack.c.b16 %v806, %v802
        %v959 = vpack.c.b16 %v807, %v803
        %v960 = vpack.c.b16 %v808, %v804
        %v961 = vpack.c.b16 %v809, %v805
        %v962 = vpack.c.b16 %v814, %v810
        %v963 = vpack.c.b16 %v815, %v811
        %v964 = vpack.c.b16 %v816, %v812
        %v965 = vpack.c.b16 %v817, %v813
        %v966 = vpack.c.b16 %v822, %v818
        %v967 = vpack.c.b16 %v823, %v819
        %v968 = vpack.c.b16 %v824, %v820
        %v969 = vpack.c.b16 %v825, %v821
        %v970 = vpack.c.b16 %v830, %v826
        %v971 = vpack.c.b16 %v831, %v827
        %v972 = vpack.c.b16 %v832, %v828
        %v973 = vpack.c.b16 %v833, %v829
        %v974 = vpack.c.b16 %v838, %v834
        %v975 = vpack.c.b16 %v839, %v835
        %v976 = vpack.c.b16 %v840, %v836
        %v977 = vpack.c.b16 %v841, %v837
        %v978 = vpack.c.b16 %v846, %v842
        %v979 = vpack.c.b16 %v847, %v843
        %v980 = vpack.c.b16 %v848, %v844
        %v981 = vpack.c.b16 %v849, %v845
        %v982 = vpack.c.b16 %v854, %v850
        %v983 = vpack.c.b16 %v855, %v851
        %v984 = vpack.c.b16 %v856, %v852
        %v985 = vpack.c.b16 %v857, %v853
        %1114 = vmatprep.subr.bf16.mxu0 %v859
        %1115 = vmatpush1.bf16.msra.mxu0 %v858
        %1116 = vmatprep.subr.bf16.mxu0 %v863
        %1117 = vmatpush1.bf16.msra.mxu0 %v862
        %1118 = vmatprep.subr.bf16.mxu0 %v867
        %1119 = vmatpush1.bf16.msra.mxu0 %v866
        %1120 = vmatprep.subr.bf16.mxu0 %v871
        %1121 = vmatpush1.bf16.msra.mxu0 %v870
        %1122 = vmatprep.subr.bf16.mxu0 %v875
        %1123 = vmatpush1.bf16.msra.mxu0 %v874
        %1124 = vmatprep.subr.bf16.mxu0 %v879
        %1125 = vmatpush1.bf16.msra.mxu0 %v878
        %1126 = vmatprep.subr.bf16.mxu0 %v883
        %1127 = vmatpush1.bf16.msra.mxu0 %v882
        %1128 = vmatprep.subr.bf16.mxu0 %v887
        %1129 = vmatpush1.bf16.msra.mxu0 %v886
        %1130 = vmatprep.subr.bf16.mxu0 %v891
        %1131 = vmatpush1.bf16.msra.mxu0 %v890
        %1132 = vmatprep.subr.bf16.mxu0 %v895
        %1133 = vmatpush1.bf16.msra.mxu0 %v894
        %1134 = vmatprep.subr.bf16.mxu0 %v899
        %1135 = vmatpush1.bf16.msra.mxu0 %v898
        %1136 = vmatprep.subr.bf16.mxu0 %v903
        %1137 = vmatpush1.bf16.msra.mxu0 %v902
        %1138 = vmatprep.subr.bf16.mxu0 %v907
        %1139 = vmatpush1.bf16.msra.mxu0 %v906
        %1140 = vmatprep.subr.bf16.mxu0 %v911
        %1141 = vmatpush1.bf16.msra.mxu0 %v910
        %1142 = vmatprep.subr.bf16.mxu0 %v915
        %1143 = vmatpush1.bf16.msra.mxu0 %v914
        %1144 = vmatprep.subr.bf16.mxu0 %v919
        %1145 = vmatpush1.bf16.msra.mxu0 %v918
        %1146 = vmatprep.mubr.bf16.mxu0 %v467
        %1147 = vmatmul.mubr.bf16.gmra.mrb[0].mxu0 %v466
        %v1148 = vpop.f32.mrb[0].mxu0
        %v1149 = vadd.f32 0.0, %v1148
        %v1150 = vpop.f32.mrb[0].mxu0
        %v1151 = vadd.f32 0.0, %v1150
        %v1152 = vpop.f32.mrb[0].mxu0
        %v1153 = vadd.f32 0.0, %v1152
        %v1154 = vpop.f32.mrb[0].mxu0
        %v1155 = vadd.f32 0.0, %v1154
        %1156 = vdwg.mxu0
        %1157 = vmatprep.subr.bf16.mxu0 %v923
        %1158 = vmatpush1.bf16.msra.mxu0 %v922
        %1159 = vmatprep.subr.bf16.mxu0 %v927
        %1160 = vmatpush1.bf16.msra.mxu0 %v926
        %1161 = vmatprep.subr.bf16.mxu0 %v931
        %1162 = vmatpush1.bf16.msra.mxu0 %v930
        %1163 = vmatprep.subr.bf16.mxu0 %v935
        %1164 = vmatpush1.bf16.msra.mxu0 %v934
        %1165 = vmatprep.subr.bf16.mxu0 %v939
        %1166 = vmatpush1.bf16.msra.mxu0 %v938
        %1167 = vmatprep.subr.bf16.mxu0 %v943
        %1168 = vmatpush1.bf16.msra.mxu0 %v942
        %1169 = vmatprep.subr.bf16.mxu0 %v947
        %1170 = vmatpush1.bf16.msra.mxu0 %v946
        %1171 = vmatprep.subr.bf16.mxu0 %v951
        %1172 = vmatpush1.bf16.msra.mxu0 %v950
        %1173 = vmatprep.subr.bf16.mxu0 %v955
        %1174 = vmatpush1.bf16.msra.mxu0 %v954
        %1175 = vmatprep.subr.bf16.mxu0 %v959
        %1176 = vmatpush1.bf16.msra.mxu0 %v958
        %1177 = vmatprep.subr.bf16.mxu0 %v963
        %1178 = vmatpush1.bf16.msra.mxu0 %v962
        %1179 = vmatprep.subr.bf16.mxu0 %v967
        %1180 = vmatpush1.bf16.msra.mxu0 %v966
        %1181 = vmatprep.subr.bf16.mxu0 %v971
        %1182 = vmatpush1.bf16.msra.mxu0 %v970
        %1183 = vmatprep.subr.bf16.mxu0 %v975
        %1184 = vmatpush1.bf16.msra.mxu0 %v974
        %1185 = vmatprep.subr.bf16.mxu0 %v979
        %1186 = vmatpush1.bf16.msra.mxu0 %v978
        %1187 = vmatprep.subr.bf16.mxu0 %v983
        %1188 = vmatpush1.bf16.msra.mxu0 %v982
        %1189 = vmatprep.mubr.bf16.mxu0 %v469
        %1190 = vmatmul.mubr.bf16.gmra.mrb[0].mxu0 %v468
        %v1191 = vpop.f32.mrb[0].mxu0
        %v1192 = vadd.f32 %v1149, %v1191
        %v1193 = vpop.f32.mrb[0].mxu0
        %v1194 = vadd.f32 %v1151, %v1193
        %v1195 = vpop.f32.mrb[0].mxu0
        %v1196 = vadd.f32 %v1153, %v1195
        %v1197 = vpop.f32.mrb[0].mxu0
        %v1198 = vadd.f32 %v1155, %v1197
        %1199 = vdwg.mxu0
        %1200 = vmatprep.subr.bf16.mxu0 %v861
        %1201 = vmatpush1.bf16.msra.mxu0 %v860
        %1202 = vmatprep.subr.bf16.mxu0 %v865
        %1203 = vmatpush1.bf16.msra.mxu0 %v864
        %1204 = vmatprep.subr.bf16.mxu0 %v869
        %1205 = vmatpush1.bf16.msra.mxu0 %v868
        %1206 = vmatprep.subr.bf16.mxu0 %v873
        %1207 = vmatpush1.bf16.msra.mxu0 %v872
        %1208 = vmatprep.subr.bf16.mxu0 %v877
        %1209 = vmatpush1.bf16.msra.mxu0 %v876
        %1210 = vmatprep.subr.bf16.mxu0 %v881
        %1211 = vmatpush1.bf16.msra.mxu0 %v880
        %1212 = vmatprep.subr.bf16.mxu0 %v885
        %1213 = vmatpush1.bf16.msra.mxu0 %v884
        %1214 = vmatprep.subr.bf16.mxu0 %v889
        %1215 = vmatpush1.bf16.msra.mxu0 %v888
        %1216 = vmatprep.subr.bf16.mxu0 %v893
        %1217 = vmatpush1.bf16.msra.mxu0 %v892
        %1218 = vmatprep.subr.bf16.mxu0 %v897
        %1219 = vmatpush1.bf16.msra.mxu0 %v896
        %1220 = vmatprep.subr.bf16.mxu0 %v901
        %1221 = vmatpush1.bf16.msra.mxu0 %v900
        %1222 = vmatprep.subr.bf16.mxu0 %v905
        %1223 = vmatpush1.bf16.msra.mxu0 %v904
        %1224 = vmatprep.subr.bf16.mxu0 %v909
        %1225 = vmatpush1.bf16.msra.mxu0 %v908
        %1226 = vmatprep.subr.bf16.mxu0 %v913
        %1227 = vmatpush1.bf16.msra.mxu0 %v912
        %1228 = vmatprep.subr.bf16.mxu0 %v917
        %1229 = vmatpush1.bf16.msra.mxu0 %v916
        %1230 = vmatprep.subr.bf16.mxu0 %v921
        %1231 = vmatpush1.bf16.msra.mxu0 %v920
        %1232 = vmatprep.mubr.bf16.mxu0 %v467
        %1233 = vmatmul.mubr.bf16.gmra.mrb[0].mxu0 %v466
        %v1234 = vpop.f32.mrb[0].mxu0
        %v1235 = vadd.f32 0.0, %v1234
        %v1236 = vpop.f32.mrb[0].mxu0
        %v1237 = vadd.f32 0.0, %v1236
        %v1238 = vpop.f32.mrb[0].mxu0
        %v1239 = vadd.f32 0.0, %v1238
        %v1240 = vpop.f32.mrb[0].mxu0
        %v1241 = vadd.f32 0.0, %v1240
        %1242 = vdwg.mxu0
        %1243 = vmatprep.subr.bf16.mxu0 %v925
        %1244 = vmatpush1.bf16.msra.mxu0 %v924
        %1245 = vmatprep.subr.bf16.mxu0 %v929
        %1246 = vmatpush1.bf16.msra.mxu0 %v928
        %1247 = vmatprep.subr.bf16.mxu0 %v933
        %1248 = vmatpush1.bf16.msra.mxu0 %v932
        %1249 = vmatprep.subr.bf16.mxu0 %v937
        %1250 = vmatpush1.bf16.msra.mxu0 %v936
        %1251 = vmatprep.subr.bf16.mxu0 %v941
        %1252 = vmatpush1.bf16.msra.mxu0 %v940
        %1253 = vmatprep.subr.bf16.mxu0 %v945
        %1254 = vmatpush1.bf16.msra.mxu0 %v944
        %1255 = vmatprep.subr.bf16.mxu0 %v949
        %1256 = vmatpush1.bf16.msra.mxu0 %v948
        %1257 = vmatprep.subr.bf16.mxu0 %v953
        %1258 = vmatpush1.bf16.msra.mxu0 %v952
        %1259 = vmatprep.subr.bf16.mxu0 %v957
        %1260 = vmatpush1.bf16.msra.mxu0 %v956
        %1261 = vmatprep.subr.bf16.mxu0 %v961
        %1262 = vmatpush1.bf16.msra.mxu0 %v960
        %1263 = vmatprep.subr.bf16.mxu0 %v965
        %1264 = vmatpush1.bf16.msra.mxu0 %v964
        %1265 = vmatprep.subr.bf16.mxu0 %v969
        %1266 = vmatpush1.bf16.msra.mxu0 %v968
        %1267 = vmatprep.subr.bf16.mxu0 %v973
        %1268 = vmatpush1.bf16.msra.mxu0 %v972
        %1269 = vmatprep.subr.bf16.mxu0 %v977
        %1270 = vmatpush1.bf16.msra.mxu0 %v976
        %1271 = vmatprep.subr.bf16.mxu0 %v981
        %1272 = vmatpush1.bf16.msra.mxu0 %v980
        %1273 = vmatprep.subr.bf16.mxu0 %v985
        %1274 = vmatpush1.bf16.msra.mxu0 %v984
        %1275 = vmatprep.mubr.bf16.mxu0 %v469
        %1276 = vmatmul.mubr.bf16.gmra.mrb[0].mxu0 %v468
        %v1277 = vpop.f32.mrb[0].mxu0
        %v1278 = vadd.f32 %v1235, %v1277
        %v1279 = vpop.f32.mrb[0].mxu0
        %v1280 = vadd.f32 %v1237, %v1279
        %v1281 = vpop.f32.mrb[0].mxu0
        %v1282 = vadd.f32 %v1239, %v1281
        %v1283 = vpop.f32.mrb[0].mxu0
        %v1284 = vadd.f32 %v1241, %v1283
        %1285 = vdwg.mxu0
        %v1286 = vadd.f32 %v314, %v1192
        %v1287 = vadd.f32 %v315, %v1194
        %v1288 = vadd.f32 %v316, %v1278
        %v1289 = vadd.f32 %v317, %v1280
        %v1290 = vadd.f32 %v318, %v1196
        %v1291 = vadd.f32 %v319, %v1198
        %v1292 = vadd.f32 %v320, %v1282
        %v1293 = vadd.f32 %v321, %v1284
        %1294 = vst [vmem:[%s294] sm:$0xff] %v1286
        %1295 = vst [vmem:[%s294 + $0x8] sm:$0xff] %v1287
        %1296 = vst [vmem:[%s294 + $0x10] sm:$0xff] %v1288
        %1297 = vst [vmem:[%s294 + $0x18] sm:$0xff] %v1289
        %1298 = vst [vmem:[%s294 + $0x20] sm:$0xff] %v1290
        %1299 = vst [vmem:[%s294 + $0x28] sm:$0xff] %v1291
        %1300 = vst [vmem:[%s294 + $0x30] sm:$0xff] %v1292
        %1301 = vst [vmem:[%s294 + $0x38] sm:$0xff] %v1293
        %p1302 = scmp.eq.s32.totalorder %s30, 17
        // Predicated region
        $region49: #{alexnet_cbam3_forward.25} parent=31 // pred_check
          %p1303 = pneg %p1302
        $region50: #{alexnet_cbam3_forward.25} parent=31 // pred_check_branch
          %1305 = sbr.rel (%p1303) target = $region52
        $region51: #{alexnet_cbam3_forward.25} parent=31 // pred_region
          %v1306 = vld [vmem:[%s294] sm:$0xff]
          %v1307 = vld [vmem:[%s294 + $0x8] sm:$0xff]
          %v1308 = vld [vmem:[%s294 + $0x10] sm:$0xff]
          %v1309 = vld [vmem:[%s294 + $0x18] sm:$0xff]
          %v1310 = vld [vmem:[%s294 + $0x20] sm:$0xff]
          %v1311 = vld [vmem:[%s294 + $0x28] sm:$0xff]
          %v1312 = vld [vmem:[%s294 + $0x30] sm:$0xff]
          %v1313 = vld [vmem:[%s294 + $0x38] sm:$0xff]
          %v1314 = vld [vmem:[%s262] sm:$0xf]
          %v1316 = vlaneseq
          %v1317 = vshrl.u32 %v1316, 7
          %v1318 = vsub.s32 0, %v1317
          %v1319 = vrot.slane %v1314, %v1318
          %v1320 = vlaneseq
          %v1321 = vshrl.u32 %v1320, 7
          %v1322 = vsub.s32 1, %v1321
          %v1323 = vrot.slane %v1314, %v1322
          %v1324 = vlaneseq
          %v1325 = vshrl.u32 %v1324, 7
          %v1326 = vsub.s32 2, %v1325
          %v1327 = vrot.slane %v1314, %v1326
          %v1328 = vlaneseq
          %v1329 = vshrl.u32 %v1328, 7
          %v1330 = vsub.s32 3, %v1329
          %v1331 = vrot.slane %v1314, %v1330
          %v1336 = vadd.f32 %v1306, %v1319
          %v1337 = vadd.f32 %v1307, %v1323
          %v1338 = vadd.f32 %v1308, %v1327
          %v1339 = vadd.f32 %v1309, %v1331
          %v1340 = vadd.f32 %v1310, %v1319
          %v1341 = vadd.f32 %v1311, %v1323
          %v1342 = vadd.f32 %v1312, %v1327
          %v1343 = vadd.f32 %v1313, %v1331
          %v1344 = vmax.f32 %v1336, 0.0
          %v1345 = vmax.f32 %v1337, 0.0
          %v1346 = vmax.f32 %v1338, 0.0
          %v1347 = vmax.f32 %v1339, 0.0
          %v1348 = vmax.f32 %v1340, 0.0
          %v1349 = vmax.f32 %v1341, 0.0
          %v1350 = vmax.f32 %v1342, 0.0
          %v1351 = vmax.f32 %v1343, 0.0
          %1352 = vst [vmem:[%s294] sm:$0xff] %v1344
          %1353 = vst [vmem:[%s294 + $0x8] sm:$0xff] %v1345
          %1354 = vst [vmem:[%s294 + $0x10] sm:$0xff] %v1346
          %1355 = vst [vmem:[%s294 + $0x18] sm:$0xff] %v1347
          %1356 = vst [vmem:[%s294 + $0x20] sm:$0xff] %v1348
          %1357 = vst [vmem:[%s294 + $0x28] sm:$0xff] %v1349
          %1358 = vst [vmem:[%s294 + $0x30] sm:$0xff] %v1350
          %1359 = vst [vmem:[%s294 + $0x38] sm:$0xff] %v1351
        $region52: #{alexnet_cbam3_forward.25} parent=31 // pred_fallthru
          _
        %s1360 = sand.u32 %s134, 1
        %s1361 = scalar_lea.sflag [#allocation4], %s1360
        %s1362 = sand.u32 %s134, 1
        %s1363 = smul.addr %s1362, 64
        %s1364 = scalar_lea.vmem [#allocation8], %s1363
        // Predicated region
        $region53: #{alexnet_cbam3_forward.25} parent=31 // pred_check
          %p1365 = pneg %p144
        $region54: #{alexnet_cbam3_forward.25} parent=31 // pred_check_branch
          %1367 = sbr.rel (%p1365) target = $region56
        $region55: #{alexnet_cbam3_forward.25} parent=31 // pred_region
          %s1368 = smul.u32 2, %s28
          %s1369 = smul.u32 4, %s29
          %s1371 = ssub.s32 1024, 1024
          %1372 = vsyncadd %s1361, %s1371
          %s1373 = smul.addr %s1368, 32
          %s1374 = sadd.s32 %s1369, %s1373
          %s1375 = smul.addr %s1374, 128
          %s1376 = scalar_lea.hbm %s3, %s1375
          %s1377 = sshll.u32 %s1364, 4
          %s1378 = int_to_ptr.vmem [resolvable:$true] %s1377
          %1383 = dma.vmem_to_hbm [thread:$0]  %s1378, 1024, %s1376, %s1361, 512, 4096, 32
        $region56: #{alexnet_cbam3_forward.25} parent=31 // pred_fallthru
          _
      $region32: #{alexnet_cbam3_forward.25} parent=5 // pred_fallthru
        _
      %p1384 = scmp.le.s32.totalorder 2, %s18
      // Predicated region
      $region57: #{alexnet_cbam3_forward.25} parent=5 // pred_check
        %p1385 = pneg %p1384
      $region58: #{alexnet_cbam3_forward.25} parent=5 // pred_check_branch
        %1387 = sbr.rel (%p1385) target = $region60
      $region59: #{alexnet_cbam3_forward.25} parent=5 // pred_region
        %s1388 = ssub.s32 %s18, 2
        // Predicated region
        $region61: #{alexnet_cbam3_forward.25} parent=59 // pred_check
          %p1389 = pneg %p150
        $region62: #{alexnet_cbam3_forward.25} parent=59 // pred_check_branch
          %1391 = sbr.rel (%p1389) target = $region64
        $region63: #{alexnet_cbam3_forward.25} parent=59 // pred_region
          %s1392 = sand.u32 %s135, 1
          %s1393 = scalar_lea.sflag [#allocation4], %s1392
          %s1394 = sand.u32 %s135, 1
          %s1395 = smul.addr %s1394, 64
          %s1396 = scalar_lea.vmem [#allocation8], %s1395
          %1397 = dma.done %s1393, 1024
        $region64: #{alexnet_cbam3_forward.25} parent=59 // pred_fallthru
          _
      $region60: #{alexnet_cbam3_forward.25} parent=5 // pred_fallthru
        _
    $region6: #{alexnet_cbam3_forward.25} parent=1 // loop_footer
      %s22 = sadd.s32 1, %s18
    $region7: #{alexnet_cbam3_forward.25} parent=1 // loop_footer_branch
      %17 = sbr.rel target = $region3
    $region8: #{alexnet_cbam3_forward.25} parent=1 // loop_exit
      _
    %1398 = vsyncpa [#allocation3], 1
    %s1399 = scalar_lea.sflag [#allocation3], 1
    %1400 = vsyncpa %s1399, 1
    %1401 = vsyncpa [#allocation6], 1
    %s1402 = scalar_lea.sflag [#allocation6], 1
    %1403 = vsyncpa %s1402, 1
    %1404 = vsyncpa [#allocation4], 1
    %s1405 = scalar_lea.sflag [#allocation4], 1
    %1406 = vsyncpa %s1405, 1

// kernel: alexnet_cbam3_forward.26
$region0: #{alexnet_cbam3_forward.26}
  #allocation0 [shape = 'u32[]', space=smem, size = 0x4, offset = 0x4, fixed_abs, tag = 'smem constant byte address 0x4 - core index']
  #allocation1 [shape = 'u32[144,128]{1,0:T(1,128)}', space=vmem, size = 0x12000, scoped, tag = 'internal scratch']
  %s0 = inlined_call_operand.hbm [shape: bf16[16,4096], index: 0, kind: input, shape index: {}]
  %s1 = inlined_call_operand.vmem [shape: bf16[4096,4096], index: 1, kind: input, shape index: {}]
  %s2 = inlined_call_operand.hbm [shape: f32[1,4096], index: 2, kind: input, shape index: {}]
  %s3 = inlined_call_operand.hbm [shape: f32[16,4096], index: 3, kind: output, shape index: {}]
  %s4 = sld [smem:[#allocation0]]
  $region84: #{alexnet_cbam3_forward.26} parent=0
    _
  %s6 = ssub.s32 1, %s4
  %s7 = scalar_select 0, %s6, %s4
  $region1: #{alexnet_cbam3_forward.26} parent=0
    #allocation2 [shape = 'u8[32768]{0}', space=vmem, size = 0x8000, scoped, tag = 'input window, operand 0']
    #allocation3 [shape = 's32[2]{0}', space=sflag, size = 0x8, scoped, tag = 'scoped memory for alexnet_cbam3_forward.26']
    #allocation4 [shape = 's32[2]{0}', space=sflag, size = 0x8, scoped, tag = 'scoped memory for alexnet_cbam3_forward.26']
    #allocation5 [shape = 'u8[1048576]{0}', space=vmem, size = 0x100000, scoped, tag = 'input window, operand 1']
    #allocation6 [shape = 'u8[4096]{0}', space=vmem, size = 0x1000, scoped, tag = 'input window, operand 2']
    #allocation7 [shape = 's32[2]{0}', space=sflag, size = 0x8, scoped, tag = 'scoped memory for alexnet_cbam3_forward.26']
    #allocation8 [shape = 'u8[65536]{0}', space=vmem, size = 0x10000, scoped, tag = 'output window, operand 0']
    %8 = vsyncpa [#allocation3], 0
    %s9 = scalar_lea.sflag [#allocation3], 1
    %10 = vsyncpa %s9, 0
    %11 = vsyncpa [#allocation7], 0
    %s12 = scalar_lea.sflag [#allocation7], 1
    %13 = vsyncpa %s12, 0
    %14 = vsyncpa [#allocation4], 0
    %s15 = scalar_lea.sflag [#allocation4], 1
    %16 = vsyncpa %s15, 0
    loop: start=0, step=1, limit=66
    $region2: #{alexnet_cbam3_forward.26} parent=1 // loop_pre_header
      _
    $region3: #{alexnet_cbam3_forward.26} parent=1 // loop_header
      %s18 = sphi 0, %s22
      %p19 = scmp.ge.s32.totalorder %s18, 66
      %s25 = sphi 0, %s44
      %s26 = sphi 0, %s40
      %s27 = sphi 0, %s36
      %s28 = sphi 0, %s25
      %s29 = sphi 0, %s26
      %s30 = sphi 0, %s27
      %s31 = sphi 0, %s28
      %s32 = sphi 0, %s29
      %s33 = sphi 0, %s30
      %s49 = sphi 0, %s51
      %s52 = sphi 0, %s49
      %s53 = sphi 0, %s52
      %s69 = sphi 0, %s53
      %s77 = sphi 0, %s79
      %s80 = sphi 0, %s77
      %s81 = sphi 0, %s80
      %s97 = sphi 0, %s81
      %s103 = sphi 0, %s105
      %s106 = sphi 0, %s103
      %s107 = sphi 0, %s106
      %s123 = sphi 0, %s107
      %s131 = sphi 0, %s133
      %s134 = sphi 0, %s131
      %s135 = sphi 0, %s134
      %s151 = sphi 0, %s135
    $region4: #{alexnet_cbam3_forward.26} parent=1 // loop_header_branch
      %21 = sbr.rel (%p19) target = $region8
    $region5: #{alexnet_cbam3_forward.26} parent=1 // loop_body
      %s23 = ssub.s32 %s18, 1
      %s24 = ssub.s32 %s18, 2
      %s34 = sadd.s32 1, %s27
      %p35 = scmp.ge.s32.totalorder %s34, 8
      %s36 = scalar_select %p35, 0, %s34
      %s37 = sadd.s32 1, %s26
      %s38 = scalar_select %p35, %s37, %s26
      %p39 = scmp.ge.s32.totalorder %s38, 8
      %s40 = scalar_select %p39, 0, %s38
      %s41 = sadd.s32 1, %s25
      %s42 = scalar_select %p39, %s41, %s25
      %p43 = scmp.ge.s32.totalorder %s42, 1
      %s44 = scalar_select %p43, 0, %s42
      %s45 = ssub.s32 %s25, %s44
      %s46 = ssub.s32 %s27, %s36
      %s47 = sor.u32 %s45, %s46
      %p48 = scmp.eq.s32.totalorder %s47, 0
      %s50 = sadd.s32 %s49, 1
      %s51 = scalar_select %p48, %s49, %s50
      %p54 = pneg %p48
      %p55 = scmp.eq.s32.totalorder %s18, 63
      %p56 = por %p54, %p55
      %p57 = scmp.ne.s32.totalorder %s49, %s52
      %p58 = scmp.eq.s32.totalorder %s18, 0
      %p59 = por %p57, %p58
      %p60 = scmp.ne.s32.totalorder %s49, %s52
      %p61 = scmp.eq.s32.totalorder %s23, 63
      %p62 = por %p60, %p61
      %p63 = scmp.ne.s32.totalorder %s52, %s53
      %p64 = scmp.eq.s32.totalorder %s23, 0
      %p65 = por %p63, %p64
      %p66 = scmp.ne.s32.totalorder %s52, %s53
      %p67 = scmp.eq.s32.totalorder %s24, 63
      %p68 = por %p66, %p67
      %p70 = scmp.ne.s32.totalorder %s53, %s69
      %p71 = scmp.eq.s32.totalorder %s24, 0
      %p72 = por %p70, %p71
      %s73 = ssub.s32 %s27, %s36
      %s74 = ssub.s32 %s26, %s40
      %s75 = sor.u32 %s73, %s74
      %p76 = scmp.eq.s32.totalorder %s75, 0
      %s78 = sadd.s32 %s77, 1
      %s79 = scalar_select %p76, %s77, %s78
      %p82 = pneg %p76
      %p83 = scmp.eq.s32.totalorder %s18, 63
      %p84 = por %p82, %p83
      %p85 = scmp.ne.s32.totalorder %s77, %s80
      %p86 = scmp.eq.s32.totalorder %s18, 0
      %p87 = por %p85, %p86
      %p88 = scmp.ne.s32.totalorder %s77, %s80
      %p89 = scmp.eq.s32.totalorder %s23, 63
      %p90 = por %p88, %p89
      %p91 = scmp.ne.s32.totalorder %s80, %s81
      %p92 = scmp.eq.s32.totalorder %s23, 0
      %p93 = por %p91, %p92
      %p94 = scmp.ne.s32.totalorder %s80, %s81
      %p95 = scmp.eq.s32.totalorder %s24, 63
      %p96 = por %p94, %p95
      %p98 = scmp.ne.s32.totalorder %s81, %s97
      %p99 = scmp.eq.s32.totalorder %s24, 0
      %p100 = por %p98, %p99
      %s101 = ssub.s32 %s26, %s40
      %p102 = scmp.eq.s32.totalorder %s101, 0
      %s104 = sadd.s32 %s103, 1
      %s105 = scalar_select %p102, %s103, %s104
      %p108 = pneg %p102
      %p109 = scmp.eq.s32.totalorder %s18, 63
      %p110 = por %p108, %p109
      %p111 = scmp.ne.s32.totalorder %s103, %s106
      %p112 = scmp.eq.s32.totalorder %s18, 0
      %p113 = por %p111, %p112
      %p114 = scmp.ne.s32.totalorder %s103, %s106
      %p115 = scmp.eq.s32.totalorder %s23, 63
      %p116 = por %p114, %p115
      %p117 = scmp.ne.s32.totalorder %s106, %s107
      %p118 = scmp.eq.s32.totalorder %s23, 0
      %p119 = por %p117, %p118
      %p120 = scmp.ne.s32.totalorder %s106, %s107
      %p121 = scmp.eq.s32.totalorder %s24, 63
      %p122 = por %p120, %p121
      %p124 = scmp.ne.s32.totalorder %s107, %s123
      %p125 = scmp.eq.s32.totalorder %s24, 0
      %p126 = por %p124, %p125
      %s127 = ssub.s32 %s25, %s44
      %s128 = ssub.s32 %s26, %s40
      %s129 = sor.u32 %s127, %s128
      %p130 = scmp.eq.s32.totalorder %s129, 0
      %s132 = sadd.s32 %s131, 1
      %s133 = scalar_select %p130, %s131, %s132
      %p136 = pneg %p130
      %p137 = scmp.eq.s32.totalorder %s18, 63
      %p138 = por %p136, %p137
      %p139 = scmp.ne.s32.totalorder %s131, %s134
      %p140 = scmp.eq.s32.totalorder %s18, 0
      %p141 = por %p139, %p140
      %p142 = scmp.ne.s32.totalorder %s131, %s134
      %p143 = scmp.eq.s32.totalorder %s23, 63
      %p144 = por %p142, %p143
      %p145 = scmp.ne.s32.totalorder %s134, %s135
      %p146 = scmp.eq.s32.totalorder %s23, 0
      %p147 = por %p145, %p146
      %p148 = scmp.ne.s32.totalorder %s134, %s135
      %p149 = scmp.eq.s32.totalorder %s24, 63
      %p150 = por %p148, %p149
      %p152 = scmp.ne.s32.totalorder %s135, %s151
      %p153 = scmp.eq.s32.totalorder %s24, 0
      %p154 = por %p152, %p153
      %p155 = scmp.le.s32.totalorder 1, %s18
      %p156 = scmp.lt.s32.totalorder %s18, 65
      %p157 = pnand %p155, %p156
      %p158 = pneg %p157
      // Predicated region
      $region9: #{alexnet_cbam3_forward.26} parent=5 // pred_check
        _
      $region10: #{alexnet_cbam3_forward.26} parent=5 // pred_check_branch
        %160 = sbr.rel (%p157) target = $region12
      $region11: #{alexnet_cbam3_forward.26} parent=5 // pred_region
        %s161 = ssub.s32 %s18, 1
      $region12: #{alexnet_cbam3_forward.26} parent=5 // pred_fallthru
        _
      %p162 = scmp.lt.s32.totalorder %s18, 64
      // Predicated region
      $region13: #{alexnet_cbam3_forward.26} parent=5 // pred_check
        %p163 = pneg %p162
      $region14: #{alexnet_cbam3_forward.26} parent=5 // pred_check_branch
        %165 = sbr.rel (%p163) target = $region16
      $region15: #{alexnet_cbam3_forward.26} parent=5 // pred_region
        // Predicated region
        $region17: #{alexnet_cbam3_forward.26} parent=15 // pred_check
          %p166 = pneg %p59
        $region18: #{alexnet_cbam3_forward.26} parent=15 // pred_check_branch
          %168 = sbr.rel (%p166) target = $region20
        $region19: #{alexnet_cbam3_forward.26} parent=15 // pred_region
          %s169 = sand.u32 %s49, 1
          %s170 = scalar_lea.sflag [#allocation3], %s169
          %s171 = sand.u32 %s49, 1
          %s172 = smul.addr %s171, 32
          %s173 = scalar_lea.vmem [#allocation2], %s172
          %s174 = smul.u32 2, %s25
          %s175 = smul.u32 4, %s27
          %s177 = ssub.s32 512, 512
          %178 = vsyncadd %s170, %s177
          %s179 = smul.addr %s174, 32
          %s180 = sadd.s32 %s175, %s179
          %s181 = smul.addr %s180, 64
          %s182 = scalar_lea.hbm %s0, %s181
          %s183 = sshll.u32 %s173, 4
          %s184 = int_to_ptr.vmem [resolvable:$true] %s183
          %189 = dma.hbm_to_vmem [thread:$0]  %s182, 512, %s184, %s170, 2048, 256, 16
        $region20: #{alexnet_cbam3_forward.26} parent=15 // pred_fallthru
          _
        // Predicated region
        $region21: #{alexnet_cbam3_forward.26} parent=15 // pred_check
          %p190 = pneg %p87
        $region22: #{alexnet_cbam3_forward.26} parent=15 // pred_check_branch
          %192 = sbr.rel (%p190) target = $region24
        $region23: #{alexnet_cbam3_forward.26} parent=15 // pred_region
          %s193 = sand.u32 %s77, 1
          %s194 = sand.u32 %s77, 1
          %s195 = smul.addr %s194, 1024
          %s196 = scalar_lea.vmem [#allocation5], %s195
          %s197 = smul.u32 64, %s27
          %s198 = smul.u32 4, %s26
          %s199 = smul.addr %s197, 32
          %s200 = sadd.s32 %s198, %s199
          %s201 = smul.addr %s200, 4
          %s202 = scalar_lea.vmem %s1, %s201
          // Predicated region
          $region25: #{alexnet_cbam3_forward.26} parent=23 // pred_check
            _
          $region26: #{alexnet_cbam3_forward.26} parent=23 // pred_check_branch
            %204 = sbr.rel (0) target = $region28
          $region27: #{alexnet_cbam3_forward.26} parent=23 // pred_region
            // Predicated region
            $region29: #{alexnet_cbam3_forward.26} parent=27 // pred_check
              _
            $region30: #{alexnet_cbam3_forward.26} parent=27 // pred_check_branch
              %206 = sbr.rel (0) target = $region32
            $region31: #{alexnet_cbam3_forward.26} parent=27 // pred_region
              loop: start=0, step=1, limit=1
              $region33: #{alexnet_cbam3_forward.26} parent=31 // loop_pre_header
                _
              $region34: #{alexnet_cbam3_forward.26} parent=31 // loop_header
                %s208 = sphi 0, %s212
                %p209 = scmp.ge.s32.totalorder %s208, 1
                %s213 = sphi %s202, %s202
                %s214 = sphi %s196, %s196
              $region35: #{alexnet_cbam3_forward.26} parent=31 // loop_header_branch
                %211 = sbr.rel (%p209) target = $region39
              $region36: #{alexnet_cbam3_forward.26} parent=31 // loop_body
                %v215 = vld [vmem:[%s213] sm:$0xff]
                %216 = vst [vmem:[%s214] sm:$0xff] %v215
                %v217 = vld [vmem:[%s213 + $0x8] sm:$0xff]
                %218 = vst [vmem:[%s214 + $0x8] sm:$0xff] %v217
                %v219 = vld [vmem:[%s213 + $0x80] sm:$0xff]
                %220 = vst [vmem:[%s214 + $0x10] sm:$0xff] %v219
                %v221 = vld [vmem:[%s213 + $0x88] sm:$0xff]
                %222 = vst [vmem:[%s214 + $0x18] sm:$0xff] %v221
                %v223 = vld [vmem:[%s213 + $0x100] sm:$0xff]
                %224 = vst [vmem:[%s214 + $0x20] sm:$0xff] %v223
                %v225 = vld [vmem:[%s213 + $0x108] sm:$0xff]
                %226 = vst [vmem:[%s214 + $0x28] sm:$0xff] %v225
                %v227 = vld [vmem:[%s213 + $0x180] sm:$0xff]
                %228 = vst [vmem:[%s214 + $0x30] sm:$0xff] %v227
                %v229 = vld [vmem:[%s213 + $0x188] sm:$0xff]
                %230 = vst [vmem:[%s214 + $0x38] sm:$0xff] %v229
                %v231 = vld [vmem:[%s213 + $0x200] sm:$0xff]
                %232 = vst [vmem:[%s214 + $0x40] sm:$0xff] %v231
                %v233 = vld [vmem:[%s213 + $0x208] sm:$0xff]
                %234 = vst [vmem:[%s214 + $0x48] sm:$0xff] %v233
                %v235 = vld [vmem:[%s213 + $0x280] sm:$0xff]
                %236 = vst [vmem:[%s214 + $0x50] sm:$0xff] %v235
                %v237 = vld [vmem:[%s213 + $0x288] sm:$0xff]
                %238 = vst [vmem:[%s214 + $0x58] sm:$0xff] %v237
                %v239 = vld [vmem:[%s213 + $0x300] sm:$0xff]
                %240 = vst [vmem:[%s214 + $0x60] sm:$0xff] %v239
                %v241 = vld [vmem:[%s213 + $0x308] sm:$0xff]
                %242 = vst [vmem:[%s214 + $0x68] sm:$0xff] %v241
                %v243 = vld [vmem:[%s213 + $0x380] sm:$0xff]
                %244 = vst [vmem:[%s214 + $0x70] sm:$0xff] %v243
                %v245 = vld [vmem:[%s213 + $0x388] sm:$0xff]
                %246 = vst [vmem:[%s214 + $0x78] sm:$0xff] %v245
                %v247 = vld [vmem:[%s213 + $0x400] sm:$0xff]
                %248 = vst [vmem:[%s214 + $0x80] sm:$0xff] %v247
                %v249 = vld [vmem:[%s213 + $0x408] sm:$0xff]
                %250 = vst [vmem:[%s214 + $0x88] sm:$0xff] %v249
                %v251 = vld [vmem:[%s213 + $0x480] sm:$0xff]
                %252 = vst [vmem:[%s214 + $0x90] sm:$0xff] %v251
                %v253 = vld [vmem:[%s213 + $0x488] sm:$0xff]
                %254 = vst [vmem:[%s214 + $0x98] sm:$0xff] %v253
                %v255 = vld [vmem:[%s213 + $0x500] sm:$0xff]
                %256 = vst [vmem:[%s214 + $0xa0] sm:$0xff] %v255
                %v257 = vld [vmem:[%s213 + $0x508] sm:$0xff]
                %258 = vst [vmem:[%s214 + $0xa8] sm:$0xff] %v257
                %v259 = vld [vmem:[%s213 + $0x580] sm:$0xff]
                %260 = vst [vmem:[%s214 + $0xb0] sm:$0xff] %v259
                %v261 = vld [vmem:[%s213 + $0x588] sm:$0xff]
                %262 = vst [vmem:[%s214 + $0xb8] sm:$0xff] %v261
                %v263 = vld [vmem:[%s213 + $0x600] sm:$0xff]
                %264 = vst [vmem:[%s214 + $0xc0] sm:$0xff] %v263
                %v265 = vld [vmem:[%s213 + $0x608] sm:$0xff]
                %266 = vst [vmem:[%s214 + $0xc8] sm:$0xff] %v265
                %v267 = vld [vmem:[%s213 + $0x680] sm:$0xff]
                %268 = vst [vmem:[%s214 + $0xd0] sm:$0xff] %v267
                %v269 = vld [vmem:[%s213 + $0x688] sm:$0xff]
                %270 = vst [vmem:[%s214 + $0xd8] sm:$0xff] %v269
                %v271 = vld [vmem:[%s213 + $0x700] sm:$0xff]
                %272 = vst [vmem:[%s214 + $0xe0] sm:$0xff] %v271
                %v273 = vld [vmem:[%s213 + $0x708] sm:$0xff]
                %274 = vst [vmem:[%s214 + $0xe8] sm:$0xff] %v273
                %v275 = vld [vmem:[%s213 + $0x780] sm:$0xff]
                %276 = vst [vmem:[%s214 + $0xf0] sm:$0xff] %v275
                %v277 = vld [vmem:[%s213 + $0x788] sm:$0xff]
                %278 = vst [vmem:[%s214 + $0xf8] sm:$0xff] %v277
                %v279 = vld [vmem:[%s213 + $0x800] sm:$0xff]
                %280 = vst [vmem:[%s214 + $0x100] sm:$0xff] %v279
                %v281 = vld [vmem:[%s213 + $0x808] sm:$0xff]
                %282 = vst [vmem:[%s214 + $0x108] sm:$0xff] %v281
                %v283 = vld [vmem:[%s213 + $0x880] sm:$0xff]
                %284 = vst [vmem:[%s214 + $0x110] sm:$0xff] %v283
                %v285 = vld [vmem:[%s213 + $0x888] sm:$0xff]
                %286 = vst [vmem:[%s214 + $0x118] sm:$0xff] %v285
                %v287 = vld [vmem:[%s213 + $0x900] sm:$0xff]
                %288 = vst [vmem:[%s214 + $0x120] sm:$0xff] %v287
                %v289 = vld [vmem:[%s213 + $0x908] sm:$0xff]
                %290 = vst [vmem:[%s214 + $0x128] sm:$0xff] %v289
                %v291 = vld [vmem:[%s213 + $0x980] sm:$0xff]
                %292 = vst [vmem:[%s214 + $0x130] sm:$0xff] %v291
                %v293 = vld [vmem:[%s213 + $0x988] sm:$0xff]
                %294 = vst [vmem:[%s214 + $0x138] sm:$0xff] %v293
                %v295 = vld [vmem:[%s213 + $0xa00] sm:$0xff]
                %296 = vst [vmem:[%s214 + $0x140] sm:$0xff] %v295
                %v297 = vld [vmem:[%s213 + $0xa08] sm:$0xff]
                %298 = vst [vmem:[%s214 + $0x148] sm:$0xff] %v297
                %v299 = vld [vmem:[%s213 + $0xa80] sm:$0xff]
                %300 = vst [vmem:[%s214 + $0x150] sm:$0xff] %v299
                %v301 = vld [vmem:[%s213 + $0xa88] sm:$0xff]
                %302 = vst [vmem:[%s214 + $0x158] sm:$0xff] %v301
                %v303 = vld [vmem:[%s213 + $0xb00] sm:$0xff]
                %304 = vst [vmem:[%s214 + $0x160] sm:$0xff] %v303
                %v305 = vld [vmem:[%s213 + $0xb08] sm:$0xff]
                %306 = vst [vmem:[%s214 + $0x168] sm:$0xff] %v305
                %v307 = vld [vmem:[%s213 + $0xb80] sm:$0xff]
                %308 = vst [vmem:[%s214 + $0x170] sm:$0xff] %v307
                %v309 = vld [vmem:[%s213 + $0xb88] sm:$0xff]
                %310 = vst [vmem:[%s214 + $0x178] sm:$0xff] %v309
                %v311 = vld [vmem:[%s213 + $0xc00] sm:$0xff]
                %312 = vst [vmem:[%s214 + $0x180] sm:$0xff] %v311
                %v313 = vld [vmem:[%s213 + $0xc08] sm:$0xff]
                %314 = vst [vmem:[%s214 + $0x188] sm:$0xff] %v313
                %v315 = vld [vmem:[%s213 + $0xc80] sm:$0xff]
                %316 = vst [vmem:[%s214 + $0x190] sm:$0xff] %v315
                %v317 = vld [vmem:[%s213 + $0xc88] sm:$0xff]
                %318 = vst [vmem:[%s214 + $0x198] sm:$0xff] %v317
                %v319 = vld [vmem:[%s213 + $0xd00] sm:$0xff]
                %320 = vst [vmem:[%s214 + $0x1a0] sm:$0xff] %v319
                %v321 = vld [vmem:[%s213 + $0xd08] sm:$0xff]
                %322 = vst [vmem:[%s214 + $0x1a8] sm:$0xff] %v321
                %v323 = vld [vmem:[%s213 + $0xd80] sm:$0xff]
                %324 = vst [vmem:[%s214 + $0x1b0] sm:$0xff] %v323
                %v325 = vld [vmem:[%s213 + $0xd88] sm:$0xff]
                %326 = vst [vmem:[%s214 + $0x1b8] sm:$0xff] %v325
                %v327 = vld [vmem:[%s213 + $0xe00] sm:$0xff]
                %328 = vst [vmem:[%s214 + $0x1c0] sm:$0xff] %v327
                %v329 = vld [vmem:[%s213 + $0xe08] sm:$0xff]
                %330 = vst [vmem:[%s214 + $0x1c8] sm:$0xff] %v329
                %v331 = vld [vmem:[%s213 + $0xe80] sm:$0xff]
                %332 = vst [vmem:[%s214 + $0x1d0] sm:$0xff] %v331
                %v333 = vld [vmem:[%s213 + $0xe88] sm:$0xff]
                %334 = vst [vmem:[%s214 + $0x1d8] sm:$0xff] %v333
                %v335 = vld [vmem:[%s213 + $0xf00] sm:$0xff]
                %336 = vst [vmem:[%s214 + $0x1e0] sm:$0xff] %v335
                %v337 = vld [vmem:[%s213 + $0xf08] sm:$0xff]
                %338 = vst [vmem:[%s214 + $0x1e8] sm:$0xff] %v337
                %v339 = vld [vmem:[%s213 + $0xf80] sm:$0xff]
                %340 = vst [vmem:[%s214 + $0x1f0] sm:$0xff] %v339
                %v341 = vld [vmem:[%s213 + $0xf88] sm:$0xff]
                %342 = vst [vmem:[%s214 + $0x1f8] sm:$0xff] %v341
                %v343 = vld [vmem:[%s213 + $0x1000] sm:$0xff]
                %344 = vst [vmem:[%s214 + $0x200] sm:$0xff] %v343
                %v345 = vld [vmem:[%s213 + $0x1008] sm:$0xff]
                %346 = vst [vmem:[%s214 + $0x208] sm:$0xff] %v345
                %v347 = vld [vmem:[%s213 + $0x1080] sm:$0xff]
                %348 = vst [vmem:[%s214 + $0x210] sm:$0xff] %v347
                %v349 = vld [vmem:[%s213 + $0x1088] sm:$0xff]
                %350 = vst [vmem:[%s214 + $0x218] sm:$0xff] %v349
                %v351 = vld [vmem:[%s213 + $0x1100] sm:$0xff]
                %352 = vst [vmem:[%s214 + $0x220] sm:$0xff] %v351
                %v353 = vld [vmem:[%s213 + $0x1108] sm:$0xff]
                %354 = vst [vmem:[%s214 + $0x228] sm:$0xff] %v353
                %v355 = vld [vmem:[%s213 + $0x1180] sm:$0xff]
                %356 = vst [vmem:[%s214 + $0x230] sm:$0xff] %v355
                %v357 = vld [vmem:[%s213 + $0x1188] sm:$0xff]
                %358 = vst [vmem:[%s214 + $0x238] sm:$0xff] %v357
                %v359 = vld [vmem:[%s213 + $0x1200] sm:$0xff]
                %360 = vst [vmem:[%s214 + $0x240] sm:$0xff] %v359
                %v361 = vld [vmem:[%s213 + $0x1208] sm:$0xff]
                %362 = vst [vmem:[%s214 + $0x248] sm:$0xff] %v361
                %v363 = vld [vmem:[%s213 + $0x1280] sm:$0xff]
                %364 = vst [vmem:[%s214 + $0x250] sm:$0xff] %v363
                %v365 = vld [vmem:[%s213 + $0x1288] sm:$0xff]
                %366 = vst [vmem:[%s214 + $0x258] sm:$0xff] %v365
                %v367 = vld [vmem:[%s213 + $0x1300] sm:$0xff]
                %368 = vst [vmem:[%s214 + $0x260] sm:$0xff] %v367
                %v369 = vld [vmem:[%s213 + $0x1308] sm:$0xff]
                %370 = vst [vmem:[%s214 + $0x268] sm:$0xff] %v369
                %v371 = vld [vmem:[%s213 + $0x1380] sm:$0xff]
                %372 = vst [vmem:[%s214 + $0x270] sm:$0xff] %v371
                %v373 = vld [vmem:[%s213 + $0x1388] sm:$0xff]
                %374 = vst [vmem:[%s214 + $0x278] sm:$0xff] %v373
                %v375 = vld [vmem:[%s213 + $0x1400] sm:$0xff]
                %376 = vst [vmem:[%s214 + $0x280] sm:$0xff] %v375
                %v377 = vld [vmem:[%s213 + $0x1408] sm:$0xff]
                %378 = vst [vmem:[%s214 + $0x288] sm:$0xff] %v377
                %v379 = vld [vmem:[%s213 + $0x1480] sm:$0xff]
                %380 = vst [vmem:[%s214 + $0x290] sm:$0xff] %v379
                %v381 = vld [vmem:[%s213 + $0x1488] sm:$0xff]
                %382 = vst [vmem:[%s214 + $0x298] sm:$0xff] %v381
                %v383 = vld [vmem:[%s213 + $0x1500] sm:$0xff]
                %384 = vst [vmem:[%s214 + $0x2a0] sm:$0xff] %v383
                %v385 = vld [vmem:[%s213 + $0x1508] sm:$0xff]
                %386 = vst [vmem:[%s214 + $0x2a8] sm:$0xff] %v385
                %v387 = vld [vmem:[%s213 + $0x1580] sm:$0xff]
                %388 = vst [vmem:[%s214 + $0x2b0] sm:$0xff] %v387
                %v389 = vld [vmem:[%s213 + $0x1588] sm:$0xff]
                %390 = vst [vmem:[%s214 + $0x2b8] sm:$0xff] %v389
                %v391 = vld [vmem:[%s213 + $0x1600] sm:$0xff]
                %392 = vst [vmem:[%s214 + $0x2c0] sm:$0xff] %v391
                %v393 = vld [vmem:[%s213 + $0x1608] sm:$0xff]
                %394 = vst [vmem:[%s214 + $0x2c8] sm:$0xff] %v393
                %v395 = vld [vmem:[%s213 + $0x1680] sm:$0xff]
                %396 = vst [vmem:[%s214 + $0x2d0] sm:$0xff] %v395
                %v397 = vld [vmem:[%s213 + $0x1688] sm:$0xff]
                %398 = vst [vmem:[%s214 + $0x2d8] sm:$0xff] %v397
                %v399 = vld [vmem:[%s213 + $0x1700] sm:$0xff]
                %400 = vst [vmem:[%s214 + $0x2e0] sm:$0xff] %v399
                %v401 = vld [vmem:[%s213 + $0x1708] sm:$0xff]
                %402 = vst [vmem:[%s214 + $0x2e8] sm:$0xff] %v401
                %v403 = vld [vmem:[%s213 + $0x1780] sm:$0xff]
                %404 = vst [vmem:[%s214 + $0x2f0] sm:$0xff] %v403
                %v405 = vld [vmem:[%s213 + $0x1788] sm:$0xff]
                %406 = vst [vmem:[%s214 + $0x2f8] sm:$0xff] %v405
                %v407 = vld [vmem:[%s213 + $0x1800] sm:$0xff]
                %408 = vst [vmem:[%s214 + $0x300] sm:$0xff] %v407
                %v409 = vld [vmem:[%s213 + $0x1808] sm:$0xff]
                %410 = vst [vmem:[%s214 + $0x308] sm:$0xff] %v409
                %v411 = vld [vmem:[%s213 + $0x1880] sm:$0xff]
                %412 = vst [vmem:[%s214 + $0x310] sm:$0xff] %v411
                %v413 = vld [vmem:[%s213 + $0x1888] sm:$0xff]
                %414 = vst [vmem:[%s214 + $0x318] sm:$0xff] %v413
                %v415 = vld [vmem:[%s213 + $0x1900] sm:$0xff]
                %416 = vst [vmem:[%s214 + $0x320] sm:$0xff] %v415
                %v417 = vld [vmem:[%s213 + $0x1908] sm:$0xff]
                %418 = vst [vmem:[%s214 + $0x328] sm:$0xff] %v417
                %v419 = vld [vmem:[%s213 + $0x1980] sm:$0xff]
                %420 = vst [vmem:[%s214 + $0x330] sm:$0xff] %v419
                %v421 = vld [vmem:[%s213 + $0x1988] sm:$0xff]
                %422 = vst [vmem:[%s214 + $0x338] sm:$0xff] %v421
                %v423 = vld [vmem:[%s213 + $0x1a00] sm:$0xff]
                %424 = vst [vmem:[%s214 + $0x340] sm:$0xff] %v423
                %v425 = vld [vmem:[%s213 + $0x1a08] sm:$0xff]
                %426 = vst [vmem:[%s214 + $0x348] sm:$0xff] %v425
                %v427 = vld [vmem:[%s213 + $0x1a80] sm:$0xff]
                %428 = vst [vmem:[%s214 + $0x350] sm:$0xff] %v427
                %v429 = vld [vmem:[%s213 + $0x1a88] sm:$0xff]
                %430 = vst [vmem:[%s214 + $0x358] sm:$0xff] %v429
                %v431 = vld [vmem:[%s213 + $0x1b00] sm:$0xff]
                %432 = vst [vmem:[%s214 + $0x360] sm:$0xff] %v431
                %v433 = vld [vmem:[%s213 + $0x1b08] sm:$0xff]
                %434 = vst [vmem:[%s214 + $0x368] sm:$0xff] %v433
                %v435 = vld [vmem:[%s213 + $0x1b80] sm:$0xff]
                %436 = vst [vmem:[%s214 + $0x370] sm:$0xff] %v435
                %v437 = vld [vmem:[%s213 + $0x1b88] sm:$0xff]
                %438 = vst [vmem:[%s214 + $0x378] sm:$0xff] %v437
                %v439 = vld [vmem:[%s213 + $0x1c00] sm:$0xff]
                %440 = vst [vmem:[%s214 + $0x380] sm:$0xff] %v439
                %v441 = vld [vmem:[%s213 + $0x1c08] sm:$0xff]
                %442 = vst [vmem:[%s214 + $0x388] sm:$0xff] %v441
                %v443 = vld [vmem:[%s213 + $0x1c80] sm:$0xff]
                %444 = vst [vmem:[%s214 + $0x390] sm:$0xff] %v443
                %v445 = vld [vmem:[%s213 + $0x1c88] sm:$0xff]
                %446 = vst [vmem:[%s214 + $0x398] sm:$0xff] %v445
                %v447 = vld [vmem:[%s213 + $0x1d00] sm:$0xff]
                %448 = vst [vmem:[%s214 + $0x3a0] sm:$0xff] %v447
                %v449 = vld [vmem:[%s213 + $0x1d08] sm:$0xff]
                %450 = vst [vmem:[%s214 + $0x3a8] sm:$0xff] %v449
                %v451 = vld [vmem:[%s213 + $0x1d80] sm:$0xff]
                %452 = vst [vmem:[%s214 + $0x3b0] sm:$0xff] %v451
                %v453 = vld [vmem:[%s213 + $0x1d88] sm:$0xff]
                %454 = vst [vmem:[%s214 + $0x3b8] sm:$0xff] %v453
                %v455 = vld [vmem:[%s213 + $0x1e00] sm:$0xff]
                %456 = vst [vmem:[%s214 + $0x3c0] sm:$0xff] %v455
                %v457 = vld [vmem:[%s213 + $0x1e08] sm:$0xff]
                %458 = vst [vmem:[%s214 + $0x3c8] sm:$0xff] %v457
                %v459 = vld [vmem:[%s213 + $0x1e80] sm:$0xff]
                %460 = vst [vmem:[%s214 + $0x3d0] sm:$0xff] %v459
                %v461 = vld [vmem:[%s213 + $0x1e88] sm:$0xff]
                %462 = vst [vmem:[%s214 + $0x3d8] sm:$0xff] %v461
                %v463 = vld [vmem:[%s213 + $0x1f00] sm:$0xff]
                %464 = vst [vmem:[%s214 + $0x3e0] sm:$0xff] %v463
                %v465 = vld [vmem:[%s213 + $0x1f08] sm:$0xff]
                %466 = vst [vmem:[%s214 + $0x3e8] sm:$0xff] %v465
                %v467 = vld [vmem:[%s213 + $0x1f80] sm:$0xff]
                %468 = vst [vmem:[%s214 + $0x3f0] sm:$0xff] %v467
                %v469 = vld [vmem:[%s213 + $0x1f88] sm:$0xff]
                %470 = vst [vmem:[%s214 + $0x3f8] sm:$0xff] %v469
              $region37: #{alexnet_cbam3_forward.26} parent=31 // loop_footer
                %s212 = sadd.s32 1, %s208
              $region38: #{alexnet_cbam3_forward.26} parent=31 // loop_footer_branch
                %207 = sbr.rel target = $region34
              $region39: #{alexnet_cbam3_forward.26} parent=31 // loop_exit
                _
            $region32: #{alexnet_cbam3_forward.26} parent=27 // pred_fallthru
              _
            // Predicated region
            $region40: #{alexnet_cbam3_forward.26} parent=27 // pred_check
              _
            $region41: #{alexnet_cbam3_forward.26} parent=27 // pred_check_branch
              %472 = sbr.rel target = $region43
            $region42: #{alexnet_cbam3_forward.26} parent=27 // pred_region
              _
            $region43: #{alexnet_cbam3_forward.26} parent=27 // pred_fallthru
              _
          $region28: #{alexnet_cbam3_forward.26} parent=23 // pred_fallthru
            _
          %473 = vnop
        $region24: #{alexnet_cbam3_forward.26} parent=15 // pred_fallthru
          _
        // Predicated region
        $region44: #{alexnet_cbam3_forward.26} parent=15 // pred_check
          %p474 = pneg %p113
        $region45: #{alexnet_cbam3_forward.26} parent=15 // pred_check_branch
          %476 = sbr.rel (%p474) target = $region47
        $region46: #{alexnet_cbam3_forward.26} parent=15 // pred_region
          %s477 = sand.u32 %s103, 1
          %s478 = scalar_lea.sflag [#allocation7], %s477
          %s479 = sand.u32 %s103, 1
          %s480 = smul.addr %s479, 4
          %s481 = scalar_lea.vmem [#allocation6], %s480
          %s482 = smul.u32 4, %s26
          %s484 = ssub.s32 64, 64
          %485 = vsyncadd %s478, %s484
          %s486 = smul.addr %s482, 16
          %s487 = scalar_lea.hbm %s2, %s486
          %s489 = sshll.u32 %s481, 4
          %s490 = int_to_ptr.vmem [resolvable:$true] %s489
          %492 = dma.hbm_to_vmem [thread:$0]  %s487, 64, %s490, %s478
        $region47: #{alexnet_cbam3_forward.26} parent=15 // pred_fallthru
          _
      $region16: #{alexnet_cbam3_forward.26} parent=5 // pred_fallthru
        _
      %p493 = scmp.le.s32.totalorder 1, %s18
      %p494 = scmp.lt.s32.totalorder %s18, 65
      %p495 = pnand %p493, %p494
      %p496 = pneg %p495
      // Predicated region
      $region48: #{alexnet_cbam3_forward.26} parent=5 // pred_check
        _
      $region49: #{alexnet_cbam3_forward.26} parent=5 // pred_check_branch
        %498 = sbr.rel (%p495) target = $region51
      $region50: #{alexnet_cbam3_forward.26} parent=5 // pred_region
        %s499 = ssub.s32 %s18, 1
        %s500 = sand.u32 %s52, 1
        %s501 = scalar_lea.sflag [#allocation3], %s500
        %s502 = sand.u32 %s52, 1
        %s503 = smul.addr %s502, 32
        %s504 = scalar_lea.vmem [#allocation2], %s503
        // Predicated region
        $region52: #{alexnet_cbam3_forward.26} parent=50 // pred_check
          %p505 = pneg %p65
        $region53: #{alexnet_cbam3_forward.26} parent=50 // pred_check_branch
          %507 = sbr.rel (%p505) target = $region55
        $region54: #{alexnet_cbam3_forward.26} parent=50 // pred_region
          %508 = dma.done %s501, 512
        $region55: #{alexnet_cbam3_forward.26} parent=50 // pred_fallthru
          _
        %s509 = sand.u32 %s80, 1
        %s510 = sand.u32 %s80, 1
        %s511 = smul.addr %s510, 1024
        %s512 = scalar_lea.vmem [#allocation5], %s511
        // Predicated region
        $region56: #{alexnet_cbam3_forward.26} parent=50 // pred_check
          %p513 = pneg %p93
        $region57: #{alexnet_cbam3_forward.26} parent=50 // pred_check_branch
          %515 = sbr.rel (%p513) target = $region59
        $region58: #{alexnet_cbam3_forward.26} parent=50 // pred_region
          _
        $region59: #{alexnet_cbam3_forward.26} parent=50 // pred_fallthru
          _
        %s516 = sand.u32 %s106, 1
        %s517 = scalar_lea.sflag [#allocation7], %s516
        %s518 = sand.u32 %s106, 1
        %s519 = smul.addr %s518, 4
        %s520 = scalar_lea.vmem [#allocation6], %s519
        // Predicated region
        $region60: #{alexnet_cbam3_forward.26} parent=50 // pred_check
          %p521 = pneg %p119
        $region61: #{alexnet_cbam3_forward.26} parent=50 // pred_check_branch
          %523 = sbr.rel (%p521) target = $region63
        $region62: #{alexnet_cbam3_forward.26} parent=50 // pred_region
          %524 = dma.done %s517, 64
        $region63: #{alexnet_cbam3_forward.26} parent=50 // pred_fallthru
          _
        %s525 = sand.u32 %s52, 1
        %s526 = scalar_lea.sflag [#allocation3], %s525
        %s527 = sand.u32 %s52, 1
        %s528 = smul.addr %s527, 32
        %s529 = scalar_lea.vmem [#allocation2], %s528
        %p530 = pneg %p65
        %p531 = pneg %p62
        %s532 = sand.u32 %s80, 1
        %s533 = sand.u32 %s80, 1
        %s534 = smul.addr %s533, 1024
        %s535 = scalar_lea.vmem [#allocation5], %s534
        %p536 = pneg %p93
        %p537 = pneg %p90
        %s538 = sand.u32 %s106, 1
        %s539 = scalar_lea.sflag [#allocation7], %s538
        %s540 = sand.u32 %s106, 1
        %s541 = smul.addr %s540, 4
        %s542 = scalar_lea.vmem [#allocation6], %s541
        %p543 = pneg %p119
        %p544 = pneg %p116
        %p545 = pneg %p147
        %p546 = pneg %p144
        %s547 = sand.u32 %s134, 1
        %s548 = scalar_lea.sflag [#allocation4], %s547
        %s549 = sand.u32 %s134, 1
        %s550 = smul.addr %s549, 64
        %s551 = scalar_lea.vmem [#allocation8], %s550
        %s552 = smul.u32 2, %s28
        %s553 = smul.u32 4, %s30
        %s554 = smul.u32 64, %s30
        %s555 = smul.u32 4, %s29
        %s556 = smul.u32 4, %s29
        %s557 = smul.u32 2, %s28
        %s558 = smul.u32 4, %s29
        %p559 = scmp.eq.s32.totalorder %s30, 0
        // Predicated region
        $region64: #{alexnet_cbam3_forward.26} parent=50 // pred_check
          %p560 = pneg %p559
        $region65: #{alexnet_cbam3_forward.26} parent=50 // pred_check_branch
          %562 = sbr.rel (%p560) target = $region67
        $region66: #{alexnet_cbam3_forward.26} parent=50 // pred_region
          %563 = vst [vmem:[%s551] sm:$0xff] 0.0
          %564 = vst [vmem:[%s551 + $0x8] sm:$0xff] 0.0
          %565 = vst [vmem:[%s551 + $0x10] sm:$0xff] 0.0
          %566 = vst [vmem:[%s551 + $0x18] sm:$0xff] 0.0
          %567 = vst [vmem:[%s551 + $0x20] sm:$0xff] 0.0
          %568 = vst [vmem:[%s551 + $0x28] sm:$0xff] 0.0
          %569 = vst [vmem:[%s551 + $0x30] sm:$0xff] 0.0
          %570 = vst [vmem:[%s551 + $0x38] sm:$0xff] 0.0
        $region67: #{alexnet_cbam3_forward.26} parent=50 // pred_fallthru
          _
        %v571 = vld [vmem:[%s551] sm:$0xff]
        %v572 = vld [vmem:[%s551 + $0x8] sm:$0xff]
        %v573 = vld [vmem:[%s551 + $0x10] sm:$0xff]
        %v574 = vld [vmem:[%s551 + $0x18] sm:$0xff]
        %v575 = vld [vmem:[%s551 + $0x20] sm:$0xff]
        %v576 = vld [vmem:[%s551 + $0x28] sm:$0xff]
        %v577 = vld [vmem:[%s551 + $0x30] sm:$0xff]
        %v578 = vld [vmem:[%s551 + $0x38] sm:$0xff]
        %v579 = vld [vmem:[%s504] sm:$0xff]
        %v580 = vld [vmem:[%s504 + $0x8] sm:$0xff]
        %v581 = vld [vmem:[%s504 + $0x10] sm:$0xff]
        %v582 = vld [vmem:[%s504 + $0x18] sm:$0xff]
        %v583 = vld [vmem:[%s512] sm:$0xff]
        %v584 = vld [vmem:[%s512 + $0x8] sm:$0xff]
        %v585 = vld [vmem:[%s512 + $0x10] sm:$0xff]
        %v586 = vld [vmem:[%s512 + $0x18] sm:$0xff]
        %v587 = vld [vmem:[%s512 + $0x20] sm:$0xff]
        %v588 = vld [vmem:[%s512 + $0x28] sm:$0xff]
        %v589 = vld [vmem:[%s512 + $0x30] sm:$0xff]
        %v590 = vld [vmem:[%s512 + $0x38] sm:$0xff]
        %v591 = vld [vmem:[%s512 + $0x40] sm:$0xff]
        %v592 = vld [vmem:[%s512 + $0x48] sm:$0xff]
        %v593 = vld [vmem:[%s512 + $0x50] sm:$0xff]
        %v594 = vld [vmem:[%s512 + $0x58] sm:$0xff]
        %v595 = vld [vmem:[%s512 + $0x60] sm:$0xff]
        %v596 = vld [vmem:[%s512 + $0x68] sm:$0xff]
        %v597 = vld [vmem:[%s512 + $0x70] sm:$0xff]
        %v598 = vld [vmem:[%s512 + $0x78] sm:$0xff]
        %v599 = vld [vmem:[%s512 + $0x80] sm:$0xff]
        %v600 = vld [vmem:[%s512 + $0x88] sm:$0xff]
        %v601 = vld [vmem:[%s512 + $0x90] sm:$0xff]
        %v602 = vld [vmem:[%s512 + $0x98] sm:$0xff]
        %v603 = vld [vmem:[%s512 + $0xa0] sm:$0xff]
        %v604 = vld [vmem:[%s512 + $0xa8] sm:$0xff]
        %v605 = vld [vmem:[%s512 + $0xb0] sm:$0xff]
        %v606 = vld [vmem:[%s512 + $0xb8] sm:$0xff]
        %v607 = vld [vmem:[%s512 + $0xc0] sm:$0xff]
        %v608 = vld [vmem:[%s512 + $0xc8] sm:$0xff]
        %v609 = vld [vmem:[%s512 + $0xd0] sm:$0xff]
        %v610 = vld [vmem:[%s512 + $0xd8] sm:$0xff]
        %v611 = vld [vmem:[%s512 + $0xe0] sm:$0xff]
        %v612 = vld [vmem:[%s512 + $0xe8] sm:$0xff]
        %v613 = vld [vmem:[%s512 + $0xf0] sm:$0xff]
        %v614 = vld [vmem:[%s512 + $0xf8] sm:$0xff]
        %v615 = vld [vmem:[%s512 + $0x100] sm:$0xff]
        %v616 = vld [vmem:[%s512 + $0x108] sm:$0xff]
        %v617 = vld [vmem:[%s512 + $0x110] sm:$0xff]
        %v618 = vld [vmem:[%s512 + $0x118] sm:$0xff]
        %v619 = vld [vmem:[%s512 + $0x120] sm:$0xff]
        %v620 = vld [vmem:[%s512 + $0x128] sm:$0xff]
        %v621 = vld [vmem:[%s512 + $0x130] sm:$0xff]
        %v622 = vld [vmem:[%s512 + $0x138] sm:$0xff]
        %v623 = vld [vmem:[%s512 + $0x140] sm:$0xff]
        %v624 = vld [vmem:[%s512 + $0x148] sm:$0xff]
        %v625 = vld [vmem:[%s512 + $0x150] sm:$0xff]
        %v626 = vld [vmem:[%s512 + $0x158] sm:$0xff]
        %v627 = vld [vmem:[%s512 + $0x160] sm:$0xff]
        %v628 = vld [vmem:[%s512 + $0x168] sm:$0xff]
        %v629 = vld [vmem:[%s512 + $0x170] sm:$0xff]
        %v630 = vld [vmem:[%s512 + $0x178] sm:$0xff]
        %v631 = vld [vmem:[%s512 + $0x180] sm:$0xff]
        %v632 = vld [vmem:[%s512 + $0x188] sm:$0xff]
        %v633 = vld [vmem:[%s512 + $0x190] sm:$0xff]
        %v634 = vld [vmem:[%s512 + $0x198] sm:$0xff]
        %v635 = vld [vmem:[%s512 + $0x1a0] sm:$0xff]
        %v636 = vld [vmem:[%s512 + $0x1a8] sm:$0xff]
        %v637 = vld [vmem:[%s512 + $0x1b0] sm:$0xff]
        %v638 = vld [vmem:[%s512 + $0x1b8] sm:$0xff]
        %v639 = vld [vmem:[%s512 + $0x1c0] sm:$0xff]
        %v640 = vld [vmem:[%s512 + $0x1c8] sm:$0xff]
        %v641 = vld [vmem:[%s512 + $0x1d0] sm:$0xff]
        %v642 = vld [vmem:[%s512 + $0x1d8] sm:$0xff]
        %v643 = vld [vmem:[%s512 + $0x1e0] sm:$0xff]
        %v644 = vld [vmem:[%s512 + $0x1e8] sm:$0xff]
        %v645 = vld [vmem:[%s512 + $0x1f0] sm:$0xff]
        %v646 = vld [vmem:[%s512 + $0x1f8] sm:$0xff]
        %v647 = vld [vmem:[%s512 + $0x200] sm:$0xff]
        %v648 = vld [vmem:[%s512 + $0x208] sm:$0xff]
        %v649 = vld [vmem:[%s512 + $0x210] sm:$0xff]
        %v650 = vld [vmem:[%s512 + $0x218] sm:$0xff]
        %v651 = vld [vmem:[%s512 + $0x220] sm:$0xff]
        %v652 = vld [vmem:[%s512 + $0x228] sm:$0xff]
        %v653 = vld [vmem:[%s512 + $0x230] sm:$0xff]
        %v654 = vld [vmem:[%s512 + $0x238] sm:$0xff]
        %v655 = vld [vmem:[%s512 + $0x240] sm:$0xff]
        %v656 = vld [vmem:[%s512 + $0x248] sm:$0xff]
        %v657 = vld [vmem:[%s512 + $0x250] sm:$0xff]
        %v658 = vld [vmem:[%s512 + $0x258] sm:$0xff]
        %v659 = vld [vmem:[%s512 + $0x260] sm:$0xff]
        %v660 = vld [vmem:[%s512 + $0x268] sm:$0xff]
        %v661 = vld [vmem:[%s512 + $0x270] sm:$0xff]
        %v662 = vld [vmem:[%s512 + $0x278] sm:$0xff]
        %v663 = vld [vmem:[%s512 + $0x280] sm:$0xff]
        %v664 = vld [vmem:[%s512 + $0x288] sm:$0xff]
        %v665 = vld [vmem:[%s512 + $0x290] sm:$0xff]
        %v666 = vld [vmem:[%s512 + $0x298] sm:$0xff]
        %v667 = vld [vmem:[%s512 + $0x2a0] sm:$0xff]
        %v668 = vld [vmem:[%s512 + $0x2a8] sm:$0xff]
        %v669 = vld [vmem:[%s512 + $0x2b0] sm:$0xff]
        %v670 = vld [vmem:[%s512 + $0x2b8] sm:$0xff]
        %v671 = vld [vmem:[%s512 + $0x2c0] sm:$0xff]
        %v672 = vld [vmem:[%s512 + $0x2c8] sm:$0xff]
        %v673 = vld [vmem:[%s512 + $0x2d0] sm:$0xff]
        %v674 = vld [vmem:[%s512 + $0x2d8] sm:$0xff]
        %v675 = vld [vmem:[%s512 + $0x2e0] sm:$0xff]
        %v676 = vld [vmem:[%s512 + $0x2e8] sm:$0xff]
        %v677 = vld [vmem:[%s512 + $0x2f0] sm:$0xff]
        %v678 = vld [vmem:[%s512 + $0x2f8] sm:$0xff]
        %v679 = vld [vmem:[%s512 + $0x300] sm:$0xff]
        %v680 = vld [vmem:[%s512 + $0x308] sm:$0xff]
        %v681 = vld [vmem:[%s512 + $0x310] sm:$0xff]
        %v682 = vld [vmem:[%s512 + $0x318] sm:$0xff]
        %v683 = vld [vmem:[%s512 + $0x320] sm:$0xff]
        %v684 = vld [vmem:[%s512 + $0x328] sm:$0xff]
        %v685 = vld [vmem:[%s512 + $0x330] sm:$0xff]
        %v686 = vld [vmem:[%s512 + $0x338] sm:$0xff]
        %v687 = vld [vmem:[%s512 + $0x340] sm:$0xff]
        %v688 = vld [vmem:[%s512 + $0x348] sm:$0xff]
        %v689 = vld [vmem:[%s512 + $0x350] sm:$0xff]
        %v690 = vld [vmem:[%s512 + $0x358] sm:$0xff]
        %v691 = vld [vmem:[%s512 + $0x360] sm:$0xff]
        %v692 = vld [vmem:[%s512 + $0x368] sm:$0xff]
        %v693 = vld [vmem:[%s512 + $0x370] sm:$0xff]
        %v694 = vld [vmem:[%s512 + $0x378] sm:$0xff]
        %v695 = vld [vmem:[%s512 + $0x380] sm:$0xff]
        %v696 = vld [vmem:[%s512 + $0x388] sm:$0xff]
        %v697 = vld [vmem:[%s512 + $0x390] sm:$0xff]
        %v698 = vld [vmem:[%s512 + $0x398] sm:$0xff]
        %v699 = vld [vmem:[%s512 + $0x3a0] sm:$0xff]
        %v700 = vld [vmem:[%s512 + $0x3a8] sm:$0xff]
        %v701 = vld [vmem:[%s512 + $0x3b0] sm:$0xff]
        %v702 = vld [vmem:[%s512 + $0x3b8] sm:$0xff]
        %v703 = vld [vmem:[%s512 + $0x3c0] sm:$0xff]
        %v704 = vld [vmem:[%s512 + $0x3c8] sm:$0xff]
        %v705 = vld [vmem:[%s512 + $0x3d0] sm:$0xff]
        %v706 = vld [vmem:[%s512 + $0x3d8] sm:$0xff]
        %v707 = vld [vmem:[%s512 + $0x3e0] sm:$0xff]
        %v708 = vld [vmem:[%s512 + $0x3e8] sm:$0xff]
        %v709 = vld [vmem:[%s512 + $0x3f0] sm:$0xff]
        %v710 = vld [vmem:[%s512 + $0x3f8] sm:$0xff]
        %v715 = vunpack.c.l.b16 %v579
        %v716 = vunpack.c.h.b16 %v579
        %v717 = vunpack.c.l.b16 %v580
        %v718 = vunpack.c.h.b16 %v580
        %v719 = vunpack.c.l.b16 %v581
        %v720 = vunpack.c.h.b16 %v581
        %v721 = vunpack.c.l.b16 %v582
        %v722 = vunpack.c.h.b16 %v582
        %v723 = vpack.c.b16 %v719, %v715
        %v724 = vpack.c.b16 %v720, %v716
        %v725 = vpack.c.b16 %v721, %v717
        %v726 = vpack.c.b16 %v722, %v718
        %v859 = vunpack.c.l.b16 %v583
        %v860 = vunpack.c.h.b16 %v583
        %v861 = vunpack.c.l.b16 %v584
        %v862 = vunpack.c.h.b16 %v584
        %v863 = vunpack.c.l.b16 %v585
        %v864 = vunpack.c.h.b16 %v585
        %v865 = vunpack.c.l.b16 %v586
        %v866 = vunpack.c.h.b16 %v586
        %v867 = vunpack.c.l.b16 %v587
        %v868 = vunpack.c.h.b16 %v587
        %v869 = vunpack.c.l.b16 %v588
        %v870 = vunpack.c.h.b16 %v588
        %v871 = vunpack.c.l.b16 %v589
        %v872 = vunpack.c.h.b16 %v589
        %v873 = vunpack.c.l.b16 %v590
        %v874 = vunpack.c.h.b16 %v590
        %v875 = vunpack.c.l.b16 %v591
        %v876 = vunpack.c.h.b16 %v591
        %v877 = vunpack.c.l.b16 %v592
        %v878 = vunpack.c.h.b16 %v592
        %v879 = vunpack.c.l.b16 %v593
        %v880 = vunpack.c.h.b16 %v593
        %v881 = vunpack.c.l.b16 %v594
        %v882 = vunpack.c.h.b16 %v594
        %v883 = vunpack.c.l.b16 %v595
        %v884 = vunpack.c.h.b16 %v595
        %v885 = vunpack.c.l.b16 %v596
        %v886 = vunpack.c.h.b16 %v596
        %v887 = vunpack.c.l.b16 %v597
        %v888 = vunpack.c.h.b16 %v597
        %v889 = vunpack.c.l.b16 %v598
        %v890 = vunpack.c.h.b16 %v598
        %v891 = vunpack.c.l.b16 %v599
        %v892 = vunpack.c.h.b16 %v599
        %v893 = vunpack.c.l.b16 %v600
        %v894 = vunpack.c.h.b16 %v600
        %v895 = vunpack.c.l.b16 %v601
        %v896 = vunpack.c.h.b16 %v601
        %v897 = vunpack.c.l.b16 %v602
        %v898 = vunpack.c.h.b16 %v602
        %v899 = vunpack.c.l.b16 %v603
        %v900 = vunpack.c.h.b16 %v603
        %v901 = vunpack.c.l.b16 %v604
        %v902 = vunpack.c.h.b16 %v604
        %v903 = vunpack.c.l.b16 %v605
        %v904 = vunpack.c.h.b16 %v605
        %v905 = vunpack.c.l.b16 %v606
        %v906 = vunpack.c.h.b16 %v606
        %v907 = vunpack.c.l.b16 %v607
        %v908 = vunpack.c.h.b16 %v607
        %v909 = vunpack.c.l.b16 %v608
        %v910 = vunpack.c.h.b16 %v608
        %v911 = vunpack.c.l.b16 %v609
        %v912 = vunpack.c.h.b16 %v609
        %v913 = vunpack.c.l.b16 %v610
        %v914 = vunpack.c.h.b16 %v610
        %v915 = vunpack.c.l.b16 %v611
        %v916 = vunpack.c.h.b16 %v611
        %v917 = vunpack.c.l.b16 %v612
        %v918 = vunpack.c.h.b16 %v612
        %v919 = vunpack.c.l.b16 %v613
        %v920 = vunpack.c.h.b16 %v613
        %v921 = vunpack.c.l.b16 %v614
        %v922 = vunpack.c.h.b16 %v614
        %v923 = vunpack.c.l.b16 %v615
        %v924 = vunpack.c.h.b16 %v615
        %v925 = vunpack.c.l.b16 %v616
        %v926 = vunpack.c.h.b16 %v616
        %v927 = vunpack.c.l.b16 %v617
        %v928 = vunpack.c.h.b16 %v617
        %v929 = vunpack.c.l.b16 %v618
        %v930 = vunpack.c.h.b16 %v618
        %v931 = vunpack.c.l.b16 %v619
        %v932 = vunpack.c.h.b16 %v619
        %v933 = vunpack.c.l.b16 %v620
        %v934 = vunpack.c.h.b16 %v620
        %v935 = vunpack.c.l.b16 %v621
        %v936 = vunpack.c.h.b16 %v621
        %v937 = vunpack.c.l.b16 %v622
        %v938 = vunpack.c.h.b16 %v622
        %v939 = vunpack.c.l.b16 %v623
        %v940 = vunpack.c.h.b16 %v623
        %v941 = vunpack.c.l.b16 %v624
        %v942 = vunpack.c.h.b16 %v624
        %v943 = vunpack.c.l.b16 %v625
        %v944 = vunpack.c.h.b16 %v625
        %v945 = vunpack.c.l.b16 %v626
        %v946 = vunpack.c.h.b16 %v626
        %v947 = vunpack.c.l.b16 %v627
        %v948 = vunpack.c.h.b16 %v627
        %v949 = vunpack.c.l.b16 %v628
        %v950 = vunpack.c.h.b16 %v628
        %v951 = vunpack.c.l.b16 %v629
        %v952 = vunpack.c.h.b16 %v629
        %v953 = vunpack.c.l.b16 %v630
        %v954 = vunpack.c.h.b16 %v630
        %v955 = vunpack.c.l.b16 %v631
        %v956 = vunpack.c.h.b16 %v631
        %v957 = vunpack.c.l.b16 %v632
        %v958 = vunpack.c.h.b16 %v632
        %v959 = vunpack.c.l.b16 %v633
        %v960 = vunpack.c.h.b16 %v633
        %v961 = vunpack.c.l.b16 %v634
        %v962 = vunpack.c.h.b16 %v634
        %v963 = vunpack.c.l.b16 %v635
        %v964 = vunpack.c.h.b16 %v635
        %v965 = vunpack.c.l.b16 %v636
        %v966 = vunpack.c.h.b16 %v636
        %v967 = vunpack.c.l.b16 %v637
        %v968 = vunpack.c.h.b16 %v637
        %v969 = vunpack.c.l.b16 %v638
        %v970 = vunpack.c.h.b16 %v638
        %v971 = vunpack.c.l.b16 %v639
        %v972 = vunpack.c.h.b16 %v639
        %v973 = vunpack.c.l.b16 %v640
        %v974 = vunpack.c.h.b16 %v640
        %v975 = vunpack.c.l.b16 %v641
        %v976 = vunpack.c.h.b16 %v641
        %v977 = vunpack.c.l.b16 %v642
        %v978 = vunpack.c.h.b16 %v642
        %v979 = vunpack.c.l.b16 %v643
        %v980 = vunpack.c.h.b16 %v643
        %v981 = vunpack.c.l.b16 %v644
        %v982 = vunpack.c.h.b16 %v644
        %v983 = vunpack.c.l.b16 %v645
        %v984 = vunpack.c.h.b16 %v645
        %v985 = vunpack.c.l.b16 %v646
        %v986 = vunpack.c.h.b16 %v646
        %v987 = vunpack.c.l.b16 %v647
        %v988 = vunpack.c.h.b16 %v647
        %v989 = vunpack.c.l.b16 %v648
        %v990 = vunpack.c.h.b16 %v648
        %v991 = vunpack.c.l.b16 %v649
        %v992 = vunpack.c.h.b16 %v649
        %v993 = vunpack.c.l.b16 %v650
        %v994 = vunpack.c.h.b16 %v650
        %v995 = vunpack.c.l.b16 %v651
        %v996 = vunpack.c.h.b16 %v651
        %v997 = vunpack.c.l.b16 %v652
        %v998 = vunpack.c.h.b16 %v652
        %v999 = vunpack.c.l.b16 %v653
        %v1000 = vunpack.c.h.b16 %v653
        %v1001 = vunpack.c.l.b16 %v654
        %v1002 = vunpack.c.h.b16 %v654
        %v1003 = vunpack.c.l.b16 %v655
        %v1004 = vunpack.c.h.b16 %v655
        %v1005 = vunpack.c.l.b16 %v656
        %v1006 = vunpack.c.h.b16 %v656
        %v1007 = vunpack.c.l.b16 %v657
        %v1008 = vunpack.c.h.b16 %v657
        %v1009 = vunpack.c.l.b16 %v658
        %v1010 = vunpack.c.h.b16 %v658
        %v1011 = vunpack.c.l.b16 %v659
        %v1012 = vunpack.c.h.b16 %v659
        %v1013 = vunpack.c.l.b16 %v660
        %v1014 = vunpack.c.h.b16 %v660
        %v1015 = vunpack.c.l.b16 %v661
        %v1016 = vunpack.c.h.b16 %v661
        %v1017 = vunpack.c.l.b16 %v662
        %v1018 = vunpack.c.h.b16 %v662
        %v1019 = vunpack.c.l.b16 %v663
        %v1020 = vunpack.c.h.b16 %v663
        %v1021 = vunpack.c.l.b16 %v664
        %v1022 = vunpack.c.h.b16 %v664
        %v1023 = vunpack.c.l.b16 %v665
        %v1024 = vunpack.c.h.b16 %v665
        %v1025 = vunpack.c.l.b16 %v666
        %v1026 = vunpack.c.h.b16 %v666
        %v1027 = vunpack.c.l.b16 %v667
        %v1028 = vunpack.c.h.b16 %v667
        %v1029 = vunpack.c.l.b16 %v668
        %v1030 = vunpack.c.h.b16 %v668
        %v1031 = vunpack.c.l.b16 %v669
        %v1032 = vunpack.c.h.b16 %v669
        %v1033 = vunpack.c.l.b16 %v670
        %v1034 = vunpack.c.h.b16 %v670
        %v1035 = vunpack.c.l.b16 %v671
        %v1036 = vunpack.c.h.b16 %v671
        %v1037 = vunpack.c.l.b16 %v672
        %v1038 = vunpack.c.h.b16 %v672
        %v1039 = vunpack.c.l.b16 %v673
        %v1040 = vunpack.c.h.b16 %v673
        %v1041 = vunpack.c.l.b16 %v674
        %v1042 = vunpack.c.h.b16 %v674
        %v1043 = vunpack.c.l.b16 %v675
        %v1044 = vunpack.c.h.b16 %v675
        %v1045 = vunpack.c.l.b16 %v676
        %v1046 = vunpack.c.h.b16 %v676
        %v1047 = vunpack.c.l.b16 %v677
        %v1048 = vunpack.c.h.b16 %v677
        %v1049 = vunpack.c.l.b16 %v678
        %v1050 = vunpack.c.h.b16 %v678
        %v1051 = vunpack.c.l.b16 %v679
        %v1052 = vunpack.c.h.b16 %v679
        %v1053 = vunpack.c.l.b16 %v680
        %v1054 = vunpack.c.h.b16 %v680
        %v1055 = vunpack.c.l.b16 %v681
        %v1056 = vunpack.c.h.b16 %v681
        %v1057 = vunpack.c.l.b16 %v682
        %v1058 = vunpack.c.h.b16 %v682
        %v1059 = vunpack.c.l.b16 %v683
        %v1060 = vunpack.c.h.b16 %v683
        %v1061 = vunpack.c.l.b16 %v684
        %v1062 = vunpack.c.h.b16 %v684
        %v1063 = vunpack.c.l.b16 %v685
        %v1064 = vunpack.c.h.b16 %v685
        %v1065 = vunpack.c.l.b16 %v686
        %v1066 = vunpack.c.h.b16 %v686
        %v1067 = vunpack.c.l.b16 %v687
        %v1068 = vunpack.c.h.b16 %v687
        %v1069 = vunpack.c.l.b16 %v688
        %v1070 = vunpack.c.h.b16 %v688
        %v1071 = vunpack.c.l.b16 %v689
        %v1072 = vunpack.c.h.b16 %v689
        %v1073 = vunpack.c.l.b16 %v690
        %v1074 = vunpack.c.h.b16 %v690
        %v1075 = vunpack.c.l.b16 %v691
        %v1076 = vunpack.c.h.b16 %v691
        %v1077 = vunpack.c.l.b16 %v692
        %v1078 = vunpack.c.h.b16 %v692
        %v1079 = vunpack.c.l.b16 %v693
        %v1080 = vunpack.c.h.b16 %v693
        %v1081 = vunpack.c.l.b16 %v694
        %v1082 = vunpack.c.h.b16 %v694
        %v1083 = vunpack.c.l.b16 %v695
        %v1084 = vunpack.c.h.b16 %v695
        %v1085 = vunpack.c.l.b16 %v696
        %v1086 = vunpack.c.h.b16 %v696
        %v1087 = vunpack.c.l.b16 %v697
        %v1088 = vunpack.c.h.b16 %v697
        %v1089 = vunpack.c.l.b16 %v698
        %v1090 = vunpack.c.h.b16 %v698
        %v1091 = vunpack.c.l.b16 %v699
        %v1092 = vunpack.c.h.b16 %v699
        %v1093 = vunpack.c.l.b16 %v700
        %v1094 = vunpack.c.h.b16 %v700
        %v1095 = vunpack.c.l.b16 %v701
        %v1096 = vunpack.c.h.b16 %v701
        %v1097 = vunpack.c.l.b16 %v702
        %v1098 = vunpack.c.h.b16 %v702
        %v1099 = vunpack.c.l.b16 %v703
        %v1100 = vunpack.c.h.b16 %v703
        %v1101 = vunpack.c.l.b16 %v704
        %v1102 = vunpack.c.h.b16 %v704
        %v1103 = vunpack.c.l.b16 %v705
        %v1104 = vunpack.c.h.b16 %v705
        %v1105 = vunpack.c.l.b16 %v706
        %v1106 = vunpack.c.h.b16 %v706
        %v1107 = vunpack.c.l.b16 %v707
        %v1108 = vunpack.c.h.b16 %v707
        %v1109 = vunpack.c.l.b16 %v708
        %v1110 = vunpack.c.h.b16 %v708
        %v1111 = vunpack.c.l.b16 %v709
        %v1112 = vunpack.c.h.b16 %v709
        %v1113 = vunpack.c.l.b16 %v710
        %v1114 = vunpack.c.h.b16 %v710
        %v1115 = vpack.c.b16 %v863, %v859
        %v1116 = vpack.c.b16 %v864, %v860
        %v1117 = vpack.c.b16 %v865, %v861
        %v1118 = vpack.c.b16 %v866, %v862
        %v1119 = vpack.c.b16 %v871, %v867
        %v1120 = vpack.c.b16 %v872, %v868
        %v1121 = vpack.c.b16 %v873, %v869
        %v1122 = vpack.c.b16 %v874, %v870
        %v1123 = vpack.c.b16 %v879, %v875
        %v1124 = vpack.c.b16 %v880, %v876
        %v1125 = vpack.c.b16 %v881, %v877
        %v1126 = vpack.c.b16 %v882, %v878
        %v1127 = vpack.c.b16 %v887, %v883
        %v1128 = vpack.c.b16 %v888, %v884
        %v1129 = vpack.c.b16 %v889, %v885
        %v1130 = vpack.c.b16 %v890, %v886
        %v1131 = vpack.c.b16 %v895, %v891
        %v1132 = vpack.c.b16 %v896, %v892
        %v1133 = vpack.c.b16 %v897, %v893
        %v1134 = vpack.c.b16 %v898, %v894
        %v1135 = vpack.c.b16 %v903, %v899
        %v1136 = vpack.c.b16 %v904, %v900
        %v1137 = vpack.c.b16 %v905, %v901
        %v1138 = vpack.c.b16 %v906, %v902
        %v1139 = vpack.c.b16 %v911, %v907
        %v1140 = vpack.c.b16 %v912, %v908
        %v1141 = vpack.c.b16 %v913, %v909
        %v1142 = vpack.c.b16 %v914, %v910
        %v1143 = vpack.c.b16 %v919, %v915
        %v1144 = vpack.c.b16 %v920, %v916
        %v1145 = vpack.c.b16 %v921, %v917
        %v1146 = vpack.c.b16 %v922, %v918
        %v1147 = vpack.c.b16 %v927, %v923
        %v1148 = vpack.c.b16 %v928, %v924
        %v1149 = vpack.c.b16 %v929, %v925
        %v1150 = vpack.c.b16 %v930, %v926
        %v1151 = vpack.c.b16 %v935, %v931
        %v1152 = vpack.c.b16 %v936, %v932
        %v1153 = vpack.c.b16 %v937, %v933
        %v1154 = vpack.c.b16 %v938, %v934
        %v1155 = vpack.c.b16 %v943, %v939
        %v1156 = vpack.c.b16 %v944, %v940
        %v1157 = vpack.c.b16 %v945, %v941
        %v1158 = vpack.c.b16 %v946, %v942
        %v1159 = vpack.c.b16 %v951, %v947
        %v1160 = vpack.c.b16 %v952, %v948
        %v1161 = vpack.c.b16 %v953, %v949
        %v1162 = vpack.c.b16 %v954, %v950
        %v1163 = vpack.c.b16 %v959, %v955
        %v1164 = vpack.c.b16 %v960, %v956
        %v1165 = vpack.c.b16 %v961, %v957
        %v1166 = vpack.c.b16 %v962, %v958
        %v1167 = vpack.c.b16 %v967, %v963
        %v1168 = vpack.c.b16 %v968, %v964
        %v1169 = vpack.c.b16 %v969, %v965
        %v1170 = vpack.c.b16 %v970, %v966
        %v1171 = vpack.c.b16 %v975, %v971
        %v1172 = vpack.c.b16 %v976, %v972
        %v1173 = vpack.c.b16 %v977, %v973
        %v1174 = vpack.c.b16 %v978, %v974
        %v1175 = vpack.c.b16 %v983, %v979
        %v1176 = vpack.c.b16 %v984, %v980
        %v1177 = vpack.c.b16 %v985, %v981
        %v1178 = vpack.c.b16 %v986, %v982
        %v1179 = vpack.c.b16 %v991, %v987
        %v1180 = vpack.c.b16 %v992, %v988
        %v1181 = vpack.c.b16 %v993, %v989
        %v1182 = vpack.c.b16 %v994, %v990
        %v1183 = vpack.c.b16 %v999, %v995
        %v1184 = vpack.c.b16 %v1000, %v996
        %v1185 = vpack.c.b16 %v1001, %v997
        %v1186 = vpack.c.b16 %v1002, %v998
        %v1187 = vpack.c.b16 %v1007, %v1003
        %v1188 = vpack.c.b16 %v1008, %v1004
        %v1189 = vpack.c.b16 %v1009, %v1005
        %v1190 = vpack.c.b16 %v1010, %v1006
        %v1191 = vpack.c.b16 %v1015, %v1011
        %v1192 = vpack.c.b16 %v1016, %v1012
        %v1193 = vpack.c.b16 %v1017, %v1013
        %v1194 = vpack.c.b16 %v1018, %v1014
        %v1195 = vpack.c.b16 %v1023, %v1019
        %v1196 = vpack.c.b16 %v1024, %v1020
        %v1197 = vpack.c.b16 %v1025, %v1021
        %v1198 = vpack.c.b16 %v1026, %v1022
        %v1199 = vpack.c.b16 %v1031, %v1027
        %v1200 = vpack.c.b16 %v1032, %v1028
        %v1201 = vpack.c.b16 %v1033, %v1029
        %v1202 = vpack.c.b16 %v1034, %v1030
        %v1203 = vpack.c.b16 %v1039, %v1035
        %v1204 = vpack.c.b16 %v1040, %v1036
        %v1205 = vpack.c.b16 %v1041, %v1037
        %v1206 = vpack.c.b16 %v1042, %v1038
        %v1207 = vpack.c.b16 %v1047, %v1043
        %v1208 = vpack.c.b16 %v1048, %v1044
        %v1209 = vpack.c.b16 %v1049, %v1045
        %v1210 = vpack.c.b16 %v1050, %v1046
        %v1211 = vpack.c.b16 %v1055, %v1051
        %v1212 = vpack.c.b16 %v1056, %v1052
        %v1213 = vpack.c.b16 %v1057, %v1053
        %v1214 = vpack.c.b16 %v1058, %v1054
        %v1215 = vpack.c.b16 %v1063, %v1059
        %v1216 = vpack.c.b16 %v1064, %v1060
        %v1217 = vpack.c.b16 %v1065, %v1061
        %v1218 = vpack.c.b16 %v1066, %v1062
        %v1219 = vpack.c.b16 %v1071, %v1067
        %v1220 = vpack.c.b16 %v1072, %v1068
        %v1221 = vpack.c.b16 %v1073, %v1069
        %v1222 = vpack.c.b16 %v1074, %v1070
        %v1223 = vpack.c.b16 %v1079, %v1075
        %v1224 = vpack.c.b16 %v1080, %v1076
        %v1225 = vpack.c.b16 %v1081, %v1077
        %v1226 = vpack.c.b16 %v1082, %v1078
        %v1227 = vpack.c.b16 %v1087, %v1083
        %v1228 = vpack.c.b16 %v1088, %v1084
        %v1229 = vpack.c.b16 %v1089, %v1085
        %v1230 = vpack.c.b16 %v1090, %v1086
        %v1231 = vpack.c.b16 %v1095, %v1091
        %v1232 = vpack.c.b16 %v1096, %v1092
        %v1233 = vpack.c.b16 %v1097, %v1093
        %v1234 = vpack.c.b16 %v1098, %v1094
        %v1235 = vpack.c.b16 %v1103, %v1099
        %v1236 = vpack.c.b16 %v1104, %v1100
        %v1237 = vpack.c.b16 %v1105, %v1101
        %v1238 = vpack.c.b16 %v1106, %v1102
        %v1239 = vpack.c.b16 %v1111, %v1107
        %v1240 = vpack.c.b16 %v1112, %v1108
        %v1241 = vpack.c.b16 %v1113, %v1109
        %v1242 = vpack.c.b16 %v1114, %v1110
        %1371 = vmatprep.subr.bf16.mxu0 %v1116
        %1372 = vmatpush1.bf16.msra.mxu0 %v1115
        %1373 = vmatprep.subr.bf16.mxu0 %v1120
        %1374 = vmatpush1.bf16.msra.mxu0 %v1119
        %1375 = vmatprep.subr.bf16.mxu0 %v1124
        %1376 = vmatpush1.bf16.msra.mxu0 %v1123
        %1377 = vmatprep.subr.bf16.mxu0 %v1128
        %1378 = vmatpush1.bf16.msra.mxu0 %v1127
        %1379 = vmatprep.subr.bf16.mxu0 %v1132
        %1380 = vmatpush1.bf16.msra.mxu0 %v1131
        %1381 = vmatprep.subr.bf16.mxu0 %v1136
        %1382 = vmatpush1.bf16.msra.mxu0 %v1135
        %1383 = vmatprep.subr.bf16.mxu0 %v1140
        %1384 = vmatpush1.bf16.msra.mxu0 %v1139
        %1385 = vmatprep.subr.bf16.mxu0 %v1144
        %1386 = vmatpush1.bf16.msra.mxu0 %v1143
        %1387 = vmatprep.subr.bf16.mxu0 %v1148
        %1388 = vmatpush1.bf16.msra.mxu0 %v1147
        %1389 = vmatprep.subr.bf16.mxu0 %v1152
        %1390 = vmatpush1.bf16.msra.mxu0 %v1151
        %1391 = vmatprep.subr.bf16.mxu0 %v1156
        %1392 = vmatpush1.bf16.msra.mxu0 %v1155
        %1393 = vmatprep.subr.bf16.mxu0 %v1160
        %1394 = vmatpush1.bf16.msra.mxu0 %v1159
        %1395 = vmatprep.subr.bf16.mxu0 %v1164
        %1396 = vmatpush1.bf16.msra.mxu0 %v1163
        %1397 = vmatprep.subr.bf16.mxu0 %v1168
        %1398 = vmatpush1.bf16.msra.mxu0 %v1167
        %1399 = vmatprep.subr.bf16.mxu0 %v1172
        %1400 = vmatpush1.bf16.msra.mxu0 %v1171
        %1401 = vmatprep.subr.bf16.mxu0 %v1176
        %1402 = vmatpush1.bf16.msra.mxu0 %v1175
        %1403 = vmatprep.mubr.bf16.mxu0 %v724
        %1404 = vmatmul.mubr.bf16.gmra.mrb[0].mxu0 %v723
        %v1405 = vpop.f32.mrb[0].mxu0
        %v1406 = vadd.f32 0.0, %v1405
        %v1407 = vpop.f32.mrb[0].mxu0
        %v1408 = vadd.f32 0.0, %v1407
        %v1409 = vpop.f32.mrb[0].mxu0
        %v1410 = vadd.f32 0.0, %v1409
        %v1411 = vpop.f32.mrb[0].mxu0
        %v1412 = vadd.f32 0.0, %v1411
        %1413 = vdwg.mxu0
        %1414 = vmatprep.subr.bf16.mxu0 %v1180
        %1415 = vmatpush1.bf16.msra.mxu0 %v1179
        %1416 = vmatprep.subr.bf16.mxu0 %v1184
        %1417 = vmatpush1.bf16.msra.mxu0 %v1183
        %1418 = vmatprep.subr.bf16.mxu0 %v1188
        %1419 = vmatpush1.bf16.msra.mxu0 %v1187
        %1420 = vmatprep.subr.bf16.mxu0 %v1192
        %1421 = vmatpush1.bf16.msra.mxu0 %v1191
        %1422 = vmatprep.subr.bf16.mxu0 %v1196
        %1423 = vmatpush1.bf16.msra.mxu0 %v1195
        %1424 = vmatprep.subr.bf16.mxu0 %v1200
        %1425 = vmatpush1.bf16.msra.mxu0 %v1199
        %1426 = vmatprep.subr.bf16.mxu0 %v1204
        %1427 = vmatpush1.bf16.msra.mxu0 %v1203
        %1428 = vmatprep.subr.bf16.mxu0 %v1208
        %1429 = vmatpush1.bf16.msra.mxu0 %v1207
        %1430 = vmatprep.subr.bf16.mxu0 %v1212
        %1431 = vmatpush1.bf16.msra.mxu0 %v1211
        %1432 = vmatprep.subr.bf16.mxu0 %v1216
        %1433 = vmatpush1.bf16.msra.mxu0 %v1215
        %1434 = vmatprep.subr.bf16.mxu0 %v1220
        %1435 = vmatpush1.bf16.msra.mxu0 %v1219
        %1436 = vmatprep.subr.bf16.mxu0 %v1224
        %1437 = vmatpush1.bf16.msra.mxu0 %v1223
        %1438 = vmatprep.subr.bf16.mxu0 %v1228
        %1439 = vmatpush1.bf16.msra.mxu0 %v1227
        %1440 = vmatprep.subr.bf16.mxu0 %v1232
        %1441 = vmatpush1.bf16.msra.mxu0 %v1231
        %1442 = vmatprep.subr.bf16.mxu0 %v1236
        %1443 = vmatpush1.bf16.msra.mxu0 %v1235
        %1444 = vmatprep.subr.bf16.mxu0 %v1240
        %1445 = vmatpush1.bf16.msra.mxu0 %v1239
        %1446 = vmatprep.mubr.bf16.mxu0 %v726
        %1447 = vmatmul.mubr.bf16.gmra.mrb[0].mxu0 %v725
        %v1448 = vpop.f32.mrb[0].mxu0
        %v1449 = vadd.f32 %v1406, %v1448
        %v1450 = vpop.f32.mrb[0].mxu0
        %v1451 = vadd.f32 %v1408, %v1450
        %v1452 = vpop.f32.mrb[0].mxu0
        %v1453 = vadd.f32 %v1410, %v1452
        %v1454 = vpop.f32.mrb[0].mxu0
        %v1455 = vadd.f32 %v1412, %v1454
        %1456 = vdwg.mxu0
        %1457 = vmatprep.subr.bf16.mxu0 %v1118
        %1458 = vmatpush1.bf16.msra.mxu0 %v1117
        %1459 = vmatprep.subr.bf16.mxu0 %v1122
        %1460 = vmatpush1.bf16.msra.mxu0 %v1121
        %1461 = vmatprep.subr.bf16.mxu0 %v1126
        %1462 = vmatpush1.bf16.msra.mxu0 %v1125
        %1463 = vmatprep.subr.bf16.mxu0 %v1130
        %1464 = vmatpush1.bf16.msra.mxu0 %v1129
        %1465 = vmatprep.subr.bf16.mxu0 %v1134
        %1466 = vmatpush1.bf16.msra.mxu0 %v1133
        %1467 = vmatprep.subr.bf16.mxu0 %v1138
        %1468 = vmatpush1.bf16.msra.mxu0 %v1137
        %1469 = vmatprep.subr.bf16.mxu0 %v1142
        %1470 = vmatpush1.bf16.msra.mxu0 %v1141
        %1471 = vmatprep.subr.bf16.mxu0 %v1146
        %1472 = vmatpush1.bf16.msra.mxu0 %v1145
        %1473 = vmatprep.subr.bf16.mxu0 %v1150
        %1474 = vmatpush1.bf16.msra.mxu0 %v1149
        %1475 = vmatprep.subr.bf16.mxu0 %v1154
        %1476 = vmatpush1.bf16.msra.mxu0 %v1153
        %1477 = vmatprep.subr.bf16.mxu0 %v1158
        %1478 = vmatpush1.bf16.msra.mxu0 %v1157
        %1479 = vmatprep.subr.bf16.mxu0 %v1162
        %1480 = vmatpush1.bf16.msra.mxu0 %v1161
        %1481 = vmatprep.subr.bf16.mxu0 %v1166
        %1482 = vmatpush1.bf16.msra.mxu0 %v1165
        %1483 = vmatprep.subr.bf16.mxu0 %v1170
        %1484 = vmatpush1.bf16.msra.mxu0 %v1169
        %1485 = vmatprep.subr.bf16.mxu0 %v1174
        %1486 = vmatpush1.bf16.msra.mxu0 %v1173
        %1487 = vmatprep.subr.bf16.mxu0 %v1178
        %1488 = vmatpush1.bf16.msra.mxu0 %v1177
        %1489 = vmatprep.mubr.bf16.mxu0 %v724
        %1490 = vmatmul.mubr.bf16.gmra.mrb[0].mxu0 %v723
        %v1491 = vpop.f32.mrb[0].mxu0
        %v1492 = vadd.f32 0.0, %v1491
        %v1493 = vpop.f32.mrb[0].mxu0
        %v1494 = vadd.f32 0.0, %v1493
        %v1495 = vpop.f32.mrb[0].mxu0
        %v1496 = vadd.f32 0.0, %v1495
        %v1497 = vpop.f32.mrb[0].mxu0
        %v1498 = vadd.f32 0.0, %v1497
        %1499 = vdwg.mxu0
        %1500 = vmatprep.subr.bf16.mxu0 %v1182
        %1501 = vmatpush1.bf16.msra.mxu0 %v1181
        %1502 = vmatprep.subr.bf16.mxu0 %v1186
        %1503 = vmatpush1.bf16.msra.mxu0 %v1185
        %1504 = vmatprep.subr.bf16.mxu0 %v1190
        %1505 = vmatpush1.bf16.msra.mxu0 %v1189
        %1506 = vmatprep.subr.bf16.mxu0 %v1194
        %1507 = vmatpush1.bf16.msra.mxu0 %v1193
        %1508 = vmatprep.subr.bf16.mxu0 %v1198
        %1509 = vmatpush1.bf16.msra.mxu0 %v1197
        %1510 = vmatprep.subr.bf16.mxu0 %v1202
        %1511 = vmatpush1.bf16.msra.mxu0 %v1201
        %1512 = vmatprep.subr.bf16.mxu0 %v1206
        %1513 = vmatpush1.bf16.msra.mxu0 %v1205
        %1514 = vmatprep.subr.bf16.mxu0 %v1210
        %1515 = vmatpush1.bf16.msra.mxu0 %v1209
        %1516 = vmatprep.subr.bf16.mxu0 %v1214
        %1517 = vmatpush1.bf16.msra.mxu0 %v1213
        %1518 = vmatprep.subr.bf16.mxu0 %v1218
        %1519 = vmatpush1.bf16.msra.mxu0 %v1217
        %1520 = vmatprep.subr.bf16.mxu0 %v1222
        %1521 = vmatpush1.bf16.msra.mxu0 %v1221
        %1522 = vmatprep.subr.bf16.mxu0 %v1226
        %1523 = vmatpush1.bf16.msra.mxu0 %v1225
        %1524 = vmatprep.subr.bf16.mxu0 %v1230
        %1525 = vmatpush1.bf16.msra.mxu0 %v1229
        %1526 = vmatprep.subr.bf16.mxu0 %v1234
        %1527 = vmatpush1.bf16.msra.mxu0 %v1233
        %1528 = vmatprep.subr.bf16.mxu0 %v1238
        %1529 = vmatpush1.bf16.msra.mxu0 %v1237
        %1530 = vmatprep.subr.bf16.mxu0 %v1242
        %1531 = vmatpush1.bf16.msra.mxu0 %v1241
        %1532 = vmatprep.mubr.bf16.mxu0 %v726
        %1533 = vmatmul.mubr.bf16.gmra.mrb[0].mxu0 %v725
        %v1534 = vpop.f32.mrb[0].mxu0
        %v1535 = vadd.f32 %v1492, %v1534
        %v1536 = vpop.f32.mrb[0].mxu0
        %v1537 = vadd.f32 %v1494, %v1536
        %v1538 = vpop.f32.mrb[0].mxu0
        %v1539 = vadd.f32 %v1496, %v1538
        %v1540 = vpop.f32.mrb[0].mxu0
        %v1541 = vadd.f32 %v1498, %v1540
        %1542 = vdwg.mxu0
        %v1543 = vadd.f32 %v571, %v1449
        %v1544 = vadd.f32 %v572, %v1451
        %v1545 = vadd.f32 %v573, %v1535
        %v1546 = vadd.f32 %v574, %v1537
        %v1547 = vadd.f32 %v575, %v1453
        %v1548 = vadd.f32 %v576, %v1455
        %v1549 = vadd.f32 %v577, %v1539
        %v1550 = vadd.f32 %v578, %v1541
        %1551 = vst [vmem:[%s551] sm:$0xff] %v1543
        %1552 = vst [vmem:[%s551 + $0x8] sm:$0xff] %v1544
        %1553 = vst [vmem:[%s551 + $0x10] sm:$0xff] %v1545
        %1554 = vst [vmem:[%s551 + $0x18] sm:$0xff] %v1546
        %1555 = vst [vmem:[%s551 + $0x20] sm:$0xff] %v1547
        %1556 = vst [vmem:[%s551 + $0x28] sm:$0xff] %v1548
        %1557 = vst [vmem:[%s551 + $0x30] sm:$0xff] %v1549
        %1558 = vst [vmem:[%s551 + $0x38] sm:$0xff] %v1550
        %p1559 = scmp.eq.s32.totalorder %s30, 7
        // Predicated region
        $region68: #{alexnet_cbam3_forward.26} parent=50 // pred_check
          %p1560 = pneg %p1559
        $region69: #{alexnet_cbam3_forward.26} parent=50 // pred_check_branch
          %1562 = sbr.rel (%p1560) target = $region71
        $region70: #{alexnet_cbam3_forward.26} parent=50 // pred_region
          %v1563 = vld [vmem:[%s551] sm:$0xff]
          %v1564 = vld [vmem:[%s551 + $0x8] sm:$0xff]
          %v1565 = vld [vmem:[%s551 + $0x10] sm:$0xff]
          %v1566 = vld [vmem:[%s551 + $0x18] sm:$0xff]
          %v1567 = vld [vmem:[%s551 + $0x20] sm:$0xff]
          %v1568 = vld [vmem:[%s551 + $0x28] sm:$0xff]
          %v1569 = vld [vmem:[%s551 + $0x30] sm:$0xff]
          %v1570 = vld [vmem:[%s551 + $0x38] sm:$0xff]
          %v1571 = vld [vmem:[%s520] sm:$0xf]
          %v1573 = vlaneseq
          %v1574 = vshrl.u32 %v1573, 7
          %v1575 = vsub.s32 0, %v1574
          %v1576 = vrot.slane %v1571, %v1575
          %v1577 = vlaneseq
          %v1578 = vshrl.u32 %v1577, 7
          %v1579 = vsub.s32 1, %v1578
          %v1580 = vrot.slane %v1571, %v1579
          %v1581 = vlaneseq
          %v1582 = vshrl.u32 %v1581, 7
          %v1583 = vsub.s32 2, %v1582
          %v1584 = vrot.slane %v1571, %v1583
          %v1585 = vlaneseq
          %v1586 = vshrl.u32 %v1585, 7
          %v1587 = vsub.s32 3, %v1586
          %v1588 = vrot.slane %v1571, %v1587
          %v1593 = vadd.f32 %v1563, %v1576
          %v1594 = vadd.f32 %v1564, %v1580
          %v1595 = vadd.f32 %v1565, %v1584
          %v1596 = vadd.f32 %v1566, %v1588
          %v1597 = vadd.f32 %v1567, %v1576
          %v1598 = vadd.f32 %v1568, %v1580
          %v1599 = vadd.f32 %v1569, %v1584
          %v1600 = vadd.f32 %v1570, %v1588
          %v1601 = vmax.f32 %v1593, 0.0
          %v1602 = vmax.f32 %v1594, 0.0
          %v1603 = vmax.f32 %v1595, 0.0
          %v1604 = vmax.f32 %v1596, 0.0
          %v1605 = vmax.f32 %v1597, 0.0
          %v1606 = vmax.f32 %v1598, 0.0
          %v1607 = vmax.f32 %v1599, 0.0
          %v1608 = vmax.f32 %v1600, 0.0
          %1609 = vst [vmem:[%s551] sm:$0xff] %v1601
          %1610 = vst [vmem:[%s551 + $0x8] sm:$0xff] %v1602
          %1611 = vst [vmem:[%s551 + $0x10] sm:$0xff] %v1603
          %1612 = vst [vmem:[%s551 + $0x18] sm:$0xff] %v1604
          %1613 = vst [vmem:[%s551 + $0x20] sm:$0xff] %v1605
          %1614 = vst [vmem:[%s551 + $0x28] sm:$0xff] %v1606
          %1615 = vst [vmem:[%s551 + $0x30] sm:$0xff] %v1607
          %1616 = vst [vmem:[%s551 + $0x38] sm:$0xff] %v1608
        $region71: #{alexnet_cbam3_forward.26} parent=50 // pred_fallthru
          _
        %s1617 = sand.u32 %s134, 1
        %s1618 = scalar_lea.sflag [#allocation4], %s1617
        %s1619 = sand.u32 %s134, 1
        %s1620 = smul.addr %s1619, 64
        %s1621 = scalar_lea.vmem [#allocation8], %s1620
        // Predicated region
        $region72: #{alexnet_cbam3_forward.26} parent=50 // pred_check
          %p1622 = pneg %p144
        $region73: #{alexnet_cbam3_forward.26} parent=50 // pred_check_branch
          %1624 = sbr.rel (%p1622) target = $region75
        $region74: #{alexnet_cbam3_forward.26} parent=50 // pred_region
          %s1625 = smul.u32 2, %s28
          %s1626 = smul.u32 4, %s29
          %s1628 = ssub.s32 1024, 1024
          %1629 = vsyncadd %s1618, %s1628
          %s1630 = smul.addr %s1625, 32
          %s1631 = sadd.s32 %s1626, %s1630
          %s1632 = smul.addr %s1631, 128
          %s1633 = scalar_lea.hbm %s3, %s1632
          %s1634 = sshll.u32 %s1621, 4
          %s1635 = int_to_ptr.vmem [resolvable:$true] %s1634
          %1640 = dma.vmem_to_hbm [thread:$0]  %s1635, 1024, %s1633, %s1618, 512, 4096, 32
        $region75: #{alexnet_cbam3_forward.26} parent=50 // pred_fallthru
          _
      $region51: #{alexnet_cbam3_forward.26} parent=5 // pred_fallthru
        _
      %p1641 = scmp.le.s32.totalorder 2, %s18
      // Predicated region
      $region76: #{alexnet_cbam3_forward.26} parent=5 // pred_check
        %p1642 = pneg %p1641
      $region77: #{alexnet_cbam3_forward.26} parent=5 // pred_check_branch
        %1644 = sbr.rel (%p1642) target = $region79
      $region78: #{alexnet_cbam3_forward.26} parent=5 // pred_region
        %s1645 = ssub.s32 %s18, 2
        // Predicated region
        $region80: #{alexnet_cbam3_forward.26} parent=78 // pred_check
          %p1646 = pneg %p150
        $region81: #{alexnet_cbam3_forward.26} parent=78 // pred_check_branch
          %1648 = sbr.rel (%p1646) target = $region83
        $region82: #{alexnet_cbam3_forward.26} parent=78 // pred_region
          %s1649 = sand.u32 %s135, 1
          %s1650 = scalar_lea.sflag [#allocation4], %s1649
          %s1651 = sand.u32 %s135, 1
          %s1652 = smul.addr %s1651, 64
          %s1653 = scalar_lea.vmem [#allocation8], %s1652
          %1654 = dma.done %s1650, 1024
        $region83: #{alexnet_cbam3_forward.26} parent=78 // pred_fallthru
          _
      $region79: #{alexnet_cbam3_forward.26} parent=5 // pred_fallthru
        _
    $region6: #{alexnet_cbam3_forward.26} parent=1 // loop_footer
      %s22 = sadd.s32 1, %s18
    $region7: #{alexnet_cbam3_forward.26} parent=1 // loop_footer_branch
      %17 = sbr.rel target = $region3
    $region8: #{alexnet_cbam3_forward.26} parent=1 // loop_exit
      _
    %1655 = vsyncpa [#allocation3], 1
    %s1656 = scalar_lea.sflag [#allocation3], 1
    %1657 = vsyncpa %s1656, 1
    %1658 = vsyncpa [#allocation7], 1
    %s1659 = scalar_lea.sflag [#allocation7], 1
    %1660 = vsyncpa %s1659, 1
    %1661 = vsyncpa [#allocation4], 1
    %s1662 = scalar_lea.sflag [#allocation4], 1
    %1663 = vsyncpa %s1662, 1

// kernel: alexnet_cbam3_forward.27
$region0: #{alexnet_cbam3_forward.27}
  #allocation0 [shape = 'u32[]', space=smem, size = 0x4, offset = 0x4, fixed_abs, tag = 'smem constant byte address 0x4 - core index']
  #allocation1 [shape = 'u32[144,128]{1,0:T(1,128)}', space=vmem, size = 0x12000, scoped, tag = 'internal scratch']
  %s0 = inlined_call_operand.vmem [shape: bf16[16,4096], index: 0, kind: input, shape index: {}]
  %s1 = inlined_call_operand.vmem [shape: bf16[4096,128], index: 1, kind: input, shape index: {}]
  %s2 = inlined_call_operand.vmem [shape: f32[1,128], index: 2, kind: input, shape index: {}]
  %s3 = inlined_call_operand.vmem [shape: f32[16,128], index: 3, kind: output, shape index: {}]
  %s4 = sld [smem:[#allocation0]]
  $region76: #{alexnet_cbam3_forward.27} parent=0
    _
  %s6 = ssub.s32 1, %s4
  %s7 = scalar_select 0, %s6, %s4
  $region1: #{alexnet_cbam3_forward.27} parent=0
    #allocation2 [shape = 'u8[32768]{0}', space=vmem, size = 0x8000, scoped, tag = 'input window, operand 0']
    loop: start=0, step=1, limit=10
    $region2: #{alexnet_cbam3_forward.27} parent=1 // loop_pre_header
      _
    $region3: #{alexnet_cbam3_forward.27} parent=1 // loop_header
      %s9 = sphi 0, %s13
      %p10 = scmp.ge.s32.totalorder %s9, 10
      %s16 = sphi 0, %s35
      %s17 = sphi 0, %s31
      %s18 = sphi 0, %s27
      %s19 = sphi 0, %s16
      %s20 = sphi 0, %s17
      %s21 = sphi 0, %s18
      %s22 = sphi 0, %s19
      %s23 = sphi 0, %s20
      %s24 = sphi 0, %s21
      %s40 = sphi 0, %s42
      %s43 = sphi 0, %s40
      %s44 = sphi 0, %s43
      %s60 = sphi 0, %s44
      %s68 = sphi 0, %s70
      %s71 = sphi 0, %s68
      %s72 = sphi 0, %s71
      %s88 = sphi 0, %s72
      %s94 = sphi 0, %s96
      %s97 = sphi 0, %s94
      %s98 = sphi 0, %s97
      %s114 = sphi 0, %s98
      %s122 = sphi 0, %s124
      %s125 = sphi 0, %s122
      %s126 = sphi 0, %s125
      %s142 = sphi 0, %s126
    $region4: #{alexnet_cbam3_forward.27} parent=1 // loop_header_branch
      %12 = sbr.rel (%p10) target = $region8
    $region5: #{alexnet_cbam3_forward.27} parent=1 // loop_body
      %s14 = ssub.s32 %s9, 1
      %s15 = ssub.s32 %s9, 2
      %s25 = sadd.s32 1, %s18
      %p26 = scmp.ge.s32.totalorder %s25, 8
      %s27 = scalar_select %p26, 0, %s25
      %s28 = sadd.s32 1, %s17
      %s29 = scalar_select %p26, %s28, %s17
      %p30 = scmp.ge.s32.totalorder %s29, 1
      %s31 = scalar_select %p30, 0, %s29
      %s32 = sadd.s32 1, %s16
      %s33 = scalar_select %p30, %s32, %s16
      %p34 = scmp.ge.s32.totalorder %s33, 1
      %s35 = scalar_select %p34, 0, %s33
      %s36 = ssub.s32 %s16, %s35
      %s37 = ssub.s32 %s18, %s27
      %s38 = sor.u32 %s36, %s37
      %p39 = scmp.eq.s32.totalorder %s38, 0
      %s41 = sadd.s32 %s40, 1
      %s42 = scalar_select %p39, %s40, %s41
      %p45 = pneg %p39
      %p46 = scmp.eq.s32.totalorder %s9, 7
      %p47 = por %p45, %p46
      %p48 = scmp.ne.s32.totalorder %s40, %s43
      %p49 = scmp.eq.s32.totalorder %s9, 0
      %p50 = por %p48, %p49
      %p51 = scmp.ne.s32.totalorder %s40, %s43
      %p52 = scmp.eq.s32.totalorder %s14, 7
      %p53 = por %p51, %p52
      %p54 = scmp.ne.s32.totalorder %s43, %s44
      %p55 = scmp.eq.s32.totalorder %s14, 0
      %p56 = por %p54, %p55
      %p57 = scmp.ne.s32.totalorder %s43, %s44
      %p58 = scmp.eq.s32.totalorder %s15, 7
      %p59 = por %p57, %p58
      %p61 = scmp.ne.s32.totalorder %s44, %s60
      %p62 = scmp.eq.s32.totalorder %s15, 0
      %p63 = por %p61, %p62
      %s64 = ssub.s32 %s18, %s27
      %s65 = ssub.s32 %s17, %s31
      %s66 = sor.u32 %s64, %s65
      %p67 = scmp.eq.s32.totalorder %s66, 0
      %s69 = sadd.s32 %s68, 1
      %s70 = scalar_select %p67, %s68, %s69
      %p73 = pneg %p67
      %p74 = scmp.eq.s32.totalorder %s9, 7
      %p75 = por %p73, %p74
      %p76 = scmp.ne.s32.totalorder %s68, %s71
      %p77 = scmp.eq.s32.totalorder %s9, 0
      %p78 = por %p76, %p77
      %p79 = scmp.ne.s32.totalorder %s68, %s71
      %p80 = scmp.eq.s32.totalorder %s14, 7
      %p81 = por %p79, %p80
      %p82 = scmp.ne.s32.totalorder %s71, %s72
      %p83 = scmp.eq.s32.totalorder %s14, 0
      %p84 = por %p82, %p83
      %p85 = scmp.ne.s32.totalorder %s71, %s72
      %p86 = scmp.eq.s32.totalorder %s15, 7
      %p87 = por %p85, %p86
      %p89 = scmp.ne.s32.totalorder %s72, %s88
      %p90 = scmp.eq.s32.totalorder %s15, 0
      %p91 = por %p89, %p90
      %s92 = ssub.s32 %s17, %s31
      %p93 = scmp.eq.s32.totalorder %s92, 0
      %s95 = sadd.s32 %s94, 1
      %s96 = scalar_select %p93, %s94, %s95
      %p99 = pneg %p93
      %p100 = scmp.eq.s32.totalorder %s9, 7
      %p101 = por %p99, %p100
      %p102 = scmp.ne.s32.totalorder %s94, %s97
      %p103 = scmp.eq.s32.totalorder %s9, 0
      %p104 = por %p102, %p103
      %p105 = scmp.ne.s32.totalorder %s94, %s97
      %p106 = scmp.eq.s32.totalorder %s14, 7
      %p107 = por %p105, %p106
      %p108 = scmp.ne.s32.totalorder %s97, %s98
      %p109 = scmp.eq.s32.totalorder %s14, 0
      %p110 = por %p108, %p109
      %p111 = scmp.ne.s32.totalorder %s97, %s98
      %p112 = scmp.eq.s32.totalorder %s15, 7
      %p113 = por %p111, %p112
      %p115 = scmp.ne.s32.totalorder %s98, %s114
      %p116 = scmp.eq.s32.totalorder %s15, 0
      %p117 = por %p115, %p116
      %s118 = ssub.s32 %s16, %s35
      %s119 = ssub.s32 %s17, %s31
      %s120 = sor.u32 %s118, %s119
      %p121 = scmp.eq.s32.totalorder %s120, 0
      %s123 = sadd.s32 %s122, 1
      %s124 = scalar_select %p121, %s122, %s123
      %p127 = pneg %p121
      %p128 = scmp.eq.s32.totalorder %s9, 7
      %p129 = por %p127, %p128
      %p130 = scmp.ne.s32.totalorder %s122, %s125
      %p131 = scmp.eq.s32.totalorder %s9, 0
      %p132 = por %p130, %p131
      %p133 = scmp.ne.s32.totalorder %s122, %s125
      %p134 = scmp.eq.s32.totalorder %s14, 7
      %p135 = por %p133, %p134
      %p136 = scmp.ne.s32.totalorder %s125, %s126
      %p137 = scmp.eq.s32.totalorder %s14, 0
      %p138 = por %p136, %p137
      %p139 = scmp.ne.s32.totalorder %s125, %s126
      %p140 = scmp.eq.s32.totalorder %s15, 7
      %p141 = por %p139, %p140
      %p143 = scmp.ne.s32.totalorder %s126, %s142
      %p144 = scmp.eq.s32.totalorder %s15, 0
      %p145 = por %p143, %p144
      %p146 = scmp.le.s32.totalorder 1, %s9
      %p147 = scmp.lt.s32.totalorder %s9, 9
      %p148 = pnand %p146, %p147
      %p149 = pneg %p148
      // Predicated region
      $region9: #{alexnet_cbam3_forward.27} parent=5 // pred_check
        _
      $region10: #{alexnet_cbam3_forward.27} parent=5 // pred_check_branch
        %151 = sbr.rel (%p148) target = $region12
      $region11: #{alexnet_cbam3_forward.27} parent=5 // pred_region
        %s152 = ssub.s32 %s9, 1
        // Predicated region
        $region13: #{alexnet_cbam3_forward.27} parent=11 // pred_check
          %p153 = pneg %p110
        $region14: #{alexnet_cbam3_forward.27} parent=11 // pred_check_branch
          %155 = sbr.rel (%p153) target = $region16
        $region15: #{alexnet_cbam3_forward.27} parent=11 // pred_region
          %p156 = scmp.lt.s32.totalorder %s20, 0
          %s157 = scalar_select %p156, %s20, 0
          %s158 = scalar_lea.vmem %s2, %s157
        $region16: #{alexnet_cbam3_forward.27} parent=11 // pred_fallthru
          _
      $region12: #{alexnet_cbam3_forward.27} parent=5 // pred_fallthru
        _
      %p159 = scmp.lt.s32.totalorder %s9, 8
      // Predicated region
      $region17: #{alexnet_cbam3_forward.27} parent=5 // pred_check
        %p160 = pneg %p159
      $region18: #{alexnet_cbam3_forward.27} parent=5 // pred_check_branch
        %162 = sbr.rel (%p160) target = $region20
      $region19: #{alexnet_cbam3_forward.27} parent=5 // pred_region
        // Predicated region
        $region21: #{alexnet_cbam3_forward.27} parent=19 // pred_check
          %p163 = pneg %p50
        $region22: #{alexnet_cbam3_forward.27} parent=19 // pred_check_branch
          %165 = sbr.rel (%p163) target = $region24
        $region23: #{alexnet_cbam3_forward.27} parent=19 // pred_region
          %s166 = sand.u32 %s40, 1
          %s167 = sand.u32 %s40, 1
          %s168 = smul.addr %s167, 32
          %s169 = scalar_lea.vmem [#allocation2], %s168
          %s170 = smul.u32 2, %s16
          %s171 = smul.u32 4, %s18
          %s172 = smul.addr %s170, 32
          %s173 = sadd.s32 %s171, %s172
          %s174 = smul.addr %s173, 4
          %s175 = scalar_lea.vmem %s0, %s174
          // Predicated region
          $region25: #{alexnet_cbam3_forward.27} parent=23 // pred_check
            _
          $region26: #{alexnet_cbam3_forward.27} parent=23 // pred_check_branch
            %177 = sbr.rel (0) target = $region28
          $region27: #{alexnet_cbam3_forward.27} parent=23 // pred_region
            // Predicated region
            $region29: #{alexnet_cbam3_forward.27} parent=27 // pred_check
              _
            $region30: #{alexnet_cbam3_forward.27} parent=27 // pred_check_branch
              %179 = sbr.rel (0) target = $region32
            $region31: #{alexnet_cbam3_forward.27} parent=27 // pred_region
              loop: start=0, step=1, limit=1
              $region33: #{alexnet_cbam3_forward.27} parent=31 // loop_pre_header
                _
              $region34: #{alexnet_cbam3_forward.27} parent=31 // loop_header
                %s181 = sphi 0, %s185
                %p182 = scmp.ge.s32.totalorder %s181, 1
                %s186 = sphi %s175, %s175
                %s187 = sphi %s169, %s169
              $region35: #{alexnet_cbam3_forward.27} parent=31 // loop_header_branch
                %184 = sbr.rel (%p182) target = $region39
              $region36: #{alexnet_cbam3_forward.27} parent=31 // loop_body
                %v188 = vld [vmem:[%s186] sm:$0xff]
                %189 = vst [vmem:[%s187] sm:$0xff] %v188
                %v190 = vld [vmem:[%s186 + $0x8] sm:$0xff]
                %191 = vst [vmem:[%s187 + $0x8] sm:$0xff] %v190
                %v192 = vld [vmem:[%s186 + $0x80] sm:$0xff]
                %193 = vst [vmem:[%s187 + $0x10] sm:$0xff] %v192
                %v194 = vld [vmem:[%s186 + $0x88] sm:$0xff]
                %195 = vst [vmem:[%s187 + $0x18] sm:$0xff] %v194
              $region37: #{alexnet_cbam3_forward.27} parent=31 // loop_footer
                %s185 = sadd.s32 1, %s181
              $region38: #{alexnet_cbam3_forward.27} parent=31 // loop_footer_branch
                %180 = sbr.rel target = $region34
              $region39: #{alexnet_cbam3_forward.27} parent=31 // loop_exit
                _
            $region32: #{alexnet_cbam3_forward.27} parent=27 // pred_fallthru
              _
            // Predicated region
            $region40: #{alexnet_cbam3_forward.27} parent=27 // pred_check
              _
            $region41: #{alexnet_cbam3_forward.27} parent=27 // pred_check_branch
              %197 = sbr.rel target = $region43
            $region42: #{alexnet_cbam3_forward.27} parent=27 // pred_region
              _
            $region43: #{alexnet_cbam3_forward.27} parent=27 // pred_fallthru
              _
          $region28: #{alexnet_cbam3_forward.27} parent=23 // pred_fallthru
            _
          %198 = vnop
        $region24: #{alexnet_cbam3_forward.27} parent=19 // pred_fallthru
          _
        // Predicated region
        $region44: #{alexnet_cbam3_forward.27} parent=19 // pred_check
          %p199 = pneg %p78
        $region45: #{alexnet_cbam3_forward.27} parent=19 // pred_check_branch
          %201 = sbr.rel (%p199) target = $region47
        $region46: #{alexnet_cbam3_forward.27} parent=19 // pred_region
          %s202 = smul.u32 64, %s18
          %p203 = scmp.lt.s32.totalorder %s202, 511
          %s204 = scalar_select %p203, %s202, 511
          %p205 = scmp.lt.s32.totalorder %s17, 0
          %s206 = scalar_select %p205, %s17, 0
          %s207 = sadd.s32 %s206, %s204
          %s208 = smul.addr %s207, 4
          %s209 = scalar_lea.vmem %s1, %s208
          %s210 = smul.u32 64, %s18
        $region47: #{alexnet_cbam3_forward.27} parent=19 // pred_fallthru
          _
      $region20: #{alexnet_cbam3_forward.27} parent=5 // pred_fallthru
        _
      %p211 = scmp.le.s32.totalorder 1, %s9
      %p212 = scmp.lt.s32.totalorder %s9, 9
      %p213 = pnand %p211, %p212
      %p214 = pneg %p213
      // Predicated region
      $region48: #{alexnet_cbam3_forward.27} parent=5 // pred_check
        _
      $region49: #{alexnet_cbam3_forward.27} parent=5 // pred_check_branch
        %216 = sbr.rel (%p213) target = $region51
      $region50: #{alexnet_cbam3_forward.27} parent=5 // pred_region
        %s217 = ssub.s32 %s9, 1
        %s218 = sand.u32 %s43, 1
        %s219 = sand.u32 %s43, 1
        %s220 = smul.addr %s219, 32
        %s221 = scalar_lea.vmem [#allocation2], %s220
        // Predicated region
        $region52: #{alexnet_cbam3_forward.27} parent=50 // pred_check
          %p222 = pneg %p56
        $region53: #{alexnet_cbam3_forward.27} parent=50 // pred_check_branch
          %224 = sbr.rel (%p222) target = $region55
        $region54: #{alexnet_cbam3_forward.27} parent=50 // pred_region
          _
        $region55: #{alexnet_cbam3_forward.27} parent=50 // pred_fallthru
          _
        %s225 = sand.u32 %s43, 1
        %s226 = sand.u32 %s43, 1
        %s227 = smul.addr %s226, 32
        %s228 = scalar_lea.vmem [#allocation2], %s227
        %p229 = pneg %p56
        %p230 = pneg %p53
        %s231 = smul.u32 64, %s21
        %p232 = scmp.lt.s32.totalorder %s231, 511
        %s233 = scalar_select %p232, %s231, 511
        %p234 = scmp.lt.s32.totalorder %s20, 0
        %s235 = scalar_select %p234, %s20, 0
        %s236 = sadd.s32 %s235, %s233
        %s237 = smul.addr %s236, 4
        %s238 = scalar_lea.vmem %s1, %s237
        %p239 = pneg %p84
        %p240 = pneg %p81
        %p241 = scmp.lt.s32.totalorder %s20, 0
        %s242 = scalar_select %p241, %s20, 0
        %s243 = scalar_lea.vmem %s2, %s242
        %p244 = pneg %p110
        %p245 = pneg %p107
        %p246 = pneg %p138
        %p247 = pneg %p135
        %s248 = smul.u32 2, %s19
        %p249 = scmp.lt.s32.totalorder %s248, 1
        %s250 = scalar_select %p249, %s248, 1
        %p251 = scmp.lt.s32.totalorder %s20, 0
        %s252 = scalar_select %p251, %s20, 0
        %s253 = sadd.s32 %s252, %s250
        %s254 = smul.addr %s253, 8
        %s255 = scalar_lea.vmem %s3, %s254
        %s256 = smul.u32 2, %s19
        %s257 = smul.u32 4, %s21
        %s258 = smul.u32 64, %s21
        %p259 = scmp.lt.s32.totalorder %s258, 511
        %s260 = scalar_select %p259, %s258, 511
        %p261 = scmp.lt.s32.totalorder %s20, 0
        %s262 = scalar_select %p261, %s20, 0
        %s263 = sadd.s32 %s262, %s260
        %s264 = smul.addr %s263, 4
        %s265 = scalar_lea.vmem %s1, %s264
        %s266 = smul.u32 64, %s21
        %p267 = scmp.lt.s32.totalorder %s20, 0
        %s268 = scalar_select %p267, %s20, 0
        %s269 = scalar_lea.vmem %s2, %s268
        %s270 = smul.u32 2, %s19
        %p271 = scmp.lt.s32.totalorder %s270, 1
        %s272 = scalar_select %p271, %s270, 1
        %p273 = scmp.lt.s32.totalorder %s20, 0
        %s274 = scalar_select %p273, %s20, 0
        %s275 = sadd.s32 %s274, %s272
        %s276 = smul.addr %s275, 8
        %s277 = scalar_lea.vmem %s3, %s276
        %s278 = smul.u32 2, %s19
        %p280 = scmp.eq.s32.totalorder %s21, 0
        // Predicated region
        $region56: #{alexnet_cbam3_forward.27} parent=50 // pred_check
          %p281 = pneg %p280
        $region57: #{alexnet_cbam3_forward.27} parent=50 // pred_check_branch
          %283 = sbr.rel (%p281) target = $region59
        $region58: #{alexnet_cbam3_forward.27} parent=50 // pred_region
          %284 = vst [vmem:[%s277] sm:$0xff] 0.0
          %285 = vst [vmem:[%s277 + $0x8] sm:$0xff] 0.0
        $region59: #{alexnet_cbam3_forward.27} parent=50 // pred_fallthru
          _
        %v286 = vld [vmem:[%s277] sm:$0xff]
        %v287 = vld [vmem:[%s277 + $0x8] sm:$0xff]
        %v288 = vld [vmem:[%s221] sm:$0xff]
        %v289 = vld [vmem:[%s221 + $0x8] sm:$0xff]
        %v290 = vld [vmem:[%s221 + $0x10] sm:$0xff]
        %v291 = vld [vmem:[%s221 + $0x18] sm:$0xff]
        %v292 = vld [vmem:[%s265] sm:$0xf]
        %v293 = vld [vmem:[%s265 + $0x4] sm:$0xf]
        %v294 = vld [vmem:[%s265 + $0x8] sm:$0xf]
        %v295 = vld [vmem:[%s265 + $0xc] sm:$0xf]
        %v296 = vld [vmem:[%s265 + $0x10] sm:$0xf]
        %v297 = vld [vmem:[%s265 + $0x14] sm:$0xf]
        %v298 = vld [vmem:[%s265 + $0x18] sm:$0xf]
        %v299 = vld [vmem:[%s265 + $0x1c] sm:$0xf]
        %v300 = vld [vmem:[%s265 + $0x20] sm:$0xf]
        %v301 = vld [vmem:[%s265 + $0x24] sm:$0xf]
        %v302 = vld [vmem:[%s265 + $0x28] sm:$0xf]
        %v303 = vld [vmem:[%s265 + $0x2c] sm:$0xf]
        %v304 = vld [vmem:[%s265 + $0x30] sm:$0xf]
        %v305 = vld [vmem:[%s265 + $0x34] sm:$0xf]
        %v306 = vld [vmem:[%s265 + $0x38] sm:$0xf]
        %v307 = vld [vmem:[%s265 + $0x3c] sm:$0xf]
        %v308 = vld [vmem:[%s265 + $0x40] sm:$0xf]
        %v309 = vld [vmem:[%s265 + $0x44] sm:$0xf]
        %v310 = vld [vmem:[%s265 + $0x48] sm:$0xf]
        %v311 = vld [vmem:[%s265 + $0x4c] sm:$0xf]
        %v312 = vld [vmem:[%s265 + $0x50] sm:$0xf]
        %v313 = vld [vmem:[%s265 + $0x54] sm:$0xf]
        %v314 = vld [vmem:[%s265 + $0x58] sm:$0xf]
        %v315 = vld [vmem:[%s265 + $0x5c] sm:$0xf]
        %v316 = vld [vmem:[%s265 + $0x60] sm:$0xf]
        %v317 = vld [vmem:[%s265 + $0x64] sm:$0xf]
        %v318 = vld [vmem:[%s265 + $0x68] sm:$0xf]
        %v319 = vld [vmem:[%s265 + $0x6c] sm:$0xf]
        %v320 = vld [vmem:[%s265 + $0x70] sm:$0xf]
        %v321 = vld [vmem:[%s265 + $0x74] sm:$0xf]
        %v322 = vld [vmem:[%s265 + $0x78] sm:$0xf]
        %v323 = vld [vmem:[%s265 + $0x7c] sm:$0xf]
        %v324 = vld [vmem:[%s265 + $0x80] sm:$0xf]
        %v325 = vld [vmem:[%s265 + $0x84] sm:$0xf]
        %v326 = vld [vmem:[%s265 + $0x88] sm:$0xf]
        %v327 = vld [vmem:[%s265 + $0x8c] sm:$0xf]
        %v328 = vld [vmem:[%s265 + $0x90] sm:$0xf]
        %v329 = vld [vmem:[%s265 + $0x94] sm:$0xf]
        %v330 = vld [vmem:[%s265 + $0x98] sm:$0xf]
        %v331 = vld [vmem:[%s265 + $0x9c] sm:$0xf]
        %v332 = vld [vmem:[%s265 + $0xa0] sm:$0xf]
        %v333 = vld [vmem:[%s265 + $0xa4] sm:$0xf]
        %v334 = vld [vmem:[%s265 + $0xa8] sm:$0xf]
        %v335 = vld [vmem:[%s265 + $0xac] sm:$0xf]
        %v336 = vld [vmem:[%s265 + $0xb0] sm:$0xf]
        %v337 = vld [vmem:[%s265 + $0xb4] sm:$0xf]
        %v338 = vld [vmem:[%s265 + $0xb8] sm:$0xf]
        %v339 = vld [vmem:[%s265 + $0xbc] sm:$0xf]
        %v340 = vld [vmem:[%s265 + $0xc0] sm:$0xf]
        %v341 = vld [vmem:[%s265 + $0xc4] sm:$0xf]
        %v342 = vld [vmem:[%s265 + $0xc8] sm:$0xf]
        %v343 = vld [vmem:[%s265 + $0xcc] sm:$0xf]
        %v344 = vld [vmem:[%s265 + $0xd0] sm:$0xf]
        %v345 = vld [vmem:[%s265 + $0xd4] sm:$0xf]
        %v346 = vld [vmem:[%s265 + $0xd8] sm:$0xf]
        %v347 = vld [vmem:[%s265 + $0xdc] sm:$0xf]
        %v348 = vld [vmem:[%s265 + $0xe0] sm:$0xf]
        %v349 = vld [vmem:[%s265 + $0xe4] sm:$0xf]
        %v350 = vld [vmem:[%s265 + $0xe8] sm:$0xf]
        %v351 = vld [vmem:[%s265 + $0xec] sm:$0xf]
        %v352 = vld [vmem:[%s265 + $0xf0] sm:$0xf]
        %v353 = vld [vmem:[%s265 + $0xf4] sm:$0xf]
        %v354 = vld [vmem:[%s265 + $0xf8] sm:$0xf]
        %v355 = vld [vmem:[%s265 + $0xfc] sm:$0xf]
        %v360 = vunpack.c.l.b16 %v288
        %v361 = vunpack.c.h.b16 %v288
        %v362 = vunpack.c.l.b16 %v289
        %v363 = vunpack.c.h.b16 %v289
        %v364 = vunpack.c.l.b16 %v290
        %v365 = vunpack.c.h.b16 %v290
        %v366 = vunpack.c.l.b16 %v291
        %v367 = vunpack.c.h.b16 %v291
        %v368 = vpack.c.b16 %v364, %v360
        %v369 = vpack.c.b16 %v365, %v361
        %v370 = vpack.c.b16 %v366, %v362
        %v371 = vpack.c.b16 %v367, %v363
        %v440 = vunpack.c.l.b16 %v292
        %v441 = vunpack.c.l.b16 %v293
        %v442 = vunpack.c.l.b16 %v294
        %v443 = vunpack.c.l.b16 %v295
        %v444 = vunpack.c.l.b16 %v296
        %v445 = vunpack.c.l.b16 %v297
        %v446 = vunpack.c.l.b16 %v298
        %v447 = vunpack.c.l.b16 %v299
        %v448 = vunpack.c.l.b16 %v300
        %v449 = vunpack.c.l.b16 %v301
        %v450 = vunpack.c.l.b16 %v302
        %v451 = vunpack.c.l.b16 %v303
        %v452 = vunpack.c.l.b16 %v304
        %v453 = vunpack.c.l.b16 %v305
        %v454 = vunpack.c.l.b16 %v306
        %v455 = vunpack.c.l.b16 %v307
        %v456 = vunpack.c.l.b16 %v308
        %v457 = vunpack.c.l.b16 %v309
        %v458 = vunpack.c.l.b16 %v310
        %v459 = vunpack.c.l.b16 %v311
        %v460 = vunpack.c.l.b16 %v312
        %v461 = vunpack.c.l.b16 %v313
        %v462 = vunpack.c.l.b16 %v314
        %v463 = vunpack.c.l.b16 %v315
        %v464 = vunpack.c.l.b16 %v316
        %v465 = vunpack.c.l.b16 %v317
        %v466 = vunpack.c.l.b16 %v318
        %v467 = vunpack.c.l.b16 %v319
        %v468 = vunpack.c.l.b16 %v320
        %v469 = vunpack.c.l.b16 %v321
        %v470 = vunpack.c.l.b16 %v322
        %v471 = vunpack.c.l.b16 %v323
        %v472 = vunpack.c.l.b16 %v324
        %v473 = vunpack.c.l.b16 %v325
        %v474 = vunpack.c.l.b16 %v326
        %v475 = vunpack.c.l.b16 %v327
        %v476 = vunpack.c.l.b16 %v328
        %v477 = vunpack.c.l.b16 %v329
        %v478 = vunpack.c.l.b16 %v330
        %v479 = vunpack.c.l.b16 %v331
        %v480 = vunpack.c.l.b16 %v332
        %v481 = vunpack.c.l.b16 %v333
        %v482 = vunpack.c.l.b16 %v334
        %v483 = vunpack.c.l.b16 %v335
        %v484 = vunpack.c.l.b16 %v336
        %v485 = vunpack.c.l.b16 %v337
        %v486 = vunpack.c.l.b16 %v338
        %v487 = vunpack.c.l.b16 %v339
        %v488 = vunpack.c.l.b16 %v340
        %v489 = vunpack.c.l.b16 %v341
        %v490 = vunpack.c.l.b16 %v342
        %v491 = vunpack.c.l.b16 %v343
        %v492 = vunpack.c.l.b16 %v344
        %v493 = vunpack.c.l.b16 %v345
        %v494 = vunpack.c.l.b16 %v346
        %v495 = vunpack.c.l.b16 %v347
        %v496 = vunpack.c.l.b16 %v348
        %v497 = vunpack.c.l.b16 %v349
        %v498 = vunpack.c.l.b16 %v350
        %v499 = vunpack.c.l.b16 %v351
        %v500 = vunpack.c.l.b16 %v352
        %v501 = vunpack.c.l.b16 %v353
        %v502 = vunpack.c.l.b16 %v354
        %v503 = vunpack.c.l.b16 %v355
        %v504 = vpack.c.b16 %v441, %v440
        %v505 = vpack.c.b16 %v443, %v442
        %v506 = vpack.c.b16 %v445, %v444
        %v507 = vpack.c.b16 %v447, %v446
        %v508 = vpack.c.b16 %v449, %v448
        %v509 = vpack.c.b16 %v451, %v450
        %v510 = vpack.c.b16 %v453, %v452
        %v511 = vpack.c.b16 %v455, %v454
        %v512 = vpack.c.b16 %v457, %v456
        %v513 = vpack.c.b16 %v459, %v458
        %v514 = vpack.c.b16 %v461, %v460
        %v515 = vpack.c.b16 %v463, %v462
        %v516 = vpack.c.b16 %v465, %v464
        %v517 = vpack.c.b16 %v467, %v466
        %v518 = vpack.c.b16 %v469, %v468
        %v519 = vpack.c.b16 %v471, %v470
        %v520 = vpack.c.b16 %v473, %v472
        %v521 = vpack.c.b16 %v475, %v474
        %v522 = vpack.c.b16 %v477, %v476
        %v523 = vpack.c.b16 %v479, %v478
        %v524 = vpack.c.b16 %v481, %v480
        %v525 = vpack.c.b16 %v483, %v482
        %v526 = vpack.c.b16 %v485, %v484
        %v527 = vpack.c.b16 %v487, %v486
        %v528 = vpack.c.b16 %v489, %v488
        %v529 = vpack.c.b16 %v491, %v490
        %v530 = vpack.c.b16 %v493, %v492
        %v531 = vpack.c.b16 %v495, %v494
        %v532 = vpack.c.b16 %v497, %v496
        %v533 = vpack.c.b16 %v499, %v498
        %v534 = vpack.c.b16 %v501, %v500
        %v535 = vpack.c.b16 %v503, %v502
        %568 = vmatprep.subr.bf16.mxu0 0
        %569 = vmatpush1.bf16.msra.mxu0 %v504
        %570 = vmatprep.subr.bf16.mxu0 0
        %571 = vmatpush1.bf16.msra.mxu0 %v505
        %572 = vmatprep.subr.bf16.mxu0 0
        %573 = vmatpush1.bf16.msra.mxu0 %v506
        %574 = vmatprep.subr.bf16.mxu0 0
        %575 = vmatpush1.bf16.msra.mxu0 %v507
        %576 = vmatprep.subr.bf16.mxu0 0
        %577 = vmatpush1.bf16.msra.mxu0 %v508
        %578 = vmatprep.subr.bf16.mxu0 0
        %579 = vmatpush1.bf16.msra.mxu0 %v509
        %580 = vmatprep.subr.bf16.mxu0 0
        %581 = vmatpush1.bf16.msra.mxu0 %v510
        %582 = vmatprep.subr.bf16.mxu0 0
        %583 = vmatpush1.bf16.msra.mxu0 %v511
        %584 = vmatprep.subr.bf16.mxu0 0
        %585 = vmatpush1.bf16.msra.mxu0 %v512
        %586 = vmatprep.subr.bf16.mxu0 0
        %587 = vmatpush1.bf16.msra.mxu0 %v513
        %588 = vmatprep.subr.bf16.mxu0 0
        %589 = vmatpush1.bf16.msra.mxu0 %v514
        %590 = vmatprep.subr.bf16.mxu0 0
        %591 = vmatpush1.bf16.msra.mxu0 %v515
        %592 = vmatprep.subr.bf16.mxu0 0
        %593 = vmatpush1.bf16.msra.mxu0 %v516
        %594 = vmatprep.subr.bf16.mxu0 0
        %595 = vmatpush1.bf16.msra.mxu0 %v517
        %596 = vmatprep.subr.bf16.mxu0 0
        %597 = vmatpush1.bf16.msra.mxu0 %v518
        %598 = vmatprep.subr.bf16.mxu0 0
        %599 = vmatpush1.bf16.msra.mxu0 %v519
        %600 = vmatprep.mubr.bf16.mxu0 %v369
        %601 = vmatmul.mubr.bf16.gmra.mrb[0].mxu0 %v368
        %v602 = vpop.f32.mrb[0].mxu0
        %v603 = vadd.f32 0.0, %v602
        %v604 = vpop.f32.mrb[0].mxu0
        %v605 = vpop.f32.mrb[0].mxu0
        %v606 = vadd.f32 0.0, %v605
        %v607 = vpop.f32.mrb[0].mxu0
        %608 = vdwg.mxu0
        %609 = vmatprep.subr.bf16.mxu0 0
        %610 = vmatpush1.bf16.msra.mxu0 %v520
        %611 = vmatprep.subr.bf16.mxu0 0
        %612 = vmatpush1.bf16.msra.mxu0 %v521
        %613 = vmatprep.subr.bf16.mxu0 0
        %614 = vmatpush1.bf16.msra.mxu0 %v522
        %615 = vmatprep.subr.bf16.mxu0 0
        %616 = vmatpush1.bf16.msra.mxu0 %v523
        %617 = vmatprep.subr.bf16.mxu0 0
        %618 = vmatpush1.bf16.msra.mxu0 %v524
        %619 = vmatprep.subr.bf16.mxu0 0
        %620 = vmatpush1.bf16.msra.mxu0 %v525
        %621 = vmatprep.subr.bf16.mxu0 0
        %622 = vmatpush1.bf16.msra.mxu0 %v526
        %623 = vmatprep.subr.bf16.mxu0 0
        %624 = vmatpush1.bf16.msra.mxu0 %v527
        %625 = vmatprep.subr.bf16.mxu0 0
        %626 = vmatpush1.bf16.msra.mxu0 %v528
        %627 = vmatprep.subr.bf16.mxu0 0
        %628 = vmatpush1.bf16.msra.mxu0 %v529
        %629 = vmatprep.subr.bf16.mxu0 0
        %630 = vmatpush1.bf16.msra.mxu0 %v530
        %631 = vmatprep.subr.bf16.mxu0 0
        %632 = vmatpush1.bf16.msra.mxu0 %v531
        %633 = vmatprep.subr.bf16.mxu0 0
        %634 = vmatpush1.bf16.msra.mxu0 %v532
        %635 = vmatprep.subr.bf16.mxu0 0
        %636 = vmatpush1.bf16.msra.mxu0 %v533
        %637 = vmatprep.subr.bf16.mxu0 0
        %638 = vmatpush1.bf16.msra.mxu0 %v534
        %639 = vmatprep.subr.bf16.mxu0 0
        %640 = vmatpush1.bf16.msra.mxu0 %v535
        %641 = vmatprep.mubr.bf16.mxu0 %v371
        %642 = vmatmul.mubr.bf16.gmra.mrb[0].mxu0 %v370
        %v643 = vpop.f32.mrb[0].mxu0
        %v644 = vadd.f32 %v603, %v643
        %v645 = vpop.f32.mrb[0].mxu0
        %v646 = vpop.f32.mrb[0].mxu0
        %v647 = vadd.f32 %v606, %v646
        %v648 = vpop.f32.mrb[0].mxu0
        %649 = vdwg.mxu0
        %v650 = vadd.f32 %v286, %v644
        %v651 = vadd.f32 %v287, %v647
        %652 = vst [vmem:[%s277] sm:$0xff] %v650
        %653 = vst [vmem:[%s277 + $0x8] sm:$0xff] %v651
        %p654 = scmp.eq.s32.totalorder %s21, 7
        // Predicated region
        $region60: #{alexnet_cbam3_forward.27} parent=50 // pred_check
          %p655 = pneg %p654
        $region61: #{alexnet_cbam3_forward.27} parent=50 // pred_check_branch
          %657 = sbr.rel (%p655) target = $region63
        $region62: #{alexnet_cbam3_forward.27} parent=50 // pred_region
          %v658 = vld [vmem:[%s277] sm:$0xff]
          %v659 = vld [vmem:[%s277 + $0x8] sm:$0xff]
          %v660 = vld [vmem:[%s269] sm:$0x1]
          %v662 = vlaneseq
          %v663 = vshrl.u32 %v662, 7
          %v664 = vsub.s32 0, %v663
          %v665 = vrot.slane %v660, %v664
          %v667 = vadd.f32 %v658, %v665
          %v668 = vadd.f32 %v659, %v665
          %669 = vst [vmem:[%s277] sm:$0xff] %v667
          %670 = vst [vmem:[%s277 + $0x8] sm:$0xff] %v668
        $region63: #{alexnet_cbam3_forward.27} parent=50 // pred_fallthru
          _
        %s671 = smul.u32 2, %s19
        %p672 = scmp.lt.s32.totalorder %s671, 1
        %s673 = scalar_select %p672, %s671, 1
        %p674 = scmp.lt.s32.totalorder %s20, 0
        %s675 = scalar_select %p674, %s20, 0
        %s676 = sadd.s32 %s675, %s673
        %s677 = smul.addr %s676, 8
        %s678 = scalar_lea.vmem %s3, %s677
        // Predicated region
        $region64: #{alexnet_cbam3_forward.27} parent=50 // pred_check
          %p679 = pneg %p135
        $region65: #{alexnet_cbam3_forward.27} parent=50 // pred_check_branch
          %681 = sbr.rel (%p679) target = $region67
        $region66: #{alexnet_cbam3_forward.27} parent=50 // pred_region
          %s682 = smul.u32 2, %s19
        $region67: #{alexnet_cbam3_forward.27} parent=50 // pred_fallthru
          _
        // Predicated region
        $region68: #{alexnet_cbam3_forward.27} parent=50 // pred_check
          %p683 = pneg %p135
        $region69: #{alexnet_cbam3_forward.27} parent=50 // pred_check_branch
          %685 = sbr.rel (%p683) target = $region71
        $region70: #{alexnet_cbam3_forward.27} parent=50 // pred_region
          %s686 = smul.u32 2, %s19
          %p687 = scmp.lt.s32.totalorder %s686, 1
          %s688 = scalar_select %p687, %s686, 1
          %p689 = scmp.lt.s32.totalorder %s20, 0
          %s690 = scalar_select %p689, %s20, 0
          %s691 = sadd.s32 %s690, %s688
          %s692 = smul.addr %s691, 8
          %s693 = scalar_lea.vmem %s3, %s692
        $region71: #{alexnet_cbam3_forward.27} parent=50 // pred_fallthru
          _
      $region51: #{alexnet_cbam3_forward.27} parent=5 // pred_fallthru
        _
      %p694 = scmp.le.s32.totalorder 2, %s9
      // Predicated region
      $region72: #{alexnet_cbam3_forward.27} parent=5 // pred_check
        %p695 = pneg %p694
      $region73: #{alexnet_cbam3_forward.27} parent=5 // pred_check_branch
        %697 = sbr.rel (%p695) target = $region75
      $region74: #{alexnet_cbam3_forward.27} parent=5 // pred_region
        %s698 = ssub.s32 %s9, 2
      $region75: #{alexnet_cbam3_forward.27} parent=5 // pred_fallthru
        _
    $region6: #{alexnet_cbam3_forward.27} parent=1 // loop_footer
      %s13 = sadd.s32 1, %s9
    $region7: #{alexnet_cbam3_forward.27} parent=1 // loop_footer_branch
      %8 = sbr.rel target = $region3
    $region8: #{alexnet_cbam3_forward.27} parent=1 // loop_exit
      _

</llo_original>
